<compile_context>
chip_gen: v7x
topology: tpu7x:2x2x1
jax: 0.10.0
libtpu: 0.0.40
codegen_flags: <defaults>
</compile_context>

<pallas_src>
import functools

import jax
import jax.numpy as jnp
from jax.experimental import pallas as pl
from jax.experimental.pallas import tpu as pltpu


# ----------------------------------------------------------------------------
# In-kernel helpers (traced inside the fused kernel)
# ----------------------------------------------------------------------------
def _gn_stats(x2, grp, eps):
    """Single-pass GroupNorm stats on an (HW, C) f32 value.

    grp is a block-diagonal (C, C) f32 matrix with 1/(channels-per-group)
    entries; one (2, C) x (C, C) dot turns per-channel E[x], E[x^2] into
    per-group moments broadcast back to channels.
    """
    inv_hw = 1.0 / float(x2.shape[0])
    s1 = jnp.sum(x2, axis=0, keepdims=True) * inv_hw           # (1, C)  E[x]
    s2 = jnp.sum(x2 * x2, axis=0, keepdims=True) * inv_hw      # (1, C)  E[x^2]
    st = jnp.concatenate([s1, s2], axis=0)                     # (2, C)
    g = jnp.dot(st, grp, preferred_element_type=jnp.float32)   # (2, C)
    mu = g[0:1, :]
    var = jnp.maximum(g[1:2, :] - mu * mu, 0.0)                # guard cancellation
    return mu, jax.lax.rsqrt(var + eps)


def _gn_relu(x2, mu, inv, gamma, beta):
    return jnp.maximum((x2 - mu) * inv * gamma + beta, 0.0)


def _conv3x3(pad_ref, w9_ref, h, w, stride):
    """3x3 conv (halo already zero in pad_ref) as 9 MXU tap accumulations."""
    ho = (h + 2 - 3) // stride + 1
    wo = (w + 2 - 3) // stride + 1
    cin = pad_ref.shape[-1]
    cout = w9_ref.shape[-1]
    acc = jnp.zeros((ho * wo, cout), jnp.float32)
    for t in range(9):                                          # static, unrolled
        i, j = t // 3, t % 3
        if stride == 1:
            tap = pad_ref[pl.ds(i, ho), pl.ds(j, wo), :]
        else:
            tap = pad_ref[pl.ds(i, ho, stride), pl.ds(j, wo, stride), :]
        acc = acc + jnp.dot(tap.reshape(ho * wo, cin).astype(jnp.bfloat16),
                            w9_ref[t], preferred_element_type=jnp.float32)
    return acc


def _bottleneck(x, gn_ref, w1_ref, wds_ref, w2_ref, w3_ref, grp, pad_ref,
                h, w, stride, dec_ref, eps):
    """Fused pre-activation ResNetV2 bottleneck on an (HW, Cin) f32 value."""
    bf16 = jnp.bfloat16
    cmid = pad_ref.shape[-1]

    # GN0 + ReLU (shared by main path and projection shortcut)
    mu, inv = _gn_stats(x, grp, eps)
    xp = _gn_relu(x, mu, inv, gn_ref[pl.ds(0, 1), :], gn_ref[pl.ds(1, 1), :])
    xpb = xp.astype(bf16)

    # shortcut: 1x1 StdConv; stride-2 spatial decimation as a 0/1 selection
    # matmul (no VMEM staging round trip).
    if stride == 1:
        xs = xpb
    else:
        xs = jnp.dot(dec_ref[...], xpb,
                     preferred_element_type=jnp.float32).astype(bf16)
    shortcut = jnp.dot(xs, wds_ref[...], preferred_element_type=jnp.float32)

    # conv1: 1x1
    y = jnp.dot(xpb, w1_ref[...], preferred_element_type=jnp.float32)
    mu, inv = _gn_stats(y, grp, eps)
    y = _gn_relu(y, mu, inv, gn_ref[pl.ds(2, 1), :], gn_ref[pl.ds(3, 1), :])

    # conv2: 3x3 (only the interior of the persistent padded scratch is rewritten)
    pad_ref[pl.ds(1, h), pl.ds(1, w), :] = y.reshape(h, w, cmid)
    acc = _conv3x3(pad_ref, w2_ref, h, w, stride)

    # GN2 + ReLU, conv3: 1x1, residual add
    mu, inv = _gn_stats(acc, grp, eps)
    y2 = _gn_relu(acc, mu, inv, gn_ref[pl.ds(4, 1), :], gn_ref[pl.ds(5, 1), :])
    return jnp.dot(y2.astype(bf16), w3_ref[...],
                   preferred_element_type=jnp.float32) + shortcut


# ----------------------------------------------------------------------------
# The single fused kernel: stem -> block1 -> block2 -> head, per sample
# ----------------------------------------------------------------------------
def _fused_kernel(x_ref, mask_ref,
                  stem_w_ref, grp1_ref, grp2_ref,
                  gn1_ref, w1a_ref, wdsa_ref, w2a_ref, w3a_ref,
                  gn2_ref, w1b_ref, wdsb_ref, w2b_ref, w3b_ref, dec_ref,
                  gnf_ref, fcw_ref, fcb_ref, clsw_ref, clsb_ref,
                  o_ref, pad_ref, *, eps):
    bf16 = jnp.bfloat16
    hp, wp, cmid = pad_ref.shape
    h, w = hp - 2, wp - 2

    # Zero only the 1-px halo of the shared conv2 scratch; done every program so
    # it stays correct when the "parallel" grid is split across TensorCores.
    pad_ref[pl.ds(0, 1), :, :] = jnp.zeros((1, wp, cmid), jnp.float32)
    pad_ref[pl.ds(hp - 1, 1), :, :] = jnp.zeros((1, wp, cmid), jnp.float32)
    pad_ref[:, pl.ds(0, 1), :] = jnp.zeros((hp, 1, cmid), jnp.float32)
    pad_ref[:, pl.ds(wp - 1, 1), :] = jnp.zeros((hp, 1, cmid), jnp.float32)

    # --- stem: 3x3 StdConv (stride 1, pad 1) as ONE im2col matmul ---
    x0 = jnp.dot(x_ref[0], stem_w_ref[...],
                 preferred_element_type=jnp.float32)            # (HW, C1)

    grp1 = grp1_ref[...]
    # --- block1: stride 1 ---
    x1 = _bottleneck(x0, gn1_ref, w1a_ref, wdsa_ref, w2a_ref, w3a_ref,
                     grp1, pad_ref, h, w, 1, None, eps)
    # --- block2: stride 2, channel expansion ---
    x2 = _bottleneck(x1, gn2_ref, w1b_ref, wdsb_ref, w2b_ref, w3b_ref,
                     grp1, pad_ref, h, w, 2, dec_ref, eps)

    # --- head: final GN+ReLU -> GAP -> fc -> GELU -> classifier -> masked_fill ---
    mu, inv = _gn_stats(x2, grp2_ref[...], eps)
    xh = _gn_relu(x2, mu, inv, gnf_ref[pl.ds(0, 1), :], gnf_ref[pl.ds(1, 1), :])
    gap = jnp.mean(xh, axis=0, keepdims=True)                   # (1, C2)
    feats = jnp.dot(gap.astype(bf16), fcw_ref[...],
                    preferred_element_type=jnp.float32) + fcb_ref[...]
    # dropout = identity at inference
    # TODO(synk): nn.GELU() default is erf-exact; tanh approximation used.
    g = 0.5 * feats * (1.0 + jnp.tanh(
        0.7978845608028654 * (feats + 0.044715 * feats * feats * feats)))
    logits = jnp.dot(g.astype(bf16), clsw_ref[...],
                     preferred_element_type=jnp.float32) + clsb_ref[...]
    o_ref[0] = jnp.where(mask_ref[0] != 0, -10000.0, logits)


# ----------------------------------------------------------------------------
# Forward wrapper
# ----------------------------------------------------------------------------
def disease_classifier_forward(x_nchw, mask_bool, prep):
    # NCHW (PyTorch) -> NHWC for kernel compute.
    x = jnp.transpose(x_nchw, (0, 2, 3, 1)).astype(jnp.float32)
    n, h, w, cin = x.shape
    ncls = mask_bool.shape[-1]
    kpad = prep["stem_w"].shape[0]
    c1 = prep["stem_w"].shape[-1]
    c2 = prep["gnf"].shape[-1]
    nbf = prep["fc_w"].shape[-1]
    ncls_pad = prep["cls_w"].shape[-1]
    dec_r, dec_c = prep["dec2"].shape
    b1, b2 = prep["block1"], prep["block2"]
    assert b1["w1"].shape[1] == c1 and b2["w1"].shape[1] == c1  # shared pad scratch

    # Stem im2col in the wrapper (Cin=3 would otherwise be near-empty MXU pushes);
    # K zero-padded 27 -> 32 and cast to bf16 for the MXU.
    xpad = jnp.pad(x, ((0, 0), (1, 1), (1, 1), (0, 0)))
    cols = [xpad[:, i:i + h, j:j + w, :] for i in range(3) for j in range(3)]
    xim = jnp.concatenate(cols, axis=-1).reshape(n, h * w, 9 * cin)
    xim = jnp.pad(xim, ((0, 0), (0, 0), (0, kpad - 9 * cin))).astype(jnp.bfloat16)

    # Mask lane-padded to the padded classifier width (padded cols sliced off below).
    mask = jnp.pad(mask_bool.astype(jnp.int32),
                   ((0, 0), (0, ncls_pad - ncls))).reshape(n, 1, ncls_pad)

    kern = functools.partial(_fused_kernel, eps=1e-5)
    out = pl.pallas_call(
        kern,
        out_shape=jax.ShapeDtypeStruct((n, 1, ncls_pad), jnp.float32),
        grid=(n,),
        in_specs=[
            pl.BlockSpec((1, h * w, kpad), lambda i: (i, 0, 0)),   # im2col'd image
            pl.BlockSpec((1, 1, ncls_pad), lambda i: (i, 0, 0)),   # class mask
            pl.BlockSpec((kpad, c1), lambda i: (0, 0)),            # stem weight
            pl.BlockSpec((c1, c1), lambda i: (0, 0)),              # group matrix C1
            pl.BlockSpec((c2, c2), lambda i: (0, 0)),              # group matrix C2
            pl.BlockSpec((6, c1), lambda i: (0, 0)),               # block1 GN params
            pl.BlockSpec((c1, c1), lambda i: (0, 0)),              # block1 w1
            pl.BlockSpec((c1, c1), lambda i: (0, 0)),              # block1 wds
            pl.BlockSpec((9, c1, c1), lambda i: (0, 0, 0)),        # block1 w2 taps
            pl.BlockSpec((c1, c1), lambda i: (0, 0)),              # block1 w3
            pl.BlockSpec((6, c1), lambda i: (0, 0)),               # block2 GN params
            pl.BlockSpec((c1, c1), lambda i: (0, 0)),              # block2 w1
            pl.BlockSpec((c1, c2), lambda i: (0, 0)),              # block2 wds
            pl.BlockSpec((9, c1, c1), lambda i: (0, 0, 0)),        # block2 w2 taps
            pl.BlockSpec((c1, c2), lambda i: (0, 0)),              # block2 w3
            pl.BlockSpec((dec_r, dec_c), lambda i: (0, 0)),        # stride-2 selection
            pl.BlockSpec((2, c2), lambda i: (0, 0)),               # final GN params
            pl.BlockSpec((c2, nbf), lambda i: (0, 0)),             # base fc W^T
            pl.BlockSpec((1, nbf), lambda i: (0, 0)),              # base fc bias
            pl.BlockSpec((nbf, ncls_pad), lambda i: (0, 0)),       # classifier W^T (padded)
            pl.BlockSpec((1, ncls_pad), lambda i: (0, 0)),         # classifier bias (padded)
        ],
        out_specs=pl.BlockSpec((1, 1, ncls_pad), lambda i: (i, 0, 0)),
        scratch_shapes=[pltpu.VMEM((h + 2, w + 2, c1), jnp.float32)],  # shared conv2 pad
        compiler_params=pltpu.CompilerParams(dimension_semantics=("parallel",)),
    )(xim, mask, prep["stem_w"], prep["grp1"], prep["grp2"],
      b1["gn"], b1["w1"], b1["wds"], b1["w2"], b1["w3"],
      b2["gn"], b2["w1"], b2["wds"], b2["w2"], b2["w3"], prep["dec2"],
      prep["gnf"], prep["fc_w"], prep["fc_b"], prep["cls_w"], prep["cls_b"])
    return out.reshape(n, ncls_pad)[:, :ncls]


# ----------------------------------------------------------------------------
# Parameter init (raw PyTorch-like weights) + one-time inference preparation
# ----------------------------------------------------------------------------
def init_params(key, *, num_base_features=128, num_classes=13):
    keys = iter(jax.random.split(key, 64))

    def conv_w(cout, cin, k):
        scale = 1.0 / (cin * k * k) ** 0.5
        return scale * jax.random.normal(next(keys), (cout, cin, k, k), jnp.float32)

    def gn(c):
        g = 1.0 + 0.02 * jax.random.normal(next(keys), (c,), jnp.float32)
        b = 0.02 * jax.random.normal(next(keys), (c,), jnp.float32)
        return g, b

    def block(cin, cmid, cout):
        p = {}
        p["gn0_g"], p["gn0_b"] = gn(cin)
        p["w1"] = conv_w(cmid, cin, 1)
        p["gn1_g"], p["gn1_b"] = gn(cmid)
        p["w2"] = conv_w(cmid, cmid, 3)
        p["gn2_g"], p["gn2_b"] = gn(cmid)
        p["w3"] = conv_w(cout, cmid, 1)
        p["wds"] = conv_w(cout, cin, 1)
        return p

    params = {
        "stem_w": conv_w(128, 3, 3),
        "block1": block(128, 128, 128),
        "block2": block(128, 128, 256),
    }
    params["final_g"], params["final_b"] = gn(256)
    params["fc_w"] = (1.0 / 256 ** 0.5) * jax.random.normal(
        next(keys), (256, num_base_features), jnp.float32)                 # Linear W^T
    params["fc_b"] = 0.01 * jax.random.normal(next(keys), (num_base_features,), jnp.float32)
    params["head_w"] = (1.0 / num_base_features ** 0.5) * jax.random.normal(
        next(keys), (num_base_features, num_classes), jnp.float32)         # Linear W^T
    params["head_b"] = 0.01 * jax.random.normal(next(keys), (num_classes,), jnp.float32)
    return params


def _standardize(w_oihw, eps=1e-6):
    # BiT StdConv2d: standardize over (Cin, kh, kw) per output channel.
    mean = w_oihw.mean(axis=(1, 2, 3), keepdims=True)
    var = w_oihw.var(axis=(1, 2, 3), keepdims=True)
    return (w_oihw - mean) * jax.lax.rsqrt(var + eps)


def _conv1x1_to_mm(w):
    return jnp.transpose(w[:, :, 0, 0], (1, 0))                  # (Cin, Cout)


def _conv3x3_to_taps(w):
    cout, cin, kh, kw = w.shape
    return jnp.transpose(w, (2, 3, 1, 0)).reshape(kh * kw, cin, cout)


def _group_matrix(c, groups):
    cg = c // groups
    gid = jnp.arange(c, dtype=jnp.int32) // cg
    return (gid[:, None] == gid[None, :]).astype(jnp.float32) / float(cg)


def _decimation_matrix(h, w, stride):
    ho, wo = h // stride, w // stride
    r = jnp.arange(ho * wo, dtype=jnp.int32)
    src = (r // wo) * stride * w + (r % wo) * stride
    cols = jnp.arange(h * w, dtype=jnp.int32)
    return (src[:, None] == cols[None, :]).astype(jnp.bfloat16)


def prepare_params(params, *, groups=32, h=16, w=16, ncls_pad=128, stem_k_pad=32):
    """One-time prep: weight standardization, bf16 matmul layouts, GN matrices."""
    bf16 = jnp.bfloat16

    def prep_block(p):
        gn = jnp.stack([p["gn0_g"], p["gn0_b"], p["gn1_g"], p["gn1_b"],
                        p["gn2_g"], p["gn2_b"]], axis=0).astype(jnp.float32)
        return {
            "gn": gn,
            "w1": _conv1x1_to_mm(_standardize(p["w1"])).astype(bf16),
            "wds": _conv1x1_to_mm(_standardize(p["wds"])).astype(bf16),
            "w2": _conv3x3_to_taps(_standardize(p["w2"])).astype(bf16),
            "w3": _conv1x1_to_mm(_standardize(p["w3"])).astype(bf16),
        }

    c1 = params["stem_w"].shape[0]
    c2 = params["final_g"].shape[0]
    cin = params["stem_w"].shape[1]
    ncls = params["head_w"].shape[1]

    stem = _conv3x3_to_taps(_standardize(params["stem_w"])).reshape(9 * cin, c1)
    stem = jnp.pad(stem, ((0, stem_k_pad - 9 * cin), (0, 0))).astype(bf16)

    cls_w = jnp.pad(params["head_w"], ((0, 0), (0, ncls_pad - ncls))).astype(bf16)
    cls_b = jnp.pad(params["head_b"], ((0, ncls_pad - ncls),)).reshape(1, ncls_pad)

    return {
        "stem_w": stem,                                   # (32, 128) bf16
        "grp1": _group_matrix(c1, groups),                # (128, 128) f32
        "grp2": _group_matrix(c2, groups),                # (256, 256) f32
        "block1": prep_block(params["block1"]),
        "block2": prep_block(params["block2"]),
        "dec2": _decimation_matrix(h, w, 2),              # (64, 256) bf16
        "gnf": jnp.stack([params["final_g"], params["final_b"]], axis=0),  # (2, 256)
        "fc_w": params["fc_w"].astype(bf16),              # (256, 128) bf16
        "fc_b": params["fc_b"].reshape(1, -1),            # (1, 128) f32
        "cls_w": cls_w,                                   # (128, 128) bf16
        "cls_b": cls_b,                                   # (1, 128) f32
    }


if __name__ == "__main__":
    key = jax.random.PRNGKey(0)
    kx, km, kp = jax.random.split(key, 3)

    x = jax.random.normal(kx, (2, 3, 16, 16), jnp.float32)   # NCHW image, like PyTorch
    mask = jax.random.bernoulli(km, 0.3, (2, 13))            # bool mask for masked_fill_
    params = init_params(kp, num_base_features=128, num_classes=13)
    prep = prepare_params(params, groups=32, h=16, w=16)

    fwd = jax.jit(disease_classifier_forward)
    out = jax.block_until_ready(fwd(x, mask, prep))

    assert out.shape == (2, 13) and out.dtype == jnp.float32
    # masked positions must be exactly -10000.0
    assert bool(jnp.all(jnp.where(mask, out == -10000.0, True)))
    print("KERNEL_OK")
</pallas_src>

<mosaic_0001>
module attributes {stable_mosaic.version = 11 : i64} {
  func.func @_fused_kernel(%arg0: i32, %arg1: memref<1x256x32xbf16, #tpu.memory_space<vmem>>, %arg2: memref<1x1x128xi32, #tpu.memory_space<vmem>>, %arg3: memref<32x128xbf16, #tpu.memory_space<vmem>>, %arg4: memref<128x128xf32, #tpu.memory_space<vmem>>, %arg5: memref<256x256xf32, #tpu.memory_space<vmem>>, %arg6: memref<6x128xf32, #tpu.memory_space<vmem>>, %arg7: memref<128x128xbf16, #tpu.memory_space<vmem>>, %arg8: memref<128x128xbf16, #tpu.memory_space<vmem>>, %arg9: memref<9x128x128xbf16, #tpu.memory_space<vmem>>, %arg10: memref<128x128xbf16, #tpu.memory_space<vmem>>, %arg11: memref<6x128xf32, #tpu.memory_space<vmem>>, %arg12: memref<128x128xbf16, #tpu.memory_space<vmem>>, %arg13: memref<128x256xbf16, #tpu.memory_space<vmem>>, %arg14: memref<9x128x128xbf16, #tpu.memory_space<vmem>>, %arg15: memref<128x256xbf16, #tpu.memory_space<vmem>>, %arg16: memref<64x256xbf16, #tpu.memory_space<vmem>>, %arg17: memref<2x256xf32, #tpu.memory_space<vmem>>, %arg18: memref<256x128xbf16, #tpu.memory_space<vmem>>, %arg19: memref<1x128xf32, #tpu.memory_space<vmem>>, %arg20: memref<128x128xbf16, #tpu.memory_space<vmem>>, %arg21: memref<1x128xf32, #tpu.memory_space<vmem>>, %arg22: memref<1x1x128xf32, #tpu.memory_space<vmem>>, %arg23: memref<18x18x128xf32, #tpu.memory_space<vmem>>) attributes {dimension_semantics = [#tpu.dimension_semantics<parallel>], iteration_bounds = array<i64: 2>, scalar_prefetch = 0 : i64, scratch_operands = 1 : i64, tpu.core_type = #tpu.core_type<tc>, window_params = [{transform_indices = @transform_0, window_bounds = array<i64: 1, 256, 32>}, {transform_indices = @transform_1, window_bounds = array<i64: 1, 1, 128>}, {pipeline_mode = #tpu.pipeline_mode<synchronous>, transform_indices = @transform_2, window_bounds = array<i64: 32, 128>}, {pipeline_mode = #tpu.pipeline_mode<synchronous>, transform_indices = @transform_3, window_bounds = array<i64: 128, 128>}, {pipeline_mode = #tpu.pipeline_mode<synchronous>, transform_indices = @transform_4, window_bounds = array<i64: 256, 256>}, {pipeline_mode = #tpu.pipeline_mode<synchronous>, transform_indices = @transform_5, window_bounds = array<i64: 6, 128>}, {pipeline_mode = #tpu.pipeline_mode<synchronous>, transform_indices = @transform_6, window_bounds = array<i64: 128, 128>}, {pipeline_mode = #tpu.pipeline_mode<synchronous>, transform_indices = @transform_7, window_bounds = array<i64: 128, 128>}, {pipeline_mode = #tpu.pipeline_mode<synchronous>, transform_indices = @transform_8, window_bounds = array<i64: 9, 128, 128>}, {pipeline_mode = #tpu.pipeline_mode<synchronous>, transform_indices = @transform_9, window_bounds = array<i64: 128, 128>}, {pipeline_mode = #tpu.pipeline_mode<synchronous>, transform_indices = @transform_10, window_bounds = array<i64: 6, 128>}, {pipeline_mode = #tpu.pipeline_mode<synchronous>, transform_indices = @transform_11, window_bounds = array<i64: 128, 128>}, {pipeline_mode = #tpu.pipeline_mode<synchronous>, transform_indices = @transform_12, window_bounds = array<i64: 128, 256>}, {pipeline_mode = #tpu.pipeline_mode<synchronous>, transform_indices = @transform_13, window_bounds = array<i64: 9, 128, 128>}, {pipeline_mode = #tpu.pipeline_mode<synchronous>, transform_indices = @transform_14, window_bounds = array<i64: 128, 256>}, {pipeline_mode = #tpu.pipeline_mode<synchronous>, transform_indices = @transform_15, window_bounds = array<i64: 64, 256>}, {pipeline_mode = #tpu.pipeline_mode<synchronous>, transform_indices = @transform_16, window_bounds = array<i64: 2, 256>}, {pipeline_mode = #tpu.pipeline_mode<synchronous>, transform_indices = @transform_17, window_bounds = array<i64: 256, 128>}, {pipeline_mode = #tpu.pipeline_mode<synchronous>, transform_indices = @transform_18, window_bounds = array<i64: 1, 128>}, {pipeline_mode = #tpu.pipeline_mode<synchronous>, transform_indices = @transform_19, window_bounds = array<i64: 128, 128>}, {pipeline_mode = #tpu.pipeline_mode<synchronous>, transform_indices = @transform_20, window_bounds = array<i64: 1, 128>}, {transform_indices = @transform_21, window_bounds = array<i64: 1, 1, 128>}]} {
    %cst = arith.constant 0.000000e+00 : f32
    %0 = vector.broadcast %cst : f32 to vector<1x18x128xf32>
    %c0 = arith.constant 0 : index
    %c0_0 = arith.constant 0 : index
    %c0_1 = arith.constant 0 : index
    %1 = vector.load %arg23[%c0, %c0_0, %c0_1] : memref<18x18x128xf32, #tpu.memory_space<vmem>>, vector<1x18x128xf32>
    tpu.vector_store %arg23[%c0, %c0_0, %c0_1], %0 {strides = array<i32>} : memref<18x18x128xf32, #tpu.memory_space<vmem>>, vector<1x18x128xf32>,
    %cst_2 = arith.constant 0.000000e+00 : f32
    %2 = vector.broadcast %cst_2 : f32 to vector<1x18x128xf32>
    %c17 = arith.constant 17 : index
    %c0_3 = arith.constant 0 : index
    %c0_4 = arith.constant 0 : index
    %3 = vector.load %arg23[%c17, %c0_3, %c0_4] : memref<18x18x128xf32, #tpu.memory_space<vmem>>, vector<1x18x128xf32>
    tpu.vector_store %arg23[%c17, %c0_3, %c0_4], %2 {strides = array<i32>} : memref<18x18x128xf32, #tpu.memory_space<vmem>>, vector<1x18x128xf32>,
    %cst_5 = arith.constant 0.000000e+00 : f32
    %4 = vector.broadcast %cst_5 : f32 to vector<18x1x128xf32>
    %c0_6 = arith.constant 0 : index
    %c0_7 = arith.constant 0 : index
    %c0_8 = arith.constant 0 : index
    %5 = vector.load %arg23[%c0_6, %c0_7, %c0_8] : memref<18x18x128xf32, #tpu.memory_space<vmem>>, vector<18x1x128xf32>
    tpu.vector_store %arg23[%c0_6, %c0_7, %c0_8], %4 {strides = array<i32>} : memref<18x18x128xf32, #tpu.memory_space<vmem>>, vector<18x1x128xf32>,
    %cst_9 = arith.constant 0.000000e+00 : f32
    %6 = vector.broadcast %cst_9 : f32 to vector<18x1x128xf32>
    %c0_10 = arith.constant 0 : index
    %c17_11 = arith.constant 17 : index
    %c0_12 = arith.constant 0 : index
    %7 = vector.load %arg23[%c0_10, %c17_11, %c0_12] : memref<18x18x128xf32, #tpu.memory_space<vmem>>, vector<18x1x128xf32>
    tpu.vector_store %arg23[%c0_10, %c17_11, %c0_12], %6 {strides = array<i32>} : memref<18x18x128xf32, #tpu.memory_space<vmem>>, vector<18x1x128xf32>,
    %c0_13 = arith.constant 0 : index
    %c0_14 = arith.constant 0 : index
    %c0_15 = arith.constant 0 : index
    %8 = vector.load %arg1[%c0_13, %c0_14, %c0_15] : memref<1x256x32xbf16, #tpu.memory_space<vmem>>, vector<1x256x32xbf16>
    %9 = vector.shape_cast %8 : vector<1x256x32xbf16> to vector<256x32xbf16>
    %c0_16 = arith.constant 0 : index
    %c0_17 = arith.constant 0 : index
    %10 = vector.load %arg3[%c0_16, %c0_17] : memref<32x128xbf16, #tpu.memory_space<vmem>>, vector<32x128xbf16>
    %cst_18 = arith.constant dense<0.000000e+00> : vector<256x128xf32>
    %11 = tpu.matmul %9, %10, %cst_18 {dimension_numbers = #tpu.dot_dimension_numbers<[1], [0], [0], [1], [0, 0, 1, 1], [], []>} : vector<256x32xbf16>, vector<32x128xbf16>, vector<256x128xf32> -> vector<256x128xf32>
    %c0_19 = arith.constant 0 : index
    %c0_20 = arith.constant 0 : index
    %12 = vector.load %arg4[%c0_19, %c0_20] : memref<128x128xf32, #tpu.memory_space<vmem>>, vector<128x128xf32>
    %cst_21 = arith.constant dense<0.000000e+00> : vector<128xf32>
    %13 = vector.multi_reduction <add>, %11, %cst_21 [0] : vector<256x128xf32> to vector<128xf32>
    %14 = vector.shape_cast %13 : vector<128xf32> to vector<1x128xf32>
    %cst_22 = arith.constant 3.906250e-03 : f32
    %15 = vector.broadcast %cst_22 : f32 to vector<1x128xf32>
    %16 = arith.mulf %14, %15 : vector<1x128xf32>
    %17 = arith.mulf %11, %11 : vector<256x128xf32>
    %cst_23 = arith.constant dense<0.000000e+00> : vector<128xf32>
    %18 = vector.multi_reduction <add>, %17, %cst_23 [0] : vector<256x128xf32> to vector<128xf32>
    %19 = vector.shape_cast %18 : vector<128xf32> to vector<1x128xf32>
    %cst_24 = arith.constant 3.906250e-03 : f32
    %20 = vector.broadcast %cst_24 : f32 to vector<1x128xf32>
    %21 = arith.mulf %19, %20 : vector<1x128xf32>
    %22 = tpu.concatenate %16, %21 in 0 : vector<1x128xf32>, vector<1x128xf32> -> vector<2x128xf32>
    %cst_25 = arith.constant dense<0.000000e+00> : vector<2x128xf32>
    %23 = tpu.matmul %22, %12, %cst_25 {dimension_numbers = #tpu.dot_dimension_numbers<[1], [0], [0], [1], [0, 0, 1, 1], [], []>} : vector<2x128xf32>, vector<128x128xf32>, vector<2x128xf32> -> vector<2x128xf32>
    %24 = vector.extract_strided_slice %23 {offsets = [0, 0], sizes = [1, 128], strides = [1, 1]} : vector<2x128xf32> to vector<1x128xf32>
    %25 = vector.extract_strided_slice %23 {offsets = [1, 0], sizes = [1, 128], strides = [1, 1]} : vector<2x128xf32> to vector<1x128xf32>
    %26 = arith.mulf %24, %24 : vector<1x128xf32>
    %27 = arith.subf %25, %26 : vector<1x128xf32>
    %cst_26 = arith.constant 0.000000e+00 : f32
    %28 = vector.broadcast %cst_26 : f32 to vector<1x128xf32>
    %29 = arith.maximumf %27, %28 : vector<1x128xf32>
    %cst_27 = arith.constant 9.99999974E-6 : f32
    %30 = vector.broadcast %cst_27 : f32 to vector<1x128xf32>
    %31 = arith.addf %29, %30 : vector<1x128xf32>
    %32 = math.rsqrt %31 : vector<1x128xf32>
    %c0_28 = arith.constant 0 : index
    %c0_29 = arith.constant 0 : index
    %33 = vector.load %arg6[%c0_28, %c0_29] : memref<6x128xf32, #tpu.memory_space<vmem>>, vector<1x128xf32>
    %c1 = arith.constant 1 : index
    %c0_30 = arith.constant 0 : index
    %34 = vector.load %arg6[%c1, %c0_30] : memref<6x128xf32, #tpu.memory_space<vmem>>, vector<1x128xf32>
    %35 = vector.broadcast %24 : vector<1x128xf32> to vector<256x128xf32>
    %36 = arith.subf %11, %35 : vector<256x128xf32>
    %37 = vector.broadcast %32 : vector<1x128xf32> to vector<256x128xf32>
    %38 = arith.mulf %36, %37 : vector<256x128xf32>
    %39 = vector.broadcast %33 : vector<1x128xf32> to vector<256x128xf32>
    %40 = arith.mulf %38, %39 : vector<256x128xf32>
    %41 = vector.broadcast %34 : vector<1x128xf32> to vector<256x128xf32>
    %42 = arith.addf %40, %41 : vector<256x128xf32>
    %cst_31 = arith.constant 0.000000e+00 : f32
    %43 = vector.broadcast %cst_31 : f32 to vector<256x128xf32>
    %44 = arith.maximumf %42, %43 : vector<256x128xf32>
    %45 = arith.truncf %44 : vector<256x128xf32> to vector<256x128xbf16>
    %c0_32 = arith.constant 0 : index
    %c0_33 = arith.constant 0 : index
    %46 = vector.load %arg8[%c0_32, %c0_33] : memref<128x128xbf16, #tpu.memory_space<vmem>>, vector<128x128xbf16>
    %cst_34 = arith.constant dense<0.000000e+00> : vector<256x128xf32>
    %47 = tpu.matmul %45, %46, %cst_34 {dimension_numbers = #tpu.dot_dimension_numbers<[1], [0], [0], [1], [0, 0, 1, 1], [], []>} : vector<256x128xbf16>, vector<128x128xbf16>, vector<256x128xf32> -> vector<256x128xf32>
    %c0_35 = arith.constant 0 : index
    %c0_36 = arith.constant 0 : index
    %48 = vector.load %arg7[%c0_35, %c0_36] : memref<128x128xbf16, #tpu.memory_space<vmem>>, vector<128x128xbf16>
    %cst_37 = arith.constant dense<0.000000e+00> : vector<256x128xf32>
    %49 = tpu.matmul %45, %48, %cst_37 {dimension_numbers = #tpu.dot_dimension_numbers<[1], [0], [0], [1], [0, 0, 1, 1], [], []>} : vector<256x128xbf16>, vector<128x128xbf16>, vector<256x128xf32> -> vector<256x128xf32>
    %cst_38 = arith.constant dense<0.000000e+00> : vector<128xf32>
    %50 = vector.multi_reduction <add>, %49, %cst_38 [0] : vector<256x128xf32> to vector<128xf32>
    %51 = vector.shape_cast %50 : vector<128xf32> to vector<1x128xf32>
    %cst_39 = arith.constant 3.906250e-03 : f32
    %52 = vector.broadcast %cst_39 : f32 to vector<1x128xf32>
    %53 = arith.mulf %51, %52 : vector<1x128xf32>
    %54 = arith.mulf %49, %49 : vector<256x128xf32>
    %cst_40 = arith.constant dense<0.000000e+00> : vector<128xf32>
    %55 = vector.multi_reduction <add>, %54, %cst_40 [0] : vector<256x128xf32> to vector<128xf32>
    %56 = vector.shape_cast %55 : vector<128xf32> to vector<1x128xf32>
    %cst_41 = arith.constant 3.906250e-03 : f32
    %57 = vector.broadcast %cst_41 : f32 to vector<1x128xf32>
    %58 = arith.mulf %56, %57 : vector<1x128xf32>
    %59 = tpu.concatenate %53, %58 in 0 : vector<1x128xf32>, vector<1x128xf32> -> vector<2x128xf32>
    %cst_42 = arith.constant dense<0.000000e+00> : vector<2x128xf32>
    %60 = tpu.matmul %59, %12, %cst_42 {dimension_numbers = #tpu.dot_dimension_numbers<[1], [0], [0], [1], [0, 0, 1, 1], [], []>} : vector<2x128xf32>, vector<128x128xf32>, vector<2x128xf32> -> vector<2x128xf32>
    %61 = vector.extract_strided_slice %60 {offsets = [0, 0], sizes = [1, 128], strides = [1, 1]} : vector<2x128xf32> to vector<1x128xf32>
    %62 = vector.extract_strided_slice %60 {offsets = [1, 0], sizes = [1, 128], strides = [1, 1]} : vector<2x128xf32> to vector<1x128xf32>
    %63 = arith.mulf %61, %61 : vector<1x128xf32>
    %64 = arith.subf %62, %63 : vector<1x128xf32>
    %cst_43 = arith.constant 0.000000e+00 : f32
    %65 = vector.broadcast %cst_43 : f32 to vector<1x128xf32>
    %66 = arith.maximumf %64, %65 : vector<1x128xf32>
    %cst_44 = arith.constant 9.99999974E-6 : f32
    %67 = vector.broadcast %cst_44 : f32 to vector<1x128xf32>
    %68 = arith.addf %66, %67 : vector<1x128xf32>
    %69 = math.rsqrt %68 : vector<1x128xf32>
    %c2 = arith.constant 2 : index
    %c0_45 = arith.constant 0 : index
    %70 = vector.load %arg6[%c2, %c0_45] : memref<6x128xf32, #tpu.memory_space<vmem>>, vector<1x128xf32>
    %c3 = arith.constant 3 : index
    %c0_46 = arith.constant 0 : index
    %71 = vector.load %arg6[%c3, %c0_46] : memref<6x128xf32, #tpu.memory_space<vmem>>, vector<1x128xf32>
    %72 = vector.broadcast %61 : vector<1x128xf32> to vector<256x128xf32>
    %73 = arith.subf %49, %72 : vector<256x128xf32>
    %74 = vector.broadcast %69 : vector<1x128xf32> to vector<256x128xf32>
    %75 = arith.mulf %73, %74 : vector<256x128xf32>
    %76 = vector.broadcast %70 : vector<1x128xf32> to vector<256x128xf32>
    %77 = arith.mulf %75, %76 : vector<256x128xf32>
    %78 = vector.broadcast %71 : vector<1x128xf32> to vector<256x128xf32>
    %79 = arith.addf %77, %78 : vector<256x128xf32>
    %cst_47 = arith.constant 0.000000e+00 : f32
    %80 = vector.broadcast %cst_47 : f32 to vector<256x128xf32>
    %81 = arith.maximumf %79, %80 : vector<256x128xf32>
    %82 = vector.shape_cast %81 : vector<256x128xf32> to vector<16x16x128xf32>
    %c1_48 = arith.constant 1 : index
    %c1_49 = arith.constant 1 : index
    %c0_50 = arith.constant 0 : index
    %83 = vector.load %arg23[%c1_48, %c1_49, %c0_50] : memref<18x18x128xf32, #tpu.memory_space<vmem>>, vector<16x16x128xf32>
    tpu.vector_store %arg23[%c1_48, %c1_49, %c0_50], %82 {strides = array<i32>} : memref<18x18x128xf32, #tpu.memory_space<vmem>>, vector<16x16x128xf32>,
    %cst_51 = arith.constant 0.000000e+00 : f32
    %84 = vector.broadcast %cst_51 : f32 to vector<256x128xf32>
    %c0_52 = arith.constant 0 : index
    %c0_53 = arith.constant 0 : index
    %c0_54 = arith.constant 0 : index
    %85 = vector.load %arg23[%c0_52, %c0_53, %c0_54] : memref<18x18x128xf32, #tpu.memory_space<vmem>>, vector<16x16x128xf32>
    %86 = vector.shape_cast %85 : vector<16x16x128xf32> to vector<256x128xf32>
    %87 = arith.truncf %86 : vector<256x128xf32> to vector<256x128xbf16>
    %c0_55 = arith.constant 0 : index
    %c0_56 = arith.constant 0 : index
    %c0_57 = arith.constant 0 : index
    %88 = vector.load %arg9[%c0_55, %c0_56, %c0_57] : memref<9x128x128xbf16, #tpu.memory_space<vmem>>, vector<1x128x128xbf16>
    %89 = vector.shape_cast %88 : vector<1x128x128xbf16> to vector<128x128xbf16>
    %cst_58 = arith.constant dense<0.000000e+00> : vector<256x128xf32>
    %90 = tpu.matmul %87, %89, %cst_58 {dimension_numbers = #tpu.dot_dimension_numbers<[1], [0], [0], [1], [0, 0, 1, 1], [], []>} : vector<256x128xbf16>, vector<128x128xbf16>, vector<256x128xf32> -> vector<256x128xf32>
    %91 = arith.addf %84, %90 : vector<256x128xf32>
    %c0_59 = arith.constant 0 : index
    %c1_60 = arith.constant 1 : index
    %c0_61 = arith.constant 0 : index
    %92 = vector.load %arg23[%c0_59, %c1_60, %c0_61] : memref<18x18x128xf32, #tpu.memory_space<vmem>>, vector<16x16x128xf32>
    %93 = vector.shape_cast %92 : vector<16x16x128xf32> to vector<256x128xf32>
    %94 = arith.truncf %93 : vector<256x128xf32> to vector<256x128xbf16>
    %c1_62 = arith.constant 1 : index
    %c0_63 = arith.constant 0 : index
    %c0_64 = arith.constant 0 : index
    %95 = vector.load %arg9[%c1_62, %c0_63, %c0_64] : memref<9x128x128xbf16, #tpu.memory_space<vmem>>, vector<1x128x128xbf16>
    %96 = vector.shape_cast %95 : vector<1x128x128xbf16> to vector<128x128xbf16>
    %cst_65 = arith.constant dense<0.000000e+00> : vector<256x128xf32>
    %97 = tpu.matmul %94, %96, %cst_65 {dimension_numbers = #tpu.dot_dimension_numbers<[1], [0], [0], [1], [0, 0, 1, 1], [], []>} : vector<256x128xbf16>, vector<128x128xbf16>, vector<256x128xf32> -> vector<256x128xf32>
    %98 = arith.addf %91, %97 : vector<256x128xf32>
    %c0_66 = arith.constant 0 : index
    %c2_67 = arith.constant 2 : index
    %c0_68 = arith.constant 0 : index
    %99 = vector.load %arg23[%c0_66, %c2_67, %c0_68] : memref<18x18x128xf32, #tpu.memory_space<vmem>>, vector<16x16x128xf32>
    %100 = vector.shape_cast %99 : vector<16x16x128xf32> to vector<256x128xf32>
    %101 = arith.truncf %100 : vector<256x128xf32> to vector<256x128xbf16>
    %c2_69 = arith.constant 2 : index
    %c0_70 = arith.constant 0 : index
    %c0_71 = arith.constant 0 : index
    %102 = vector.load %arg9[%c2_69, %c0_70, %c0_71] : memref<9x128x128xbf16, #tpu.memory_space<vmem>>, vector<1x128x128xbf16>
    %103 = vector.shape_cast %102 : vector<1x128x128xbf16> to vector<128x128xbf16>
    %cst_72 = arith.constant dense<0.000000e+00> : vector<256x128xf32>
    %104 = tpu.matmul %101, %103, %cst_72 {dimension_numbers = #tpu.dot_dimension_numbers<[1], [0], [0], [1], [0, 0, 1, 1], [], []>} : vector<256x128xbf16>, vector<128x128xbf16>, vector<256x128xf32> -> vector<256x128xf32>
    %105 = arith.addf %98, %104 : vector<256x128xf32>
    %c1_73 = arith.constant 1 : index
    %c0_74 = arith.constant 0 : index
    %c0_75 = arith.constant 0 : index
    %106 = vector.load %arg23[%c1_73, %c0_74, %c0_75] : memref<18x18x128xf32, #tpu.memory_space<vmem>>, vector<16x16x128xf32>
    %107 = vector.shape_cast %106 : vector<16x16x128xf32> to vector<256x128xf32>
    %108 = arith.truncf %107 : vector<256x128xf32> to vector<256x128xbf16>
    %c3_76 = arith.constant 3 : index
    %c0_77 = arith.constant 0 : index
    %c0_78 = arith.constant 0 : index
    %109 = vector.load %arg9[%c3_76, %c0_77, %c0_78] : memref<9x128x128xbf16, #tpu.memory_space<vmem>>, vector<1x128x128xbf16>
    %110 = vector.shape_cast %109 : vector<1x128x128xbf16> to vector<128x128xbf16>
    %cst_79 = arith.constant dense<0.000000e+00> : vector<256x128xf32>
    %111 = tpu.matmul %108, %110, %cst_79 {dimension_numbers = #tpu.dot_dimension_numbers<[1], [0], [0], [1], [0, 0, 1, 1], [], []>} : vector<256x128xbf16>, vector<128x128xbf16>, vector<256x128xf32> -> vector<256x128xf32>
    %112 = arith.addf %105, %111 : vector<256x128xf32>
    %c1_80 = arith.constant 1 : index
    %c1_81 = arith.constant 1 : index
    %c0_82 = arith.constant 0 : index
    %113 = vector.load %arg23[%c1_80, %c1_81, %c0_82] : memref<18x18x128xf32, #tpu.memory_space<vmem>>, vector<16x16x128xf32>
    %114 = vector.shape_cast %113 : vector<16x16x128xf32> to vector<256x128xf32>
    %115 = arith.truncf %114 : vector<256x128xf32> to vector<256x128xbf16>
    %c4 = arith.constant 4 : index
    %c0_83 = arith.constant 0 : index
    %c0_84 = arith.constant 0 : index
    %116 = vector.load %arg9[%c4, %c0_83, %c0_84] : memref<9x128x128xbf16, #tpu.memory_space<vmem>>, vector<1x128x128xbf16>
    %117 = vector.shape_cast %116 : vector<1x128x128xbf16> to vector<128x128xbf16>
    %cst_85 = arith.constant dense<0.000000e+00> : vector<256x128xf32>
    %118 = tpu.matmul %115, %117, %cst_85 {dimension_numbers = #tpu.dot_dimension_numbers<[1], [0], [0], [1], [0, 0, 1, 1], [], []>} : vector<256x128xbf16>, vector<128x128xbf16>, vector<256x128xf32> -> vector<256x128xf32>
    %119 = arith.addf %112, %118 : vector<256x128xf32>
    %c1_86 = arith.constant 1 : index
    %c2_87 = arith.constant 2 : index
    %c0_88 = arith.constant 0 : index
    %120 = vector.load %arg23[%c1_86, %c2_87, %c0_88] : memref<18x18x128xf32, #tpu.memory_space<vmem>>, vector<16x16x128xf32>
    %121 = vector.shape_cast %120 : vector<16x16x128xf32> to vector<256x128xf32>
    %122 = arith.truncf %121 : vector<256x128xf32> to vector<256x128xbf16>
    %c5 = arith.constant 5 : index
    %c0_89 = arith.constant 0 : index
    %c0_90 = arith.constant 0 : index
    %123 = vector.load %arg9[%c5, %c0_89, %c0_90] : memref<9x128x128xbf16, #tpu.memory_space<vmem>>, vector<1x128x128xbf16>
    %124 = vector.shape_cast %123 : vector<1x128x128xbf16> to vector<128x128xbf16>
    %cst_91 = arith.constant dense<0.000000e+00> : vector<256x128xf32>
    %125 = tpu.matmul %122, %124, %cst_91 {dimension_numbers = #tpu.dot_dimension_numbers<[1], [0], [0], [1], [0, 0, 1, 1], [], []>} : vector<256x128xbf16>, vector<128x128xbf16>, vector<256x128xf32> -> vector<256x128xf32>
    %126 = arith.addf %119, %125 : vector<256x128xf32>
    %c2_92 = arith.constant 2 : index
    %c0_93 = arith.constant 0 : index
    %c0_94 = arith.constant 0 : index
    %127 = vector.load %arg23[%c2_92, %c0_93, %c0_94] : memref<18x18x128xf32, #tpu.memory_space<vmem>>, vector<16x16x128xf32>
    %128 = vector.shape_cast %127 : vector<16x16x128xf32> to vector<256x128xf32>
    %129 = arith.truncf %128 : vector<256x128xf32> to vector<256x128xbf16>
    %c6 = arith.constant 6 : index
    %c0_95 = arith.constant 0 : index
    %c0_96 = arith.constant 0 : index
    %130 = vector.load %arg9[%c6, %c0_95, %c0_96] : memref<9x128x128xbf16, #tpu.memory_space<vmem>>, vector<1x128x128xbf16>
    %131 = vector.shape_cast %130 : vector<1x128x128xbf16> to vector<128x128xbf16>
    %cst_97 = arith.constant dense<0.000000e+00> : vector<256x128xf32>
    %132 = tpu.matmul %129, %131, %cst_97 {dimension_numbers = #tpu.dot_dimension_numbers<[1], [0], [0], [1], [0, 0, 1, 1], [], []>} : vector<256x128xbf16>, vector<128x128xbf16>, vector<256x128xf32> -> vector<256x128xf32>
    %133 = arith.addf %126, %132 : vector<256x128xf32>
    %c2_98 = arith.constant 2 : index
    %c1_99 = arith.constant 1 : index
    %c0_100 = arith.constant 0 : index
    %134 = vector.load %arg23[%c2_98, %c1_99, %c0_100] : memref<18x18x128xf32, #tpu.memory_space<vmem>>, vector<16x16x128xf32>
    %135 = vector.shape_cast %134 : vector<16x16x128xf32> to vector<256x128xf32>
    %136 = arith.truncf %135 : vector<256x128xf32> to vector<256x128xbf16>
    %c7 = arith.constant 7 : index
    %c0_101 = arith.constant 0 : index
    %c0_102 = arith.constant 0 : index
    %137 = vector.load %arg9[%c7, %c0_101, %c0_102] : memref<9x128x128xbf16, #tpu.memory_space<vmem>>, vector<1x128x128xbf16>
    %138 = vector.shape_cast %137 : vector<1x128x128xbf16> to vector<128x128xbf16>
    %cst_103 = arith.constant dense<0.000000e+00> : vector<256x128xf32>
    %139 = tpu.matmul %136, %138, %cst_103 {dimension_numbers = #tpu.dot_dimension_numbers<[1], [0], [0], [1], [0, 0, 1, 1], [], []>} : vector<256x128xbf16>, vector<128x128xbf16>, vector<256x128xf32> -> vector<256x128xf32>
    %140 = arith.addf %133, %139 : vector<256x128xf32>
    %c2_104 = arith.constant 2 : index
    %c2_105 = arith.constant 2 : index
    %c0_106 = arith.constant 0 : index
    %141 = vector.load %arg23[%c2_104, %c2_105, %c0_106] : memref<18x18x128xf32, #tpu.memory_space<vmem>>, vector<16x16x128xf32>
    %142 = vector.shape_cast %141 : vector<16x16x128xf32> to vector<256x128xf32>
    %143 = arith.truncf %142 : vector<256x128xf32> to vector<256x128xbf16>
    %c8 = arith.constant 8 : index
    %c0_107 = arith.constant 0 : index
    %c0_108 = arith.constant 0 : index
    %144 = vector.load %arg9[%c8, %c0_107, %c0_108] : memref<9x128x128xbf16, #tpu.memory_space<vmem>>, vector<1x128x128xbf16>
    %145 = vector.shape_cast %144 : vector<1x128x128xbf16> to vector<128x128xbf16>
    %cst_109 = arith.constant dense<0.000000e+00> : vector<256x128xf32>
    %146 = tpu.matmul %143, %145, %cst_109 {dimension_numbers = #tpu.dot_dimension_numbers<[1], [0], [0], [1], [0, 0, 1, 1], [], []>} : vector<256x128xbf16>, vector<128x128xbf16>, vector<256x128xf32> -> vector<256x128xf32>
    %147 = arith.addf %140, %146 : vector<256x128xf32>
    %cst_110 = arith.constant dense<0.000000e+00> : vector<128xf32>
    %148 = vector.multi_reduction <add>, %147, %cst_110 [0] : vector<256x128xf32> to vector<128xf32>
    %149 = vector.shape_cast %148 : vector<128xf32> to vector<1x128xf32>
    %cst_111 = arith.constant 3.906250e-03 : f32
    %150 = vector.broadcast %cst_111 : f32 to vector<1x128xf32>
    %151 = arith.mulf %149, %150 : vector<1x128xf32>
    %152 = arith.mulf %147, %147 : vector<256x128xf32>
    %cst_112 = arith.constant dense<0.000000e+00> : vector<128xf32>
    %153 = vector.multi_reduction <add>, %152, %cst_112 [0] : vector<256x128xf32> to vector<128xf32>
    %154 = vector.shape_cast %153 : vector<128xf32> to vector<1x128xf32>
    %cst_113 = arith.constant 3.906250e-03 : f32
    %155 = vector.broadcast %cst_113 : f32 to vector<1x128xf32>
    %156 = arith.mulf %154, %155 : vector<1x128xf32>
    %157 = tpu.concatenate %151, %156 in 0 : vector<1x128xf32>, vector<1x128xf32> -> vector<2x128xf32>
    %cst_114 = arith.constant dense<0.000000e+00> : vector<2x128xf32>
    %158 = tpu.matmul %157, %12, %cst_114 {dimension_numbers = #tpu.dot_dimension_numbers<[1], [0], [0], [1], [0, 0, 1, 1], [], []>} : vector<2x128xf32>, vector<128x128xf32>, vector<2x128xf32> -> vector<2x128xf32>
    %159 = vector.extract_strided_slice %158 {offsets = [0, 0], sizes = [1, 128], strides = [1, 1]} : vector<2x128xf32> to vector<1x128xf32>
    %160 = vector.extract_strided_slice %158 {offsets = [1, 0], sizes = [1, 128], strides = [1, 1]} : vector<2x128xf32> to vector<1x128xf32>
    %161 = arith.mulf %159, %159 : vector<1x128xf32>
    %162 = arith.subf %160, %161 : vector<1x128xf32>
    %cst_115 = arith.constant 0.000000e+00 : f32
    %163 = vector.broadcast %cst_115 : f32 to vector<1x128xf32>
    %164 = arith.maximumf %162, %163 : vector<1x128xf32>
    %cst_116 = arith.constant 9.99999974E-6 : f32
    %165 = vector.broadcast %cst_116 : f32 to vector<1x128xf32>
    %166 = arith.addf %164, %165 : vector<1x128xf32>
    %167 = math.rsqrt %166 : vector<1x128xf32>
    %c4_117 = arith.constant 4 : index
    %c0_118 = arith.constant 0 : index
    %168 = vector.load %arg6[%c4_117, %c0_118] : memref<6x128xf32, #tpu.memory_space<vmem>>, vector<1x128xf32>
    %c5_119 = arith.constant 5 : index
    %c0_120 = arith.constant 0 : index
    %169 = vector.load %arg6[%c5_119, %c0_120] : memref<6x128xf32, #tpu.memory_space<vmem>>, vector<1x128xf32>
    %170 = vector.broadcast %159 : vector<1x128xf32> to vector<256x128xf32>
    %171 = arith.subf %147, %170 : vector<256x128xf32>
    %172 = vector.broadcast %167 : vector<1x128xf32> to vector<256x128xf32>
    %173 = arith.mulf %171, %172 : vector<256x128xf32>
    %174 = vector.broadcast %168 : vector<1x128xf32> to vector<256x128xf32>
    %175 = arith.mulf %173, %174 : vector<256x128xf32>
    %176 = vector.broadcast %169 : vector<1x128xf32> to vector<256x128xf32>
    %177 = arith.addf %175, %176 : vector<256x128xf32>
    %cst_121 = arith.constant 0.000000e+00 : f32
    %178 = vector.broadcast %cst_121 : f32 to vector<256x128xf32>
    %179 = arith.maximumf %177, %178 : vector<256x128xf32>
    %180 = arith.truncf %179 : vector<256x128xf32> to vector<256x128xbf16>
    %c0_122 = arith.constant 0 : index
    %c0_123 = arith.constant 0 : index
    %181 = vector.load %arg10[%c0_122, %c0_123] : memref<128x128xbf16, #tpu.memory_space<vmem>>, vector<128x128xbf16>
    %cst_124 = arith.constant dense<0.000000e+00> : vector<256x128xf32>
    %182 = tpu.matmul %180, %181, %cst_124 {dimension_numbers = #tpu.dot_dimension_numbers<[1], [0], [0], [1], [0, 0, 1, 1], [], []>} : vector<256x128xbf16>, vector<128x128xbf16>, vector<256x128xf32> -> vector<256x128xf32>
    %183 = arith.addf %182, %47 : vector<256x128xf32>
    %cst_125 = arith.constant dense<0.000000e+00> : vector<128xf32>
    %184 = vector.multi_reduction <add>, %183, %cst_125 [0] : vector<256x128xf32> to vector<128xf32>
    %185 = vector.shape_cast %184 : vector<128xf32> to vector<1x128xf32>
    %cst_126 = arith.constant 3.906250e-03 : f32
    %186 = vector.broadcast %cst_126 : f32 to vector<1x128xf32>
    %187 = arith.mulf %185, %186 : vector<1x128xf32>
    %188 = arith.mulf %183, %183 : vector<256x128xf32>
    %cst_127 = arith.constant dense<0.000000e+00> : vector<128xf32>
    %189 = vector.multi_reduction <add>, %188, %cst_127 [0] : vector<256x128xf32> to vector<128xf32>
    %190 = vector.shape_cast %189 : vector<128xf32> to vector<1x128xf32>
    %cst_128 = arith.constant 3.906250e-03 : f32
    %191 = vector.broadcast %cst_128 : f32 to vector<1x128xf32>
    %192 = arith.mulf %190, %191 : vector<1x128xf32>
    %193 = tpu.concatenate %187, %192 in 0 : vector<1x128xf32>, vector<1x128xf32> -> vector<2x128xf32>
    %cst_129 = arith.constant dense<0.000000e+00> : vector<2x128xf32>
    %194 = tpu.matmul %193, %12, %cst_129 {dimension_numbers = #tpu.dot_dimension_numbers<[1], [0], [0], [1], [0, 0, 1, 1], [], []>} : vector<2x128xf32>, vector<128x128xf32>, vector<2x128xf32> -> vector<2x128xf32>
    %195 = vector.extract_strided_slice %194 {offsets = [0, 0], sizes = [1, 128], strides = [1, 1]} : vector<2x128xf32> to vector<1x128xf32>
    %196 = vector.extract_strided_slice %194 {offsets = [1, 0], sizes = [1, 128], strides = [1, 1]} : vector<2x128xf32> to vector<1x128xf32>
    %197 = arith.mulf %195, %195 : vector<1x128xf32>
    %198 = arith.subf %196, %197 : vector<1x128xf32>
    %cst_130 = arith.constant 0.000000e+00 : f32
    %199 = vector.broadcast %cst_130 : f32 to vector<1x128xf32>
    %200 = arith.maximumf %198, %199 : vector<1x128xf32>
    %cst_131 = arith.constant 9.99999974E-6 : f32
    %201 = vector.broadcast %cst_131 : f32 to vector<1x128xf32>
    %202 = arith.addf %200, %201 : vector<1x128xf32>
    %203 = math.rsqrt %202 : vector<1x128xf32>
    %c0_132 = arith.constant 0 : index
    %c0_133 = arith.constant 0 : index
    %204 = vector.load %arg11[%c0_132, %c0_133] : memref<6x128xf32, #tpu.memory_space<vmem>>, vector<1x128xf32>
    %c1_134 = arith.constant 1 : index
    %c0_135 = arith.constant 0 : index
    %205 = vector.load %arg11[%c1_134, %c0_135] : memref<6x128xf32, #tpu.memory_space<vmem>>, vector<1x128xf32>
    %206 = vector.broadcast %195 : vector<1x128xf32> to vector<256x128xf32>
    %207 = arith.subf %183, %206 : vector<256x128xf32>
    %208 = vector.broadcast %203 : vector<1x128xf32> to vector<256x128xf32>
    %209 = arith.mulf %207, %208 : vector<256x128xf32>
    %210 = vector.broadcast %204 : vector<1x128xf32> to vector<256x128xf32>
    %211 = arith.mulf %209, %210 : vector<256x128xf32>
    %212 = vector.broadcast %205 : vector<1x128xf32> to vector<256x128xf32>
    %213 = arith.addf %211, %212 : vector<256x128xf32>
    %cst_136 = arith.constant 0.000000e+00 : f32
    %214 = vector.broadcast %cst_136 : f32 to vector<256x128xf32>
    %215 = arith.maximumf %213, %214 : vector<256x128xf32>
    %216 = arith.truncf %215 : vector<256x128xf32> to vector<256x128xbf16>
    %c0_137 = arith.constant 0 : index
    %c0_138 = arith.constant 0 : index
    %217 = vector.load %arg16[%c0_137, %c0_138] : memref<64x256xbf16, #tpu.memory_space<vmem>>, vector<64x256xbf16>
    %cst_139 = arith.constant dense<0.000000e+00> : vector<64x128xf32>
    %218 = tpu.matmul %217, %216, %cst_139 {dimension_numbers = #tpu.dot_dimension_numbers<[1], [0], [0], [1], [0, 0, 1, 1], [], []>} : vector<64x256xbf16>, vector<256x128xbf16>, vector<64x128xf32> -> vector<64x128xf32>
    %219 = arith.truncf %218 : vector<64x128xf32> to vector<64x128xbf16>
    %c0_140 = arith.constant 0 : index
    %c0_141 = arith.constant 0 : index
    %220 = vector.load %arg13[%c0_140, %c0_141] : memref<128x256xbf16, #tpu.memory_space<vmem>>, vector<128x256xbf16>
    %cst_142 = arith.constant dense<0.000000e+00> : vector<64x256xf32>
    %221 = tpu.matmul %219, %220, %cst_142 {dimension_numbers = #tpu.dot_dimension_numbers<[1], [0], [0], [1], [0, 0, 1, 1], [], []>} : vector<64x128xbf16>, vector<128x256xbf16>, vector<64x256xf32> -> vector<64x256xf32>
    %c0_143 = arith.constant 0 : index
    %c0_144 = arith.constant 0 : index
    %222 = vector.load %arg12[%c0_143, %c0_144] : memref<128x128xbf16, #tpu.memory_space<vmem>>, vector<128x128xbf16>
    %cst_145 = arith.constant dense<0.000000e+00> : vector<256x128xf32>
    %223 = tpu.matmul %216, %222, %cst_145 {dimension_numbers = #tpu.dot_dimension_numbers<[1], [0], [0], [1], [0, 0, 1, 1], [], []>} : vector<256x128xbf16>, vector<128x128xbf16>, vector<256x128xf32> -> vector<256x128xf32>
    %cst_146 = arith.constant dense<0.000000e+00> : vector<128xf32>
    %224 = vector.multi_reduction <add>, %223, %cst_146 [0] : vector<256x128xf32> to vector<128xf32>
    %225 = vector.shape_cast %224 : vector<128xf32> to vector<1x128xf32>
    %cst_147 = arith.constant 3.906250e-03 : f32
    %226 = vector.broadcast %cst_147 : f32 to vector<1x128xf32>
    %227 = arith.mulf %225, %226 : vector<1x128xf32>
    %228 = arith.mulf %223, %223 : vector<256x128xf32>
    %cst_148 = arith.constant dense<0.000000e+00> : vector<128xf32>
    %229 = vector.multi_reduction <add>, %228, %cst_148 [0] : vector<256x128xf32> to vector<128xf32>
    %230 = vector.shape_cast %229 : vector<128xf32> to vector<1x128xf32>
    %cst_149 = arith.constant 3.906250e-03 : f32
    %231 = vector.broadcast %cst_149 : f32 to vector<1x128xf32>
    %232 = arith.mulf %230, %231 : vector<1x128xf32>
    %233 = tpu.concatenate %227, %232 in 0 : vector<1x128xf32>, vector<1x128xf32> -> vector<2x128xf32>
    %cst_150 = arith.constant dense<0.000000e+00> : vector<2x128xf32>
    %234 = tpu.matmul %233, %12, %cst_150 {dimension_numbers = #tpu.dot_dimension_numbers<[1], [0], [0], [1], [0, 0, 1, 1], [], []>} : vector<2x128xf32>, vector<128x128xf32>, vector<2x128xf32> -> vector<2x128xf32>
    %235 = vector.extract_strided_slice %234 {offsets = [0, 0], sizes = [1, 128], strides = [1, 1]} : vector<2x128xf32> to vector<1x128xf32>
    %236 = vector.extract_strided_slice %234 {offsets = [1, 0], sizes = [1, 128], strides = [1, 1]} : vector<2x128xf32> to vector<1x128xf32>
    %237 = arith.mulf %235, %235 : vector<1x128xf32>
    %238 = arith.subf %236, %237 : vector<1x128xf32>
    %cst_151 = arith.constant 0.000000e+00 : f32
    %239 = vector.broadcast %cst_151 : f32 to vector<1x128xf32>
    %240 = arith.maximumf %238, %239 : vector<1x128xf32>
    %cst_152 = arith.constant 9.99999974E-6 : f32
    %241 = vector.broadcast %cst_152 : f32 to vector<1x128xf32>
    %242 = arith.addf %240, %241 : vector<1x128xf32>
    %243 = math.rsqrt %242 : vector<1x128xf32>
    %c2_153 = arith.constant 2 : index
    %c0_154 = arith.constant 0 : index
    %244 = vector.load %arg11[%c2_153, %c0_154] : memref<6x128xf32, #tpu.memory_space<vmem>>, vector<1x128xf32>
    %c3_155 = arith.constant 3 : index
    %c0_156 = arith.constant 0 : index
    %245 = vector.load %arg11[%c3_155, %c0_156] : memref<6x128xf32, #tpu.memory_space<vmem>>, vector<1x128xf32>
    %246 = vector.broadcast %235 : vector<1x128xf32> to vector<256x128xf32>
    %247 = arith.subf %223, %246 : vector<256x128xf32>
    %248 = vector.broadcast %243 : vector<1x128xf32> to vector<256x128xf32>
    %249 = arith.mulf %247, %248 : vector<256x128xf32>
    %250 = vector.broadcast %244 : vector<1x128xf32> to vector<256x128xf32>
    %251 = arith.mulf %249, %250 : vector<256x128xf32>
    %252 = vector.broadcast %245 : vector<1x128xf32> to vector<256x128xf32>
    %253 = arith.addf %251, %252 : vector<256x128xf32>
    %cst_157 = arith.constant 0.000000e+00 : f32
    %254 = vector.broadcast %cst_157 : f32 to vector<256x128xf32>
    %255 = arith.maximumf %253, %254 : vector<256x128xf32>
    %256 = vector.shape_cast %255 : vector<256x128xf32> to vector<16x16x128xf32>
    %c1_158 = arith.constant 1 : index
    %c1_159 = arith.constant 1 : index
    %c0_160 = arith.constant 0 : index
    %257 = vector.load %arg23[%c1_158, %c1_159, %c0_160] : memref<18x18x128xf32, #tpu.memory_space<vmem>>, vector<16x16x128xf32>
    tpu.vector_store %arg23[%c1_158, %c1_159, %c0_160], %256 {strides = array<i32>} : memref<18x18x128xf32, #tpu.memory_space<vmem>>, vector<16x16x128xf32>,
    %cst_161 = arith.constant 0.000000e+00 : f32
    %258 = vector.broadcast %cst_161 : f32 to vector<64x128xf32>
    %c0_162 = arith.constant 0 : index
    %c0_163 = arith.constant 0 : index
    %c0_164 = arith.constant 0 : index
    %259 = tpu.strided_load %arg23[%c0_162, %c0_163, %c0_164] {strides = array<i32: 2, 2, 1>} : memref<18x18x128xf32, #tpu.memory_space<vmem>>, vector<8x8x128xf32>
    %260 = vector.shape_cast %259 : vector<8x8x128xf32> to vector<64x128xf32>
    %261 = arith.truncf %260 : vector<64x128xf32> to vector<64x128xbf16>
    %c0_165 = arith.constant 0 : index
    %c0_166 = arith.constant 0 : index
    %c0_167 = arith.constant 0 : index
    %262 = vector.load %arg14[%c0_165, %c0_166, %c0_167] : memref<9x128x128xbf16, #tpu.memory_space<vmem>>, vector<1x128x128xbf16>
    %263 = vector.shape_cast %262 : vector<1x128x128xbf16> to vector<128x128xbf16>
    %cst_168 = arith.constant dense<0.000000e+00> : vector<64x128xf32>
    %264 = tpu.matmul %261, %263, %cst_168 {dimension_numbers = #tpu.dot_dimension_numbers<[1], [0], [0], [1], [0, 0, 1, 1], [], []>} : vector<64x128xbf16>, vector<128x128xbf16>, vector<64x128xf32> -> vector<64x128xf32>
    %265 = arith.addf %258, %264 : vector<64x128xf32>
    %c0_169 = arith.constant 0 : index
    %c1_170 = arith.constant 1 : index
    %c0_171 = arith.constant 0 : index
    %266 = tpu.strided_load %arg23[%c0_169, %c1_170, %c0_171] {strides = array<i32: 2, 2, 1>} : memref<18x18x128xf32, #tpu.memory_space<vmem>>, vector<8x8x128xf32>
    %267 = vector.shape_cast %266 : vector<8x8x128xf32> to vector<64x128xf32>
    %268 = arith.truncf %267 : vector<64x128xf32> to vector<64x128xbf16>
    %c1_172 = arith.constant 1 : index
    %c0_173 = arith.constant 0 : index
    %c0_174 = arith.constant 0 : index
    %269 = vector.load %arg14[%c1_172, %c0_173, %c0_174] : memref<9x128x128xbf16, #tpu.memory_space<vmem>>, vector<1x128x128xbf16>
    %270 = vector.shape_cast %269 : vector<1x128x128xbf16> to vector<128x128xbf16>
    %cst_175 = arith.constant dense<0.000000e+00> : vector<64x128xf32>
    %271 = tpu.matmul %268, %270, %cst_175 {dimension_numbers = #tpu.dot_dimension_numbers<[1], [0], [0], [1], [0, 0, 1, 1], [], []>} : vector<64x128xbf16>, vector<128x128xbf16>, vector<64x128xf32> -> vector<64x128xf32>
    %272 = arith.addf %265, %271 : vector<64x128xf32>
    %c0_176 = arith.constant 0 : index
    %c2_177 = arith.constant 2 : index
    %c0_178 = arith.constant 0 : index
    %273 = tpu.strided_load %arg23[%c0_176, %c2_177, %c0_178] {strides = array<i32: 2, 2, 1>} : memref<18x18x128xf32, #tpu.memory_space<vmem>>, vector<8x8x128xf32>
    %274 = vector.shape_cast %273 : vector<8x8x128xf32> to vector<64x128xf32>
    %275 = arith.truncf %274 : vector<64x128xf32> to vector<64x128xbf16>
    %c2_179 = arith.constant 2 : index
    %c0_180 = arith.constant 0 : index
    %c0_181 = arith.constant 0 : index
    %276 = vector.load %arg14[%c2_179, %c0_180, %c0_181] : memref<9x128x128xbf16, #tpu.memory_space<vmem>>, vector<1x128x128xbf16>
    %277 = vector.shape_cast %276 : vector<1x128x128xbf16> to vector<128x128xbf16>
    %cst_182 = arith.constant dense<0.000000e+00> : vector<64x128xf32>
    %278 = tpu.matmul %275, %277, %cst_182 {dimension_numbers = #tpu.dot_dimension_numbers<[1], [0], [0], [1], [0, 0, 1, 1], [], []>} : vector<64x128xbf16>, vector<128x128xbf16>, vector<64x128xf32> -> vector<64x128xf32>
    %279 = arith.addf %272, %278 : vector<64x128xf32>
    %c1_183 = arith.constant 1 : index
    %c0_184 = arith.constant 0 : index
    %c0_185 = arith.constant 0 : index
    %280 = tpu.strided_load %arg23[%c1_183, %c0_184, %c0_185] {strides = array<i32: 2, 2, 1>} : memref<18x18x128xf32, #tpu.memory_space<vmem>>, vector<8x8x128xf32>
    %281 = vector.shape_cast %280 : vector<8x8x128xf32> to vector<64x128xf32>
    %282 = arith.truncf %281 : vector<64x128xf32> to vector<64x128xbf16>
    %c3_186 = arith.constant 3 : index
    %c0_187 = arith.constant 0 : index
    %c0_188 = arith.constant 0 : index
    %283 = vector.load %arg14[%c3_186, %c0_187, %c0_188] : memref<9x128x128xbf16, #tpu.memory_space<vmem>>, vector<1x128x128xbf16>
    %284 = vector.shape_cast %283 : vector<1x128x128xbf16> to vector<128x128xbf16>
    %cst_189 = arith.constant dense<0.000000e+00> : vector<64x128xf32>
    %285 = tpu.matmul %282, %284, %cst_189 {dimension_numbers = #tpu.dot_dimension_numbers<[1], [0], [0], [1], [0, 0, 1, 1], [], []>} : vector<64x128xbf16>, vector<128x128xbf16>, vector<64x128xf32> -> vector<64x128xf32>
    %286 = arith.addf %279, %285 : vector<64x128xf32>
    %c1_190 = arith.constant 1 : index
    %c1_191 = arith.constant 1 : index
    %c0_192 = arith.constant 0 : index
    %287 = tpu.strided_load %arg23[%c1_190, %c1_191, %c0_192] {strides = array<i32: 2, 2, 1>} : memref<18x18x128xf32, #tpu.memory_space<vmem>>, vector<8x8x128xf32>
    %288 = vector.shape_cast %287 : vector<8x8x128xf32> to vector<64x128xf32>
    %289 = arith.truncf %288 : vector<64x128xf32> to vector<64x128xbf16>
    %c4_193 = arith.constant 4 : index
    %c0_194 = arith.constant 0 : index
    %c0_195 = arith.constant 0 : index
    %290 = vector.load %arg14[%c4_193, %c0_194, %c0_195] : memref<9x128x128xbf16, #tpu.memory_space<vmem>>, vector<1x128x128xbf16>
    %291 = vector.shape_cast %290 : vector<1x128x128xbf16> to vector<128x128xbf16>
    %cst_196 = arith.constant dense<0.000000e+00> : vector<64x128xf32>
    %292 = tpu.matmul %289, %291, %cst_196 {dimension_numbers = #tpu.dot_dimension_numbers<[1], [0], [0], [1], [0, 0, 1, 1], [], []>} : vector<64x128xbf16>, vector<128x128xbf16>, vector<64x128xf32> -> vector<64x128xf32>
    %293 = arith.addf %286, %292 : vector<64x128xf32>
    %c1_197 = arith.constant 1 : index
    %c2_198 = arith.constant 2 : index
    %c0_199 = arith.constant 0 : index
    %294 = tpu.strided_load %arg23[%c1_197, %c2_198, %c0_199] {strides = array<i32: 2, 2, 1>} : memref<18x18x128xf32, #tpu.memory_space<vmem>>, vector<8x8x128xf32>
    %295 = vector.shape_cast %294 : vector<8x8x128xf32> to vector<64x128xf32>
    %296 = arith.truncf %295 : vector<64x128xf32> to vector<64x128xbf16>
    %c5_200 = arith.constant 5 : index
    %c0_201 = arith.constant 0 : index
    %c0_202 = arith.constant 0 : index
    %297 = vector.load %arg14[%c5_200, %c0_201, %c0_202] : memref<9x128x128xbf16, #tpu.memory_space<vmem>>, vector<1x128x128xbf16>
    %298 = vector.shape_cast %297 : vector<1x128x128xbf16> to vector<128x128xbf16>
    %cst_203 = arith.constant dense<0.000000e+00> : vector<64x128xf32>
    %299 = tpu.matmul %296, %298, %cst_203 {dimension_numbers = #tpu.dot_dimension_numbers<[1], [0], [0], [1], [0, 0, 1, 1], [], []>} : vector<64x128xbf16>, vector<128x128xbf16>, vector<64x128xf32> -> vector<64x128xf32>
    %300 = arith.addf %293, %299 : vector<64x128xf32>
    %c2_204 = arith.constant 2 : index
    %c0_205 = arith.constant 0 : index
    %c0_206 = arith.constant 0 : index
    %301 = tpu.strided_load %arg23[%c2_204, %c0_205, %c0_206] {strides = array<i32: 2, 2, 1>} : memref<18x18x128xf32, #tpu.memory_space<vmem>>, vector<8x8x128xf32>
    %302 = vector.shape_cast %301 : vector<8x8x128xf32> to vector<64x128xf32>
    %303 = arith.truncf %302 : vector<64x128xf32> to vector<64x128xbf16>
    %c6_207 = arith.constant 6 : index
    %c0_208 = arith.constant 0 : index
    %c0_209 = arith.constant 0 : index
    %304 = vector.load %arg14[%c6_207, %c0_208, %c0_209] : memref<9x128x128xbf16, #tpu.memory_space<vmem>>, vector<1x128x128xbf16>
    %305 = vector.shape_cast %304 : vector<1x128x128xbf16> to vector<128x128xbf16>
    %cst_210 = arith.constant dense<0.000000e+00> : vector<64x128xf32>
    %306 = tpu.matmul %303, %305, %cst_210 {dimension_numbers = #tpu.dot_dimension_numbers<[1], [0], [0], [1], [0, 0, 1, 1], [], []>} : vector<64x128xbf16>, vector<128x128xbf16>, vector<64x128xf32> -> vector<64x128xf32>
    %307 = arith.addf %300, %306 : vector<64x128xf32>
    %c2_211 = arith.constant 2 : index
    %c1_212 = arith.constant 1 : index
    %c0_213 = arith.constant 0 : index
    %308 = tpu.strided_load %arg23[%c2_211, %c1_212, %c0_213] {strides = array<i32: 2, 2, 1>} : memref<18x18x128xf32, #tpu.memory_space<vmem>>, vector<8x8x128xf32>
    %309 = vector.shape_cast %308 : vector<8x8x128xf32> to vector<64x128xf32>
    %310 = arith.truncf %309 : vector<64x128xf32> to vector<64x128xbf16>
    %c7_214 = arith.constant 7 : index
    %c0_215 = arith.constant 0 : index
    %c0_216 = arith.constant 0 : index
    %311 = vector.load %arg14[%c7_214, %c0_215, %c0_216] : memref<9x128x128xbf16, #tpu.memory_space<vmem>>, vector<1x128x128xbf16>
    %312 = vector.shape_cast %311 : vector<1x128x128xbf16> to vector<128x128xbf16>
    %cst_217 = arith.constant dense<0.000000e+00> : vector<64x128xf32>
    %313 = tpu.matmul %310, %312, %cst_217 {dimension_numbers = #tpu.dot_dimension_numbers<[1], [0], [0], [1], [0, 0, 1, 1], [], []>} : vector<64x128xbf16>, vector<128x128xbf16>, vector<64x128xf32> -> vector<64x128xf32>
    %314 = arith.addf %307, %313 : vector<64x128xf32>
    %c2_218 = arith.constant 2 : index
    %c2_219 = arith.constant 2 : index
    %c0_220 = arith.constant 0 : index
    %315 = tpu.strided_load %arg23[%c2_218, %c2_219, %c0_220] {strides = array<i32: 2, 2, 1>} : memref<18x18x128xf32, #tpu.memory_space<vmem>>, vector<8x8x128xf32>
    %316 = vector.shape_cast %315 : vector<8x8x128xf32> to vector<64x128xf32>
    %317 = arith.truncf %316 : vector<64x128xf32> to vector<64x128xbf16>
    %c8_221 = arith.constant 8 : index
    %c0_222 = arith.constant 0 : index
    %c0_223 = arith.constant 0 : index
    %318 = vector.load %arg14[%c8_221, %c0_222, %c0_223] : memref<9x128x128xbf16, #tpu.memory_space<vmem>>, vector<1x128x128xbf16>
    %319 = vector.shape_cast %318 : vector<1x128x128xbf16> to vector<128x128xbf16>
    %cst_224 = arith.constant dense<0.000000e+00> : vector<64x128xf32>
    %320 = tpu.matmul %317, %319, %cst_224 {dimension_numbers = #tpu.dot_dimension_numbers<[1], [0], [0], [1], [0, 0, 1, 1], [], []>} : vector<64x128xbf16>, vector<128x128xbf16>, vector<64x128xf32> -> vector<64x128xf32>
    %321 = arith.addf %314, %320 : vector<64x128xf32>
    %cst_225 = arith.constant dense<0.000000e+00> : vector<128xf32>
    %322 = vector.multi_reduction <add>, %321, %cst_225 [0] : vector<64x128xf32> to vector<128xf32>
    %323 = vector.shape_cast %322 : vector<128xf32> to vector<1x128xf32>
    %cst_226 = arith.constant 1.562500e-02 : f32
    %324 = vector.broadcast %cst_226 : f32 to vector<1x128xf32>
    %325 = arith.mulf %323, %324 : vector<1x128xf32>
    %326 = arith.mulf %321, %321 : vector<64x128xf32>
    %cst_227 = arith.constant dense<0.000000e+00> : vector<128xf32>
    %327 = vector.multi_reduction <add>, %326, %cst_227 [0] : vector<64x128xf32> to vector<128xf32>
    %328 = vector.shape_cast %327 : vector<128xf32> to vector<1x128xf32>
    %cst_228 = arith.constant 1.562500e-02 : f32
    %329 = vector.broadcast %cst_228 : f32 to vector<1x128xf32>
    %330 = arith.mulf %328, %329 : vector<1x128xf32>
    %331 = tpu.concatenate %325, %330 in 0 : vector<1x128xf32>, vector<1x128xf32> -> vector<2x128xf32>
    %cst_229 = arith.constant dense<0.000000e+00> : vector<2x128xf32>
    %332 = tpu.matmul %331, %12, %cst_229 {dimension_numbers = #tpu.dot_dimension_numbers<[1], [0], [0], [1], [0, 0, 1, 1], [], []>} : vector<2x128xf32>, vector<128x128xf32>, vector<2x128xf32> -> vector<2x128xf32>
    %333 = vector.extract_strided_slice %332 {offsets = [0, 0], sizes = [1, 128], strides = [1, 1]} : vector<2x128xf32> to vector<1x128xf32>
    %334 = vector.extract_strided_slice %332 {offsets = [1, 0], sizes = [1, 128], strides = [1, 1]} : vector<2x128xf32> to vector<1x128xf32>
    %335 = arith.mulf %333, %333 : vector<1x128xf32>
    %336 = arith.subf %334, %335 : vector<1x128xf32>
    %cst_230 = arith.constant 0.000000e+00 : f32
    %337 = vector.broadcast %cst_230 : f32 to vector<1x128xf32>
    %338 = arith.maximumf %336, %337 : vector<1x128xf32>
    %cst_231 = arith.constant 9.99999974E-6 : f32
    %339 = vector.broadcast %cst_231 : f32 to vector<1x128xf32>
    %340 = arith.addf %338, %339 : vector<1x128xf32>
    %341 = math.rsqrt %340 : vector<1x128xf32>
    %c4_232 = arith.constant 4 : index
    %c0_233 = arith.constant 0 : index
    %342 = vector.load %arg11[%c4_232, %c0_233] : memref<6x128xf32, #tpu.memory_space<vmem>>, vector<1x128xf32>
    %c5_234 = arith.constant 5 : index
    %c0_235 = arith.constant 0 : index
    %343 = vector.load %arg11[%c5_234, %c0_235] : memref<6x128xf32, #tpu.memory_space<vmem>>, vector<1x128xf32>
    %344 = vector.broadcast %333 : vector<1x128xf32> to vector<64x128xf32>
    %345 = arith.subf %321, %344 : vector<64x128xf32>
    %346 = vector.broadcast %341 : vector<1x128xf32> to vector<64x128xf32>
    %347 = arith.mulf %345, %346 : vector<64x128xf32>
    %348 = vector.broadcast %342 : vector<1x128xf32> to vector<64x128xf32>
    %349 = arith.mulf %347, %348 : vector<64x128xf32>
    %350 = vector.broadcast %343 : vector<1x128xf32> to vector<64x128xf32>
    %351 = arith.addf %349, %350 : vector<64x128xf32>
    %cst_236 = arith.constant 0.000000e+00 : f32
    %352 = vector.broadcast %cst_236 : f32 to vector<64x128xf32>
    %353 = arith.maximumf %351, %352 : vector<64x128xf32>
    %354 = arith.truncf %353 : vector<64x128xf32> to vector<64x128xbf16>
    %c0_237 = arith.constant 0 : index
    %c0_238 = arith.constant 0 : index
    %355 = vector.load %arg15[%c0_237, %c0_238] : memref<128x256xbf16, #tpu.memory_space<vmem>>, vector<128x256xbf16>
    %cst_239 = arith.constant dense<0.000000e+00> : vector<64x256xf32>
    %356 = tpu.matmul %354, %355, %cst_239 {dimension_numbers = #tpu.dot_dimension_numbers<[1], [0], [0], [1], [0, 0, 1, 1], [], []>} : vector<64x128xbf16>, vector<128x256xbf16>, vector<64x256xf32> -> vector<64x256xf32>
    %357 = arith.addf %356, %221 : vector<64x256xf32>
    %c0_240 = arith.constant 0 : index
    %c0_241 = arith.constant 0 : index
    %358 = vector.load %arg5[%c0_240, %c0_241] : memref<256x256xf32, #tpu.memory_space<vmem>>, vector<256x256xf32>
    %cst_242 = arith.constant dense<0.000000e+00> : vector<256xf32>
    %359 = vector.multi_reduction <add>, %357, %cst_242 [0] : vector<64x256xf32> to vector<256xf32>
    %360 = vector.shape_cast %359 : vector<256xf32> to vector<1x256xf32>
    %cst_243 = arith.constant 1.562500e-02 : f32
    %361 = vector.broadcast %cst_243 : f32 to vector<1x256xf32>
    %362 = arith.mulf %360, %361 : vector<1x256xf32>
    %363 = arith.mulf %357, %357 : vector<64x256xf32>
    %cst_244 = arith.constant dense<0.000000e+00> : vector<256xf32>
    %364 = vector.multi_reduction <add>, %363, %cst_244 [0] : vector<64x256xf32> to vector<256xf32>
    %365 = vector.shape_cast %364 : vector<256xf32> to vector<1x256xf32>
    %cst_245 = arith.constant 1.562500e-02 : f32
    %366 = vector.broadcast %cst_245 : f32 to vector<1x256xf32>
    %367 = arith.mulf %365, %366 : vector<1x256xf32>
    %368 = tpu.concatenate %362, %367 in 0 : vector<1x256xf32>, vector<1x256xf32> -> vector<2x256xf32>
    %cst_246 = arith.constant dense<0.000000e+00> : vector<2x256xf32>
    %369 = tpu.matmul %368, %358, %cst_246 {dimension_numbers = #tpu.dot_dimension_numbers<[1], [0], [0], [1], [0, 0, 1, 1], [], []>} : vector<2x256xf32>, vector<256x256xf32>, vector<2x256xf32> -> vector<2x256xf32>
    %370 = vector.extract_strided_slice %369 {offsets = [0, 0], sizes = [1, 256], strides = [1, 1]} : vector<2x256xf32> to vector<1x256xf32>
    %371 = vector.extract_strided_slice %369 {offsets = [1, 0], sizes = [1, 256], strides = [1, 1]} : vector<2x256xf32> to vector<1x256xf32>
    %372 = arith.mulf %370, %370 : vector<1x256xf32>
    %373 = arith.subf %371, %372 : vector<1x256xf32>
    %cst_247 = arith.constant 0.000000e+00 : f32
    %374 = vector.broadcast %cst_247 : f32 to vector<1x256xf32>
    %375 = arith.maximumf %373, %374 : vector<1x256xf32>
    %cst_248 = arith.constant 9.99999974E-6 : f32
    %376 = vector.broadcast %cst_248 : f32 to vector<1x256xf32>
    %377 = arith.addf %375, %376 : vector<1x256xf32>
    %378 = math.rsqrt %377 : vector<1x256xf32>
    %c0_249 = arith.constant 0 : index
    %c0_250 = arith.constant 0 : index
    %379 = vector.load %arg17[%c0_249, %c0_250] : memref<2x256xf32, #tpu.memory_space<vmem>>, vector<1x256xf32>
    %c1_251 = arith.constant 1 : index
    %c0_252 = arith.constant 0 : index
    %380 = vector.load %arg17[%c1_251, %c0_252] : memref<2x256xf32, #tpu.memory_space<vmem>>, vector<1x256xf32>
    %381 = vector.broadcast %370 : vector<1x256xf32> to vector<64x256xf32>
    %382 = arith.subf %357, %381 : vector<64x256xf32>
    %383 = vector.broadcast %378 : vector<1x256xf32> to vector<64x256xf32>
    %384 = arith.mulf %382, %383 : vector<64x256xf32>
    %385 = vector.broadcast %379 : vector<1x256xf32> to vector<64x256xf32>
    %386 = arith.mulf %384, %385 : vector<64x256xf32>
    %387 = vector.broadcast %380 : vector<1x256xf32> to vector<64x256xf32>
    %388 = arith.addf %386, %387 : vector<64x256xf32>
    %cst_253 = arith.constant 0.000000e+00 : f32
    %389 = vector.broadcast %cst_253 : f32 to vector<64x256xf32>
    %390 = arith.maximumf %388, %389 : vector<64x256xf32>
    %cst_254 = arith.constant dense<0.000000e+00> : vector<256xf32>
    %391 = vector.multi_reduction <add>, %390, %cst_254 [0] : vector<64x256xf32> to vector<256xf32>
    %392 = vector.shape_cast %391 : vector<256xf32> to vector<1x256xf32>
    %cst_255 = arith.constant 6.400000e+01 : f32
    %393 = vector.broadcast %cst_255 : f32 to vector<1x256xf32>
    %394 = arith.divf %392, %393 : vector<1x256xf32>
    %395 = arith.truncf %394 : vector<1x256xf32> to vector<1x256xbf16>
    %c0_256 = arith.constant 0 : index
    %c0_257 = arith.constant 0 : index
    %396 = vector.load %arg18[%c0_256, %c0_257] : memref<256x128xbf16, #tpu.memory_space<vmem>>, vector<256x128xbf16>
    %cst_258 = arith.constant dense<0.000000e+00> : vector<1x128xf32>
    %397 = tpu.matmul %395, %396, %cst_258 {dimension_numbers = #tpu.dot_dimension_numbers<[1], [0], [0], [1], [0, 0, 1, 1], [], []>} : vector<1x256xbf16>, vector<256x128xbf16>, vector<1x128xf32> -> vector<1x128xf32>
    %c0_259 = arith.constant 0 : index
    %c0_260 = arith.constant 0 : index
    %398 = vector.load %arg19[%c0_259, %c0_260] : memref<1x128xf32, #tpu.memory_space<vmem>>, vector<1x128xf32>
    %399 = arith.addf %397, %398 : vector<1x128xf32>
    %cst_261 = arith.constant 5.000000e-01 : f32
    %400 = vector.broadcast %cst_261 : f32 to vector<1x128xf32>
    %401 = arith.mulf %400, %399 : vector<1x128xf32>
    %cst_262 = arith.constant 4.471500e-02 : f32
    %402 = vector.broadcast %cst_262 : f32 to vector<1x128xf32>
    %403 = arith.mulf %402, %399 : vector<1x128xf32>
    %404 = arith.mulf %403, %399 : vector<1x128xf32>
    %405 = arith.mulf %404, %399 : vector<1x128xf32>
    %406 = arith.addf %399, %405 : vector<1x128xf32>
    %cst_263 = arith.constant 0.797884583 : f32
    %407 = vector.broadcast %cst_263 : f32 to vector<1x128xf32>
    %408 = arith.mulf %407, %406 : vector<1x128xf32>
    %409 = math.tanh %408 : vector<1x128xf32>
    %cst_264 = arith.constant 1.000000e+00 : f32
    %410 = vector.broadcast %cst_264 : f32 to vector<1x128xf32>
    %411 = arith.addf %410, %409 : vector<1x128xf32>
    %412 = arith.mulf %401, %411 : vector<1x128xf32>
    %413 = arith.truncf %412 : vector<1x128xf32> to vector<1x128xbf16>
    %c0_265 = arith.constant 0 : index
    %c0_266 = arith.constant 0 : index
    %414 = vector.load %arg20[%c0_265, %c0_266] : memref<128x128xbf16, #tpu.memory_space<vmem>>, vector<128x128xbf16>
    %cst_267 = arith.constant dense<0.000000e+00> : vector<1x128xf32>
    %415 = tpu.matmul %413, %414, %cst_267 {dimension_numbers = #tpu.dot_dimension_numbers<[1], [0], [0], [1], [0, 0, 1, 1], [], []>} : vector<1x128xbf16>, vector<128x128xbf16>, vector<1x128xf32> -> vector<1x128xf32>
    %c0_268 = arith.constant 0 : index
    %c0_269 = arith.constant 0 : index
    %416 = vector.load %arg21[%c0_268, %c0_269] : memref<1x128xf32, #tpu.memory_space<vmem>>, vector<1x128xf32>
    %417 = arith.addf %415, %416 : vector<1x128xf32>
    %c0_270 = arith.constant 0 : index
    %c0_271 = arith.constant 0 : index
    %c0_272 = arith.constant 0 : index
    %418 = vector.load %arg2[%c0_270, %c0_271, %c0_272] : memref<1x1x128xi32, #tpu.memory_space<vmem>>, vector<1x1x128xi32>
    %419 = vector.shape_cast %418 : vector<1x1x128xi32> to vector<1x128xi32>
    %c0_i32 = arith.constant 0 : i32
    %420 = vector.broadcast %c0_i32 : i32 to vector<1x128xi32>
    %421 = arith.cmpi ne, %419, %420 : vector<1x128xi32>
    %cst_273 = arith.constant -1.000000e+04 : f32
    %422 = vector.broadcast %cst_273 : f32 to vector<1x128xf32>
    %423 = arith.select %421, %422, %417 : vector<1x128xi1>, vector<1x128xf32>
    %c0_274 = arith.constant 0 : index
    %c0_275 = arith.constant 0 : index
    %c0_276 = arith.constant 0 : index
    %424 = vector.load %arg22[%c0_274, %c0_275, %c0_276] : memref<1x1x128xf32, #tpu.memory_space<vmem>>, vector<1x1x128xf32>
    %425 = vector.shape_cast %424 : vector<1x1x128xf32> to vector<1x128xf32>
    %426 = vector.shape_cast %423 : vector<1x128xf32> to vector<1x1x128xf32>
    tpu.vector_store %arg22[%c0_274, %c0_275, %c0_276], %426 {strides = array<i32>} : memref<1x1x128xf32, #tpu.memory_space<vmem>>, vector<1x1x128xf32>,
    return
  }
  func.func @transform_0(%arg0: i32) -> (i32, i32, i32) {
    %c0_i32 = arith.constant 0 : i32
    %c0_i32_0 = arith.constant 0 : i32
    %c0_i32_1 = arith.constant 0 : i32
    return %arg0, %c0_i32, %c0_i32_0 : i32, i32, i32
  }
  func.func @transform_1(%arg0: i32) -> (i32, i32, i32) {
    %c0_i32 = arith.constant 0 : i32
    %c0_i32_0 = arith.constant 0 : i32
    %c0_i32_1 = arith.constant 0 : i32
    return %arg0, %c0_i32, %c0_i32_0 : i32, i32, i32
  }
  func.func @transform_2(%arg0: i32) -> (i32, i32) {
    %c0_i32 = arith.constant 0 : i32
    %c0_i32_0 = arith.constant 0 : i32
    %c0_i32_1 = arith.constant 0 : i32
    return %c0_i32, %c0_i32_0 : i32, i32
  }
  func.func @transform_3(%arg0: i32) -> (i32, i32) {
    %c0_i32 = arith.constant 0 : i32
    %c0_i32_0 = arith.constant 0 : i32
    %c0_i32_1 = arith.constant 0 : i32
    return %c0_i32, %c0_i32_0 : i32, i32
  }
  func.func @transform_4(%arg0: i32) -> (i32, i32) {
    %c0_i32 = arith.constant 0 : i32
    %c0_i32_0 = arith.constant 0 : i32
    %c0_i32_1 = arith.constant 0 : i32
    return %c0_i32, %c0_i32_0 : i32, i32
  }
  func.func @transform_5(%arg0: i32) -> (i32, i32) {
    %c0_i32 = arith.constant 0 : i32
    %c0_i32_0 = arith.constant 0 : i32
    %c0_i32_1 = arith.constant 0 : i32
    return %c0_i32, %c0_i32_0 : i32, i32
  }
  func.func @transform_6(%arg0: i32) -> (i32, i32) {
    %c0_i32 = arith.constant 0 : i32
    %c0_i32_0 = arith.constant 0 : i32
    %c0_i32_1 = arith.constant 0 : i32
    return %c0_i32, %c0_i32_0 : i32, i32
  }
  func.func @transform_7(%arg0: i32) -> (i32, i32) {
    %c0_i32 = arith.constant 0 : i32
    %c0_i32_0 = arith.constant 0 : i32
    %c0_i32_1 = arith.constant 0 : i32
    return %c0_i32, %c0_i32_0 : i32, i32
  }
  func.func @transform_8(%arg0: i32) -> (i32, i32, i32) {
    %c0_i32 = arith.constant 0 : i32
    %c0_i32_0 = arith.constant 0 : i32
    %c0_i32_1 = arith.constant 0 : i32
    %c0_i32_2 = arith.constant 0 : i32
    return %c0_i32, %c0_i32_0, %c0_i32_1 : i32, i32, i32
  }
  func.func @transform_9(%arg0: i32) -> (i32, i32) {
    %c0_i32 = arith.constant 0 : i32
    %c0_i32_0 = arith.constant 0 : i32
    %c0_i32_1 = arith.constant 0 : i32
    return %c0_i32, %c0_i32_0 : i32, i32
  }
  func.func @transform_10(%arg0: i32) -> (i32, i32) {
    %c0_i32 = arith.constant 0 : i32
    %c0_i32_0 = arith.constant 0 : i32
    %c0_i32_1 = arith.constant 0 : i32
    return %c0_i32, %c0_i32_0 : i32, i32
  }
  func.func @transform_11(%arg0: i32) -> (i32, i32) {
    %c0_i32 = arith.constant 0 : i32
    %c0_i32_0 = arith.constant 0 : i32
    %c0_i32_1 = arith.constant 0 : i32
    return %c0_i32, %c0_i32_0 : i32, i32
  }
  func.func @transform_12(%arg0: i32) -> (i32, i32) {
    %c0_i32 = arith.constant 0 : i32
    %c0_i32_0 = arith.constant 0 : i32
    %c0_i32_1 = arith.constant 0 : i32
    return %c0_i32, %c0_i32_0 : i32, i32
  }
  func.func @transform_13(%arg0: i32) -> (i32, i32, i32) {
    %c0_i32 = arith.constant 0 : i32
    %c0_i32_0 = arith.constant 0 : i32
    %c0_i32_1 = arith.constant 0 : i32
    %c0_i32_2 = arith.constant 0 : i32
    return %c0_i32, %c0_i32_0, %c0_i32_1 : i32, i32, i32
  }
  func.func @transform_14(%arg0: i32) -> (i32, i32) {
    %c0_i32 = arith.constant 0 : i32
    %c0_i32_0 = arith.constant 0 : i32
    %c0_i32_1 = arith.constant 0 : i32
    return %c0_i32, %c0_i32_0 : i32, i32
  }
  func.func @transform_15(%arg0: i32) -> (i32, i32) {
    %c0_i32 = arith.constant 0 : i32
    %c0_i32_0 = arith.constant 0 : i32
    %c0_i32_1 = arith.constant 0 : i32
    return %c0_i32, %c0_i32_0 : i32, i32
  }
  func.func @transform_16(%arg0: i32) -> (i32, i32) {
    %c0_i32 = arith.constant 0 : i32
    %c0_i32_0 = arith.constant 0 : i32
    %c0_i32_1 = arith.constant 0 : i32
    return %c0_i32, %c0_i32_0 : i32, i32
  }
  func.func @transform_17(%arg0: i32) -> (i32, i32) {
    %c0_i32 = arith.constant 0 : i32
    %c0_i32_0 = arith.constant 0 : i32
    %c0_i32_1 = arith.constant 0 : i32
    return %c0_i32, %c0_i32_0 : i32, i32
  }
  func.func @transform_18(%arg0: i32) -> (i32, i32) {
    %c0_i32 = arith.constant 0 : i32
    %c0_i32_0 = arith.constant 0 : i32
    %c0_i32_1 = arith.constant 0 : i32
    return %c0_i32, %c0_i32_0 : i32, i32
  }
  func.func @transform_19(%arg0: i32) -> (i32, i32) {
    %c0_i32 = arith.constant 0 : i32
    %c0_i32_0 = arith.constant 0 : i32
    %c0_i32_1 = arith.constant 0 : i32
    return %c0_i32, %c0_i32_0 : i32, i32
  }
  func.func @transform_20(%arg0: i32) -> (i32, i32) {
    %c0_i32 = arith.constant 0 : i32
    %c0_i32_0 = arith.constant 0 : i32
    %c0_i32_1 = arith.constant 0 : i32
    return %c0_i32, %c0_i32_0 : i32, i32
  }
  func.func @transform_21(%arg0: i32) -> (i32, i32, i32) {
    %c0_i32 = arith.constant 0 : i32
    %c0_i32_0 = arith.constant 0 : i32
    %c0_i32_1 = arith.constant 0 : i32
    return %arg0, %c0_i32, %c0_i32_0 : i32, i32, i32
  }
}

</mosaic_0001>

<llo_original>
// kernel: disease_classifier_forward.1
$region0: #{disease_classifier_forward.1}
  #allocation0 [shape = 'u32[]', space=smem, size = 0x4, offset = 0x4, fixed_abs, tag = 'smem constant byte address 0x4 - core index']
  #allocation1 [shape = 'u32[144,128]{1,0:T(1,128)}', space=vmem, size = 0x12000, scoped, tag = 'internal scratch']
  #allocation2 [shape = 'f32[18,18,128]{2,1,0:T(8,128)}', space=vmem, size = 0x36000, scoped, tag = 'scratch operand']
  %s0 = inlined_call_operand.vmem [shape: bf16[2,256,32], index: 0, kind: input, shape index: {}]
  %s1 = inlined_call_operand.vmem [shape: s32[2,1,128], index: 1, kind: input, shape index: {}]
  %s2 = inlined_call_operand.hbm [shape: bf16[32,128], index: 2, kind: input, shape index: {}]
  %s3 = inlined_call_operand.vmem [shape: f32[128,128], index: 3, kind: input, shape index: {}]
  %s4 = inlined_call_operand.vmem [shape: f32[256,256], index: 4, kind: input, shape index: {}]
  %s5 = inlined_call_operand.vmem [shape: f32[6,128], index: 5, kind: input, shape index: {}]
  %s6 = inlined_call_operand.vmem [shape: bf16[128,128], index: 6, kind: input, shape index: {}]
  %s7 = inlined_call_operand.hbm [shape: bf16[128,128], index: 7, kind: input, shape index: {}]
  %s8 = inlined_call_operand.vmem [shape: bf16[9,128,128], index: 8, kind: input, shape index: {}]
  %s9 = inlined_call_operand.hbm [shape: bf16[128,128], index: 9, kind: input, shape index: {}]
  %s10 = inlined_call_operand.hbm [shape: f32[6,128], index: 10, kind: input, shape index: {}]
  %s11 = inlined_call_operand.hbm [shape: bf16[128,128], index: 11, kind: input, shape index: {}]
  %s12 = inlined_call_operand.vmem [shape: bf16[128,256], index: 12, kind: input, shape index: {}]
  %s13 = inlined_call_operand.vmem [shape: bf16[9,128,128], index: 13, kind: input, shape index: {}]
  %s14 = inlined_call_operand.vmem [shape: bf16[128,256], index: 14, kind: input, shape index: {}]
  %s15 = inlined_call_operand.hbm [shape: bf16[64,256], index: 15, kind: input, shape index: {}]
  %s16 = inlined_call_operand.hbm [shape: f32[2,256], index: 16, kind: input, shape index: {}]
  %s17 = inlined_call_operand.vmem [shape: bf16[256,128], index: 17, kind: input, shape index: {}]
  %s18 = inlined_call_operand.vmem [shape: f32[1,128], index: 18, kind: input, shape index: {}]
  %s19 = inlined_call_operand.hbm [shape: bf16[128,128], index: 19, kind: input, shape index: {}]
  %s20 = inlined_call_operand.hbm [shape: f32[1,128], index: 20, kind: input, shape index: {}]
  %s21 = inlined_call_operand.hbm [shape: f32[2,1,128], index: 21, kind: output, shape index: {}]
  %s22 = sld [smem:[#allocation0]]
  $region153: #{disease_classifier_forward.1} parent=0
    _
  %s24 = ssub.s32 1, %s22
  %s25 = scalar_select 0, %s24, %s22
  $region1: #{disease_classifier_forward.1} parent=0
    #allocation3 [shape = 'u8[8192]{0}', space=vmem, size = 0x2000, scoped, tag = 'input window, operand 2, single buffered']
    #allocation4 [shape = 's32[2]{0}', space=sflag, size = 0x8, scoped, tag = 'scoped memory for disease_classifier_forward.1']
    #allocation5 [shape = 's32[2]{0}', space=sflag, size = 0x8, scoped, tag = 'scoped memory for disease_classifier_forward.1']
    #allocation6 [shape = 'u8[32768]{0}', space=vmem, size = 0x8000, scoped, tag = 'input window, operand 7, single buffered']
    #allocation7 [shape = 's32[1]{0}', space=sflag, size = 0x4, scoped, tag = 'scoped memory for disease_classifier_forward.1']
    #allocation8 [shape = 'u8[32768]{0}', space=vmem, size = 0x8000, scoped, tag = 'input window, operand 9, single buffered']
    #allocation9 [shape = 'u8[4096]{0}', space=vmem, size = 0x1000, scoped, tag = 'input window, operand 10, single buffered']
    #allocation10 [shape = 's32[1]{0}', space=sflag, size = 0x4, scoped, tag = 'scoped memory for disease_classifier_forward.1']
    #allocation11 [shape = 'u8[32768]{0}', space=vmem, size = 0x8000, scoped, tag = 'input window, operand 11, single buffered']
    #allocation12 [shape = 'u8[32768]{0}', space=vmem, size = 0x8000, scoped, tag = 'input window, operand 15, single buffered']
    #allocation13 [shape = 's32[1]{0}', space=sflag, size = 0x4, scoped, tag = 'scoped memory for disease_classifier_forward.1']
    #allocation14 [shape = 'u8[2048]{0}', space=vmem, size = 0x800, scoped, tag = 'input window, operand 16, single buffered']
    #allocation15 [shape = 'u8[32768]{0}', space=vmem, size = 0x8000, scoped, tag = 'input window, operand 19, single buffered']
    #allocation16 [shape = 's32[1]{0}', space=sflag, size = 0x4, scoped, tag = 'scoped memory for disease_classifier_forward.1']
    #allocation17 [shape = 'u8[512]{0}', space=vmem, size = 0x400, scoped, tag = 'input window, operand 20, single buffered']
    #allocation18 [shape = 'u8[1024]{0}', space=vmem, size = 0x400, scoped, tag = 'output window, operand 0']
    %26 = vsyncpa [#allocation4], 0
    %27 = vsyncpa [#allocation7], 0
    %28 = vsyncpa [#allocation10], 0
    %29 = vsyncpa [#allocation13], 0
    %30 = vsyncpa [#allocation16], 0
    %31 = vsyncpa [#allocation5], 0
    %s32 = scalar_lea.sflag [#allocation5], 1
    %33 = vsyncpa %s32, 0
    loop: start=0, step=1, limit=4
    $region2: #{disease_classifier_forward.1} parent=1 // loop_pre_header
      _
    $region3: #{disease_classifier_forward.1} parent=1 // loop_header
      %s35 = sphi 0, %s39
      %p36 = scmp.ge.s32.totalorder %s35, 4
      %s45 = sphi 0, %s47
      %s48 = sphi 0, %s45
      %s49 = sphi 0, %s48
      %s65 = sphi 0, %s49
      %s71 = sphi 0, %s73
      %s74 = sphi 0, %s71
      %s75 = sphi 0, %s74
      %s91 = sphi 0, %s75
      %s95 = sphi 0, %s95
      %s97 = sphi 0, %s95
      %s98 = sphi 0, %s97
      %s112 = sphi 0, %s98
      %s116 = sphi 0, %s116
      %s118 = sphi 0, %s116
      %s119 = sphi 0, %s118
      %s133 = sphi 0, %s119
      %s137 = sphi 0, %s137
      %s139 = sphi 0, %s137
      %s140 = sphi 0, %s139
      %s154 = sphi 0, %s140
      %s158 = sphi 0, %s158
      %s160 = sphi 0, %s158
      %s161 = sphi 0, %s160
      %s175 = sphi 0, %s161
      %s179 = sphi 0, %s179
      %s181 = sphi 0, %s179
      %s182 = sphi 0, %s181
      %s196 = sphi 0, %s182
      %s200 = sphi 0, %s200
      %s202 = sphi 0, %s200
      %s203 = sphi 0, %s202
      %s217 = sphi 0, %s203
      %s221 = sphi 0, %s221
      %s223 = sphi 0, %s221
      %s224 = sphi 0, %s223
      %s238 = sphi 0, %s224
      %s242 = sphi 0, %s242
      %s244 = sphi 0, %s242
      %s245 = sphi 0, %s244
      %s259 = sphi 0, %s245
      %s263 = sphi 0, %s263
      %s265 = sphi 0, %s263
      %s266 = sphi 0, %s265
      %s280 = sphi 0, %s266
      %s284 = sphi 0, %s284
      %s286 = sphi 0, %s284
      %s287 = sphi 0, %s286
      %s301 = sphi 0, %s287
      %s305 = sphi 0, %s305
      %s307 = sphi 0, %s305
      %s308 = sphi 0, %s307
      %s322 = sphi 0, %s308
      %s326 = sphi 0, %s326
      %s328 = sphi 0, %s326
      %s329 = sphi 0, %s328
      %s343 = sphi 0, %s329
      %s347 = sphi 0, %s347
      %s349 = sphi 0, %s347
      %s350 = sphi 0, %s349
      %s364 = sphi 0, %s350
      %s368 = sphi 0, %s368
      %s370 = sphi 0, %s368
      %s371 = sphi 0, %s370
      %s385 = sphi 0, %s371
      %s389 = sphi 0, %s389
      %s391 = sphi 0, %s389
      %s392 = sphi 0, %s391
      %s406 = sphi 0, %s392
      %s410 = sphi 0, %s410
      %s412 = sphi 0, %s410
      %s413 = sphi 0, %s412
      %s427 = sphi 0, %s413
      %s431 = sphi 0, %s431
      %s433 = sphi 0, %s431
      %s434 = sphi 0, %s433
      %s448 = sphi 0, %s434
      %s452 = sphi 0, %s452
      %s454 = sphi 0, %s452
      %s455 = sphi 0, %s454
      %s469 = sphi 0, %s455
      %s473 = sphi 0, %s473
      %s475 = sphi 0, %s473
      %s476 = sphi 0, %s475
      %s490 = sphi 0, %s476
      %s496 = sphi 0, %s498
      %s499 = sphi 0, %s496
      %s500 = sphi 0, %s499
      %s516 = sphi 0, %s500
    $region4: #{disease_classifier_forward.1} parent=1 // loop_header_branch
      %38 = sbr.rel (%p36) target = $region8
    $region5: #{disease_classifier_forward.1} parent=1 // loop_body
      %s40 = ssub.s32 %s35, 1
      %s41 = ssub.s32 %s35, 2
      %s42 = sadd.s32 %s35, 1
      %s43 = ssub.s32 %s35, %s42
      %p44 = scmp.eq.s32.totalorder %s43, 0
      %s46 = sadd.s32 %s45, 1
      %s47 = scalar_select %p44, %s45, %s46
      %p50 = pneg %p44
      %p51 = scmp.eq.s32.totalorder %s35, 1
      %p52 = por %p50, %p51
      %p53 = scmp.ne.s32.totalorder %s45, %s48
      %p54 = scmp.eq.s32.totalorder %s35, 0
      %p55 = por %p53, %p54
      %p56 = scmp.ne.s32.totalorder %s45, %s48
      %p57 = scmp.eq.s32.totalorder %s40, 1
      %p58 = por %p56, %p57
      %p59 = scmp.ne.s32.totalorder %s48, %s49
      %p60 = scmp.eq.s32.totalorder %s40, 0
      %p61 = por %p59, %p60
      %p62 = scmp.ne.s32.totalorder %s48, %s49
      %p63 = scmp.eq.s32.totalorder %s41, 1
      %p64 = por %p62, %p63
      %p66 = scmp.ne.s32.totalorder %s49, %s65
      %p67 = scmp.eq.s32.totalorder %s41, 0
      %p68 = por %p66, %p67
      %s69 = ssub.s32 %s35, %s42
      %p70 = scmp.eq.s32.totalorder %s69, 0
      %s72 = sadd.s32 %s71, 1
      %s73 = scalar_select %p70, %s71, %s72
      %p76 = pneg %p70
      %p77 = scmp.eq.s32.totalorder %s35, 1
      %p78 = por %p76, %p77
      %p79 = scmp.ne.s32.totalorder %s71, %s74
      %p80 = scmp.eq.s32.totalorder %s35, 0
      %p81 = por %p79, %p80
      %p82 = scmp.ne.s32.totalorder %s71, %s74
      %p83 = scmp.eq.s32.totalorder %s40, 1
      %p84 = por %p82, %p83
      %p85 = scmp.ne.s32.totalorder %s74, %s75
      %p86 = scmp.eq.s32.totalorder %s40, 0
      %p87 = por %p85, %p86
      %p88 = scmp.ne.s32.totalorder %s74, %s75
      %p89 = scmp.eq.s32.totalorder %s41, 1
      %p90 = por %p88, %p89
      %p92 = scmp.ne.s32.totalorder %s75, %s91
      %p93 = scmp.eq.s32.totalorder %s41, 0
      %p94 = por %p92, %p93
      %s96 = sadd.s32 %s95, 1
      %p99 = scmp.eq.s32.totalorder %s35, 1
      %p100 = scmp.ne.s32.totalorder %s95, %s97
      %p101 = scmp.eq.s32.totalorder %s35, 0
      %p102 = por %p100, %p101
      %p103 = scmp.ne.s32.totalorder %s95, %s97
      %p104 = scmp.eq.s32.totalorder %s40, 1
      %p105 = por %p103, %p104
      %p106 = scmp.ne.s32.totalorder %s97, %s98
      %p107 = scmp.eq.s32.totalorder %s40, 0
      %p108 = por %p106, %p107
      %p109 = scmp.ne.s32.totalorder %s97, %s98
      %p110 = scmp.eq.s32.totalorder %s41, 1
      %p111 = por %p109, %p110
      %p113 = scmp.ne.s32.totalorder %s98, %s112
      %p114 = scmp.eq.s32.totalorder %s41, 0
      %p115 = por %p113, %p114
      %s117 = sadd.s32 %s116, 1
      %p120 = scmp.eq.s32.totalorder %s35, 1
      %p121 = scmp.ne.s32.totalorder %s116, %s118
      %p122 = scmp.eq.s32.totalorder %s35, 0
      %p123 = por %p121, %p122
      %p124 = scmp.ne.s32.totalorder %s116, %s118
      %p125 = scmp.eq.s32.totalorder %s40, 1
      %p126 = por %p124, %p125
      %p127 = scmp.ne.s32.totalorder %s118, %s119
      %p128 = scmp.eq.s32.totalorder %s40, 0
      %p129 = por %p127, %p128
      %p130 = scmp.ne.s32.totalorder %s118, %s119
      %p131 = scmp.eq.s32.totalorder %s41, 1
      %p132 = por %p130, %p131
      %p134 = scmp.ne.s32.totalorder %s119, %s133
      %p135 = scmp.eq.s32.totalorder %s41, 0
      %p136 = por %p134, %p135
      %s138 = sadd.s32 %s137, 1
      %p141 = scmp.eq.s32.totalorder %s35, 1
      %p142 = scmp.ne.s32.totalorder %s137, %s139
      %p143 = scmp.eq.s32.totalorder %s35, 0
      %p144 = por %p142, %p143
      %p145 = scmp.ne.s32.totalorder %s137, %s139
      %p146 = scmp.eq.s32.totalorder %s40, 1
      %p147 = por %p145, %p146
      %p148 = scmp.ne.s32.totalorder %s139, %s140
      %p149 = scmp.eq.s32.totalorder %s40, 0
      %p150 = por %p148, %p149
      %p151 = scmp.ne.s32.totalorder %s139, %s140
      %p152 = scmp.eq.s32.totalorder %s41, 1
      %p153 = por %p151, %p152
      %p155 = scmp.ne.s32.totalorder %s140, %s154
      %p156 = scmp.eq.s32.totalorder %s41, 0
      %p157 = por %p155, %p156
      %s159 = sadd.s32 %s158, 1
      %p162 = scmp.eq.s32.totalorder %s35, 1
      %p163 = scmp.ne.s32.totalorder %s158, %s160
      %p164 = scmp.eq.s32.totalorder %s35, 0
      %p165 = por %p163, %p164
      %p166 = scmp.ne.s32.totalorder %s158, %s160
      %p167 = scmp.eq.s32.totalorder %s40, 1
      %p168 = por %p166, %p167
      %p169 = scmp.ne.s32.totalorder %s160, %s161
      %p170 = scmp.eq.s32.totalorder %s40, 0
      %p171 = por %p169, %p170
      %p172 = scmp.ne.s32.totalorder %s160, %s161
      %p173 = scmp.eq.s32.totalorder %s41, 1
      %p174 = por %p172, %p173
      %p176 = scmp.ne.s32.totalorder %s161, %s175
      %p177 = scmp.eq.s32.totalorder %s41, 0
      %p178 = por %p176, %p177
      %s180 = sadd.s32 %s179, 1
      %p183 = scmp.eq.s32.totalorder %s35, 1
      %p184 = scmp.ne.s32.totalorder %s179, %s181
      %p185 = scmp.eq.s32.totalorder %s35, 0
      %p186 = por %p184, %p185
      %p187 = scmp.ne.s32.totalorder %s179, %s181
      %p188 = scmp.eq.s32.totalorder %s40, 1
      %p189 = por %p187, %p188
      %p190 = scmp.ne.s32.totalorder %s181, %s182
      %p191 = scmp.eq.s32.totalorder %s40, 0
      %p192 = por %p190, %p191
      %p193 = scmp.ne.s32.totalorder %s181, %s182
      %p194 = scmp.eq.s32.totalorder %s41, 1
      %p195 = por %p193, %p194
      %p197 = scmp.ne.s32.totalorder %s182, %s196
      %p198 = scmp.eq.s32.totalorder %s41, 0
      %p199 = por %p197, %p198
      %s201 = sadd.s32 %s200, 1
      %p204 = scmp.eq.s32.totalorder %s35, 1
      %p205 = scmp.ne.s32.totalorder %s200, %s202
      %p206 = scmp.eq.s32.totalorder %s35, 0
      %p207 = por %p205, %p206
      %p208 = scmp.ne.s32.totalorder %s200, %s202
      %p209 = scmp.eq.s32.totalorder %s40, 1
      %p210 = por %p208, %p209
      %p211 = scmp.ne.s32.totalorder %s202, %s203
      %p212 = scmp.eq.s32.totalorder %s40, 0
      %p213 = por %p211, %p212
      %p214 = scmp.ne.s32.totalorder %s202, %s203
      %p215 = scmp.eq.s32.totalorder %s41, 1
      %p216 = por %p214, %p215
      %p218 = scmp.ne.s32.totalorder %s203, %s217
      %p219 = scmp.eq.s32.totalorder %s41, 0
      %p220 = por %p218, %p219
      %s222 = sadd.s32 %s221, 1
      %p225 = scmp.eq.s32.totalorder %s35, 1
      %p226 = scmp.ne.s32.totalorder %s221, %s223
      %p227 = scmp.eq.s32.totalorder %s35, 0
      %p228 = por %p226, %p227
      %p229 = scmp.ne.s32.totalorder %s221, %s223
      %p230 = scmp.eq.s32.totalorder %s40, 1
      %p231 = por %p229, %p230
      %p232 = scmp.ne.s32.totalorder %s223, %s224
      %p233 = scmp.eq.s32.totalorder %s40, 0
      %p234 = por %p232, %p233
      %p235 = scmp.ne.s32.totalorder %s223, %s224
      %p236 = scmp.eq.s32.totalorder %s41, 1
      %p237 = por %p235, %p236
      %p239 = scmp.ne.s32.totalorder %s224, %s238
      %p240 = scmp.eq.s32.totalorder %s41, 0
      %p241 = por %p239, %p240
      %s243 = sadd.s32 %s242, 1
      %p246 = scmp.eq.s32.totalorder %s35, 1
      %p247 = scmp.ne.s32.totalorder %s242, %s244
      %p248 = scmp.eq.s32.totalorder %s35, 0
      %p249 = por %p247, %p248
      %p250 = scmp.ne.s32.totalorder %s242, %s244
      %p251 = scmp.eq.s32.totalorder %s40, 1
      %p252 = por %p250, %p251
      %p253 = scmp.ne.s32.totalorder %s244, %s245
      %p254 = scmp.eq.s32.totalorder %s40, 0
      %p255 = por %p253, %p254
      %p256 = scmp.ne.s32.totalorder %s244, %s245
      %p257 = scmp.eq.s32.totalorder %s41, 1
      %p258 = por %p256, %p257
      %p260 = scmp.ne.s32.totalorder %s245, %s259
      %p261 = scmp.eq.s32.totalorder %s41, 0
      %p262 = por %p260, %p261
      %s264 = sadd.s32 %s263, 1
      %p267 = scmp.eq.s32.totalorder %s35, 1
      %p268 = scmp.ne.s32.totalorder %s263, %s265
      %p269 = scmp.eq.s32.totalorder %s35, 0
      %p270 = por %p268, %p269
      %p271 = scmp.ne.s32.totalorder %s263, %s265
      %p272 = scmp.eq.s32.totalorder %s40, 1
      %p273 = por %p271, %p272
      %p274 = scmp.ne.s32.totalorder %s265, %s266
      %p275 = scmp.eq.s32.totalorder %s40, 0
      %p276 = por %p274, %p275
      %p277 = scmp.ne.s32.totalorder %s265, %s266
      %p278 = scmp.eq.s32.totalorder %s41, 1
      %p279 = por %p277, %p278
      %p281 = scmp.ne.s32.totalorder %s266, %s280
      %p282 = scmp.eq.s32.totalorder %s41, 0
      %p283 = por %p281, %p282
      %s285 = sadd.s32 %s284, 1
      %p288 = scmp.eq.s32.totalorder %s35, 1
      %p289 = scmp.ne.s32.totalorder %s284, %s286
      %p290 = scmp.eq.s32.totalorder %s35, 0
      %p291 = por %p289, %p290
      %p292 = scmp.ne.s32.totalorder %s284, %s286
      %p293 = scmp.eq.s32.totalorder %s40, 1
      %p294 = por %p292, %p293
      %p295 = scmp.ne.s32.totalorder %s286, %s287
      %p296 = scmp.eq.s32.totalorder %s40, 0
      %p297 = por %p295, %p296
      %p298 = scmp.ne.s32.totalorder %s286, %s287
      %p299 = scmp.eq.s32.totalorder %s41, 1
      %p300 = por %p298, %p299
      %p302 = scmp.ne.s32.totalorder %s287, %s301
      %p303 = scmp.eq.s32.totalorder %s41, 0
      %p304 = por %p302, %p303
      %s306 = sadd.s32 %s305, 1
      %p309 = scmp.eq.s32.totalorder %s35, 1
      %p310 = scmp.ne.s32.totalorder %s305, %s307
      %p311 = scmp.eq.s32.totalorder %s35, 0
      %p312 = por %p310, %p311
      %p313 = scmp.ne.s32.totalorder %s305, %s307
      %p314 = scmp.eq.s32.totalorder %s40, 1
      %p315 = por %p313, %p314
      %p316 = scmp.ne.s32.totalorder %s307, %s308
      %p317 = scmp.eq.s32.totalorder %s40, 0
      %p318 = por %p316, %p317
      %p319 = scmp.ne.s32.totalorder %s307, %s308
      %p320 = scmp.eq.s32.totalorder %s41, 1
      %p321 = por %p319, %p320
      %p323 = scmp.ne.s32.totalorder %s308, %s322
      %p324 = scmp.eq.s32.totalorder %s41, 0
      %p325 = por %p323, %p324
      %s327 = sadd.s32 %s326, 1
      %p330 = scmp.eq.s32.totalorder %s35, 1
      %p331 = scmp.ne.s32.totalorder %s326, %s328
      %p332 = scmp.eq.s32.totalorder %s35, 0
      %p333 = por %p331, %p332
      %p334 = scmp.ne.s32.totalorder %s326, %s328
      %p335 = scmp.eq.s32.totalorder %s40, 1
      %p336 = por %p334, %p335
      %p337 = scmp.ne.s32.totalorder %s328, %s329
      %p338 = scmp.eq.s32.totalorder %s40, 0
      %p339 = por %p337, %p338
      %p340 = scmp.ne.s32.totalorder %s328, %s329
      %p341 = scmp.eq.s32.totalorder %s41, 1
      %p342 = por %p340, %p341
      %p344 = scmp.ne.s32.totalorder %s329, %s343
      %p345 = scmp.eq.s32.totalorder %s41, 0
      %p346 = por %p344, %p345
      %s348 = sadd.s32 %s347, 1
      %p351 = scmp.eq.s32.totalorder %s35, 1
      %p352 = scmp.ne.s32.totalorder %s347, %s349
      %p353 = scmp.eq.s32.totalorder %s35, 0
      %p354 = por %p352, %p353
      %p355 = scmp.ne.s32.totalorder %s347, %s349
      %p356 = scmp.eq.s32.totalorder %s40, 1
      %p357 = por %p355, %p356
      %p358 = scmp.ne.s32.totalorder %s349, %s350
      %p359 = scmp.eq.s32.totalorder %s40, 0
      %p360 = por %p358, %p359
      %p361 = scmp.ne.s32.totalorder %s349, %s350
      %p362 = scmp.eq.s32.totalorder %s41, 1
      %p363 = por %p361, %p362
      %p365 = scmp.ne.s32.totalorder %s350, %s364
      %p366 = scmp.eq.s32.totalorder %s41, 0
      %p367 = por %p365, %p366
      %s369 = sadd.s32 %s368, 1
      %p372 = scmp.eq.s32.totalorder %s35, 1
      %p373 = scmp.ne.s32.totalorder %s368, %s370
      %p374 = scmp.eq.s32.totalorder %s35, 0
      %p375 = por %p373, %p374
      %p376 = scmp.ne.s32.totalorder %s368, %s370
      %p377 = scmp.eq.s32.totalorder %s40, 1
      %p378 = por %p376, %p377
      %p379 = scmp.ne.s32.totalorder %s370, %s371
      %p380 = scmp.eq.s32.totalorder %s40, 0
      %p381 = por %p379, %p380
      %p382 = scmp.ne.s32.totalorder %s370, %s371
      %p383 = scmp.eq.s32.totalorder %s41, 1
      %p384 = por %p382, %p383
      %p386 = scmp.ne.s32.totalorder %s371, %s385
      %p387 = scmp.eq.s32.totalorder %s41, 0
      %p388 = por %p386, %p387
      %s390 = sadd.s32 %s389, 1
      %p393 = scmp.eq.s32.totalorder %s35, 1
      %p394 = scmp.ne.s32.totalorder %s389, %s391
      %p395 = scmp.eq.s32.totalorder %s35, 0
      %p396 = por %p394, %p395
      %p397 = scmp.ne.s32.totalorder %s389, %s391
      %p398 = scmp.eq.s32.totalorder %s40, 1
      %p399 = por %p397, %p398
      %p400 = scmp.ne.s32.totalorder %s391, %s392
      %p401 = scmp.eq.s32.totalorder %s40, 0
      %p402 = por %p400, %p401
      %p403 = scmp.ne.s32.totalorder %s391, %s392
      %p404 = scmp.eq.s32.totalorder %s41, 1
      %p405 = por %p403, %p404
      %p407 = scmp.ne.s32.totalorder %s392, %s406
      %p408 = scmp.eq.s32.totalorder %s41, 0
      %p409 = por %p407, %p408
      %s411 = sadd.s32 %s410, 1
      %p414 = scmp.eq.s32.totalorder %s35, 1
      %p415 = scmp.ne.s32.totalorder %s410, %s412
      %p416 = scmp.eq.s32.totalorder %s35, 0
      %p417 = por %p415, %p416
      %p418 = scmp.ne.s32.totalorder %s410, %s412
      %p419 = scmp.eq.s32.totalorder %s40, 1
      %p420 = por %p418, %p419
      %p421 = scmp.ne.s32.totalorder %s412, %s413
      %p422 = scmp.eq.s32.totalorder %s40, 0
      %p423 = por %p421, %p422
      %p424 = scmp.ne.s32.totalorder %s412, %s413
      %p425 = scmp.eq.s32.totalorder %s41, 1
      %p426 = por %p424, %p425
      %p428 = scmp.ne.s32.totalorder %s413, %s427
      %p429 = scmp.eq.s32.totalorder %s41, 0
      %p430 = por %p428, %p429
      %s432 = sadd.s32 %s431, 1
      %p435 = scmp.eq.s32.totalorder %s35, 1
      %p436 = scmp.ne.s32.totalorder %s431, %s433
      %p437 = scmp.eq.s32.totalorder %s35, 0
      %p438 = por %p436, %p437
      %p439 = scmp.ne.s32.totalorder %s431, %s433
      %p440 = scmp.eq.s32.totalorder %s40, 1
      %p441 = por %p439, %p440
      %p442 = scmp.ne.s32.totalorder %s433, %s434
      %p443 = scmp.eq.s32.totalorder %s40, 0
      %p444 = por %p442, %p443
      %p445 = scmp.ne.s32.totalorder %s433, %s434
      %p446 = scmp.eq.s32.totalorder %s41, 1
      %p447 = por %p445, %p446
      %p449 = scmp.ne.s32.totalorder %s434, %s448
      %p450 = scmp.eq.s32.totalorder %s41, 0
      %p451 = por %p449, %p450
      %s453 = sadd.s32 %s452, 1
      %p456 = scmp.eq.s32.totalorder %s35, 1
      %p457 = scmp.ne.s32.totalorder %s452, %s454
      %p458 = scmp.eq.s32.totalorder %s35, 0
      %p459 = por %p457, %p458
      %p460 = scmp.ne.s32.totalorder %s452, %s454
      %p461 = scmp.eq.s32.totalorder %s40, 1
      %p462 = por %p460, %p461
      %p463 = scmp.ne.s32.totalorder %s454, %s455
      %p464 = scmp.eq.s32.totalorder %s40, 0
      %p465 = por %p463, %p464
      %p466 = scmp.ne.s32.totalorder %s454, %s455
      %p467 = scmp.eq.s32.totalorder %s41, 1
      %p468 = por %p466, %p467
      %p470 = scmp.ne.s32.totalorder %s455, %s469
      %p471 = scmp.eq.s32.totalorder %s41, 0
      %p472 = por %p470, %p471
      %s474 = sadd.s32 %s473, 1
      %p477 = scmp.eq.s32.totalorder %s35, 1
      %p478 = scmp.ne.s32.totalorder %s473, %s475
      %p479 = scmp.eq.s32.totalorder %s35, 0
      %p480 = por %p478, %p479
      %p481 = scmp.ne.s32.totalorder %s473, %s475
      %p482 = scmp.eq.s32.totalorder %s40, 1
      %p483 = por %p481, %p482
      %p484 = scmp.ne.s32.totalorder %s475, %s476
      %p485 = scmp.eq.s32.totalorder %s40, 0
      %p486 = por %p484, %p485
      %p487 = scmp.ne.s32.totalorder %s475, %s476
      %p488 = scmp.eq.s32.totalorder %s41, 1
      %p489 = por %p487, %p488
      %p491 = scmp.ne.s32.totalorder %s476, %s490
      %p492 = scmp.eq.s32.totalorder %s41, 0
      %p493 = por %p491, %p492
      %s494 = ssub.s32 %s35, %s42
      %p495 = scmp.eq.s32.totalorder %s494, 0
      %s497 = sadd.s32 %s496, 1
      %s498 = scalar_select %p495, %s496, %s497
      %p501 = pneg %p495
      %p502 = scmp.eq.s32.totalorder %s35, 1
      %p503 = por %p501, %p502
      %p504 = scmp.ne.s32.totalorder %s496, %s499
      %p505 = scmp.eq.s32.totalorder %s35, 0
      %p506 = por %p504, %p505
      %p507 = scmp.ne.s32.totalorder %s496, %s499
      %p508 = scmp.eq.s32.totalorder %s40, 1
      %p509 = por %p507, %p508
      %p510 = scmp.ne.s32.totalorder %s499, %s500
      %p511 = scmp.eq.s32.totalorder %s40, 0
      %p512 = por %p510, %p511
      %p513 = scmp.ne.s32.totalorder %s499, %s500
      %p514 = scmp.eq.s32.totalorder %s41, 1
      %p515 = por %p513, %p514
      %p517 = scmp.ne.s32.totalorder %s500, %s516
      %p518 = scmp.eq.s32.totalorder %s41, 0
      %p519 = por %p517, %p518
      %p520 = scmp.le.s32.totalorder 1, %s35
      %p521 = scmp.lt.s32.totalorder %s35, 3
      %p522 = pnand %p520, %p521
      %p523 = pneg %p522
      // Predicated region
      $region9: #{disease_classifier_forward.1} parent=5 // pred_check
        _
      $region10: #{disease_classifier_forward.1} parent=5 // pred_check_branch
        %525 = sbr.rel (%p522) target = $region12
      $region11: #{disease_classifier_forward.1} parent=5 // pred_region
        %s526 = ssub.s32 %s35, 1
        // Predicated region
        $region13: #{disease_classifier_forward.1} parent=11 // pred_check
          %p527 = pneg %p108
        $region14: #{disease_classifier_forward.1} parent=11 // pred_check_branch
          %529 = sbr.rel (%p527) target = $region16
        $region15: #{disease_classifier_forward.1} parent=11 // pred_region
          %s531 = ssub.s32 256, 256
          %532 = vsyncadd [#allocation4], %s531
          %s533 = sshll.u32 [#allocation3], 4
          %s534 = int_to_ptr.vmem [resolvable:$true] %s533
          %539 = dma.hbm_to_vmem [thread:$0]  %s2, 256, %s534, [#allocation4], 64, 64, 4
        $region16: #{disease_classifier_forward.1} parent=11 // pred_fallthru
          _
        // Predicated region
        $region17: #{disease_classifier_forward.1} parent=11 // pred_check
          %p540 = pneg %p129
        $region18: #{disease_classifier_forward.1} parent=11 // pred_check_branch
          %542 = sbr.rel (%p540) target = $region20
        $region19: #{disease_classifier_forward.1} parent=11 // pred_region
          _
        $region20: #{disease_classifier_forward.1} parent=11 // pred_fallthru
          _
        // Predicated region
        $region21: #{disease_classifier_forward.1} parent=11 // pred_check
          %p543 = pneg %p150
        $region22: #{disease_classifier_forward.1} parent=11 // pred_check_branch
          %545 = sbr.rel (%p543) target = $region24
        $region23: #{disease_classifier_forward.1} parent=11 // pred_region
          _
        $region24: #{disease_classifier_forward.1} parent=11 // pred_fallthru
          _
        // Predicated region
        $region25: #{disease_classifier_forward.1} parent=11 // pred_check
          %p546 = pneg %p171
        $region26: #{disease_classifier_forward.1} parent=11 // pred_check_branch
          %548 = sbr.rel (%p546) target = $region28
        $region27: #{disease_classifier_forward.1} parent=11 // pred_region
          _
        $region28: #{disease_classifier_forward.1} parent=11 // pred_fallthru
          _
        // Predicated region
        $region29: #{disease_classifier_forward.1} parent=11 // pred_check
          %p549 = pneg %p192
        $region30: #{disease_classifier_forward.1} parent=11 // pred_check_branch
          %551 = sbr.rel (%p549) target = $region32
        $region31: #{disease_classifier_forward.1} parent=11 // pred_region
          _
        $region32: #{disease_classifier_forward.1} parent=11 // pred_fallthru
          _
        // Predicated region
        $region33: #{disease_classifier_forward.1} parent=11 // pred_check
          %p552 = pneg %p213
        $region34: #{disease_classifier_forward.1} parent=11 // pred_check_branch
          %554 = sbr.rel (%p552) target = $region36
        $region35: #{disease_classifier_forward.1} parent=11 // pred_region
          %s556 = ssub.s32 1024, 1024
          %557 = vsyncadd [#allocation7], %s556
          %s558 = sshll.u32 [#allocation6], 4
          %s559 = int_to_ptr.vmem [resolvable:$true] %s558
          %564 = dma.hbm_to_vmem [thread:$0]  %s7, 1024, %s559, [#allocation7], 64, 64, 4
        $region36: #{disease_classifier_forward.1} parent=11 // pred_fallthru
          _
        // Predicated region
        $region37: #{disease_classifier_forward.1} parent=11 // pred_check
          %p565 = pneg %p234
        $region38: #{disease_classifier_forward.1} parent=11 // pred_check_branch
          %567 = sbr.rel (%p565) target = $region40
        $region39: #{disease_classifier_forward.1} parent=11 // pred_region
          _
        $region40: #{disease_classifier_forward.1} parent=11 // pred_fallthru
          _
        // Predicated region
        $region41: #{disease_classifier_forward.1} parent=11 // pred_check
          %p568 = pneg %p255
        $region42: #{disease_classifier_forward.1} parent=11 // pred_check_branch
          %570 = sbr.rel (%p568) target = $region44
        $region43: #{disease_classifier_forward.1} parent=11 // pred_region
          %s572 = ssub.s32 1024, 1024
          %573 = vsyncadd [#allocation7], %s572
          %s574 = sshll.u32 [#allocation8], 4
          %s575 = int_to_ptr.vmem [resolvable:$true] %s574
          %580 = dma.hbm_to_vmem [thread:$0]  %s9, 1024, %s575, [#allocation7], 64, 64, 4
        $region44: #{disease_classifier_forward.1} parent=11 // pred_fallthru
          _
        // Predicated region
        $region45: #{disease_classifier_forward.1} parent=11 // pred_check
          %p581 = pneg %p276
        $region46: #{disease_classifier_forward.1} parent=11 // pred_check_branch
          %583 = sbr.rel (%p581) target = $region48
        $region47: #{disease_classifier_forward.1} parent=11 // pred_region
          %s585 = ssub.s32 128, 128
          %586 = vsyncadd [#allocation10], %s585
          %s588 = sshll.u32 [#allocation9], 4
          %s589 = int_to_ptr.vmem [resolvable:$true] %s588
          %591 = dma.hbm_to_vmem [thread:$0]  %s10, 128, %s589, [#allocation10]
        $region48: #{disease_classifier_forward.1} parent=11 // pred_fallthru
          _
        // Predicated region
        $region49: #{disease_classifier_forward.1} parent=11 // pred_check
          %p592 = pneg %p297
        $region50: #{disease_classifier_forward.1} parent=11 // pred_check_branch
          %594 = sbr.rel (%p592) target = $region52
        $region51: #{disease_classifier_forward.1} parent=11 // pred_region
          %s596 = ssub.s32 1024, 1024
          %597 = vsyncadd [#allocation10], %s596
          %s598 = sshll.u32 [#allocation11], 4
          %s599 = int_to_ptr.vmem [resolvable:$true] %s598
          %604 = dma.hbm_to_vmem [thread:$0]  %s11, 1024, %s599, [#allocation10], 64, 64, 4
        $region52: #{disease_classifier_forward.1} parent=11 // pred_fallthru
          _
        // Predicated region
        $region53: #{disease_classifier_forward.1} parent=11 // pred_check
          %p605 = pneg %p318
        $region54: #{disease_classifier_forward.1} parent=11 // pred_check_branch
          %607 = sbr.rel (%p605) target = $region56
        $region55: #{disease_classifier_forward.1} parent=11 // pred_region
          _
        $region56: #{disease_classifier_forward.1} parent=11 // pred_fallthru
          _
        // Predicated region
        $region57: #{disease_classifier_forward.1} parent=11 // pred_check
          %p608 = pneg %p339
        $region58: #{disease_classifier_forward.1} parent=11 // pred_check_branch
          %610 = sbr.rel (%p608) target = $region60
        $region59: #{disease_classifier_forward.1} parent=11 // pred_region
          _
        $region60: #{disease_classifier_forward.1} parent=11 // pred_fallthru
          _
        // Predicated region
        $region61: #{disease_classifier_forward.1} parent=11 // pred_check
          %p611 = pneg %p360
        $region62: #{disease_classifier_forward.1} parent=11 // pred_check_branch
          %613 = sbr.rel (%p611) target = $region64
        $region63: #{disease_classifier_forward.1} parent=11 // pred_region
          _
        $region64: #{disease_classifier_forward.1} parent=11 // pred_fallthru
          _
        // Predicated region
        $region65: #{disease_classifier_forward.1} parent=11 // pred_check
          %p614 = pneg %p381
        $region66: #{disease_classifier_forward.1} parent=11 // pred_check_branch
          %616 = sbr.rel (%p614) target = $region68
        $region67: #{disease_classifier_forward.1} parent=11 // pred_region
          %s618 = ssub.s32 1024, 1024
          %619 = vsyncadd [#allocation13], %s618
          %s620 = sshll.u32 [#allocation12], 4
          %s621 = int_to_ptr.vmem [resolvable:$true] %s620
          %626 = dma.hbm_to_vmem [thread:$0]  %s15, 1024, %s621, [#allocation13], 128, 128, 8
        $region68: #{disease_classifier_forward.1} parent=11 // pred_fallthru
          _
        // Predicated region
        $region69: #{disease_classifier_forward.1} parent=11 // pred_check
          %p627 = pneg %p402
        $region70: #{disease_classifier_forward.1} parent=11 // pred_check_branch
          %629 = sbr.rel (%p627) target = $region72
        $region71: #{disease_classifier_forward.1} parent=11 // pred_region
          %s631 = ssub.s32 64, 64
          %632 = vsyncadd [#allocation13], %s631
          %s634 = sshll.u32 [#allocation14], 4
          %s635 = int_to_ptr.vmem [resolvable:$true] %s634
          %637 = dma.hbm_to_vmem [thread:$0]  %s16, 64, %s635, [#allocation13]
        $region72: #{disease_classifier_forward.1} parent=11 // pred_fallthru
          _
        // Predicated region
        $region73: #{disease_classifier_forward.1} parent=11 // pred_check
          %p638 = pneg %p423
        $region74: #{disease_classifier_forward.1} parent=11 // pred_check_branch
          %640 = sbr.rel (%p638) target = $region76
        $region75: #{disease_classifier_forward.1} parent=11 // pred_region
          _
        $region76: #{disease_classifier_forward.1} parent=11 // pred_fallthru
          _
        // Predicated region
        $region77: #{disease_classifier_forward.1} parent=11 // pred_check
          %p641 = pneg %p444
        $region78: #{disease_classifier_forward.1} parent=11 // pred_check_branch
          %643 = sbr.rel (%p641) target = $region80
        $region79: #{disease_classifier_forward.1} parent=11 // pred_region
          _
        $region80: #{disease_classifier_forward.1} parent=11 // pred_fallthru
          _
        // Predicated region
        $region81: #{disease_classifier_forward.1} parent=11 // pred_check
          %p644 = pneg %p465
        $region82: #{disease_classifier_forward.1} parent=11 // pred_check_branch
          %646 = sbr.rel (%p644) target = $region84
        $region83: #{disease_classifier_forward.1} parent=11 // pred_region
          %s648 = ssub.s32 1024, 1024
          %649 = vsyncadd [#allocation16], %s648
          %s650 = sshll.u32 [#allocation15], 4
          %s651 = int_to_ptr.vmem [resolvable:$true] %s650
          %656 = dma.hbm_to_vmem [thread:$0]  %s19, 1024, %s651, [#allocation16], 64, 64, 4
        $region84: #{disease_classifier_forward.1} parent=11 // pred_fallthru
          _
        // Predicated region
        $region85: #{disease_classifier_forward.1} parent=11 // pred_check
          %p657 = pneg %p486
        $region86: #{disease_classifier_forward.1} parent=11 // pred_check_branch
          %659 = sbr.rel (%p657) target = $region88
        $region87: #{disease_classifier_forward.1} parent=11 // pred_region
          %s661 = ssub.s32 16, 16
          %662 = vsyncadd [#allocation16], %s661
          %s664 = sshll.u32 [#allocation17], 4
          %s665 = int_to_ptr.vmem [resolvable:$true] %s664
          %667 = dma.hbm_to_vmem [thread:$0]  %s20, 16, %s665, [#allocation16]
        $region88: #{disease_classifier_forward.1} parent=11 // pred_fallthru
          _
      $region12: #{disease_classifier_forward.1} parent=5 // pred_fallthru
        _
      %p668 = scmp.lt.s32.totalorder %s35, 2
      // Predicated region
      $region89: #{disease_classifier_forward.1} parent=5 // pred_check
        %p669 = pneg %p668
      $region90: #{disease_classifier_forward.1} parent=5 // pred_check_branch
        %671 = sbr.rel (%p669) target = $region92
      $region91: #{disease_classifier_forward.1} parent=5 // pred_region
        // Predicated region
        $region93: #{disease_classifier_forward.1} parent=91 // pred_check
          %p672 = pneg %p55
        $region94: #{disease_classifier_forward.1} parent=91 // pred_check_branch
          %674 = sbr.rel (%p672) target = $region96
        $region95: #{disease_classifier_forward.1} parent=91 // pred_region
          %p675 = scmp.lt.s32.totalorder %s35, 1
          %s676 = scalar_select %p675, %s35, 1
          %s677 = smul.addr %s676, 32
          %s678 = smul.addr %s677, 4
          %s679 = scalar_lea.vmem %s0, %s678
        $region96: #{disease_classifier_forward.1} parent=91 // pred_fallthru
          _
        // Predicated region
        $region97: #{disease_classifier_forward.1} parent=91 // pred_check
          %p680 = pneg %p81
        $region98: #{disease_classifier_forward.1} parent=91 // pred_check_branch
          %682 = sbr.rel (%p680) target = $region100
        $region99: #{disease_classifier_forward.1} parent=91 // pred_region
          %p683 = scmp.lt.s32.totalorder %s35, 1
          %s684 = scalar_select %p683, %s35, 1
          %s685 = scalar_lea.vmem %s1, %s684
        $region100: #{disease_classifier_forward.1} parent=91 // pred_fallthru
          _
      $region92: #{disease_classifier_forward.1} parent=5 // pred_fallthru
        _
      %p686 = scmp.le.s32.totalorder 1, %s35
      %p687 = scmp.lt.s32.totalorder %s35, 3
      %p688 = pnand %p686, %p687
      %p689 = pneg %p688
      // Predicated region
      $region101: #{disease_classifier_forward.1} parent=5 // pred_check
        _
      $region102: #{disease_classifier_forward.1} parent=5 // pred_check_branch
        %691 = sbr.rel (%p688) target = $region104
      $region103: #{disease_classifier_forward.1} parent=5 // pred_region
        %s692 = ssub.s32 %s35, 1
        // Predicated region
        $region105: #{disease_classifier_forward.1} parent=103 // pred_check
          %p693 = pneg %p108
        $region106: #{disease_classifier_forward.1} parent=103 // pred_check_branch
          %695 = sbr.rel (%p693) target = $region108
        $region107: #{disease_classifier_forward.1} parent=103 // pred_region
          %696 = dma.done [#allocation4], 256
        $region108: #{disease_classifier_forward.1} parent=103 // pred_fallthru
          _
        // Predicated region
        $region109: #{disease_classifier_forward.1} parent=103 // pred_check
          %p697 = pneg %p213
        $region110: #{disease_classifier_forward.1} parent=103 // pred_check_branch
          %699 = sbr.rel (%p697) target = $region112
        $region111: #{disease_classifier_forward.1} parent=103 // pred_region
          %700 = dma.done [#allocation7], 1024
        $region112: #{disease_classifier_forward.1} parent=103 // pred_fallthru
          _
        // Predicated region
        $region113: #{disease_classifier_forward.1} parent=103 // pred_check
          %p701 = pneg %p255
        $region114: #{disease_classifier_forward.1} parent=103 // pred_check_branch
          %703 = sbr.rel (%p701) target = $region116
        $region115: #{disease_classifier_forward.1} parent=103 // pred_region
          %704 = dma.done [#allocation7], 1024
        $region116: #{disease_classifier_forward.1} parent=103 // pred_fallthru
          _
        // Predicated region
        $region117: #{disease_classifier_forward.1} parent=103 // pred_check
          %p705 = pneg %p276
        $region118: #{disease_classifier_forward.1} parent=103 // pred_check_branch
          %707 = sbr.rel (%p705) target = $region120
        $region119: #{disease_classifier_forward.1} parent=103 // pred_region
          %708 = dma.done [#allocation10], 128
        $region120: #{disease_classifier_forward.1} parent=103 // pred_fallthru
          _
        // Predicated region
        $region121: #{disease_classifier_forward.1} parent=103 // pred_check
          %p709 = pneg %p297
        $region122: #{disease_classifier_forward.1} parent=103 // pred_check_branch
          %711 = sbr.rel (%p709) target = $region124
        $region123: #{disease_classifier_forward.1} parent=103 // pred_region
          %712 = dma.done [#allocation10], 1024
        $region124: #{disease_classifier_forward.1} parent=103 // pred_fallthru
          _
        // Predicated region
        $region125: #{disease_classifier_forward.1} parent=103 // pred_check
          %p713 = pneg %p381
        $region126: #{disease_classifier_forward.1} parent=103 // pred_check_branch
          %715 = sbr.rel (%p713) target = $region128
        $region127: #{disease_classifier_forward.1} parent=103 // pred_region
          %716 = dma.done [#allocation13], 1024
        $region128: #{disease_classifier_forward.1} parent=103 // pred_fallthru
          _
        // Predicated region
        $region129: #{disease_classifier_forward.1} parent=103 // pred_check
          %p717 = pneg %p402
        $region130: #{disease_classifier_forward.1} parent=103 // pred_check_branch
          %719 = sbr.rel (%p717) target = $region132
        $region131: #{disease_classifier_forward.1} parent=103 // pred_region
          %720 = dma.done [#allocation13], 64
        $region132: #{disease_classifier_forward.1} parent=103 // pred_fallthru
          _
        // Predicated region
        $region133: #{disease_classifier_forward.1} parent=103 // pred_check
          %p721 = pneg %p465
        $region134: #{disease_classifier_forward.1} parent=103 // pred_check_branch
          %723 = sbr.rel (%p721) target = $region136
        $region135: #{disease_classifier_forward.1} parent=103 // pred_region
          %724 = dma.done [#allocation16], 1024
        $region136: #{disease_classifier_forward.1} parent=103 // pred_fallthru
          _
        // Predicated region
        $region137: #{disease_classifier_forward.1} parent=103 // pred_check
          %p725 = pneg %p486
        $region138: #{disease_classifier_forward.1} parent=103 // pred_check_branch
          %727 = sbr.rel (%p725) target = $region140
        $region139: #{disease_classifier_forward.1} parent=103 // pred_region
          %728 = dma.done [#allocation16], 16
        $region140: #{disease_classifier_forward.1} parent=103 // pred_fallthru
          _
        %p729 = scmp.lt.s32.totalorder %s40, 1
        %s730 = scalar_select %p729, %s40, 1
        %s731 = smul.addr %s730, 32
        %s732 = smul.addr %s731, 4
        %s733 = scalar_lea.vmem %s0, %s732
        %p734 = pneg %p61
        %p735 = pneg %p58
        %p736 = scmp.lt.s32.totalorder %s40, 1
        %s737 = scalar_select %p736, %s40, 1
        %s738 = scalar_lea.vmem %s1, %s737
        %p739 = pneg %p87
        %p740 = pneg %p84
        %p741 = pneg %p108
        %p742 = pneg %p105
        %p743 = pneg %p129
        %p744 = pneg %p126
        %p745 = pneg %p150
        %p746 = pneg %p147
        %p747 = pneg %p171
        %p748 = pneg %p168
        %p749 = pneg %p192
        %p750 = pneg %p189
        %p751 = pneg %p213
        %p752 = pneg %p210
        %p753 = pneg %p234
        %p754 = pneg %p231
        %p755 = pneg %p255
        %p756 = pneg %p252
        %p757 = pneg %p276
        %p758 = pneg %p273
        %p759 = pneg %p297
        %p760 = pneg %p294
        %p761 = pneg %p318
        %p762 = pneg %p315
        %p763 = pneg %p339
        %p764 = pneg %p336
        %p765 = pneg %p360
        %p766 = pneg %p357
        %p767 = pneg %p381
        %p768 = pneg %p378
        %p769 = pneg %p402
        %p770 = pneg %p399
        %p771 = pneg %p423
        %p772 = pneg %p420
        %p773 = pneg %p444
        %p774 = pneg %p441
        %p775 = pneg %p465
        %p776 = pneg %p462
        %p777 = pneg %p486
        %p778 = pneg %p483
        %p779 = pneg %p512
        %p780 = pneg %p509
        %s781 = sand.u32 %s499, 1
        %s782 = scalar_lea.sflag [#allocation5], %s781
        %s783 = sand.u32 %s499, 1
        %s784 = scalar_lea.vmem [#allocation18], %s783
        %p785 = scmp.lt.s32.totalorder %s40, 1
        %s786 = scalar_select %p785, %s40, 1
        %s787 = smul.addr %s786, 32
        %s788 = smul.addr %s787, 4
        %s789 = scalar_lea.vmem %s0, %s788
        %p790 = scmp.lt.s32.totalorder %s40, 1
        %s791 = scalar_select %p790, %s40, 1
        %s792 = scalar_lea.vmem %s1, %s791
        %794 = vst [vmem:[#allocation2] sm:$0xff] 0.0
        %795 = vst [vmem:[#allocation2 + $0x8] sm:$0xff] 0.0
        %796 = vst [vmem:[#allocation2 + $0x10] sm:$0x3] 0.0
        %s797 = scalar_lea.vmem [#allocation2], 408
        %798 = vst [vmem:[%s797] sm:$0xff] 0.0
        %799 = vst [vmem:[%s797 + $0x8] sm:$0xff] 0.0
        %800 = vst [vmem:[%s797 + $0x10] sm:$0x3] 0.0
        %801 = vst [vmem:[#allocation2] sm:$0x1] 0.0
        %802 = vst [vmem:[#allocation2 + $0x18] sm:$0x1] 0.0
        %803 = vst [vmem:[#allocation2 + $0x30] sm:$0x1] 0.0
        %804 = vst [vmem:[#allocation2 + $0x48] sm:$0x1] 0.0
        %805 = vst [vmem:[#allocation2 + $0x60] sm:$0x1] 0.0
        %806 = vst [vmem:[#allocation2 + $0x78] sm:$0x1] 0.0
        %807 = vst [vmem:[#allocation2 + $0x90] sm:$0x1] 0.0
        %808 = vst [vmem:[#allocation2 + $0xa8] sm:$0x1] 0.0
        %809 = vst [vmem:[#allocation2 + $0xc0] sm:$0x1] 0.0
        %810 = vst [vmem:[#allocation2 + $0xd8] sm:$0x1] 0.0
        %811 = vst [vmem:[#allocation2 + $0xf0] sm:$0x1] 0.0
        %812 = vst [vmem:[#allocation2 + $0x108] sm:$0x1] 0.0
        %813 = vst [vmem:[#allocation2 + $0x120] sm:$0x1] 0.0
        %814 = vst [vmem:[#allocation2 + $0x138] sm:$0x1] 0.0
        %815 = vst [vmem:[#allocation2 + $0x150] sm:$0x1] 0.0
        %816 = vst [vmem:[#allocation2 + $0x168] sm:$0x1] 0.0
        %817 = vst [vmem:[#allocation2 + $0x180] sm:$0x1] 0.0
        %818 = vst [vmem:[#allocation2 + $0x198] sm:$0x1] 0.0
        %819 = vst [vmem:[#allocation2 + $0x11] sm:$0x1] 0.0
        %820 = vst [vmem:[#allocation2 + $0x29] sm:$0x1] 0.0
        %821 = vst [vmem:[#allocation2 + $0x41] sm:$0x1] 0.0
        %822 = vst [vmem:[#allocation2 + $0x59] sm:$0x1] 0.0
        %823 = vst [vmem:[#allocation2 + $0x71] sm:$0x1] 0.0
        %824 = vst [vmem:[#allocation2 + $0x89] sm:$0x1] 0.0
        %825 = vst [vmem:[#allocation2 + $0xa1] sm:$0x1] 0.0
        %826 = vst [vmem:[#allocation2 + $0xb9] sm:$0x1] 0.0
        %827 = vst [vmem:[#allocation2 + $0xd1] sm:$0x1] 0.0
        %828 = vst [vmem:[#allocation2 + $0xe9] sm:$0x1] 0.0
        %829 = vst [vmem:[#allocation2 + $0x101] sm:$0x1] 0.0
        %830 = vst [vmem:[#allocation2 + $0x119] sm:$0x1] 0.0
        %831 = vst [vmem:[#allocation2 + $0x131] sm:$0x1] 0.0
        %832 = vst [vmem:[#allocation2 + $0x149] sm:$0x1] 0.0
        %833 = vst [vmem:[#allocation2 + $0x161] sm:$0x1] 0.0
        %834 = vst [vmem:[#allocation2 + $0x179] sm:$0x1] 0.0
        %835 = vst [vmem:[#allocation2 + $0x191] sm:$0x1] 0.0
        %836 = vst [vmem:[#allocation2 + $0x1a9] sm:$0x1] 0.0
        %v837 = vld [vmem:[%s789] sm:$0xf]
        %v838 = vld [vmem:[%s789 + $0x4] sm:$0xf]
        %v839 = vld [vmem:[%s789 + $0x8] sm:$0xf]
        %v840 = vld [vmem:[%s789 + $0xc] sm:$0xf]
        %v841 = vld [vmem:[%s789 + $0x10] sm:$0xf]
        %v842 = vld [vmem:[%s789 + $0x14] sm:$0xf]
        %v843 = vld [vmem:[%s789 + $0x18] sm:$0xf]
        %v844 = vld [vmem:[%s789 + $0x1c] sm:$0xf]
        %v845 = vld [vmem:[%s789 + $0x20] sm:$0xf]
        %v846 = vld [vmem:[%s789 + $0x24] sm:$0xf]
        %v847 = vld [vmem:[%s789 + $0x28] sm:$0xf]
        %v848 = vld [vmem:[%s789 + $0x2c] sm:$0xf]
        %v849 = vld [vmem:[%s789 + $0x30] sm:$0xf]
        %v850 = vld [vmem:[%s789 + $0x34] sm:$0xf]
        %v851 = vld [vmem:[%s789 + $0x38] sm:$0xf]
        %v852 = vld [vmem:[%s789 + $0x3c] sm:$0xf]
        %v853 = vld [vmem:[%s789 + $0x40] sm:$0xf]
        %v854 = vld [vmem:[%s789 + $0x44] sm:$0xf]
        %v855 = vld [vmem:[%s789 + $0x48] sm:$0xf]
        %v856 = vld [vmem:[%s789 + $0x4c] sm:$0xf]
        %v857 = vld [vmem:[%s789 + $0x50] sm:$0xf]
        %v858 = vld [vmem:[%s789 + $0x54] sm:$0xf]
        %v859 = vld [vmem:[%s789 + $0x58] sm:$0xf]
        %v860 = vld [vmem:[%s789 + $0x5c] sm:$0xf]
        %v861 = vld [vmem:[%s789 + $0x60] sm:$0xf]
        %v862 = vld [vmem:[%s789 + $0x64] sm:$0xf]
        %v863 = vld [vmem:[%s789 + $0x68] sm:$0xf]
        %v864 = vld [vmem:[%s789 + $0x6c] sm:$0xf]
        %v865 = vld [vmem:[%s789 + $0x70] sm:$0xf]
        %v866 = vld [vmem:[%s789 + $0x74] sm:$0xf]
        %v867 = vld [vmem:[%s789 + $0x78] sm:$0xf]
        %v868 = vld [vmem:[%s789 + $0x7c] sm:$0xf]
        %v869 = vld [vmem:[#allocation3] sm:$0xf]
        %v870 = vld [vmem:[#allocation3 + $0x4] sm:$0xf]
        %v871 = vld [vmem:[#allocation3 + $0x8] sm:$0xf]
        %v872 = vld [vmem:[#allocation3 + $0xc] sm:$0xf]
        %v905 = vunpack.c.l.b16 %v837
        %v906 = vunpack.c.l.b16 %v838
        %v907 = vunpack.c.l.b16 %v839
        %v908 = vunpack.c.l.b16 %v840
        %v909 = vunpack.c.l.b16 %v841
        %v910 = vunpack.c.l.b16 %v842
        %v911 = vunpack.c.l.b16 %v843
        %v912 = vunpack.c.l.b16 %v844
        %v913 = vunpack.c.l.b16 %v845
        %v914 = vunpack.c.l.b16 %v846
        %v915 = vunpack.c.l.b16 %v847
        %v916 = vunpack.c.l.b16 %v848
        %v917 = vunpack.c.l.b16 %v849
        %v918 = vunpack.c.l.b16 %v850
        %v919 = vunpack.c.l.b16 %v851
        %v920 = vunpack.c.l.b16 %v852
        %v921 = vunpack.c.l.b16 %v853
        %v922 = vunpack.c.l.b16 %v854
        %v923 = vunpack.c.l.b16 %v855
        %v924 = vunpack.c.l.b16 %v856
        %v925 = vunpack.c.l.b16 %v857
        %v926 = vunpack.c.l.b16 %v858
        %v927 = vunpack.c.l.b16 %v859
        %v928 = vunpack.c.l.b16 %v860
        %v929 = vunpack.c.l.b16 %v861
        %v930 = vunpack.c.l.b16 %v862
        %v931 = vunpack.c.l.b16 %v863
        %v932 = vunpack.c.l.b16 %v864
        %v933 = vunpack.c.l.b16 %v865
        %v934 = vunpack.c.l.b16 %v866
        %v935 = vunpack.c.l.b16 %v867
        %v936 = vunpack.c.l.b16 %v868
        %v937 = vpack.c.b16 %v906, %v905
        %v938 = vpack.c.b16 %v908, %v907
        %v939 = vpack.c.b16 %v910, %v909
        %v940 = vpack.c.b16 %v912, %v911
        %v941 = vpack.c.b16 %v914, %v913
        %v942 = vpack.c.b16 %v916, %v915
        %v943 = vpack.c.b16 %v918, %v917
        %v944 = vpack.c.b16 %v920, %v919
        %v945 = vpack.c.b16 %v922, %v921
        %v946 = vpack.c.b16 %v924, %v923
        %v947 = vpack.c.b16 %v926, %v925
        %v948 = vpack.c.b16 %v928, %v927
        %v949 = vpack.c.b16 %v930, %v929
        %v950 = vpack.c.b16 %v932, %v931
        %v951 = vpack.c.b16 %v934, %v933
        %v952 = vpack.c.b16 %v936, %v935
        %v957 = vunpack.c.l.b16 %v869
        %v958 = vunpack.c.l.b16 %v870
        %v959 = vunpack.c.l.b16 %v871
        %v960 = vunpack.c.l.b16 %v872
        %v961 = vpack.c.b16 %v958, %v957
        %v962 = vpack.c.b16 %v960, %v959
        %vm965 = vcmask 261120
        %v967 = vsel %vm965, %v937, 0
        %v970 = vsel %vm965, %v938, 0
        %v973 = vsel %vm965, %v939, 0
        %v976 = vsel %vm965, %v940, 0
        %v979 = vsel %vm965, %v941, 0
        %v982 = vsel %vm965, %v942, 0
        %v985 = vsel %vm965, %v943, 0
        %v988 = vsel %vm965, %v944, 0
        %v991 = vsel %vm965, %v945, 0
        %v994 = vsel %vm965, %v946, 0
        %v997 = vsel %vm965, %v947, 0
        %v1000 = vsel %vm965, %v948, 0
        %v1003 = vsel %vm965, %v949, 0
        %v1006 = vsel %vm965, %v950, 0
        %v1009 = vsel %vm965, %v951, 0
        %v1012 = vsel %vm965, %v952, 0
        %1014 = vmatprep.subr.bf16.mxu0 0
        %1015 = vmatpush1.bf16.msra.mxu0 %v961
        %1016 = vmatprep.subr.bf16.mxu0 0
        %1017 = vmatpush1.bf16.msra.mxu0 %v962
        %1018 = vmatprep.subr.bf16.mxu0 0
        %1019 = vmatpush1.bf16.msra.mxu0 0
        %1020 = vmatprep.subr.bf16.mxu0 0
        %1021 = vmatpush1.bf16.msra.mxu0 0
        %1022 = vmatprep.subr.bf16.mxu0 0
        %1023 = vmatpush1.bf16.msra.mxu0 0
        %1024 = vmatprep.subr.bf16.mxu0 0
        %1025 = vmatpush1.bf16.msra.mxu0 0
        %1026 = vmatprep.subr.bf16.mxu0 0
        %1027 = vmatpush1.bf16.msra.mxu0 0
        %1028 = vmatprep.subr.bf16.mxu0 0
        %1029 = vmatpush1.bf16.msra.mxu0 0
        %1030 = vmatprep.subr.bf16.mxu0 0
        %1031 = vmatpush1.bf16.msra.mxu0 0
        %1032 = vmatprep.subr.bf16.mxu0 0
        %1033 = vmatpush1.bf16.msra.mxu0 0
        %1034 = vmatprep.subr.bf16.mxu0 0
        %1035 = vmatpush1.bf16.msra.mxu0 0
        %1036 = vmatprep.subr.bf16.mxu0 0
        %1037 = vmatpush1.bf16.msra.mxu0 0
        %1038 = vmatprep.subr.bf16.mxu0 0
        %1039 = vmatpush1.bf16.msra.mxu0 0
        %1040 = vmatprep.subr.bf16.mxu0 0
        %1041 = vmatpush1.bf16.msra.mxu0 0
        %1042 = vmatprep.subr.bf16.mxu0 0
        %1043 = vmatpush1.bf16.msra.mxu0 0
        %1044 = vmatprep.subr.bf16.mxu0 0
        %1045 = vmatpush1.bf16.msra.mxu0 0
        %1046 = vmatprep.mubr.bf16.mxu0 0
        %1047 = vmatmul.mubr.bf16.gmra.mrb[0].mxu0 %v967
        %v1048 = vpop.f32.mrb[0].mxu0
        %v1049 = vadd.f32 0.0, %v1048
        %v1050 = vpop.f32.mrb[0].mxu0
        %v1051 = vpop.f32.mrb[0].mxu0
        %v1052 = vadd.f32 0.0, %v1051
        %v1053 = vpop.f32.mrb[0].mxu0
        %1054 = vmatprep.mubr.bf16.mxu0 0
        %1055 = vmatmul.mubr.bf16.gmra.mrb[0].mxu0 %v970
        %v1056 = vpop.f32.mrb[0].mxu0
        %v1057 = vadd.f32 0.0, %v1056
        %v1058 = vpop.f32.mrb[0].mxu0
        %v1059 = vpop.f32.mrb[0].mxu0
        %v1060 = vadd.f32 0.0, %v1059
        %v1061 = vpop.f32.mrb[0].mxu0
        %1062 = vmatprep.mubr.bf16.mxu0 0
        %1063 = vmatmul.mubr.bf16.gmra.mrb[0].mxu0 %v973
        %v1064 = vpop.f32.mrb[0].mxu0
        %v1065 = vadd.f32 0.0, %v1064
        %v1066 = vpop.f32.mrb[0].mxu0
        %v1067 = vpop.f32.mrb[0].mxu0
        %v1068 = vadd.f32 0.0, %v1067
        %v1069 = vpop.f32.mrb[0].mxu0
        %1070 = vmatprep.mubr.bf16.mxu0 0
        %1071 = vmatmul.mubr.bf16.gmra.mrb[0].mxu0 %v976
        %v1072 = vpop.f32.mrb[0].mxu0
        %v1073 = vadd.f32 0.0, %v1072
        %v1074 = vpop.f32.mrb[0].mxu0
        %v1075 = vpop.f32.mrb[0].mxu0
        %v1076 = vadd.f32 0.0, %v1075
        %v1077 = vpop.f32.mrb[0].mxu0
        %1078 = vmatprep.mubr.bf16.mxu0 0
        %1079 = vmatmul.mubr.bf16.gmra.mrb[0].mxu0 %v979
        %v1080 = vpop.f32.mrb[0].mxu0
        %v1081 = vadd.f32 0.0, %v1080
        %v1082 = vpop.f32.mrb[0].mxu0
        %v1083 = vpop.f32.mrb[0].mxu0
        %v1084 = vadd.f32 0.0, %v1083
        %v1085 = vpop.f32.mrb[0].mxu0
        %1086 = vmatprep.mubr.bf16.mxu0 0
        %1087 = vmatmul.mubr.bf16.gmra.mrb[0].mxu0 %v982
        %v1088 = vpop.f32.mrb[0].mxu0
        %v1089 = vadd.f32 0.0, %v1088
        %v1090 = vpop.f32.mrb[0].mxu0
        %v1091 = vpop.f32.mrb[0].mxu0
        %v1092 = vadd.f32 0.0, %v1091
        %v1093 = vpop.f32.mrb[0].mxu0
        %1094 = vmatprep.mubr.bf16.mxu0 0
        %1095 = vmatmul.mubr.bf16.gmra.mrb[0].mxu0 %v985
        %v1096 = vpop.f32.mrb[0].mxu0
        %v1097 = vadd.f32 0.0, %v1096
        %v1098 = vpop.f32.mrb[0].mxu0
        %v1099 = vpop.f32.mrb[0].mxu0
        %v1100 = vadd.f32 0.0, %v1099
        %v1101 = vpop.f32.mrb[0].mxu0
        %1102 = vmatprep.mubr.bf16.mxu0 0
        %1103 = vmatmul.mubr.bf16.gmra.mrb[0].mxu0 %v988
        %v1104 = vpop.f32.mrb[0].mxu0
        %v1105 = vadd.f32 0.0, %v1104
        %v1106 = vpop.f32.mrb[0].mxu0
        %v1107 = vpop.f32.mrb[0].mxu0
        %v1108 = vadd.f32 0.0, %v1107
        %v1109 = vpop.f32.mrb[0].mxu0
        %1110 = vmatprep.mubr.bf16.mxu0 0
        %1111 = vmatmul.mubr.bf16.gmra.mrb[0].mxu0 %v991
        %v1112 = vpop.f32.mrb[0].mxu0
        %v1113 = vadd.f32 0.0, %v1112
        %v1114 = vpop.f32.mrb[0].mxu0
        %v1115 = vpop.f32.mrb[0].mxu0
        %v1116 = vadd.f32 0.0, %v1115
        %v1117 = vpop.f32.mrb[0].mxu0
        %1118 = vmatprep.mubr.bf16.mxu0 0
        %1119 = vmatmul.mubr.bf16.gmra.mrb[0].mxu0 %v994
        %v1120 = vpop.f32.mrb[0].mxu0
        %v1121 = vadd.f32 0.0, %v1120
        %v1122 = vpop.f32.mrb[0].mxu0
        %v1123 = vpop.f32.mrb[0].mxu0
        %v1124 = vadd.f32 0.0, %v1123
        %v1125 = vpop.f32.mrb[0].mxu0
        %1126 = vmatprep.mubr.bf16.mxu0 0
        %1127 = vmatmul.mubr.bf16.gmra.mrb[0].mxu0 %v997
        %v1128 = vpop.f32.mrb[0].mxu0
        %v1129 = vadd.f32 0.0, %v1128
        %v1130 = vpop.f32.mrb[0].mxu0
        %v1131 = vpop.f32.mrb[0].mxu0
        %v1132 = vadd.f32 0.0, %v1131
        %v1133 = vpop.f32.mrb[0].mxu0
        %1134 = vmatprep.mubr.bf16.mxu0 0
        %1135 = vmatmul.mubr.bf16.gmra.mrb[0].mxu0 %v1000
        %v1136 = vpop.f32.mrb[0].mxu0
        %v1137 = vadd.f32 0.0, %v1136
        %v1138 = vpop.f32.mrb[0].mxu0
        %v1139 = vpop.f32.mrb[0].mxu0
        %v1140 = vadd.f32 0.0, %v1139
        %v1141 = vpop.f32.mrb[0].mxu0
        %1142 = vmatprep.mubr.bf16.mxu0 0
        %1143 = vmatmul.mubr.bf16.gmra.mrb[0].mxu0 %v1003
        %v1144 = vpop.f32.mrb[0].mxu0
        %v1145 = vadd.f32 0.0, %v1144
        %v1146 = vpop.f32.mrb[0].mxu0
        %v1147 = vpop.f32.mrb[0].mxu0
        %v1148 = vadd.f32 0.0, %v1147
        %v1149 = vpop.f32.mrb[0].mxu0
        %1150 = vmatprep.mubr.bf16.mxu0 0
        %1151 = vmatmul.mubr.bf16.gmra.mrb[0].mxu0 %v1006
        %v1152 = vpop.f32.mrb[0].mxu0
        %v1153 = vadd.f32 0.0, %v1152
        %v1154 = vpop.f32.mrb[0].mxu0
        %v1155 = vpop.f32.mrb[0].mxu0
        %v1156 = vadd.f32 0.0, %v1155
        %v1157 = vpop.f32.mrb[0].mxu0
        %1158 = vmatprep.mubr.bf16.mxu0 0
        %1159 = vmatmul.mubr.bf16.gmra.mrb[0].mxu0 %v1009
        %v1160 = vpop.f32.mrb[0].mxu0
        %v1161 = vadd.f32 0.0, %v1160
        %v1162 = vpop.f32.mrb[0].mxu0
        %v1163 = vpop.f32.mrb[0].mxu0
        %v1164 = vadd.f32 0.0, %v1163
        %v1165 = vpop.f32.mrb[0].mxu0
        %1166 = vmatprep.mubr.bf16.mxu0 0
        %1167 = vmatmul.mubr.bf16.gmra.mrb[0].mxu0 %v1012
        %v1168 = vpop.f32.mrb[0].mxu0
        %v1169 = vadd.f32 0.0, %v1168
        %v1170 = vpop.f32.mrb[0].mxu0
        %v1171 = vpop.f32.mrb[0].mxu0
        %v1172 = vadd.f32 0.0, %v1171
        %v1173 = vpop.f32.mrb[0].mxu0
        %1174 = vdwg.mxu0
        %v1175 = vld [vmem:[%s3] sm:$0xff]
        %v1176 = vld [vmem:[%s3 + $0x8] sm:$0xff]
        %v1177 = vld [vmem:[%s3 + $0x10] sm:$0xff]
        %v1178 = vld [vmem:[%s3 + $0x18] sm:$0xff]
        %v1179 = vld [vmem:[%s3 + $0x20] sm:$0xff]
        %v1180 = vld [vmem:[%s3 + $0x28] sm:$0xff]
        %v1181 = vld [vmem:[%s3 + $0x30] sm:$0xff]
        %v1182 = vld [vmem:[%s3 + $0x38] sm:$0xff]
        %v1183 = vld [vmem:[%s3 + $0x40] sm:$0xff]
        %v1184 = vld [vmem:[%s3 + $0x48] sm:$0xff]
        %v1185 = vld [vmem:[%s3 + $0x50] sm:$0xff]
        %v1186 = vld [vmem:[%s3 + $0x58] sm:$0xff]
        %v1187 = vld [vmem:[%s3 + $0x60] sm:$0xff]
        %v1188 = vld [vmem:[%s3 + $0x68] sm:$0xff]
        %v1189 = vld [vmem:[%s3 + $0x70] sm:$0xff]
        %v1190 = vld [vmem:[%s3 + $0x78] sm:$0xff]
        %v1191 = vadd.f32 %v1049, %v1052
        %v1192 = vadd.f32 %v1191, %v1057
        %v1193 = vadd.f32 %v1192, %v1060
        %v1194 = vadd.f32 %v1193, %v1065
        %v1195 = vadd.f32 %v1194, %v1068
        %v1196 = vadd.f32 %v1195, %v1073
        %v1197 = vadd.f32 %v1196, %v1076
        %v1198 = vadd.f32 %v1197, %v1081
        %v1199 = vadd.f32 %v1198, %v1084
        %v1200 = vadd.f32 %v1199, %v1089
        %v1201 = vadd.f32 %v1200, %v1092
        %v1202 = vadd.f32 %v1201, %v1097
        %v1203 = vadd.f32 %v1202, %v1100
        %v1204 = vadd.f32 %v1203, %v1105
        %v1205 = vadd.f32 %v1204, %v1108
        %v1206 = vadd.f32 %v1205, %v1113
        %v1207 = vadd.f32 %v1206, %v1116
        %v1208 = vadd.f32 %v1207, %v1121
        %v1209 = vadd.f32 %v1208, %v1124
        %v1210 = vadd.f32 %v1209, %v1129
        %v1211 = vadd.f32 %v1210, %v1132
        %v1212 = vadd.f32 %v1211, %v1137
        %v1213 = vadd.f32 %v1212, %v1140
        %v1214 = vadd.f32 %v1213, %v1145
        %v1215 = vadd.f32 %v1214, %v1148
        %v1216 = vadd.f32 %v1215, %v1153
        %v1217 = vadd.f32 %v1216, %v1156
        %v1218 = vadd.f32 %v1217, %v1161
        %v1219 = vadd.f32 %v1218, %v1164
        %v1220 = vadd.f32 %v1219, %v1169
        %v1221 = vadd.f32 %v1220, %v1172
        %v1222 = vrot.slane %v1221, 4
        %v1223 = vadd.f32 %v1221, %v1222
        %v1224 = vrot.slane %v1223, 2
        %v1225 = vadd.f32 %v1223, %v1224
        %v1226 = vrot.slane %v1225, 1
        %v1227 = vadd.f32 %v1225, %v1226
        %v1228 = vmul.f32 %v1227, 0.00390625
        %v1229 = vmul.f32 %v1049, %v1049
        %v1230 = vmul.f32 %v1052, %v1052
        %v1231 = vmul.f32 %v1057, %v1057
        %v1232 = vmul.f32 %v1060, %v1060
        %v1233 = vmul.f32 %v1065, %v1065
        %v1234 = vmul.f32 %v1068, %v1068
        %v1235 = vmul.f32 %v1073, %v1073
        %v1236 = vmul.f32 %v1076, %v1076
        %v1237 = vmul.f32 %v1081, %v1081
        %v1238 = vmul.f32 %v1084, %v1084
        %v1239 = vmul.f32 %v1089, %v1089
        %v1240 = vmul.f32 %v1092, %v1092
        %v1241 = vmul.f32 %v1097, %v1097
        %v1242 = vmul.f32 %v1100, %v1100
        %v1243 = vmul.f32 %v1105, %v1105
        %v1244 = vmul.f32 %v1108, %v1108
        %v1245 = vmul.f32 %v1113, %v1113
        %v1246 = vmul.f32 %v1116, %v1116
        %v1247 = vmul.f32 %v1121, %v1121
        %v1248 = vmul.f32 %v1124, %v1124
        %v1249 = vmul.f32 %v1129, %v1129
        %v1250 = vmul.f32 %v1132, %v1132
        %v1251 = vmul.f32 %v1137, %v1137
        %v1252 = vmul.f32 %v1140, %v1140
        %v1253 = vmul.f32 %v1145, %v1145
        %v1254 = vmul.f32 %v1148, %v1148
        %v1255 = vmul.f32 %v1153, %v1153
        %v1256 = vmul.f32 %v1156, %v1156
        %v1257 = vmul.f32 %v1161, %v1161
        %v1258 = vmul.f32 %v1164, %v1164
        %v1259 = vmul.f32 %v1169, %v1169
        %v1260 = vmul.f32 %v1172, %v1172
        %v1261 = vadd.f32 %v1229, %v1230
        %v1262 = vadd.f32 %v1261, %v1231
        %v1263 = vadd.f32 %v1262, %v1232
        %v1264 = vadd.f32 %v1263, %v1233
        %v1265 = vadd.f32 %v1264, %v1234
        %v1266 = vadd.f32 %v1265, %v1235
        %v1267 = vadd.f32 %v1266, %v1236
        %v1268 = vadd.f32 %v1267, %v1237
        %v1269 = vadd.f32 %v1268, %v1238
        %v1270 = vadd.f32 %v1269, %v1239
        %v1271 = vadd.f32 %v1270, %v1240
        %v1272 = vadd.f32 %v1271, %v1241
        %v1273 = vadd.f32 %v1272, %v1242
        %v1274 = vadd.f32 %v1273, %v1243
        %v1275 = vadd.f32 %v1274, %v1244
        %v1276 = vadd.f32 %v1275, %v1245
        %v1277 = vadd.f32 %v1276, %v1246
        %v1278 = vadd.f32 %v1277, %v1247
        %v1279 = vadd.f32 %v1278, %v1248
        %v1280 = vadd.f32 %v1279, %v1249
        %v1281 = vadd.f32 %v1280, %v1250
        %v1282 = vadd.f32 %v1281, %v1251
        %v1283 = vadd.f32 %v1282, %v1252
        %v1284 = vadd.f32 %v1283, %v1253
        %v1285 = vadd.f32 %v1284, %v1254
        %v1286 = vadd.f32 %v1285, %v1255
        %v1287 = vadd.f32 %v1286, %v1256
        %v1288 = vadd.f32 %v1287, %v1257
        %v1289 = vadd.f32 %v1288, %v1258
        %v1290 = vadd.f32 %v1289, %v1259
        %v1291 = vadd.f32 %v1290, %v1260
        %v1292 = vrot.slane %v1291, 4
        %v1293 = vadd.f32 %v1291, %v1292
        %v1294 = vrot.slane %v1293, 2
        %v1295 = vadd.f32 %v1293, %v1294
        %v1296 = vrot.slane %v1295, 1
        %v1297 = vadd.f32 %v1295, %v1296
        %v1298 = vmul.f32 %v1297, 0.00390625
        %vm1299 = vcmask 1040384
        %v1300 = vsel %vm1299, %v1228, %v1298
        %1301 = vmatprep.subr.mxu0 0.0
        %1302 = vmatpush1.msra.mxu0 %v1175
        %1303 = vmatprep.subr.mxu0 0.0
        %1304 = vmatpush1.msra.mxu0 %v1176
        %1305 = vmatprep.subr.mxu0 0.0
        %1306 = vmatpush1.msra.mxu0 %v1177
        %1307 = vmatprep.subr.mxu0 0.0
        %1308 = vmatpush1.msra.mxu0 %v1178
        %1309 = vmatprep.subr.mxu0 0.0
        %1310 = vmatpush1.msra.mxu0 %v1179
        %1311 = vmatprep.subr.mxu0 0.0
        %1312 = vmatpush1.msra.mxu0 %v1180
        %1313 = vmatprep.subr.mxu0 0.0
        %1314 = vmatpush1.msra.mxu0 %v1181
        %1315 = vmatprep.subr.mxu0 0.0
        %1316 = vmatpush1.msra.mxu0 %v1182
        %1317 = vmatprep.subr.mxu0 0.0
        %1318 = vmatpush1.msra.mxu0 %v1183
        %1319 = vmatprep.subr.mxu0 0.0
        %1320 = vmatpush1.msra.mxu0 %v1184
        %1321 = vmatprep.subr.mxu0 0.0
        %1322 = vmatpush1.msra.mxu0 %v1185
        %1323 = vmatprep.subr.mxu0 0.0
        %1324 = vmatpush1.msra.mxu0 %v1186
        %1325 = vmatprep.subr.mxu0 0.0
        %1326 = vmatpush1.msra.mxu0 %v1187
        %1327 = vmatprep.subr.mxu0 0.0
        %1328 = vmatpush1.msra.mxu0 %v1188
        %1329 = vmatprep.subr.mxu0 0.0
        %1330 = vmatpush1.msra.mxu0 %v1189
        %1331 = vmatprep.subr.mxu0 0.0
        %1332 = vmatpush1.msra.mxu0 %v1190
        %1333 = vmatprep.subr.mxu0 0.0
        %1334 = vmatpush1.msra.mxu0 0.0
        %1335 = vmatprep.subr.mxu0 0.0
        %1336 = vmatpush1.msra.mxu0 0.0
        %1337 = vmatprep.subr.mxu0 0.0
        %1338 = vmatpush1.msra.mxu0 0.0
        %1339 = vmatprep.subr.mxu0 0.0
        %1340 = vmatpush1.msra.mxu0 0.0
        %1341 = vmatprep.subr.mxu0 0.0
        %1342 = vmatpush1.msra.mxu0 0.0
        %1343 = vmatprep.subr.mxu0 0.0
        %1344 = vmatpush1.msra.mxu0 0.0
        %1345 = vmatprep.subr.mxu0 0.0
        %1346 = vmatpush1.msra.mxu0 0.0
        %1347 = vmatprep.subr.mxu0 0.0
        %1348 = vmatpush1.msra.mxu0 0.0
        %1349 = vmatprep.subr.mxu0 0.0
        %1350 = vmatpush1.msra.mxu0 0.0
        %1351 = vmatprep.subr.mxu0 0.0
        %1352 = vmatpush1.msra.mxu0 0.0
        %1353 = vmatprep.subr.mxu0 0.0
        %1354 = vmatpush1.msra.mxu0 0.0
        %1355 = vmatprep.subr.mxu0 0.0
        %1356 = vmatpush1.msra.mxu0 0.0
        %1357 = vmatprep.subr.mxu0 0.0
        %1358 = vmatpush1.msra.mxu0 0.0
        %1359 = vmatprep.subr.mxu0 0.0
        %1360 = vmatpush1.msra.mxu0 0.0
        %1361 = vmatprep.subr.mxu0 0.0
        %1362 = vmatpush1.msra.mxu0 0.0
        %1363 = vmatprep.subr.mxu0 0.0
        %1364 = vmatpush1.msra.mxu0 0.0
        %1365 = vmatprep.mubr.f32.mxu0 0.0
        %1366 = vmatmul.mubr.f32.gmra.mrb[0].mxu0 %v1300
        %v1367 = vpop.f32.mrb[0].mxu0
        %v1368 = vadd.f32 0.0, %v1367
        %v1369 = vpop.f32.mrb[0].mxu0
        %1370 = vdwg.mxu0
        %v1371 = vmul.f32 %v1368, %v1368
        %v1373 = vrot.slane %v1371, 7
        %v1375 = vsub.f32 %v1368, %v1373
        %v1376 = vmax.f32 %v1375, 0.0
        %v1377 = vadd.f32 %v1376, 1e-05
        %v1378 = vrsqrt.pop %v1377
        %v1379 = vld [vmem:[%s5] sm:$0x1]
        %v1380 = vld [vmem:[%s5 + $0x1] sm:$0x1]
        %v1381 = vlaneseq
        %v1382 = vshrl.u32 %v1381, 7
        %v1383 = vsub.s32 0, %v1382
        %v1384 = vrot.slane %v1368, %v1383
        %v1385 = vsub.f32 %v1049, %v1384
        %v1386 = vsub.f32 %v1052, %v1384
        %v1387 = vsub.f32 %v1057, %v1384
        %v1388 = vsub.f32 %v1060, %v1384
        %v1389 = vsub.f32 %v1065, %v1384
        %v1390 = vsub.f32 %v1068, %v1384
        %v1391 = vsub.f32 %v1073, %v1384
        %v1392 = vsub.f32 %v1076, %v1384
        %v1393 = vsub.f32 %v1081, %v1384
        %v1394 = vsub.f32 %v1084, %v1384
        %v1395 = vsub.f32 %v1089, %v1384
        %v1396 = vsub.f32 %v1092, %v1384
        %v1397 = vsub.f32 %v1097, %v1384
        %v1398 = vsub.f32 %v1100, %v1384
        %v1399 = vsub.f32 %v1105, %v1384
        %v1400 = vsub.f32 %v1108, %v1384
        %v1401 = vsub.f32 %v1113, %v1384
        %v1402 = vsub.f32 %v1116, %v1384
        %v1403 = vsub.f32 %v1121, %v1384
        %v1404 = vsub.f32 %v1124, %v1384
        %v1405 = vsub.f32 %v1129, %v1384
        %v1406 = vsub.f32 %v1132, %v1384
        %v1407 = vsub.f32 %v1137, %v1384
        %v1408 = vsub.f32 %v1140, %v1384
        %v1409 = vsub.f32 %v1145, %v1384
        %v1410 = vsub.f32 %v1148, %v1384
        %v1411 = vsub.f32 %v1153, %v1384
        %v1412 = vsub.f32 %v1156, %v1384
        %v1413 = vsub.f32 %v1161, %v1384
        %v1414 = vsub.f32 %v1164, %v1384
        %v1415 = vsub.f32 %v1169, %v1384
        %v1416 = vsub.f32 %v1172, %v1384
        %v1417 = vlaneseq
        %v1418 = vshrl.u32 %v1417, 7
        %v1419 = vsub.s32 1, %v1418
        %v1420 = vrot.slane %v1378, %v1419
        %v1421 = vmul.f32 %v1385, %v1420
        %v1422 = vmul.f32 %v1386, %v1420
        %v1423 = vmul.f32 %v1387, %v1420
        %v1424 = vmul.f32 %v1388, %v1420
        %v1425 = vmul.f32 %v1389, %v1420
        %v1426 = vmul.f32 %v1390, %v1420
        %v1427 = vmul.f32 %v1391, %v1420
        %v1428 = vmul.f32 %v1392, %v1420
        %v1429 = vmul.f32 %v1393, %v1420
        %v1430 = vmul.f32 %v1394, %v1420
        %v1431 = vmul.f32 %v1395, %v1420
        %v1432 = vmul.f32 %v1396, %v1420
        %v1433 = vmul.f32 %v1397, %v1420
        %v1434 = vmul.f32 %v1398, %v1420
        %v1435 = vmul.f32 %v1399, %v1420
        %v1436 = vmul.f32 %v1400, %v1420
        %v1437 = vmul.f32 %v1401, %v1420
        %v1438 = vmul.f32 %v1402, %v1420
        %v1439 = vmul.f32 %v1403, %v1420
        %v1440 = vmul.f32 %v1404, %v1420
        %v1441 = vmul.f32 %v1405, %v1420
        %v1442 = vmul.f32 %v1406, %v1420
        %v1443 = vmul.f32 %v1407, %v1420
        %v1444 = vmul.f32 %v1408, %v1420
        %v1445 = vmul.f32 %v1409, %v1420
        %v1446 = vmul.f32 %v1410, %v1420
        %v1447 = vmul.f32 %v1411, %v1420
        %v1448 = vmul.f32 %v1412, %v1420
        %v1449 = vmul.f32 %v1413, %v1420
        %v1450 = vmul.f32 %v1414, %v1420
        %v1451 = vmul.f32 %v1415, %v1420
        %v1452 = vmul.f32 %v1416, %v1420
        %v1453 = vlaneseq
        %v1454 = vshrl.u32 %v1453, 7
        %v1455 = vsub.s32 0, %v1454
        %v1456 = vrot.slane %v1379, %v1455
        %v1457 = vmul.f32 %v1421, %v1456
        %v1458 = vmul.f32 %v1422, %v1456
        %v1459 = vmul.f32 %v1423, %v1456
        %v1460 = vmul.f32 %v1424, %v1456
        %v1461 = vmul.f32 %v1425, %v1456
        %v1462 = vmul.f32 %v1426, %v1456
        %v1463 = vmul.f32 %v1427, %v1456
        %v1464 = vmul.f32 %v1428, %v1456
        %v1465 = vmul.f32 %v1429, %v1456
        %v1466 = vmul.f32 %v1430, %v1456
        %v1467 = vmul.f32 %v1431, %v1456
        %v1468 = vmul.f32 %v1432, %v1456
        %v1469 = vmul.f32 %v1433, %v1456
        %v1470 = vmul.f32 %v1434, %v1456
        %v1471 = vmul.f32 %v1435, %v1456
        %v1472 = vmul.f32 %v1436, %v1456
        %v1473 = vmul.f32 %v1437, %v1456
        %v1474 = vmul.f32 %v1438, %v1456
        %v1475 = vmul.f32 %v1439, %v1456
        %v1476 = vmul.f32 %v1440, %v1456
        %v1477 = vmul.f32 %v1441, %v1456
        %v1478 = vmul.f32 %v1442, %v1456
        %v1479 = vmul.f32 %v1443, %v1456
        %v1480 = vmul.f32 %v1444, %v1456
        %v1481 = vmul.f32 %v1445, %v1456
        %v1482 = vmul.f32 %v1446, %v1456
        %v1483 = vmul.f32 %v1447, %v1456
        %v1484 = vmul.f32 %v1448, %v1456
        %v1485 = vmul.f32 %v1449, %v1456
        %v1486 = vmul.f32 %v1450, %v1456
        %v1487 = vmul.f32 %v1451, %v1456
        %v1488 = vmul.f32 %v1452, %v1456
        %v1489 = vlaneseq
        %v1490 = vshrl.u32 %v1489, 7
        %v1491 = vsub.s32 0, %v1490
        %v1492 = vrot.slane %v1380, %v1491
        %v1493 = vadd.f32 %v1457, %v1492
        %v1494 = vadd.f32 %v1458, %v1492
        %v1495 = vadd.f32 %v1459, %v1492
        %v1496 = vadd.f32 %v1460, %v1492
        %v1497 = vadd.f32 %v1461, %v1492
        %v1498 = vadd.f32 %v1462, %v1492
        %v1499 = vadd.f32 %v1463, %v1492
        %v1500 = vadd.f32 %v1464, %v1492
        %v1501 = vadd.f32 %v1465, %v1492
        %v1502 = vadd.f32 %v1466, %v1492
        %v1503 = vadd.f32 %v1467, %v1492
        %v1504 = vadd.f32 %v1468, %v1492
        %v1505 = vadd.f32 %v1469, %v1492
        %v1506 = vadd.f32 %v1470, %v1492
        %v1507 = vadd.f32 %v1471, %v1492
        %v1508 = vadd.f32 %v1472, %v1492
        %v1509 = vadd.f32 %v1473, %v1492
        %v1510 = vadd.f32 %v1474, %v1492
        %v1511 = vadd.f32 %v1475, %v1492
        %v1512 = vadd.f32 %v1476, %v1492
        %v1513 = vadd.f32 %v1477, %v1492
        %v1514 = vadd.f32 %v1478, %v1492
        %v1515 = vadd.f32 %v1479, %v1492
        %v1516 = vadd.f32 %v1480, %v1492
        %v1517 = vadd.f32 %v1481, %v1492
        %v1518 = vadd.f32 %v1482, %v1492
        %v1519 = vadd.f32 %v1483, %v1492
        %v1520 = vadd.f32 %v1484, %v1492
        %v1521 = vadd.f32 %v1485, %v1492
        %v1522 = vadd.f32 %v1486, %v1492
        %v1523 = vadd.f32 %v1487, %v1492
        %v1524 = vadd.f32 %v1488, %v1492
        %v1525 = vmax.f32 %v1493, 0.0
        %v1526 = vmax.f32 %v1494, 0.0
        %v1527 = vmax.f32 %v1495, 0.0
        %v1528 = vmax.f32 %v1496, 0.0
        %v1529 = vmax.f32 %v1497, 0.0
        %v1530 = vmax.f32 %v1498, 0.0
        %v1531 = vmax.f32 %v1499, 0.0
        %v1532 = vmax.f32 %v1500, 0.0
        %v1533 = vmax.f32 %v1501, 0.0
        %v1534 = vmax.f32 %v1502, 0.0
        %v1535 = vmax.f32 %v1503, 0.0
        %v1536 = vmax.f32 %v1504, 0.0
        %v1537 = vmax.f32 %v1505, 0.0
        %v1538 = vmax.f32 %v1506, 0.0
        %v1539 = vmax.f32 %v1507, 0.0
        %v1540 = vmax.f32 %v1508, 0.0
        %v1541 = vmax.f32 %v1509, 0.0
        %v1542 = vmax.f32 %v1510, 0.0
        %v1543 = vmax.f32 %v1511, 0.0
        %v1544 = vmax.f32 %v1512, 0.0
        %v1545 = vmax.f32 %v1513, 0.0
        %v1546 = vmax.f32 %v1514, 0.0
        %v1547 = vmax.f32 %v1515, 0.0
        %v1548 = vmax.f32 %v1516, 0.0
        %v1549 = vmax.f32 %v1517, 0.0
        %v1550 = vmax.f32 %v1518, 0.0
        %v1551 = vmax.f32 %v1519, 0.0
        %v1552 = vmax.f32 %v1520, 0.0
        %v1553 = vmax.f32 %v1521, 0.0
        %v1554 = vmax.f32 %v1522, 0.0
        %v1555 = vmax.f32 %v1523, 0.0
        %v1556 = vmax.f32 %v1524, 0.0
        %v1557 = vpack.c.bf16 %v1526, %v1525
        %v1558 = vpack.c.bf16 %v1528, %v1527
        %v1559 = vpack.c.bf16 %v1530, %v1529
        %v1560 = vpack.c.bf16 %v1532, %v1531
        %v1561 = vpack.c.bf16 %v1534, %v1533
        %v1562 = vpack.c.bf16 %v1536, %v1535
        %v1563 = vpack.c.bf16 %v1538, %v1537
        %v1564 = vpack.c.bf16 %v1540, %v1539
        %v1565 = vpack.c.bf16 %v1542, %v1541
        %v1566 = vpack.c.bf16 %v1544, %v1543
        %v1567 = vpack.c.bf16 %v1546, %v1545
        %v1568 = vpack.c.bf16 %v1548, %v1547
        %v1569 = vpack.c.bf16 %v1550, %v1549
        %v1570 = vpack.c.bf16 %v1552, %v1551
        %v1571 = vpack.c.bf16 %v1554, %v1553
        %v1572 = vpack.c.bf16 %v1556, %v1555
        %v1573 = vld [vmem:[#allocation6] sm:$0xf]
        %v1574 = vld [vmem:[#allocation6 + $0x4] sm:$0xf]
        %v1575 = vld [vmem:[#allocation6 + $0x8] sm:$0xf]
        %v1576 = vld [vmem:[#allocation6 + $0xc] sm:$0xf]
        %v1577 = vld [vmem:[#allocation6 + $0x10] sm:$0xf]
        %v1578 = vld [vmem:[#allocation6 + $0x14] sm:$0xf]
        %v1579 = vld [vmem:[#allocation6 + $0x18] sm:$0xf]
        %v1580 = vld [vmem:[#allocation6 + $0x1c] sm:$0xf]
        %v1581 = vld [vmem:[#allocation6 + $0x20] sm:$0xf]
        %v1582 = vld [vmem:[#allocation6 + $0x24] sm:$0xf]
        %v1583 = vld [vmem:[#allocation6 + $0x28] sm:$0xf]
        %v1584 = vld [vmem:[#allocation6 + $0x2c] sm:$0xf]
        %v1585 = vld [vmem:[#allocation6 + $0x30] sm:$0xf]
        %v1586 = vld [vmem:[#allocation6 + $0x34] sm:$0xf]
        %v1587 = vld [vmem:[#allocation6 + $0x38] sm:$0xf]
        %v1588 = vld [vmem:[#allocation6 + $0x3c] sm:$0xf]
        %v1605 = vunpack.c.l.b16 %v1573
        %v1606 = vunpack.c.l.b16 %v1574
        %v1607 = vunpack.c.l.b16 %v1575
        %v1608 = vunpack.c.l.b16 %v1576
        %v1609 = vunpack.c.l.b16 %v1577
        %v1610 = vunpack.c.l.b16 %v1578
        %v1611 = vunpack.c.l.b16 %v1579
        %v1612 = vunpack.c.l.b16 %v1580
        %v1613 = vunpack.c.l.b16 %v1581
        %v1614 = vunpack.c.l.b16 %v1582
        %v1615 = vunpack.c.l.b16 %v1583
        %v1616 = vunpack.c.l.b16 %v1584
        %v1617 = vunpack.c.l.b16 %v1585
        %v1618 = vunpack.c.l.b16 %v1586
        %v1619 = vunpack.c.l.b16 %v1587
        %v1620 = vunpack.c.l.b16 %v1588
        %v1621 = vpack.c.b16 %v1606, %v1605
        %v1622 = vpack.c.b16 %v1608, %v1607
        %v1623 = vpack.c.b16 %v1610, %v1609
        %v1624 = vpack.c.b16 %v1612, %v1611
        %v1625 = vpack.c.b16 %v1614, %v1613
        %v1626 = vpack.c.b16 %v1616, %v1615
        %v1627 = vpack.c.b16 %v1618, %v1617
        %v1628 = vpack.c.b16 %v1620, %v1619
        %1637 = vmatprep.subr.bf16.mxu0 0
        %1638 = vmatpush1.bf16.msra.mxu0 %v1621
        %1639 = vmatprep.subr.bf16.mxu0 0
        %1640 = vmatpush1.bf16.msra.mxu0 %v1622
        %1641 = vmatprep.subr.bf16.mxu0 0
        %1642 = vmatpush1.bf16.msra.mxu0 %v1623
        %1643 = vmatprep.subr.bf16.mxu0 0
        %1644 = vmatpush1.bf16.msra.mxu0 %v1624
        %1645 = vmatprep.subr.bf16.mxu0 0
        %1646 = vmatpush1.bf16.msra.mxu0 %v1625
        %1647 = vmatprep.subr.bf16.mxu0 0
        %1648 = vmatpush1.bf16.msra.mxu0 %v1626
        %1649 = vmatprep.subr.bf16.mxu0 0
        %1650 = vmatpush1.bf16.msra.mxu0 %v1627
        %1651 = vmatprep.subr.bf16.mxu0 0
        %1652 = vmatpush1.bf16.msra.mxu0 %v1628
        %1653 = vmatprep.subr.bf16.mxu0 0
        %1654 = vmatpush1.bf16.msra.mxu0 0
        %1655 = vmatprep.subr.bf16.mxu0 0
        %1656 = vmatpush1.bf16.msra.mxu0 0
        %1657 = vmatprep.subr.bf16.mxu0 0
        %1658 = vmatpush1.bf16.msra.mxu0 0
        %1659 = vmatprep.subr.bf16.mxu0 0
        %1660 = vmatpush1.bf16.msra.mxu0 0
        %1661 = vmatprep.subr.bf16.mxu0 0
        %1662 = vmatpush1.bf16.msra.mxu0 0
        %1663 = vmatprep.subr.bf16.mxu0 0
        %1664 = vmatpush1.bf16.msra.mxu0 0
        %1665 = vmatprep.subr.bf16.mxu0 0
        %1666 = vmatpush1.bf16.msra.mxu0 0
        %1667 = vmatprep.subr.bf16.mxu0 0
        %1668 = vmatpush1.bf16.msra.mxu0 0
        %1669 = vmatprep.mubr.bf16.mxu0 0
        %1670 = vmatmul.mubr.bf16.gmra.mrb[0].mxu0 %v1557
        %v1671 = vpop.f32.mrb[0].mxu0
        %v1672 = vadd.f32 0.0, %v1671
        %v1673 = vpop.f32.mrb[0].mxu0
        %v1674 = vpop.f32.mrb[0].mxu0
        %v1675 = vadd.f32 0.0, %v1674
        %v1676 = vpop.f32.mrb[0].mxu0
        %1677 = vmatprep.mubr.bf16.mxu0 0
        %1678 = vmatmul.mubr.bf16.gmra.mrb[0].mxu0 %v1558
        %v1679 = vpop.f32.mrb[0].mxu0
        %v1680 = vadd.f32 0.0, %v1679
        %v1681 = vpop.f32.mrb[0].mxu0
        %v1682 = vpop.f32.mrb[0].mxu0
        %v1683 = vadd.f32 0.0, %v1682
        %v1684 = vpop.f32.mrb[0].mxu0
        %1685 = vmatprep.mubr.bf16.mxu0 0
        %1686 = vmatmul.mubr.bf16.gmra.mrb[0].mxu0 %v1559
        %v1687 = vpop.f32.mrb[0].mxu0
        %v1688 = vadd.f32 0.0, %v1687
        %v1689 = vpop.f32.mrb[0].mxu0
        %v1690 = vpop.f32.mrb[0].mxu0
        %v1691 = vadd.f32 0.0, %v1690
        %v1692 = vpop.f32.mrb[0].mxu0
        %1693 = vmatprep.mubr.bf16.mxu0 0
        %1694 = vmatmul.mubr.bf16.gmra.mrb[0].mxu0 %v1560
        %v1695 = vpop.f32.mrb[0].mxu0
        %v1696 = vadd.f32 0.0, %v1695
        %v1697 = vpop.f32.mrb[0].mxu0
        %v1698 = vpop.f32.mrb[0].mxu0
        %v1699 = vadd.f32 0.0, %v1698
        %v1700 = vpop.f32.mrb[0].mxu0
        %1701 = vmatprep.mubr.bf16.mxu0 0
        %1702 = vmatmul.mubr.bf16.gmra.mrb[0].mxu0 %v1561
        %v1703 = vpop.f32.mrb[0].mxu0
        %v1704 = vadd.f32 0.0, %v1703
        %v1705 = vpop.f32.mrb[0].mxu0
        %v1706 = vpop.f32.mrb[0].mxu0
        %v1707 = vadd.f32 0.0, %v1706
        %v1708 = vpop.f32.mrb[0].mxu0
        %1709 = vmatprep.mubr.bf16.mxu0 0
        %1710 = vmatmul.mubr.bf16.gmra.mrb[0].mxu0 %v1562
        %v1711 = vpop.f32.mrb[0].mxu0
        %v1712 = vadd.f32 0.0, %v1711
        %v1713 = vpop.f32.mrb[0].mxu0
        %v1714 = vpop.f32.mrb[0].mxu0
        %v1715 = vadd.f32 0.0, %v1714
        %v1716 = vpop.f32.mrb[0].mxu0
        %1717 = vmatprep.mubr.bf16.mxu0 0
        %1718 = vmatmul.mubr.bf16.gmra.mrb[0].mxu0 %v1563
        %v1719 = vpop.f32.mrb[0].mxu0
        %v1720 = vadd.f32 0.0, %v1719
        %v1721 = vpop.f32.mrb[0].mxu0
        %v1722 = vpop.f32.mrb[0].mxu0
        %v1723 = vadd.f32 0.0, %v1722
        %v1724 = vpop.f32.mrb[0].mxu0
        %1725 = vmatprep.mubr.bf16.mxu0 0
        %1726 = vmatmul.mubr.bf16.gmra.mrb[0].mxu0 %v1564
        %v1727 = vpop.f32.mrb[0].mxu0
        %v1728 = vadd.f32 0.0, %v1727
        %v1729 = vpop.f32.mrb[0].mxu0
        %v1730 = vpop.f32.mrb[0].mxu0
        %v1731 = vadd.f32 0.0, %v1730
        %v1732 = vpop.f32.mrb[0].mxu0
        %1733 = vmatprep.mubr.bf16.mxu0 0
        %1734 = vmatmul.mubr.bf16.gmra.mrb[0].mxu0 %v1565
        %v1735 = vpop.f32.mrb[0].mxu0
        %v1736 = vadd.f32 0.0, %v1735
        %v1737 = vpop.f32.mrb[0].mxu0
        %v1738 = vpop.f32.mrb[0].mxu0
        %v1739 = vadd.f32 0.0, %v1738
        %v1740 = vpop.f32.mrb[0].mxu0
        %1741 = vmatprep.mubr.bf16.mxu0 0
        %1742 = vmatmul.mubr.bf16.gmra.mrb[0].mxu0 %v1566
        %v1743 = vpop.f32.mrb[0].mxu0
        %v1744 = vadd.f32 0.0, %v1743
        %v1745 = vpop.f32.mrb[0].mxu0
        %v1746 = vpop.f32.mrb[0].mxu0
        %v1747 = vadd.f32 0.0, %v1746
        %v1748 = vpop.f32.mrb[0].mxu0
        %1749 = vmatprep.mubr.bf16.mxu0 0
        %1750 = vmatmul.mubr.bf16.gmra.mrb[0].mxu0 %v1567
        %v1751 = vpop.f32.mrb[0].mxu0
        %v1752 = vadd.f32 0.0, %v1751
        %v1753 = vpop.f32.mrb[0].mxu0
        %v1754 = vpop.f32.mrb[0].mxu0
        %v1755 = vadd.f32 0.0, %v1754
        %v1756 = vpop.f32.mrb[0].mxu0
        %1757 = vmatprep.mubr.bf16.mxu0 0
        %1758 = vmatmul.mubr.bf16.gmra.mrb[0].mxu0 %v1568
        %v1759 = vpop.f32.mrb[0].mxu0
        %v1760 = vadd.f32 0.0, %v1759
        %v1761 = vpop.f32.mrb[0].mxu0
        %v1762 = vpop.f32.mrb[0].mxu0
        %v1763 = vadd.f32 0.0, %v1762
        %v1764 = vpop.f32.mrb[0].mxu0
        %1765 = vmatprep.mubr.bf16.mxu0 0
        %1766 = vmatmul.mubr.bf16.gmra.mrb[0].mxu0 %v1569
        %v1767 = vpop.f32.mrb[0].mxu0
        %v1768 = vadd.f32 0.0, %v1767
        %v1769 = vpop.f32.mrb[0].mxu0
        %v1770 = vpop.f32.mrb[0].mxu0
        %v1771 = vadd.f32 0.0, %v1770
        %v1772 = vpop.f32.mrb[0].mxu0
        %1773 = vmatprep.mubr.bf16.mxu0 0
        %1774 = vmatmul.mubr.bf16.gmra.mrb[0].mxu0 %v1570
        %v1775 = vpop.f32.mrb[0].mxu0
        %v1776 = vadd.f32 0.0, %v1775
        %v1777 = vpop.f32.mrb[0].mxu0
        %v1778 = vpop.f32.mrb[0].mxu0
        %v1779 = vadd.f32 0.0, %v1778
        %v1780 = vpop.f32.mrb[0].mxu0
        %1781 = vmatprep.mubr.bf16.mxu0 0
        %1782 = vmatmul.mubr.bf16.gmra.mrb[0].mxu0 %v1571
        %v1783 = vpop.f32.mrb[0].mxu0
        %v1784 = vadd.f32 0.0, %v1783
        %v1785 = vpop.f32.mrb[0].mxu0
        %v1786 = vpop.f32.mrb[0].mxu0
        %v1787 = vadd.f32 0.0, %v1786
        %v1788 = vpop.f32.mrb[0].mxu0
        %1789 = vmatprep.mubr.bf16.mxu0 0
        %1790 = vmatmul.mubr.bf16.gmra.mrb[0].mxu0 %v1572
        %v1791 = vpop.f32.mrb[0].mxu0
        %v1792 = vadd.f32 0.0, %v1791
        %v1793 = vpop.f32.mrb[0].mxu0
        %v1794 = vpop.f32.mrb[0].mxu0
        %v1795 = vadd.f32 0.0, %v1794
        %v1796 = vpop.f32.mrb[0].mxu0
        %1797 = vdwg.mxu0
        %v1798 = vld [vmem:[%s6] sm:$0xf]
        %v1799 = vld [vmem:[%s6 + $0x4] sm:$0xf]
        %v1800 = vld [vmem:[%s6 + $0x8] sm:$0xf]
        %v1801 = vld [vmem:[%s6 + $0xc] sm:$0xf]
        %v1802 = vld [vmem:[%s6 + $0x10] sm:$0xf]
        %v1803 = vld [vmem:[%s6 + $0x14] sm:$0xf]
        %v1804 = vld [vmem:[%s6 + $0x18] sm:$0xf]
        %v1805 = vld [vmem:[%s6 + $0x1c] sm:$0xf]
        %v1806 = vld [vmem:[%s6 + $0x20] sm:$0xf]
        %v1807 = vld [vmem:[%s6 + $0x24] sm:$0xf]
        %v1808 = vld [vmem:[%s6 + $0x28] sm:$0xf]
        %v1809 = vld [vmem:[%s6 + $0x2c] sm:$0xf]
        %v1810 = vld [vmem:[%s6 + $0x30] sm:$0xf]
        %v1811 = vld [vmem:[%s6 + $0x34] sm:$0xf]
        %v1812 = vld [vmem:[%s6 + $0x38] sm:$0xf]
        %v1813 = vld [vmem:[%s6 + $0x3c] sm:$0xf]
        %v1830 = vunpack.c.l.b16 %v1798
        %v1831 = vunpack.c.l.b16 %v1799
        %v1832 = vunpack.c.l.b16 %v1800
        %v1833 = vunpack.c.l.b16 %v1801
        %v1834 = vunpack.c.l.b16 %v1802
        %v1835 = vunpack.c.l.b16 %v1803
        %v1836 = vunpack.c.l.b16 %v1804
        %v1837 = vunpack.c.l.b16 %v1805
        %v1838 = vunpack.c.l.b16 %v1806
        %v1839 = vunpack.c.l.b16 %v1807
        %v1840 = vunpack.c.l.b16 %v1808
        %v1841 = vunpack.c.l.b16 %v1809
        %v1842 = vunpack.c.l.b16 %v1810
        %v1843 = vunpack.c.l.b16 %v1811
        %v1844 = vunpack.c.l.b16 %v1812
        %v1845 = vunpack.c.l.b16 %v1813
        %v1846 = vpack.c.b16 %v1831, %v1830
        %v1847 = vpack.c.b16 %v1833, %v1832
        %v1848 = vpack.c.b16 %v1835, %v1834
        %v1849 = vpack.c.b16 %v1837, %v1836
        %v1850 = vpack.c.b16 %v1839, %v1838
        %v1851 = vpack.c.b16 %v1841, %v1840
        %v1852 = vpack.c.b16 %v1843, %v1842
        %v1853 = vpack.c.b16 %v1845, %v1844
        %1862 = vmatprep.subr.bf16.mxu0 0
        %1863 = vmatpush1.bf16.msra.mxu0 %v1846
        %1864 = vmatprep.subr.bf16.mxu0 0
        %1865 = vmatpush1.bf16.msra.mxu0 %v1847
        %1866 = vmatprep.subr.bf16.mxu0 0
        %1867 = vmatpush1.bf16.msra.mxu0 %v1848
        %1868 = vmatprep.subr.bf16.mxu0 0
        %1869 = vmatpush1.bf16.msra.mxu0 %v1849
        %1870 = vmatprep.subr.bf16.mxu0 0
        %1871 = vmatpush1.bf16.msra.mxu0 %v1850
        %1872 = vmatprep.subr.bf16.mxu0 0
        %1873 = vmatpush1.bf16.msra.mxu0 %v1851
        %1874 = vmatprep.subr.bf16.mxu0 0
        %1875 = vmatpush1.bf16.msra.mxu0 %v1852
        %1876 = vmatprep.subr.bf16.mxu0 0
        %1877 = vmatpush1.bf16.msra.mxu0 %v1853
        %1878 = vmatprep.subr.bf16.mxu0 0
        %1879 = vmatpush1.bf16.msra.mxu0 0
        %1880 = vmatprep.subr.bf16.mxu0 0
        %1881 = vmatpush1.bf16.msra.mxu0 0
        %1882 = vmatprep.subr.bf16.mxu0 0
        %1883 = vmatpush1.bf16.msra.mxu0 0
        %1884 = vmatprep.subr.bf16.mxu0 0
        %1885 = vmatpush1.bf16.msra.mxu0 0
        %1886 = vmatprep.subr.bf16.mxu0 0
        %1887 = vmatpush1.bf16.msra.mxu0 0
        %1888 = vmatprep.subr.bf16.mxu0 0
        %1889 = vmatpush1.bf16.msra.mxu0 0
        %1890 = vmatprep.subr.bf16.mxu0 0
        %1891 = vmatpush1.bf16.msra.mxu0 0
        %1892 = vmatprep.subr.bf16.mxu0 0
        %1893 = vmatpush1.bf16.msra.mxu0 0
        %1894 = vmatprep.mubr.bf16.mxu0 0
        %1895 = vmatmul.mubr.bf16.gmra.mrb[0].mxu0 %v1557
        %v1896 = vpop.f32.mrb[0].mxu0
        %v1897 = vadd.f32 0.0, %v1896
        %v1898 = vpop.f32.mrb[0].mxu0
        %v1899 = vpop.f32.mrb[0].mxu0
        %v1900 = vadd.f32 0.0, %v1899
        %v1901 = vpop.f32.mrb[0].mxu0
        %1902 = vmatprep.mubr.bf16.mxu0 0
        %1903 = vmatmul.mubr.bf16.gmra.mrb[0].mxu0 %v1558
        %v1904 = vpop.f32.mrb[0].mxu0
        %v1905 = vadd.f32 0.0, %v1904
        %v1906 = vpop.f32.mrb[0].mxu0
        %v1907 = vpop.f32.mrb[0].mxu0
        %v1908 = vadd.f32 0.0, %v1907
        %v1909 = vpop.f32.mrb[0].mxu0
        %1910 = vmatprep.mubr.bf16.mxu0 0
        %1911 = vmatmul.mubr.bf16.gmra.mrb[0].mxu0 %v1559
        %v1912 = vpop.f32.mrb[0].mxu0
        %v1913 = vadd.f32 0.0, %v1912
        %v1914 = vpop.f32.mrb[0].mxu0
        %v1915 = vpop.f32.mrb[0].mxu0
        %v1916 = vadd.f32 0.0, %v1915
        %v1917 = vpop.f32.mrb[0].mxu0
        %1918 = vmatprep.mubr.bf16.mxu0 0
        %1919 = vmatmul.mubr.bf16.gmra.mrb[0].mxu0 %v1560
        %v1920 = vpop.f32.mrb[0].mxu0
        %v1921 = vadd.f32 0.0, %v1920
        %v1922 = vpop.f32.mrb[0].mxu0
        %v1923 = vpop.f32.mrb[0].mxu0
        %v1924 = vadd.f32 0.0, %v1923
        %v1925 = vpop.f32.mrb[0].mxu0
        %1926 = vmatprep.mubr.bf16.mxu0 0
        %1927 = vmatmul.mubr.bf16.gmra.mrb[0].mxu0 %v1561
        %v1928 = vpop.f32.mrb[0].mxu0
        %v1929 = vadd.f32 0.0, %v1928
        %v1930 = vpop.f32.mrb[0].mxu0
        %v1931 = vpop.f32.mrb[0].mxu0
        %v1932 = vadd.f32 0.0, %v1931
        %v1933 = vpop.f32.mrb[0].mxu0
        %1934 = vmatprep.mubr.bf16.mxu0 0
        %1935 = vmatmul.mubr.bf16.gmra.mrb[0].mxu0 %v1562
        %v1936 = vpop.f32.mrb[0].mxu0
        %v1937 = vadd.f32 0.0, %v1936
        %v1938 = vpop.f32.mrb[0].mxu0
        %v1939 = vpop.f32.mrb[0].mxu0
        %v1940 = vadd.f32 0.0, %v1939
        %v1941 = vpop.f32.mrb[0].mxu0
        %1942 = vmatprep.mubr.bf16.mxu0 0
        %1943 = vmatmul.mubr.bf16.gmra.mrb[0].mxu0 %v1563
        %v1944 = vpop.f32.mrb[0].mxu0
        %v1945 = vadd.f32 0.0, %v1944
        %v1946 = vpop.f32.mrb[0].mxu0
        %v1947 = vpop.f32.mrb[0].mxu0
        %v1948 = vadd.f32 0.0, %v1947
        %v1949 = vpop.f32.mrb[0].mxu0
        %1950 = vmatprep.mubr.bf16.mxu0 0
        %1951 = vmatmul.mubr.bf16.gmra.mrb[0].mxu0 %v1564
        %v1952 = vpop.f32.mrb[0].mxu0
        %v1953 = vadd.f32 0.0, %v1952
        %v1954 = vpop.f32.mrb[0].mxu0
        %v1955 = vpop.f32.mrb[0].mxu0
        %v1956 = vadd.f32 0.0, %v1955
        %v1957 = vpop.f32.mrb[0].mxu0
        %1958 = vmatprep.mubr.bf16.mxu0 0
        %1959 = vmatmul.mubr.bf16.gmra.mrb[0].mxu0 %v1565
        %v1960 = vpop.f32.mrb[0].mxu0
        %v1961 = vadd.f32 0.0, %v1960
        %v1962 = vpop.f32.mrb[0].mxu0
        %v1963 = vpop.f32.mrb[0].mxu0
        %v1964 = vadd.f32 0.0, %v1963
        %v1965 = vpop.f32.mrb[0].mxu0
        %1966 = vmatprep.mubr.bf16.mxu0 0
        %1967 = vmatmul.mubr.bf16.gmra.mrb[0].mxu0 %v1566
        %v1968 = vpop.f32.mrb[0].mxu0
        %v1969 = vadd.f32 0.0, %v1968
        %v1970 = vpop.f32.mrb[0].mxu0
        %v1971 = vpop.f32.mrb[0].mxu0
        %v1972 = vadd.f32 0.0, %v1971
        %v1973 = vpop.f32.mrb[0].mxu0
        %1974 = vmatprep.mubr.bf16.mxu0 0
        %1975 = vmatmul.mubr.bf16.gmra.mrb[0].mxu0 %v1567
        %v1976 = vpop.f32.mrb[0].mxu0
        %v1977 = vadd.f32 0.0, %v1976
        %v1978 = vpop.f32.mrb[0].mxu0
        %v1979 = vpop.f32.mrb[0].mxu0
        %v1980 = vadd.f32 0.0, %v1979
        %v1981 = vpop.f32.mrb[0].mxu0
        %1982 = vmatprep.mubr.bf16.mxu0 0
        %1983 = vmatmul.mubr.bf16.gmra.mrb[0].mxu0 %v1568
        %v1984 = vpop.f32.mrb[0].mxu0
        %v1985 = vadd.f32 0.0, %v1984
        %v1986 = vpop.f32.mrb[0].mxu0
        %v1987 = vpop.f32.mrb[0].mxu0
        %v1988 = vadd.f32 0.0, %v1987
        %v1989 = vpop.f32.mrb[0].mxu0
        %1990 = vmatprep.mubr.bf16.mxu0 0
        %1991 = vmatmul.mubr.bf16.gmra.mrb[0].mxu0 %v1569
        %v1992 = vpop.f32.mrb[0].mxu0
        %v1993 = vadd.f32 0.0, %v1992
        %v1994 = vpop.f32.mrb[0].mxu0
        %v1995 = vpop.f32.mrb[0].mxu0
        %v1996 = vadd.f32 0.0, %v1995
        %v1997 = vpop.f32.mrb[0].mxu0
        %1998 = vmatprep.mubr.bf16.mxu0 0
        %1999 = vmatmul.mubr.bf16.gmra.mrb[0].mxu0 %v1570
        %v2000 = vpop.f32.mrb[0].mxu0
        %v2001 = vadd.f32 0.0, %v2000
        %v2002 = vpop.f32.mrb[0].mxu0
        %v2003 = vpop.f32.mrb[0].mxu0
        %v2004 = vadd.f32 0.0, %v2003
        %v2005 = vpop.f32.mrb[0].mxu0
        %2006 = vmatprep.mubr.bf16.mxu0 0
        %2007 = vmatmul.mubr.bf16.gmra.mrb[0].mxu0 %v1571
        %v2008 = vpop.f32.mrb[0].mxu0
        %v2009 = vadd.f32 0.0, %v2008
        %v2010 = vpop.f32.mrb[0].mxu0
        %v2011 = vpop.f32.mrb[0].mxu0
        %v2012 = vadd.f32 0.0, %v2011
        %v2013 = vpop.f32.mrb[0].mxu0
        %2014 = vmatprep.mubr.bf16.mxu0 0
        %2015 = vmatmul.mubr.bf16.gmra.mrb[0].mxu0 %v1572
        %v2016 = vpop.f32.mrb[0].mxu0
        %v2017 = vadd.f32 0.0, %v2016
        %v2018 = vpop.f32.mrb[0].mxu0
        %v2019 = vpop.f32.mrb[0].mxu0
        %v2020 = vadd.f32 0.0, %v2019
        %v2021 = vpop.f32.mrb[0].mxu0
        %2022 = vdwg.mxu0
        %v2023 = vadd.f32 %v1897, %v1900
        %v2024 = vadd.f32 %v2023, %v1905
        %v2025 = vadd.f32 %v2024, %v1908
        %v2026 = vadd.f32 %v2025, %v1913
        %v2027 = vadd.f32 %v2026, %v1916
        %v2028 = vadd.f32 %v2027, %v1921
        %v2029 = vadd.f32 %v2028, %v1924
        %v2030 = vadd.f32 %v2029, %v1929
        %v2031 = vadd.f32 %v2030, %v1932
        %v2032 = vadd.f32 %v2031, %v1937
        %v2033 = vadd.f32 %v2032, %v1940
        %v2034 = vadd.f32 %v2033, %v1945
        %v2035 = vadd.f32 %v2034, %v1948
        %v2036 = vadd.f32 %v2035, %v1953
        %v2037 = vadd.f32 %v2036, %v1956
        %v2038 = vadd.f32 %v2037, %v1961
        %v2039 = vadd.f32 %v2038, %v1964
        %v2040 = vadd.f32 %v2039, %v1969
        %v2041 = vadd.f32 %v2040, %v1972
        %v2042 = vadd.f32 %v2041, %v1977
        %v2043 = vadd.f32 %v2042, %v1980
        %v2044 = vadd.f32 %v2043, %v1985
        %v2045 = vadd.f32 %v2044, %v1988
        %v2046 = vadd.f32 %v2045, %v1993
        %v2047 = vadd.f32 %v2046, %v1996
        %v2048 = vadd.f32 %v2047, %v2001
        %v2049 = vadd.f32 %v2048, %v2004
        %v2050 = vadd.f32 %v2049, %v2009
        %v2051 = vadd.f32 %v2050, %v2012
        %v2052 = vadd.f32 %v2051, %v2017
        %v2053 = vadd.f32 %v2052, %v2020
        %v2054 = vrot.slane %v2053, 4
        %v2055 = vadd.f32 %v2053, %v2054
        %v2056 = vrot.slane %v2055, 2
        %v2057 = vadd.f32 %v2055, %v2056
        %v2058 = vrot.slane %v2057, 1
        %v2059 = vadd.f32 %v2057, %v2058
        %v2060 = vmul.f32 %v2059, 0.00390625
        %v2061 = vmul.f32 %v1897, %v1897
        %v2062 = vmul.f32 %v1900, %v1900
        %v2063 = vmul.f32 %v1905, %v1905
        %v2064 = vmul.f32 %v1908, %v1908
        %v2065 = vmul.f32 %v1913, %v1913
        %v2066 = vmul.f32 %v1916, %v1916
        %v2067 = vmul.f32 %v1921, %v1921
        %v2068 = vmul.f32 %v1924, %v1924
        %v2069 = vmul.f32 %v1929, %v1929
        %v2070 = vmul.f32 %v1932, %v1932
        %v2071 = vmul.f32 %v1937, %v1937
        %v2072 = vmul.f32 %v1940, %v1940
        %v2073 = vmul.f32 %v1945, %v1945
        %v2074 = vmul.f32 %v1948, %v1948
        %v2075 = vmul.f32 %v1953, %v1953
        %v2076 = vmul.f32 %v1956, %v1956
        %v2077 = vmul.f32 %v1961, %v1961
        %v2078 = vmul.f32 %v1964, %v1964
        %v2079 = vmul.f32 %v1969, %v1969
        %v2080 = vmul.f32 %v1972, %v1972
        %v2081 = vmul.f32 %v1977, %v1977
        %v2082 = vmul.f32 %v1980, %v1980
        %v2083 = vmul.f32 %v1985, %v1985
        %v2084 = vmul.f32 %v1988, %v1988
        %v2085 = vmul.f32 %v1993, %v1993
        %v2086 = vmul.f32 %v1996, %v1996
        %v2087 = vmul.f32 %v2001, %v2001
        %v2088 = vmul.f32 %v2004, %v2004
        %v2089 = vmul.f32 %v2009, %v2009
        %v2090 = vmul.f32 %v2012, %v2012
        %v2091 = vmul.f32 %v2017, %v2017
        %v2092 = vmul.f32 %v2020, %v2020
        %v2093 = vadd.f32 %v2061, %v2062
        %v2094 = vadd.f32 %v2093, %v2063
        %v2095 = vadd.f32 %v2094, %v2064
        %v2096 = vadd.f32 %v2095, %v2065
        %v2097 = vadd.f32 %v2096, %v2066
        %v2098 = vadd.f32 %v2097, %v2067
        %v2099 = vadd.f32 %v2098, %v2068
        %v2100 = vadd.f32 %v2099, %v2069
        %v2101 = vadd.f32 %v2100, %v2070
        %v2102 = vadd.f32 %v2101, %v2071
        %v2103 = vadd.f32 %v2102, %v2072
        %v2104 = vadd.f32 %v2103, %v2073
        %v2105 = vadd.f32 %v2104, %v2074
        %v2106 = vadd.f32 %v2105, %v2075
        %v2107 = vadd.f32 %v2106, %v2076
        %v2108 = vadd.f32 %v2107, %v2077
        %v2109 = vadd.f32 %v2108, %v2078
        %v2110 = vadd.f32 %v2109, %v2079
        %v2111 = vadd.f32 %v2110, %v2080
        %v2112 = vadd.f32 %v2111, %v2081
        %v2113 = vadd.f32 %v2112, %v2082
        %v2114 = vadd.f32 %v2113, %v2083
        %v2115 = vadd.f32 %v2114, %v2084
        %v2116 = vadd.f32 %v2115, %v2085
        %v2117 = vadd.f32 %v2116, %v2086
        %v2118 = vadd.f32 %v2117, %v2087
        %v2119 = vadd.f32 %v2118, %v2088
        %v2120 = vadd.f32 %v2119, %v2089
        %v2121 = vadd.f32 %v2120, %v2090
        %v2122 = vadd.f32 %v2121, %v2091
        %v2123 = vadd.f32 %v2122, %v2092
        %v2124 = vrot.slane %v2123, 4
        %v2125 = vadd.f32 %v2123, %v2124
        %v2126 = vrot.slane %v2125, 2
        %v2127 = vadd.f32 %v2125, %v2126
        %v2128 = vrot.slane %v2127, 1
        %v2129 = vadd.f32 %v2127, %v2128
        %v2130 = vmul.f32 %v2129, 0.00390625
        %v2131 = vsel %vm1299, %v2060, %v2130
        %2132 = vmatprep.subr.mxu0 0.0
        %2133 = vmatpush1.msra.mxu0 %v1175
        %2134 = vmatprep.subr.mxu0 0.0
        %2135 = vmatpush1.msra.mxu0 %v1176
        %2136 = vmatprep.subr.mxu0 0.0
        %2137 = vmatpush1.msra.mxu0 %v1177
        %2138 = vmatprep.subr.mxu0 0.0
        %2139 = vmatpush1.msra.mxu0 %v1178
        %2140 = vmatprep.subr.mxu0 0.0
        %2141 = vmatpush1.msra.mxu0 %v1179
        %2142 = vmatprep.subr.mxu0 0.0
        %2143 = vmatpush1.msra.mxu0 %v1180
        %2144 = vmatprep.subr.mxu0 0.0
        %2145 = vmatpush1.msra.mxu0 %v1181
        %2146 = vmatprep.subr.mxu0 0.0
        %2147 = vmatpush1.msra.mxu0 %v1182
        %2148 = vmatprep.subr.mxu0 0.0
        %2149 = vmatpush1.msra.mxu0 %v1183
        %2150 = vmatprep.subr.mxu0 0.0
        %2151 = vmatpush1.msra.mxu0 %v1184
        %2152 = vmatprep.subr.mxu0 0.0
        %2153 = vmatpush1.msra.mxu0 %v1185
        %2154 = vmatprep.subr.mxu0 0.0
        %2155 = vmatpush1.msra.mxu0 %v1186
        %2156 = vmatprep.subr.mxu0 0.0
        %2157 = vmatpush1.msra.mxu0 %v1187
        %2158 = vmatprep.subr.mxu0 0.0
        %2159 = vmatpush1.msra.mxu0 %v1188
        %2160 = vmatprep.subr.mxu0 0.0
        %2161 = vmatpush1.msra.mxu0 %v1189
        %2162 = vmatprep.subr.mxu0 0.0
        %2163 = vmatpush1.msra.mxu0 %v1190
        %2164 = vmatprep.subr.mxu0 0.0
        %2165 = vmatpush1.msra.mxu0 0.0
        %2166 = vmatprep.subr.mxu0 0.0
        %2167 = vmatpush1.msra.mxu0 0.0
        %2168 = vmatprep.subr.mxu0 0.0
        %2169 = vmatpush1.msra.mxu0 0.0
        %2170 = vmatprep.subr.mxu0 0.0
        %2171 = vmatpush1.msra.mxu0 0.0
        %2172 = vmatprep.subr.mxu0 0.0
        %2173 = vmatpush1.msra.mxu0 0.0
        %2174 = vmatprep.subr.mxu0 0.0
        %2175 = vmatpush1.msra.mxu0 0.0
        %2176 = vmatprep.subr.mxu0 0.0
        %2177 = vmatpush1.msra.mxu0 0.0
        %2178 = vmatprep.subr.mxu0 0.0
        %2179 = vmatpush1.msra.mxu0 0.0
        %2180 = vmatprep.subr.mxu0 0.0
        %2181 = vmatpush1.msra.mxu0 0.0
        %2182 = vmatprep.subr.mxu0 0.0
        %2183 = vmatpush1.msra.mxu0 0.0
        %2184 = vmatprep.subr.mxu0 0.0
        %2185 = vmatpush1.msra.mxu0 0.0
        %2186 = vmatprep.subr.mxu0 0.0
        %2187 = vmatpush1.msra.mxu0 0.0
        %2188 = vmatprep.subr.mxu0 0.0
        %2189 = vmatpush1.msra.mxu0 0.0
        %2190 = vmatprep.subr.mxu0 0.0
        %2191 = vmatpush1.msra.mxu0 0.0
        %2192 = vmatprep.subr.mxu0 0.0
        %2193 = vmatpush1.msra.mxu0 0.0
        %2194 = vmatprep.subr.mxu0 0.0
        %2195 = vmatpush1.msra.mxu0 0.0
        %2196 = vmatprep.mubr.f32.mxu0 0.0
        %2197 = vmatmul.mubr.f32.gmra.mrb[0].mxu0 %v2131
        %v2198 = vpop.f32.mrb[0].mxu0
        %v2199 = vadd.f32 0.0, %v2198
        %v2200 = vpop.f32.mrb[0].mxu0
        %2201 = vdwg.mxu0
        %v2202 = vmul.f32 %v2199, %v2199
        %v2204 = vrot.slane %v2202, 7
        %v2206 = vsub.f32 %v2199, %v2204
        %v2207 = vmax.f32 %v2206, 0.0
        %v2208 = vadd.f32 %v2207, 1e-05
        %v2209 = vrsqrt.pop %v2208
        %v2210 = vld [vmem:[%s5 + $0x2] sm:$0x1]
        %v2211 = vld [vmem:[%s5 + $0x3] sm:$0x1]
        %v2212 = vlaneseq
        %v2213 = vshrl.u32 %v2212, 7
        %v2214 = vsub.s32 0, %v2213
        %v2215 = vrot.slane %v2199, %v2214
        %v2216 = vsub.f32 %v1897, %v2215
        %v2217 = vsub.f32 %v1900, %v2215
        %v2218 = vsub.f32 %v1905, %v2215
        %v2219 = vsub.f32 %v1908, %v2215
        %v2220 = vsub.f32 %v1913, %v2215
        %v2221 = vsub.f32 %v1916, %v2215
        %v2222 = vsub.f32 %v1921, %v2215
        %v2223 = vsub.f32 %v1924, %v2215
        %v2224 = vsub.f32 %v1929, %v2215
        %v2225 = vsub.f32 %v1932, %v2215
        %v2226 = vsub.f32 %v1937, %v2215
        %v2227 = vsub.f32 %v1940, %v2215
        %v2228 = vsub.f32 %v1945, %v2215
        %v2229 = vsub.f32 %v1948, %v2215
        %v2230 = vsub.f32 %v1953, %v2215
        %v2231 = vsub.f32 %v1956, %v2215
        %v2232 = vsub.f32 %v1961, %v2215
        %v2233 = vsub.f32 %v1964, %v2215
        %v2234 = vsub.f32 %v1969, %v2215
        %v2235 = vsub.f32 %v1972, %v2215
        %v2236 = vsub.f32 %v1977, %v2215
        %v2237 = vsub.f32 %v1980, %v2215
        %v2238 = vsub.f32 %v1985, %v2215
        %v2239 = vsub.f32 %v1988, %v2215
        %v2240 = vsub.f32 %v1993, %v2215
        %v2241 = vsub.f32 %v1996, %v2215
        %v2242 = vsub.f32 %v2001, %v2215
        %v2243 = vsub.f32 %v2004, %v2215
        %v2244 = vsub.f32 %v2009, %v2215
        %v2245 = vsub.f32 %v2012, %v2215
        %v2246 = vsub.f32 %v2017, %v2215
        %v2247 = vsub.f32 %v2020, %v2215
        %v2248 = vlaneseq
        %v2249 = vshrl.u32 %v2248, 7
        %v2250 = vsub.s32 1, %v2249
        %v2251 = vrot.slane %v2209, %v2250
        %v2252 = vmul.f32 %v2216, %v2251
        %v2253 = vmul.f32 %v2217, %v2251
        %v2254 = vmul.f32 %v2218, %v2251
        %v2255 = vmul.f32 %v2219, %v2251
        %v2256 = vmul.f32 %v2220, %v2251
        %v2257 = vmul.f32 %v2221, %v2251
        %v2258 = vmul.f32 %v2222, %v2251
        %v2259 = vmul.f32 %v2223, %v2251
        %v2260 = vmul.f32 %v2224, %v2251
        %v2261 = vmul.f32 %v2225, %v2251
        %v2262 = vmul.f32 %v2226, %v2251
        %v2263 = vmul.f32 %v2227, %v2251
        %v2264 = vmul.f32 %v2228, %v2251
        %v2265 = vmul.f32 %v2229, %v2251
        %v2266 = vmul.f32 %v2230, %v2251
        %v2267 = vmul.f32 %v2231, %v2251
        %v2268 = vmul.f32 %v2232, %v2251
        %v2269 = vmul.f32 %v2233, %v2251
        %v2270 = vmul.f32 %v2234, %v2251
        %v2271 = vmul.f32 %v2235, %v2251
        %v2272 = vmul.f32 %v2236, %v2251
        %v2273 = vmul.f32 %v2237, %v2251
        %v2274 = vmul.f32 %v2238, %v2251
        %v2275 = vmul.f32 %v2239, %v2251
        %v2276 = vmul.f32 %v2240, %v2251
        %v2277 = vmul.f32 %v2241, %v2251
        %v2278 = vmul.f32 %v2242, %v2251
        %v2279 = vmul.f32 %v2243, %v2251
        %v2280 = vmul.f32 %v2244, %v2251
        %v2281 = vmul.f32 %v2245, %v2251
        %v2282 = vmul.f32 %v2246, %v2251
        %v2283 = vmul.f32 %v2247, %v2251
        %v2284 = vlaneseq
        %v2285 = vshrl.u32 %v2284, 7
        %v2286 = vsub.s32 0, %v2285
        %v2287 = vrot.slane %v2210, %v2286
        %v2288 = vmul.f32 %v2252, %v2287
        %v2289 = vmul.f32 %v2253, %v2287
        %v2290 = vmul.f32 %v2254, %v2287
        %v2291 = vmul.f32 %v2255, %v2287
        %v2292 = vmul.f32 %v2256, %v2287
        %v2293 = vmul.f32 %v2257, %v2287
        %v2294 = vmul.f32 %v2258, %v2287
        %v2295 = vmul.f32 %v2259, %v2287
        %v2296 = vmul.f32 %v2260, %v2287
        %v2297 = vmul.f32 %v2261, %v2287
        %v2298 = vmul.f32 %v2262, %v2287
        %v2299 = vmul.f32 %v2263, %v2287
        %v2300 = vmul.f32 %v2264, %v2287
        %v2301 = vmul.f32 %v2265, %v2287
        %v2302 = vmul.f32 %v2266, %v2287
        %v2303 = vmul.f32 %v2267, %v2287
        %v2304 = vmul.f32 %v2268, %v2287
        %v2305 = vmul.f32 %v2269, %v2287
        %v2306 = vmul.f32 %v2270, %v2287
        %v2307 = vmul.f32 %v2271, %v2287
        %v2308 = vmul.f32 %v2272, %v2287
        %v2309 = vmul.f32 %v2273, %v2287
        %v2310 = vmul.f32 %v2274, %v2287
        %v2311 = vmul.f32 %v2275, %v2287
        %v2312 = vmul.f32 %v2276, %v2287
        %v2313 = vmul.f32 %v2277, %v2287
        %v2314 = vmul.f32 %v2278, %v2287
        %v2315 = vmul.f32 %v2279, %v2287
        %v2316 = vmul.f32 %v2280, %v2287
        %v2317 = vmul.f32 %v2281, %v2287
        %v2318 = vmul.f32 %v2282, %v2287
        %v2319 = vmul.f32 %v2283, %v2287
        %v2320 = vlaneseq
        %v2321 = vshrl.u32 %v2320, 7
        %v2322 = vsub.s32 0, %v2321
        %v2323 = vrot.slane %v2211, %v2322
        %v2324 = vadd.f32 %v2288, %v2323
        %v2325 = vadd.f32 %v2289, %v2323
        %v2326 = vadd.f32 %v2290, %v2323
        %v2327 = vadd.f32 %v2291, %v2323
        %v2328 = vadd.f32 %v2292, %v2323
        %v2329 = vadd.f32 %v2293, %v2323
        %v2330 = vadd.f32 %v2294, %v2323
        %v2331 = vadd.f32 %v2295, %v2323
        %v2332 = vadd.f32 %v2296, %v2323
        %v2333 = vadd.f32 %v2297, %v2323
        %v2334 = vadd.f32 %v2298, %v2323
        %v2335 = vadd.f32 %v2299, %v2323
        %v2336 = vadd.f32 %v2300, %v2323
        %v2337 = vadd.f32 %v2301, %v2323
        %v2338 = vadd.f32 %v2302, %v2323
        %v2339 = vadd.f32 %v2303, %v2323
        %v2340 = vadd.f32 %v2304, %v2323
        %v2341 = vadd.f32 %v2305, %v2323
        %v2342 = vadd.f32 %v2306, %v2323
        %v2343 = vadd.f32 %v2307, %v2323
        %v2344 = vadd.f32 %v2308, %v2323
        %v2345 = vadd.f32 %v2309, %v2323
        %v2346 = vadd.f32 %v2310, %v2323
        %v2347 = vadd.f32 %v2311, %v2323
        %v2348 = vadd.f32 %v2312, %v2323
        %v2349 = vadd.f32 %v2313, %v2323
        %v2350 = vadd.f32 %v2314, %v2323
        %v2351 = vadd.f32 %v2315, %v2323
        %v2352 = vadd.f32 %v2316, %v2323
        %v2353 = vadd.f32 %v2317, %v2323
        %v2354 = vadd.f32 %v2318, %v2323
        %v2355 = vadd.f32 %v2319, %v2323
        %v2356 = vmax.f32 %v2324, 0.0
        %v2357 = vmax.f32 %v2325, 0.0
        %v2358 = vmax.f32 %v2326, 0.0
        %v2359 = vmax.f32 %v2327, 0.0
        %v2360 = vmax.f32 %v2328, 0.0
        %v2361 = vmax.f32 %v2329, 0.0
        %v2362 = vmax.f32 %v2330, 0.0
        %v2363 = vmax.f32 %v2331, 0.0
        %v2364 = vmax.f32 %v2332, 0.0
        %v2365 = vmax.f32 %v2333, 0.0
        %v2366 = vmax.f32 %v2334, 0.0
        %v2367 = vmax.f32 %v2335, 0.0
        %v2368 = vmax.f32 %v2336, 0.0
        %v2369 = vmax.f32 %v2337, 0.0
        %v2370 = vmax.f32 %v2338, 0.0
        %v2371 = vmax.f32 %v2339, 0.0
        %v2372 = vmax.f32 %v2340, 0.0
        %v2373 = vmax.f32 %v2341, 0.0
        %v2374 = vmax.f32 %v2342, 0.0
        %v2375 = vmax.f32 %v2343, 0.0
        %v2376 = vmax.f32 %v2344, 0.0
        %v2377 = vmax.f32 %v2345, 0.0
        %v2378 = vmax.f32 %v2346, 0.0
        %v2379 = vmax.f32 %v2347, 0.0
        %v2380 = vmax.f32 %v2348, 0.0
        %v2381 = vmax.f32 %v2349, 0.0
        %v2382 = vmax.f32 %v2350, 0.0
        %v2383 = vmax.f32 %v2351, 0.0
        %v2384 = vmax.f32 %v2352, 0.0
        %v2385 = vmax.f32 %v2353, 0.0
        %v2386 = vmax.f32 %v2354, 0.0
        %v2387 = vmax.f32 %v2355, 0.0
        %s2388 = scalar_lea.vmem [#allocation2], 24
        %2389 = vst [vmem:[%s2388 + $0x1] sm:$0xff] %v2356
        %2390 = vst [vmem:[%s2388 + $0x9] sm:$0xff] %v2357
        %2391 = vst [vmem:[%s2388 + $0x19] sm:$0xff] %v2358
        %2392 = vst [vmem:[%s2388 + $0x21] sm:$0xff] %v2359
        %2393 = vst [vmem:[%s2388 + $0x31] sm:$0xff] %v2360
        %2394 = vst [vmem:[%s2388 + $0x39] sm:$0xff] %v2361
        %2395 = vst [vmem:[%s2388 + $0x49] sm:$0xff] %v2362
        %2396 = vst [vmem:[%s2388 + $0x51] sm:$0xff] %v2363
        %2397 = vst [vmem:[%s2388 + $0x61] sm:$0xff] %v2364
        %2398 = vst [vmem:[%s2388 + $0x69] sm:$0xff] %v2365
        %2399 = vst [vmem:[%s2388 + $0x79] sm:$0xff] %v2366
        %2400 = vst [vmem:[%s2388 + $0x81] sm:$0xff] %v2367
        %2401 = vst [vmem:[%s2388 + $0x91] sm:$0xff] %v2368
        %2402 = vst [vmem:[%s2388 + $0x99] sm:$0xff] %v2369
        %2403 = vst [vmem:[%s2388 + $0xa9] sm:$0xff] %v2370
        %2404 = vst [vmem:[%s2388 + $0xb1] sm:$0xff] %v2371
        %2405 = vst [vmem:[%s2388 + $0xc1] sm:$0xff] %v2372
        %2406 = vst [vmem:[%s2388 + $0xc9] sm:$0xff] %v2373
        %2407 = vst [vmem:[%s2388 + $0xd9] sm:$0xff] %v2374
        %2408 = vst [vmem:[%s2388 + $0xe1] sm:$0xff] %v2375
        %2409 = vst [vmem:[%s2388 + $0xf1] sm:$0xff] %v2376
        %2410 = vst [vmem:[%s2388 + $0xf9] sm:$0xff] %v2377
        %2411 = vst [vmem:[%s2388 + $0x109] sm:$0xff] %v2378
        %2412 = vst [vmem:[%s2388 + $0x111] sm:$0xff] %v2379
        %2413 = vst [vmem:[%s2388 + $0x121] sm:$0xff] %v2380
        %2414 = vst [vmem:[%s2388 + $0x129] sm:$0xff] %v2381
        %2415 = vst [vmem:[%s2388 + $0x139] sm:$0xff] %v2382
        %2416 = vst [vmem:[%s2388 + $0x141] sm:$0xff] %v2383
        %2417 = vst [vmem:[%s2388 + $0x151] sm:$0xff] %v2384
        %2418 = vst [vmem:[%s2388 + $0x159] sm:$0xff] %v2385
        %2419 = vst [vmem:[%s2388 + $0x169] sm:$0xff] %v2386
        %2420 = vst [vmem:[%s2388 + $0x171] sm:$0xff] %v2387
        %v2421 = vld [vmem:[#allocation2] sm:$0xff]
        %v2422 = vld [vmem:[#allocation2 + $0x8] sm:$0xff]
        %v2423 = vld [vmem:[#allocation2 + $0x18] sm:$0xff]
        %v2424 = vld [vmem:[#allocation2 + $0x20] sm:$0xff]
        %v2425 = vld [vmem:[#allocation2 + $0x30] sm:$0xff]
        %v2426 = vld [vmem:[#allocation2 + $0x38] sm:$0xff]
        %v2427 = vld [vmem:[#allocation2 + $0x48] sm:$0xff]
        %v2428 = vld [vmem:[#allocation2 + $0x50] sm:$0xff]
        %v2429 = vld [vmem:[#allocation2 + $0x60] sm:$0xff]
        %v2430 = vld [vmem:[#allocation2 + $0x68] sm:$0xff]
        %v2431 = vld [vmem:[#allocation2 + $0x78] sm:$0xff]
        %v2432 = vld [vmem:[#allocation2 + $0x80] sm:$0xff]
        %v2433 = vld [vmem:[#allocation2 + $0x90] sm:$0xff]
        %v2434 = vld [vmem:[#allocation2 + $0x98] sm:$0xff]
        %v2435 = vld [vmem:[#allocation2 + $0xa8] sm:$0xff]
        %v2436 = vld [vmem:[#allocation2 + $0xb0] sm:$0xff]
        %v2437 = vld [vmem:[#allocation2 + $0xc0] sm:$0xff]
        %v2438 = vld [vmem:[#allocation2 + $0xc8] sm:$0xff]
        %v2439 = vld [vmem:[#allocation2 + $0xd8] sm:$0xff]
        %v2440 = vld [vmem:[#allocation2 + $0xe0] sm:$0xff]
        %v2441 = vld [vmem:[#allocation2 + $0xf0] sm:$0xff]
        %v2442 = vld [vmem:[#allocation2 + $0xf8] sm:$0xff]
        %v2443 = vld [vmem:[#allocation2 + $0x108] sm:$0xff]
        %v2444 = vld [vmem:[#allocation2 + $0x110] sm:$0xff]
        %v2445 = vld [vmem:[#allocation2 + $0x120] sm:$0xff]
        %v2446 = vld [vmem:[#allocation2 + $0x128] sm:$0xff]
        %v2447 = vld [vmem:[#allocation2 + $0x138] sm:$0xff]
        %v2448 = vld [vmem:[#allocation2 + $0x140] sm:$0xff]
        %v2449 = vld [vmem:[#allocation2 + $0x150] sm:$0xff]
        %v2450 = vld [vmem:[#allocation2 + $0x158] sm:$0xff]
        %v2451 = vld [vmem:[#allocation2 + $0x168] sm:$0xff]
        %v2452 = vld [vmem:[#allocation2 + $0x170] sm:$0xff]
        %v2453 = vpack.c.bf16 %v2422, %v2421
        %v2454 = vpack.c.bf16 %v2424, %v2423
        %v2455 = vpack.c.bf16 %v2426, %v2425
        %v2456 = vpack.c.bf16 %v2428, %v2427
        %v2457 = vpack.c.bf16 %v2430, %v2429
        %v2458 = vpack.c.bf16 %v2432, %v2431
        %v2459 = vpack.c.bf16 %v2434, %v2433
        %v2460 = vpack.c.bf16 %v2436, %v2435
        %v2461 = vpack.c.bf16 %v2438, %v2437
        %v2462 = vpack.c.bf16 %v2440, %v2439
        %v2463 = vpack.c.bf16 %v2442, %v2441
        %v2464 = vpack.c.bf16 %v2444, %v2443
        %v2465 = vpack.c.bf16 %v2446, %v2445
        %v2466 = vpack.c.bf16 %v2448, %v2447
        %v2467 = vpack.c.bf16 %v2450, %v2449
        %v2468 = vpack.c.bf16 %v2452, %v2451
        %v2469 = vld [vmem:[%s8] sm:$0xf]
        %v2470 = vld [vmem:[%s8 + $0x4] sm:$0xf]
        %v2471 = vld [vmem:[%s8 + $0x8] sm:$0xf]
        %v2472 = vld [vmem:[%s8 + $0xc] sm:$0xf]
        %v2473 = vld [vmem:[%s8 + $0x10] sm:$0xf]
        %v2474 = vld [vmem:[%s8 + $0x14] sm:$0xf]
        %v2475 = vld [vmem:[%s8 + $0x18] sm:$0xf]
        %v2476 = vld [vmem:[%s8 + $0x1c] sm:$0xf]
        %v2477 = vld [vmem:[%s8 + $0x20] sm:$0xf]
        %v2478 = vld [vmem:[%s8 + $0x24] sm:$0xf]
        %v2479 = vld [vmem:[%s8 + $0x28] sm:$0xf]
        %v2480 = vld [vmem:[%s8 + $0x2c] sm:$0xf]
        %v2481 = vld [vmem:[%s8 + $0x30] sm:$0xf]
        %v2482 = vld [vmem:[%s8 + $0x34] sm:$0xf]
        %v2483 = vld [vmem:[%s8 + $0x38] sm:$0xf]
        %v2484 = vld [vmem:[%s8 + $0x3c] sm:$0xf]
        %v2485 = vld [vmem:[#allocation2 + $0x1] sm:$0xff]
        %v2486 = vld [vmem:[#allocation2 + $0x9] sm:$0xff]
        %v2487 = vld [vmem:[#allocation2 + $0x19] sm:$0xff]
        %v2488 = vld [vmem:[#allocation2 + $0x21] sm:$0xff]
        %v2489 = vld [vmem:[#allocation2 + $0x31] sm:$0xff]
        %v2490 = vld [vmem:[#allocation2 + $0x39] sm:$0xff]
        %v2491 = vld [vmem:[#allocation2 + $0x49] sm:$0xff]
        %v2492 = vld [vmem:[#allocation2 + $0x51] sm:$0xff]
        %v2493 = vld [vmem:[#allocation2 + $0x61] sm:$0xff]
        %v2494 = vld [vmem:[#allocation2 + $0x69] sm:$0xff]
        %v2495 = vld [vmem:[#allocation2 + $0x79] sm:$0xff]
        %v2496 = vld [vmem:[#allocation2 + $0x81] sm:$0xff]
        %v2497 = vld [vmem:[#allocation2 + $0x91] sm:$0xff]
        %v2498 = vld [vmem:[#allocation2 + $0x99] sm:$0xff]
        %v2499 = vld [vmem:[#allocation2 + $0xa9] sm:$0xff]
        %v2500 = vld [vmem:[#allocation2 + $0xb1] sm:$0xff]
        %v2501 = vld [vmem:[#allocation2 + $0xc1] sm:$0xff]
        %v2502 = vld [vmem:[#allocation2 + $0xc9] sm:$0xff]
        %v2503 = vld [vmem:[#allocation2 + $0xd9] sm:$0xff]
        %v2504 = vld [vmem:[#allocation2 + $0xe1] sm:$0xff]
        %v2505 = vld [vmem:[#allocation2 + $0xf1] sm:$0xff]
        %v2506 = vld [vmem:[#allocation2 + $0xf9] sm:$0xff]
        %v2507 = vld [vmem:[#allocation2 + $0x109] sm:$0xff]
        %v2508 = vld [vmem:[#allocation2 + $0x111] sm:$0xff]
        %v2509 = vld [vmem:[#allocation2 + $0x121] sm:$0xff]
        %v2510 = vld [vmem:[#allocation2 + $0x129] sm:$0xff]
        %v2511 = vld [vmem:[#allocation2 + $0x139] sm:$0xff]
        %v2512 = vld [vmem:[#allocation2 + $0x141] sm:$0xff]
        %v2513 = vld [vmem:[#allocation2 + $0x151] sm:$0xff]
        %v2514 = vld [vmem:[#allocation2 + $0x159] sm:$0xff]
        %v2515 = vld [vmem:[#allocation2 + $0x169] sm:$0xff]
        %v2516 = vld [vmem:[#allocation2 + $0x171] sm:$0xff]
        %v2517 = vpack.c.bf16 %v2486, %v2485
        %v2518 = vpack.c.bf16 %v2488, %v2487
        %v2519 = vpack.c.bf16 %v2490, %v2489
        %v2520 = vpack.c.bf16 %v2492, %v2491
        %v2521 = vpack.c.bf16 %v2494, %v2493
        %v2522 = vpack.c.bf16 %v2496, %v2495
        %v2523 = vpack.c.bf16 %v2498, %v2497
        %v2524 = vpack.c.bf16 %v2500, %v2499
        %v2525 = vpack.c.bf16 %v2502, %v2501
        %v2526 = vpack.c.bf16 %v2504, %v2503
        %v2527 = vpack.c.bf16 %v2506, %v2505
        %v2528 = vpack.c.bf16 %v2508, %v2507
        %v2529 = vpack.c.bf16 %v2510, %v2509
        %v2530 = vpack.c.bf16 %v2512, %v2511
        %v2531 = vpack.c.bf16 %v2514, %v2513
        %v2532 = vpack.c.bf16 %v2516, %v2515
        %s2533 = scalar_lea.vmem %s8, 64
        %v2534 = vld [vmem:[%s2533] sm:$0xf]
        %v2535 = vld [vmem:[%s2533 + $0x4] sm:$0xf]
        %v2536 = vld [vmem:[%s2533 + $0x8] sm:$0xf]
        %v2537 = vld [vmem:[%s2533 + $0xc] sm:$0xf]
        %v2538 = vld [vmem:[%s2533 + $0x10] sm:$0xf]
        %v2539 = vld [vmem:[%s2533 + $0x14] sm:$0xf]
        %v2540 = vld [vmem:[%s2533 + $0x18] sm:$0xf]
        %v2541 = vld [vmem:[%s2533 + $0x1c] sm:$0xf]
        %v2542 = vld [vmem:[%s2533 + $0x20] sm:$0xf]
        %v2543 = vld [vmem:[%s2533 + $0x24] sm:$0xf]
        %v2544 = vld [vmem:[%s2533 + $0x28] sm:$0xf]
        %v2545 = vld [vmem:[%s2533 + $0x2c] sm:$0xf]
        %v2546 = vld [vmem:[%s2533 + $0x30] sm:$0xf]
        %v2547 = vld [vmem:[%s2533 + $0x34] sm:$0xf]
        %v2548 = vld [vmem:[%s2533 + $0x38] sm:$0xf]
        %v2549 = vld [vmem:[%s2533 + $0x3c] sm:$0xf]
        %v2566 = vunpack.c.l.b16 %v2534
        %v2567 = vunpack.c.l.b16 %v2535
        %v2568 = vunpack.c.l.b16 %v2536
        %v2569 = vunpack.c.l.b16 %v2537
        %v2570 = vunpack.c.l.b16 %v2538
        %v2571 = vunpack.c.l.b16 %v2539
        %v2572 = vunpack.c.l.b16 %v2540
        %v2573 = vunpack.c.l.b16 %v2541
        %v2574 = vunpack.c.l.b16 %v2542
        %v2575 = vunpack.c.l.b16 %v2543
        %v2576 = vunpack.c.l.b16 %v2544
        %v2577 = vunpack.c.l.b16 %v2545
        %v2578 = vunpack.c.l.b16 %v2546
        %v2579 = vunpack.c.l.b16 %v2547
        %v2580 = vunpack.c.l.b16 %v2548
        %v2581 = vunpack.c.l.b16 %v2549
        %v2582 = vpack.c.b16 %v2567, %v2566
        %v2583 = vpack.c.b16 %v2569, %v2568
        %v2584 = vpack.c.b16 %v2571, %v2570
        %v2585 = vpack.c.b16 %v2573, %v2572
        %v2586 = vpack.c.b16 %v2575, %v2574
        %v2587 = vpack.c.b16 %v2577, %v2576
        %v2588 = vpack.c.b16 %v2579, %v2578
        %v2589 = vpack.c.b16 %v2581, %v2580
        %2598 = vmatprep.subr.bf16.mxu0 0
        %2599 = vmatpush1.bf16.msra.mxu0 %v2582
        %2600 = vmatprep.subr.bf16.mxu0 0
        %2601 = vmatpush1.bf16.msra.mxu0 %v2583
        %2602 = vmatprep.subr.bf16.mxu0 0
        %2603 = vmatpush1.bf16.msra.mxu0 %v2584
        %2604 = vmatprep.subr.bf16.mxu0 0
        %2605 = vmatpush1.bf16.msra.mxu0 %v2585
        %2606 = vmatprep.subr.bf16.mxu0 0
        %2607 = vmatpush1.bf16.msra.mxu0 %v2586
        %2608 = vmatprep.subr.bf16.mxu0 0
        %2609 = vmatpush1.bf16.msra.mxu0 %v2587
        %2610 = vmatprep.subr.bf16.mxu0 0
        %2611 = vmatpush1.bf16.msra.mxu0 %v2588
        %2612 = vmatprep.subr.bf16.mxu0 0
        %2613 = vmatpush1.bf16.msra.mxu0 %v2589
        %2614 = vmatprep.subr.bf16.mxu0 0
        %2615 = vmatpush1.bf16.msra.mxu0 0
        %2616 = vmatprep.subr.bf16.mxu0 0
        %2617 = vmatpush1.bf16.msra.mxu0 0
        %2618 = vmatprep.subr.bf16.mxu0 0
        %2619 = vmatpush1.bf16.msra.mxu0 0
        %2620 = vmatprep.subr.bf16.mxu0 0
        %2621 = vmatpush1.bf16.msra.mxu0 0
        %2622 = vmatprep.subr.bf16.mxu0 0
        %2623 = vmatpush1.bf16.msra.mxu0 0
        %2624 = vmatprep.subr.bf16.mxu0 0
        %2625 = vmatpush1.bf16.msra.mxu0 0
        %2626 = vmatprep.subr.bf16.mxu0 0
        %2627 = vmatpush1.bf16.msra.mxu0 0
        %2628 = vmatprep.subr.bf16.mxu0 0
        %2629 = vmatpush1.bf16.msra.mxu0 0
        %2630 = vmatprep.mubr.bf16.mxu0 0
        %2631 = vmatmul.mubr.bf16.gmra.mrb[0].mxu0 %v2517
        %v2632 = vpop.f32.mrb[0].mxu0
        %v2633 = vadd.f32 0.0, %v2632
        %v2634 = vpop.f32.mrb[0].mxu0
        %v2635 = vpop.f32.mrb[0].mxu0
        %v2636 = vadd.f32 0.0, %v2635
        %v2637 = vpop.f32.mrb[0].mxu0
        %2638 = vmatprep.mubr.bf16.mxu0 0
        %2639 = vmatmul.mubr.bf16.gmra.mrb[0].mxu0 %v2518
        %v2640 = vpop.f32.mrb[0].mxu0
        %v2641 = vadd.f32 0.0, %v2640
        %v2642 = vpop.f32.mrb[0].mxu0
        %v2643 = vpop.f32.mrb[0].mxu0
        %v2644 = vadd.f32 0.0, %v2643
        %v2645 = vpop.f32.mrb[0].mxu0
        %2646 = vmatprep.mubr.bf16.mxu0 0
        %2647 = vmatmul.mubr.bf16.gmra.mrb[0].mxu0 %v2519
        %v2648 = vpop.f32.mrb[0].mxu0
        %v2649 = vadd.f32 0.0, %v2648
        %v2650 = vpop.f32.mrb[0].mxu0
        %v2651 = vpop.f32.mrb[0].mxu0
        %v2652 = vadd.f32 0.0, %v2651
        %v2653 = vpop.f32.mrb[0].mxu0
        %2654 = vmatprep.mubr.bf16.mxu0 0
        %2655 = vmatmul.mubr.bf16.gmra.mrb[0].mxu0 %v2520
        %v2656 = vpop.f32.mrb[0].mxu0
        %v2657 = vadd.f32 0.0, %v2656
        %v2658 = vpop.f32.mrb[0].mxu0
        %v2659 = vpop.f32.mrb[0].mxu0
        %v2660 = vadd.f32 0.0, %v2659
        %v2661 = vpop.f32.mrb[0].mxu0
        %2662 = vmatprep.mubr.bf16.mxu0 0
        %2663 = vmatmul.mubr.bf16.gmra.mrb[0].mxu0 %v2521
        %v2664 = vpop.f32.mrb[0].mxu0
        %v2665 = vadd.f32 0.0, %v2664
        %v2666 = vpop.f32.mrb[0].mxu0
        %v2667 = vpop.f32.mrb[0].mxu0
        %v2668 = vadd.f32 0.0, %v2667
        %v2669 = vpop.f32.mrb[0].mxu0
        %2670 = vmatprep.mubr.bf16.mxu0 0
        %2671 = vmatmul.mubr.bf16.gmra.mrb[0].mxu0 %v2522
        %v2672 = vpop.f32.mrb[0].mxu0
        %v2673 = vadd.f32 0.0, %v2672
        %v2674 = vpop.f32.mrb[0].mxu0
        %v2675 = vpop.f32.mrb[0].mxu0
        %v2676 = vadd.f32 0.0, %v2675
        %v2677 = vpop.f32.mrb[0].mxu0
        %2678 = vmatprep.mubr.bf16.mxu0 0
        %2679 = vmatmul.mubr.bf16.gmra.mrb[0].mxu0 %v2523
        %v2680 = vpop.f32.mrb[0].mxu0
        %v2681 = vadd.f32 0.0, %v2680
        %v2682 = vpop.f32.mrb[0].mxu0
        %v2683 = vpop.f32.mrb[0].mxu0
        %v2684 = vadd.f32 0.0, %v2683
        %v2685 = vpop.f32.mrb[0].mxu0
        %2686 = vmatprep.mubr.bf16.mxu0 0
        %2687 = vmatmul.mubr.bf16.gmra.mrb[0].mxu0 %v2524
        %v2688 = vpop.f32.mrb[0].mxu0
        %v2689 = vadd.f32 0.0, %v2688
        %v2690 = vpop.f32.mrb[0].mxu0
        %v2691 = vpop.f32.mrb[0].mxu0
        %v2692 = vadd.f32 0.0, %v2691
        %v2693 = vpop.f32.mrb[0].mxu0
        %2694 = vmatprep.mubr.bf16.mxu0 0
        %2695 = vmatmul.mubr.bf16.gmra.mrb[0].mxu0 %v2525
        %v2696 = vpop.f32.mrb[0].mxu0
        %v2697 = vadd.f32 0.0, %v2696
        %v2698 = vpop.f32.mrb[0].mxu0
        %v2699 = vpop.f32.mrb[0].mxu0
        %v2700 = vadd.f32 0.0, %v2699
        %v2701 = vpop.f32.mrb[0].mxu0
        %2702 = vmatprep.mubr.bf16.mxu0 0
        %2703 = vmatmul.mubr.bf16.gmra.mrb[0].mxu0 %v2526
        %v2704 = vpop.f32.mrb[0].mxu0
        %v2705 = vadd.f32 0.0, %v2704
        %v2706 = vpop.f32.mrb[0].mxu0
        %v2707 = vpop.f32.mrb[0].mxu0
        %v2708 = vadd.f32 0.0, %v2707
        %v2709 = vpop.f32.mrb[0].mxu0
        %2710 = vmatprep.mubr.bf16.mxu0 0
        %2711 = vmatmul.mubr.bf16.gmra.mrb[0].mxu0 %v2527
        %v2712 = vpop.f32.mrb[0].mxu0
        %v2713 = vadd.f32 0.0, %v2712
        %v2714 = vpop.f32.mrb[0].mxu0
        %v2715 = vpop.f32.mrb[0].mxu0
        %v2716 = vadd.f32 0.0, %v2715
        %v2717 = vpop.f32.mrb[0].mxu0
        %2718 = vmatprep.mubr.bf16.mxu0 0
        %2719 = vmatmul.mubr.bf16.gmra.mrb[0].mxu0 %v2528
        %v2720 = vpop.f32.mrb[0].mxu0
        %v2721 = vadd.f32 0.0, %v2720
        %v2722 = vpop.f32.mrb[0].mxu0
        %v2723 = vpop.f32.mrb[0].mxu0
        %v2724 = vadd.f32 0.0, %v2723
        %v2725 = vpop.f32.mrb[0].mxu0
        %2726 = vmatprep.mubr.bf16.mxu0 0
        %2727 = vmatmul.mubr.bf16.gmra.mrb[0].mxu0 %v2529
        %v2728 = vpop.f32.mrb[0].mxu0
        %v2729 = vadd.f32 0.0, %v2728
        %v2730 = vpop.f32.mrb[0].mxu0
        %v2731 = vpop.f32.mrb[0].mxu0
        %v2732 = vadd.f32 0.0, %v2731
        %v2733 = vpop.f32.mrb[0].mxu0
        %2734 = vmatprep.mubr.bf16.mxu0 0
        %2735 = vmatmul.mubr.bf16.gmra.mrb[0].mxu0 %v2530
        %v2736 = vpop.f32.mrb[0].mxu0
        %v2737 = vadd.f32 0.0, %v2736
        %v2738 = vpop.f32.mrb[0].mxu0
        %v2739 = vpop.f32.mrb[0].mxu0
        %v2740 = vadd.f32 0.0, %v2739
        %v2741 = vpop.f32.mrb[0].mxu0
        %2742 = vmatprep.mubr.bf16.mxu0 0
        %2743 = vmatmul.mubr.bf16.gmra.mrb[0].mxu0 %v2531
        %v2744 = vpop.f32.mrb[0].mxu0
        %v2745 = vadd.f32 0.0, %v2744
        %v2746 = vpop.f32.mrb[0].mxu0
        %v2747 = vpop.f32.mrb[0].mxu0
        %v2748 = vadd.f32 0.0, %v2747
        %v2749 = vpop.f32.mrb[0].mxu0
        %2750 = vmatprep.mubr.bf16.mxu0 0
        %2751 = vmatmul.mubr.bf16.gmra.mrb[0].mxu0 %v2532
        %v2752 = vpop.f32.mrb[0].mxu0
        %v2753 = vadd.f32 0.0, %v2752
        %v2754 = vpop.f32.mrb[0].mxu0
        %v2755 = vpop.f32.mrb[0].mxu0
        %v2756 = vadd.f32 0.0, %v2755
        %v2757 = vpop.f32.mrb[0].mxu0
        %2758 = vdwg.mxu0
        %v2775 = vunpack.c.l.b16 %v2469
        %v2776 = vunpack.c.l.b16 %v2470
        %v2777 = vunpack.c.l.b16 %v2471
        %v2778 = vunpack.c.l.b16 %v2472
        %v2779 = vunpack.c.l.b16 %v2473
        %v2780 = vunpack.c.l.b16 %v2474
        %v2781 = vunpack.c.l.b16 %v2475
        %v2782 = vunpack.c.l.b16 %v2476
        %v2783 = vunpack.c.l.b16 %v2477
        %v2784 = vunpack.c.l.b16 %v2478
        %v2785 = vunpack.c.l.b16 %v2479
        %v2786 = vunpack.c.l.b16 %v2480
        %v2787 = vunpack.c.l.b16 %v2481
        %v2788 = vunpack.c.l.b16 %v2482
        %v2789 = vunpack.c.l.b16 %v2483
        %v2790 = vunpack.c.l.b16 %v2484
        %v2791 = vpack.c.b16 %v2776, %v2775
        %v2792 = vpack.c.b16 %v2778, %v2777
        %v2793 = vpack.c.b16 %v2780, %v2779
        %v2794 = vpack.c.b16 %v2782, %v2781
        %v2795 = vpack.c.b16 %v2784, %v2783
        %v2796 = vpack.c.b16 %v2786, %v2785
        %v2797 = vpack.c.b16 %v2788, %v2787
        %v2798 = vpack.c.b16 %v2790, %v2789
        %2807 = vmatprep.subr.bf16.mxu0 0
        %2808 = vmatpush1.bf16.msra.mxu0 %v2791
        %2809 = vmatprep.subr.bf16.mxu0 0
        %2810 = vmatpush1.bf16.msra.mxu0 %v2792
        %2811 = vmatprep.subr.bf16.mxu0 0
        %2812 = vmatpush1.bf16.msra.mxu0 %v2793
        %2813 = vmatprep.subr.bf16.mxu0 0
        %2814 = vmatpush1.bf16.msra.mxu0 %v2794
        %2815 = vmatprep.subr.bf16.mxu0 0
        %2816 = vmatpush1.bf16.msra.mxu0 %v2795
        %2817 = vmatprep.subr.bf16.mxu0 0
        %2818 = vmatpush1.bf16.msra.mxu0 %v2796
        %2819 = vmatprep.subr.bf16.mxu0 0
        %2820 = vmatpush1.bf16.msra.mxu0 %v2797
        %2821 = vmatprep.subr.bf16.mxu0 0
        %2822 = vmatpush1.bf16.msra.mxu0 %v2798
        %2823 = vmatprep.subr.bf16.mxu0 0
        %2824 = vmatpush1.bf16.msra.mxu0 0
        %2825 = vmatprep.subr.bf16.mxu0 0
        %2826 = vmatpush1.bf16.msra.mxu0 0
        %2827 = vmatprep.subr.bf16.mxu0 0
        %2828 = vmatpush1.bf16.msra.mxu0 0
        %2829 = vmatprep.subr.bf16.mxu0 0
        %2830 = vmatpush1.bf16.msra.mxu0 0
        %2831 = vmatprep.subr.bf16.mxu0 0
        %2832 = vmatpush1.bf16.msra.mxu0 0
        %2833 = vmatprep.subr.bf16.mxu0 0
        %2834 = vmatpush1.bf16.msra.mxu0 0
        %2835 = vmatprep.subr.bf16.mxu0 0
        %2836 = vmatpush1.bf16.msra.mxu0 0
        %2837 = vmatprep.subr.bf16.mxu0 0
        %2838 = vmatpush1.bf16.msra.mxu0 0
        %2839 = vmatprep.mubr.bf16.mxu0 0
        %2840 = vmatmul.mubr.bf16.gmra.mrb[0].mxu0 %v2453
        %v2841 = vpop.f32.mrb[0].mxu0
        %v2842 = vadd.f32 %v2633, %v2841
        %v2843 = vpop.f32.mrb[0].mxu0
        %v2844 = vpop.f32.mrb[0].mxu0
        %v2845 = vadd.f32 %v2636, %v2844
        %v2846 = vpop.f32.mrb[0].mxu0
        %2847 = vmatprep.mubr.bf16.mxu0 0
        %2848 = vmatmul.mubr.bf16.gmra.mrb[0].mxu0 %v2454
        %v2849 = vpop.f32.mrb[0].mxu0
        %v2850 = vadd.f32 %v2641, %v2849
        %v2851 = vpop.f32.mrb[0].mxu0
        %v2852 = vpop.f32.mrb[0].mxu0
        %v2853 = vadd.f32 %v2644, %v2852
        %v2854 = vpop.f32.mrb[0].mxu0
        %2855 = vmatprep.mubr.bf16.mxu0 0
        %2856 = vmatmul.mubr.bf16.gmra.mrb[0].mxu0 %v2455
        %v2857 = vpop.f32.mrb[0].mxu0
        %v2858 = vadd.f32 %v2649, %v2857
        %v2859 = vpop.f32.mrb[0].mxu0
        %v2860 = vpop.f32.mrb[0].mxu0
        %v2861 = vadd.f32 %v2652, %v2860
        %v2862 = vpop.f32.mrb[0].mxu0
        %2863 = vmatprep.mubr.bf16.mxu0 0
        %2864 = vmatmul.mubr.bf16.gmra.mrb[0].mxu0 %v2456
        %v2865 = vpop.f32.mrb[0].mxu0
        %v2866 = vadd.f32 %v2657, %v2865
        %v2867 = vpop.f32.mrb[0].mxu0
        %v2868 = vpop.f32.mrb[0].mxu0
        %v2869 = vadd.f32 %v2660, %v2868
        %v2870 = vpop.f32.mrb[0].mxu0
        %2871 = vmatprep.mubr.bf16.mxu0 0
        %2872 = vmatmul.mubr.bf16.gmra.mrb[0].mxu0 %v2457
        %v2873 = vpop.f32.mrb[0].mxu0
        %v2874 = vadd.f32 %v2665, %v2873
        %v2875 = vpop.f32.mrb[0].mxu0
        %v2876 = vpop.f32.mrb[0].mxu0
        %v2877 = vadd.f32 %v2668, %v2876
        %v2878 = vpop.f32.mrb[0].mxu0
        %2879 = vmatprep.mubr.bf16.mxu0 0
        %2880 = vmatmul.mubr.bf16.gmra.mrb[0].mxu0 %v2458
        %v2881 = vpop.f32.mrb[0].mxu0
        %v2882 = vadd.f32 %v2673, %v2881
        %v2883 = vpop.f32.mrb[0].mxu0
        %v2884 = vpop.f32.mrb[0].mxu0
        %v2885 = vadd.f32 %v2676, %v2884
        %v2886 = vpop.f32.mrb[0].mxu0
        %2887 = vmatprep.mubr.bf16.mxu0 0
        %2888 = vmatmul.mubr.bf16.gmra.mrb[0].mxu0 %v2459
        %v2889 = vpop.f32.mrb[0].mxu0
        %v2890 = vadd.f32 %v2681, %v2889
        %v2891 = vpop.f32.mrb[0].mxu0
        %v2892 = vpop.f32.mrb[0].mxu0
        %v2893 = vadd.f32 %v2684, %v2892
        %v2894 = vpop.f32.mrb[0].mxu0
        %2895 = vmatprep.mubr.bf16.mxu0 0
        %2896 = vmatmul.mubr.bf16.gmra.mrb[0].mxu0 %v2460
        %v2897 = vpop.f32.mrb[0].mxu0
        %v2898 = vadd.f32 %v2689, %v2897
        %v2899 = vpop.f32.mrb[0].mxu0
        %v2900 = vpop.f32.mrb[0].mxu0
        %v2901 = vadd.f32 %v2692, %v2900
        %v2902 = vpop.f32.mrb[0].mxu0
        %2903 = vmatprep.mubr.bf16.mxu0 0
        %2904 = vmatmul.mubr.bf16.gmra.mrb[0].mxu0 %v2461
        %v2905 = vpop.f32.mrb[0].mxu0
        %v2906 = vadd.f32 %v2697, %v2905
        %v2907 = vpop.f32.mrb[0].mxu0
        %v2908 = vpop.f32.mrb[0].mxu0
        %v2909 = vadd.f32 %v2700, %v2908
        %v2910 = vpop.f32.mrb[0].mxu0
        %2911 = vmatprep.mubr.bf16.mxu0 0
        %2912 = vmatmul.mubr.bf16.gmra.mrb[0].mxu0 %v2462
        %v2913 = vpop.f32.mrb[0].mxu0
        %v2914 = vadd.f32 %v2705, %v2913
        %v2915 = vpop.f32.mrb[0].mxu0
        %v2916 = vpop.f32.mrb[0].mxu0
        %v2917 = vadd.f32 %v2708, %v2916
        %v2918 = vpop.f32.mrb[0].mxu0
        %2919 = vmatprep.mubr.bf16.mxu0 0
        %2920 = vmatmul.mubr.bf16.gmra.mrb[0].mxu0 %v2463
        %v2921 = vpop.f32.mrb[0].mxu0
        %v2922 = vadd.f32 %v2713, %v2921
        %v2923 = vpop.f32.mrb[0].mxu0
        %v2924 = vpop.f32.mrb[0].mxu0
        %v2925 = vadd.f32 %v2716, %v2924
        %v2926 = vpop.f32.mrb[0].mxu0
        %2927 = vmatprep.mubr.bf16.mxu0 0
        %2928 = vmatmul.mubr.bf16.gmra.mrb[0].mxu0 %v2464
        %v2929 = vpop.f32.mrb[0].mxu0
        %v2930 = vadd.f32 %v2721, %v2929
        %v2931 = vpop.f32.mrb[0].mxu0
        %v2932 = vpop.f32.mrb[0].mxu0
        %v2933 = vadd.f32 %v2724, %v2932
        %v2934 = vpop.f32.mrb[0].mxu0
        %2935 = vmatprep.mubr.bf16.mxu0 0
        %2936 = vmatmul.mubr.bf16.gmra.mrb[0].mxu0 %v2465
        %v2937 = vpop.f32.mrb[0].mxu0
        %v2938 = vadd.f32 %v2729, %v2937
        %v2939 = vpop.f32.mrb[0].mxu0
        %v2940 = vpop.f32.mrb[0].mxu0
        %v2941 = vadd.f32 %v2732, %v2940
        %v2942 = vpop.f32.mrb[0].mxu0
        %2943 = vmatprep.mubr.bf16.mxu0 0
        %2944 = vmatmul.mubr.bf16.gmra.mrb[0].mxu0 %v2466
        %v2945 = vpop.f32.mrb[0].mxu0
        %v2946 = vadd.f32 %v2737, %v2945
        %v2947 = vpop.f32.mrb[0].mxu0
        %v2948 = vpop.f32.mrb[0].mxu0
        %v2949 = vadd.f32 %v2740, %v2948
        %v2950 = vpop.f32.mrb[0].mxu0
        %2951 = vmatprep.mubr.bf16.mxu0 0
        %2952 = vmatmul.mubr.bf16.gmra.mrb[0].mxu0 %v2467
        %v2953 = vpop.f32.mrb[0].mxu0
        %v2954 = vadd.f32 %v2745, %v2953
        %v2955 = vpop.f32.mrb[0].mxu0
        %v2956 = vpop.f32.mrb[0].mxu0
        %v2957 = vadd.f32 %v2748, %v2956
        %v2958 = vpop.f32.mrb[0].mxu0
        %2959 = vmatprep.mubr.bf16.mxu0 0
        %2960 = vmatmul.mubr.bf16.gmra.mrb[0].mxu0 %v2468
        %v2961 = vpop.f32.mrb[0].mxu0
        %v2962 = vadd.f32 %v2753, %v2961
        %v2963 = vpop.f32.mrb[0].mxu0
        %v2964 = vpop.f32.mrb[0].mxu0
        %v2965 = vadd.f32 %v2756, %v2964
        %v2966 = vpop.f32.mrb[0].mxu0
        %2967 = vdwg.mxu0
        %v2968 = vld [vmem:[#allocation2 + $0x2] sm:$0xff]
        %v2969 = vld [vmem:[#allocation2 + $0xa] sm:$0xff]
        %v2970 = vld [vmem:[#allocation2 + $0x1a] sm:$0xff]
        %v2971 = vld [vmem:[#allocation2 + $0x22] sm:$0xff]
        %v2972 = vld [vmem:[#allocation2 + $0x32] sm:$0xff]
        %v2973 = vld [vmem:[#allocation2 + $0x3a] sm:$0xff]
        %v2974 = vld [vmem:[#allocation2 + $0x4a] sm:$0xff]
        %v2975 = vld [vmem:[#allocation2 + $0x52] sm:$0xff]
        %v2976 = vld [vmem:[#allocation2 + $0x62] sm:$0xff]
        %v2977 = vld [vmem:[#allocation2 + $0x6a] sm:$0xff]
        %v2978 = vld [vmem:[#allocation2 + $0x7a] sm:$0xff]
        %v2979 = vld [vmem:[#allocation2 + $0x82] sm:$0xff]
        %v2980 = vld [vmem:[#allocation2 + $0x92] sm:$0xff]
        %v2981 = vld [vmem:[#allocation2 + $0x9a] sm:$0xff]
        %v2982 = vld [vmem:[#allocation2 + $0xaa] sm:$0xff]
        %v2983 = vld [vmem:[#allocation2 + $0xb2] sm:$0xff]
        %v2984 = vld [vmem:[#allocation2 + $0xc2] sm:$0xff]
        %v2985 = vld [vmem:[#allocation2 + $0xca] sm:$0xff]
        %v2986 = vld [vmem:[#allocation2 + $0xda] sm:$0xff]
        %v2987 = vld [vmem:[#allocation2 + $0xe2] sm:$0xff]
        %v2988 = vld [vmem:[#allocation2 + $0xf2] sm:$0xff]
        %v2989 = vld [vmem:[#allocation2 + $0xfa] sm:$0xff]
        %v2990 = vld [vmem:[#allocation2 + $0x10a] sm:$0xff]
        %v2991 = vld [vmem:[#allocation2 + $0x112] sm:$0xff]
        %v2992 = vld [vmem:[#allocation2 + $0x122] sm:$0xff]
        %v2993 = vld [vmem:[#allocation2 + $0x12a] sm:$0xff]
        %v2994 = vld [vmem:[#allocation2 + $0x13a] sm:$0xff]
        %v2995 = vld [vmem:[#allocation2 + $0x142] sm:$0xff]
        %v2996 = vld [vmem:[#allocation2 + $0x152] sm:$0xff]
        %v2997 = vld [vmem:[#allocation2 + $0x15a] sm:$0xff]
        %v2998 = vld [vmem:[#allocation2 + $0x16a] sm:$0xff]
        %v2999 = vld [vmem:[#allocation2 + $0x172] sm:$0xff]
        %v3000 = vpack.c.bf16 %v2969, %v2968
        %v3001 = vpack.c.bf16 %v2971, %v2970
        %v3002 = vpack.c.bf16 %v2973, %v2972
        %v3003 = vpack.c.bf16 %v2975, %v2974
        %v3004 = vpack.c.bf16 %v2977, %v2976
        %v3005 = vpack.c.bf16 %v2979, %v2978
        %v3006 = vpack.c.bf16 %v2981, %v2980
        %v3007 = vpack.c.bf16 %v2983, %v2982
        %v3008 = vpack.c.bf16 %v2985, %v2984
        %v3009 = vpack.c.bf16 %v2987, %v2986
        %v3010 = vpack.c.bf16 %v2989, %v2988
        %v3011 = vpack.c.bf16 %v2991, %v2990
        %v3012 = vpack.c.bf16 %v2993, %v2992
        %v3013 = vpack.c.bf16 %v2995, %v2994
        %v3014 = vpack.c.bf16 %v2997, %v2996
        %v3015 = vpack.c.bf16 %v2999, %v2998
        %s3016 = scalar_lea.vmem %s8, 128
        %v3017 = vld [vmem:[%s3016] sm:$0xf]
        %v3018 = vld [vmem:[%s3016 + $0x4] sm:$0xf]
        %v3019 = vld [vmem:[%s3016 + $0x8] sm:$0xf]
        %v3020 = vld [vmem:[%s3016 + $0xc] sm:$0xf]
        %v3021 = vld [vmem:[%s3016 + $0x10] sm:$0xf]
        %v3022 = vld [vmem:[%s3016 + $0x14] sm:$0xf]
        %v3023 = vld [vmem:[%s3016 + $0x18] sm:$0xf]
        %v3024 = vld [vmem:[%s3016 + $0x1c] sm:$0xf]
        %v3025 = vld [vmem:[%s3016 + $0x20] sm:$0xf]
        %v3026 = vld [vmem:[%s3016 + $0x24] sm:$0xf]
        %v3027 = vld [vmem:[%s3016 + $0x28] sm:$0xf]
        %v3028 = vld [vmem:[%s3016 + $0x2c] sm:$0xf]
        %v3029 = vld [vmem:[%s3016 + $0x30] sm:$0xf]
        %v3030 = vld [vmem:[%s3016 + $0x34] sm:$0xf]
        %v3031 = vld [vmem:[%s3016 + $0x38] sm:$0xf]
        %v3032 = vld [vmem:[%s3016 + $0x3c] sm:$0xf]
        %v3049 = vunpack.c.l.b16 %v3017
        %v3050 = vunpack.c.l.b16 %v3018
        %v3051 = vunpack.c.l.b16 %v3019
        %v3052 = vunpack.c.l.b16 %v3020
        %v3053 = vunpack.c.l.b16 %v3021
        %v3054 = vunpack.c.l.b16 %v3022
        %v3055 = vunpack.c.l.b16 %v3023
        %v3056 = vunpack.c.l.b16 %v3024
        %v3057 = vunpack.c.l.b16 %v3025
        %v3058 = vunpack.c.l.b16 %v3026
        %v3059 = vunpack.c.l.b16 %v3027
        %v3060 = vunpack.c.l.b16 %v3028
        %v3061 = vunpack.c.l.b16 %v3029
        %v3062 = vunpack.c.l.b16 %v3030
        %v3063 = vunpack.c.l.b16 %v3031
        %v3064 = vunpack.c.l.b16 %v3032
        %v3065 = vpack.c.b16 %v3050, %v3049
        %v3066 = vpack.c.b16 %v3052, %v3051
        %v3067 = vpack.c.b16 %v3054, %v3053
        %v3068 = vpack.c.b16 %v3056, %v3055
        %v3069 = vpack.c.b16 %v3058, %v3057
        %v3070 = vpack.c.b16 %v3060, %v3059
        %v3071 = vpack.c.b16 %v3062, %v3061
        %v3072 = vpack.c.b16 %v3064, %v3063
        %3081 = vmatprep.subr.bf16.mxu0 0
        %3082 = vmatpush1.bf16.msra.mxu0 %v3065
        %3083 = vmatprep.subr.bf16.mxu0 0
        %3084 = vmatpush1.bf16.msra.mxu0 %v3066
        %3085 = vmatprep.subr.bf16.mxu0 0
        %3086 = vmatpush1.bf16.msra.mxu0 %v3067
        %3087 = vmatprep.subr.bf16.mxu0 0
        %3088 = vmatpush1.bf16.msra.mxu0 %v3068
        %3089 = vmatprep.subr.bf16.mxu0 0
        %3090 = vmatpush1.bf16.msra.mxu0 %v3069
        %3091 = vmatprep.subr.bf16.mxu0 0
        %3092 = vmatpush1.bf16.msra.mxu0 %v3070
        %3093 = vmatprep.subr.bf16.mxu0 0
        %3094 = vmatpush1.bf16.msra.mxu0 %v3071
        %3095 = vmatprep.subr.bf16.mxu0 0
        %3096 = vmatpush1.bf16.msra.mxu0 %v3072
        %3097 = vmatprep.subr.bf16.mxu0 0
        %3098 = vmatpush1.bf16.msra.mxu0 0
        %3099 = vmatprep.subr.bf16.mxu0 0
        %3100 = vmatpush1.bf16.msra.mxu0 0
        %3101 = vmatprep.subr.bf16.mxu0 0
        %3102 = vmatpush1.bf16.msra.mxu0 0
        %3103 = vmatprep.subr.bf16.mxu0 0
        %3104 = vmatpush1.bf16.msra.mxu0 0
        %3105 = vmatprep.subr.bf16.mxu0 0
        %3106 = vmatpush1.bf16.msra.mxu0 0
        %3107 = vmatprep.subr.bf16.mxu0 0
        %3108 = vmatpush1.bf16.msra.mxu0 0
        %3109 = vmatprep.subr.bf16.mxu0 0
        %3110 = vmatpush1.bf16.msra.mxu0 0
        %3111 = vmatprep.subr.bf16.mxu0 0
        %3112 = vmatpush1.bf16.msra.mxu0 0
        %3113 = vmatprep.mubr.bf16.mxu0 0
        %3114 = vmatmul.mubr.bf16.gmra.mrb[0].mxu0 %v3000
        %v3115 = vpop.f32.mrb[0].mxu0
        %v3116 = vadd.f32 0.0, %v3115
        %v3117 = vpop.f32.mrb[0].mxu0
        %v3118 = vpop.f32.mrb[0].mxu0
        %v3119 = vadd.f32 0.0, %v3118
        %v3120 = vpop.f32.mrb[0].mxu0
        %3121 = vmatprep.mubr.bf16.mxu0 0
        %3122 = vmatmul.mubr.bf16.gmra.mrb[0].mxu0 %v3001
        %v3123 = vpop.f32.mrb[0].mxu0
        %v3124 = vadd.f32 0.0, %v3123
        %v3125 = vpop.f32.mrb[0].mxu0
        %v3126 = vpop.f32.mrb[0].mxu0
        %v3127 = vadd.f32 0.0, %v3126
        %v3128 = vpop.f32.mrb[0].mxu0
        %3129 = vmatprep.mubr.bf16.mxu0 0
        %3130 = vmatmul.mubr.bf16.gmra.mrb[0].mxu0 %v3002
        %v3131 = vpop.f32.mrb[0].mxu0
        %v3132 = vadd.f32 0.0, %v3131
        %v3133 = vpop.f32.mrb[0].mxu0
        %v3134 = vpop.f32.mrb[0].mxu0
        %v3135 = vadd.f32 0.0, %v3134
        %v3136 = vpop.f32.mrb[0].mxu0
        %3137 = vmatprep.mubr.bf16.mxu0 0
        %3138 = vmatmul.mubr.bf16.gmra.mrb[0].mxu0 %v3003
        %v3139 = vpop.f32.mrb[0].mxu0
        %v3140 = vadd.f32 0.0, %v3139
        %v3141 = vpop.f32.mrb[0].mxu0
        %v3142 = vpop.f32.mrb[0].mxu0
        %v3143 = vadd.f32 0.0, %v3142
        %v3144 = vpop.f32.mrb[0].mxu0
        %3145 = vmatprep.mubr.bf16.mxu0 0
        %3146 = vmatmul.mubr.bf16.gmra.mrb[0].mxu0 %v3004
        %v3147 = vpop.f32.mrb[0].mxu0
        %v3148 = vadd.f32 0.0, %v3147
        %v3149 = vpop.f32.mrb[0].mxu0
        %v3150 = vpop.f32.mrb[0].mxu0
        %v3151 = vadd.f32 0.0, %v3150
        %v3152 = vpop.f32.mrb[0].mxu0
        %3153 = vmatprep.mubr.bf16.mxu0 0
        %3154 = vmatmul.mubr.bf16.gmra.mrb[0].mxu0 %v3005
        %v3155 = vpop.f32.mrb[0].mxu0
        %v3156 = vadd.f32 0.0, %v3155
        %v3157 = vpop.f32.mrb[0].mxu0
        %v3158 = vpop.f32.mrb[0].mxu0
        %v3159 = vadd.f32 0.0, %v3158
        %v3160 = vpop.f32.mrb[0].mxu0
        %3161 = vmatprep.mubr.bf16.mxu0 0
        %3162 = vmatmul.mubr.bf16.gmra.mrb[0].mxu0 %v3006
        %v3163 = vpop.f32.mrb[0].mxu0
        %v3164 = vadd.f32 0.0, %v3163
        %v3165 = vpop.f32.mrb[0].mxu0
        %v3166 = vpop.f32.mrb[0].mxu0
        %v3167 = vadd.f32 0.0, %v3166
        %v3168 = vpop.f32.mrb[0].mxu0
        %3169 = vmatprep.mubr.bf16.mxu0 0
        %3170 = vmatmul.mubr.bf16.gmra.mrb[0].mxu0 %v3007
        %v3171 = vpop.f32.mrb[0].mxu0
        %v3172 = vadd.f32 0.0, %v3171
        %v3173 = vpop.f32.mrb[0].mxu0
        %v3174 = vpop.f32.mrb[0].mxu0
        %v3175 = vadd.f32 0.0, %v3174
        %v3176 = vpop.f32.mrb[0].mxu0
        %3177 = vmatprep.mubr.bf16.mxu0 0
        %3178 = vmatmul.mubr.bf16.gmra.mrb[0].mxu0 %v3008
        %v3179 = vpop.f32.mrb[0].mxu0
        %v3180 = vadd.f32 0.0, %v3179
        %v3181 = vpop.f32.mrb[0].mxu0
        %v3182 = vpop.f32.mrb[0].mxu0
        %v3183 = vadd.f32 0.0, %v3182
        %v3184 = vpop.f32.mrb[0].mxu0
        %3185 = vmatprep.mubr.bf16.mxu0 0
        %3186 = vmatmul.mubr.bf16.gmra.mrb[0].mxu0 %v3009
        %v3187 = vpop.f32.mrb[0].mxu0
        %v3188 = vadd.f32 0.0, %v3187
        %v3189 = vpop.f32.mrb[0].mxu0
        %v3190 = vpop.f32.mrb[0].mxu0
        %v3191 = vadd.f32 0.0, %v3190
        %v3192 = vpop.f32.mrb[0].mxu0
        %3193 = vmatprep.mubr.bf16.mxu0 0
        %3194 = vmatmul.mubr.bf16.gmra.mrb[0].mxu0 %v3010
        %v3195 = vpop.f32.mrb[0].mxu0
        %v3196 = vadd.f32 0.0, %v3195
        %v3197 = vpop.f32.mrb[0].mxu0
        %v3198 = vpop.f32.mrb[0].mxu0
        %v3199 = vadd.f32 0.0, %v3198
        %v3200 = vpop.f32.mrb[0].mxu0
        %3201 = vmatprep.mubr.bf16.mxu0 0
        %3202 = vmatmul.mubr.bf16.gmra.mrb[0].mxu0 %v3011
        %v3203 = vpop.f32.mrb[0].mxu0
        %v3204 = vadd.f32 0.0, %v3203
        %v3205 = vpop.f32.mrb[0].mxu0
        %v3206 = vpop.f32.mrb[0].mxu0
        %v3207 = vadd.f32 0.0, %v3206
        %v3208 = vpop.f32.mrb[0].mxu0
        %3209 = vmatprep.mubr.bf16.mxu0 0
        %3210 = vmatmul.mubr.bf16.gmra.mrb[0].mxu0 %v3012
        %v3211 = vpop.f32.mrb[0].mxu0
        %v3212 = vadd.f32 0.0, %v3211
        %v3213 = vpop.f32.mrb[0].mxu0
        %v3214 = vpop.f32.mrb[0].mxu0
        %v3215 = vadd.f32 0.0, %v3214
        %v3216 = vpop.f32.mrb[0].mxu0
        %3217 = vmatprep.mubr.bf16.mxu0 0
        %3218 = vmatmul.mubr.bf16.gmra.mrb[0].mxu0 %v3013
        %v3219 = vpop.f32.mrb[0].mxu0
        %v3220 = vadd.f32 0.0, %v3219
        %v3221 = vpop.f32.mrb[0].mxu0
        %v3222 = vpop.f32.mrb[0].mxu0
        %v3223 = vadd.f32 0.0, %v3222
        %v3224 = vpop.f32.mrb[0].mxu0
        %3225 = vmatprep.mubr.bf16.mxu0 0
        %3226 = vmatmul.mubr.bf16.gmra.mrb[0].mxu0 %v3014
        %v3227 = vpop.f32.mrb[0].mxu0
        %v3228 = vadd.f32 0.0, %v3227
        %v3229 = vpop.f32.mrb[0].mxu0
        %v3230 = vpop.f32.mrb[0].mxu0
        %v3231 = vadd.f32 0.0, %v3230
        %v3232 = vpop.f32.mrb[0].mxu0
        %3233 = vmatprep.mubr.bf16.mxu0 0
        %3234 = vmatmul.mubr.bf16.gmra.mrb[0].mxu0 %v3015
        %v3235 = vpop.f32.mrb[0].mxu0
        %v3236 = vadd.f32 0.0, %v3235
        %v3237 = vpop.f32.mrb[0].mxu0
        %v3238 = vpop.f32.mrb[0].mxu0
        %v3239 = vadd.f32 0.0, %v3238
        %v3240 = vpop.f32.mrb[0].mxu0
        %3241 = vdwg.mxu0
        %v3242 = vadd.f32 %v2842, %v3116
        %v3243 = vadd.f32 %v2845, %v3119
        %v3244 = vadd.f32 %v2850, %v3124
        %v3245 = vadd.f32 %v2853, %v3127
        %v3246 = vadd.f32 %v2858, %v3132
        %v3247 = vadd.f32 %v2861, %v3135
        %v3248 = vadd.f32 %v2866, %v3140
        %v3249 = vadd.f32 %v2869, %v3143
        %v3250 = vadd.f32 %v2874, %v3148
        %v3251 = vadd.f32 %v2877, %v3151
        %v3252 = vadd.f32 %v2882, %v3156
        %v3253 = vadd.f32 %v2885, %v3159
        %v3254 = vadd.f32 %v2890, %v3164
        %v3255 = vadd.f32 %v2893, %v3167
        %v3256 = vadd.f32 %v2898, %v3172
        %v3257 = vadd.f32 %v2901, %v3175
        %v3258 = vadd.f32 %v2906, %v3180
        %v3259 = vadd.f32 %v2909, %v3183
        %v3260 = vadd.f32 %v2914, %v3188
        %v3261 = vadd.f32 %v2917, %v3191
        %v3262 = vadd.f32 %v2922, %v3196
        %v3263 = vadd.f32 %v2925, %v3199
        %v3264 = vadd.f32 %v2930, %v3204
        %v3265 = vadd.f32 %v2933, %v3207
        %v3266 = vadd.f32 %v2938, %v3212
        %v3267 = vadd.f32 %v2941, %v3215
        %v3268 = vadd.f32 %v2946, %v3220
        %v3269 = vadd.f32 %v2949, %v3223
        %v3270 = vadd.f32 %v2954, %v3228
        %v3271 = vadd.f32 %v2957, %v3231
        %v3272 = vadd.f32 %v2962, %v3236
        %v3273 = vadd.f32 %v2965, %v3239
        %v3274 = vld [vmem:[%s2388] sm:$0xff]
        %v3275 = vld [vmem:[%s2388 + $0x8] sm:$0xff]
        %v3276 = vld [vmem:[%s2388 + $0x18] sm:$0xff]
        %v3277 = vld [vmem:[%s2388 + $0x20] sm:$0xff]
        %v3278 = vld [vmem:[%s2388 + $0x30] sm:$0xff]
        %v3279 = vld [vmem:[%s2388 + $0x38] sm:$0xff]
        %v3280 = vld [vmem:[%s2388 + $0x48] sm:$0xff]
        %v3281 = vld [vmem:[%s2388 + $0x50] sm:$0xff]
        %v3282 = vld [vmem:[%s2388 + $0x60] sm:$0xff]
        %v3283 = vld [vmem:[%s2388 + $0x68] sm:$0xff]
        %v3284 = vld [vmem:[%s2388 + $0x78] sm:$0xff]
        %v3285 = vld [vmem:[%s2388 + $0x80] sm:$0xff]
        %v3286 = vld [vmem:[%s2388 + $0x90] sm:$0xff]
        %v3287 = vld [vmem:[%s2388 + $0x98] sm:$0xff]
        %v3288 = vld [vmem:[%s2388 + $0xa8] sm:$0xff]
        %v3289 = vld [vmem:[%s2388 + $0xb0] sm:$0xff]
        %v3290 = vld [vmem:[%s2388 + $0xc0] sm:$0xff]
        %v3291 = vld [vmem:[%s2388 + $0xc8] sm:$0xff]
        %v3292 = vld [vmem:[%s2388 + $0xd8] sm:$0xff]
        %v3293 = vld [vmem:[%s2388 + $0xe0] sm:$0xff]
        %v3294 = vld [vmem:[%s2388 + $0xf0] sm:$0xff]
        %v3295 = vld [vmem:[%s2388 + $0xf8] sm:$0xff]
        %v3296 = vld [vmem:[%s2388 + $0x108] sm:$0xff]
        %v3297 = vld [vmem:[%s2388 + $0x110] sm:$0xff]
        %v3298 = vld [vmem:[%s2388 + $0x120] sm:$0xff]
        %v3299 = vld [vmem:[%s2388 + $0x128] sm:$0xff]
        %v3300 = vld [vmem:[%s2388 + $0x138] sm:$0xff]
        %v3301 = vld [vmem:[%s2388 + $0x140] sm:$0xff]
        %v3302 = vld [vmem:[%s2388 + $0x150] sm:$0xff]
        %v3303 = vld [vmem:[%s2388 + $0x158] sm:$0xff]
        %v3304 = vld [vmem:[%s2388 + $0x168] sm:$0xff]
        %v3305 = vld [vmem:[%s2388 + $0x170] sm:$0xff]
        %v3306 = vpack.c.bf16 %v3275, %v3274
        %v3307 = vpack.c.bf16 %v3277, %v3276
        %v3308 = vpack.c.bf16 %v3279, %v3278
        %v3309 = vpack.c.bf16 %v3281, %v3280
        %v3310 = vpack.c.bf16 %v3283, %v3282
        %v3311 = vpack.c.bf16 %v3285, %v3284
        %v3312 = vpack.c.bf16 %v3287, %v3286
        %v3313 = vpack.c.bf16 %v3289, %v3288
        %v3314 = vpack.c.bf16 %v3291, %v3290
        %v3315 = vpack.c.bf16 %v3293, %v3292
        %v3316 = vpack.c.bf16 %v3295, %v3294
        %v3317 = vpack.c.bf16 %v3297, %v3296
        %v3318 = vpack.c.bf16 %v3299, %v3298
        %v3319 = vpack.c.bf16 %v3301, %v3300
        %v3320 = vpack.c.bf16 %v3303, %v3302
        %v3321 = vpack.c.bf16 %v3305, %v3304
        %s3322 = scalar_lea.vmem %s8, 192
        %v3323 = vld [vmem:[%s3322] sm:$0xf]
        %v3324 = vld [vmem:[%s3322 + $0x4] sm:$0xf]
        %v3325 = vld [vmem:[%s3322 + $0x8] sm:$0xf]
        %v3326 = vld [vmem:[%s3322 + $0xc] sm:$0xf]
        %v3327 = vld [vmem:[%s3322 + $0x10] sm:$0xf]
        %v3328 = vld [vmem:[%s3322 + $0x14] sm:$0xf]
        %v3329 = vld [vmem:[%s3322 + $0x18] sm:$0xf]
        %v3330 = vld [vmem:[%s3322 + $0x1c] sm:$0xf]
        %v3331 = vld [vmem:[%s3322 + $0x20] sm:$0xf]
        %v3332 = vld [vmem:[%s3322 + $0x24] sm:$0xf]
        %v3333 = vld [vmem:[%s3322 + $0x28] sm:$0xf]
        %v3334 = vld [vmem:[%s3322 + $0x2c] sm:$0xf]
        %v3335 = vld [vmem:[%s3322 + $0x30] sm:$0xf]
        %v3336 = vld [vmem:[%s3322 + $0x34] sm:$0xf]
        %v3337 = vld [vmem:[%s3322 + $0x38] sm:$0xf]
        %v3338 = vld [vmem:[%s3322 + $0x3c] sm:$0xf]
        %v3355 = vunpack.c.l.b16 %v3323
        %v3356 = vunpack.c.l.b16 %v3324
        %v3357 = vunpack.c.l.b16 %v3325
        %v3358 = vunpack.c.l.b16 %v3326
        %v3359 = vunpack.c.l.b16 %v3327
        %v3360 = vunpack.c.l.b16 %v3328
        %v3361 = vunpack.c.l.b16 %v3329
        %v3362 = vunpack.c.l.b16 %v3330
        %v3363 = vunpack.c.l.b16 %v3331
        %v3364 = vunpack.c.l.b16 %v3332
        %v3365 = vunpack.c.l.b16 %v3333
        %v3366 = vunpack.c.l.b16 %v3334
        %v3367 = vunpack.c.l.b16 %v3335
        %v3368 = vunpack.c.l.b16 %v3336
        %v3369 = vunpack.c.l.b16 %v3337
        %v3370 = vunpack.c.l.b16 %v3338
        %v3371 = vpack.c.b16 %v3356, %v3355
        %v3372 = vpack.c.b16 %v3358, %v3357
        %v3373 = vpack.c.b16 %v3360, %v3359
        %v3374 = vpack.c.b16 %v3362, %v3361
        %v3375 = vpack.c.b16 %v3364, %v3363
        %v3376 = vpack.c.b16 %v3366, %v3365
        %v3377 = vpack.c.b16 %v3368, %v3367
        %v3378 = vpack.c.b16 %v3370, %v3369
        %3387 = vmatprep.subr.bf16.mxu0 0
        %3388 = vmatpush1.bf16.msra.mxu0 %v3371
        %3389 = vmatprep.subr.bf16.mxu0 0
        %3390 = vmatpush1.bf16.msra.mxu0 %v3372
        %3391 = vmatprep.subr.bf16.mxu0 0
        %3392 = vmatpush1.bf16.msra.mxu0 %v3373
        %3393 = vmatprep.subr.bf16.mxu0 0
        %3394 = vmatpush1.bf16.msra.mxu0 %v3374
        %3395 = vmatprep.subr.bf16.mxu0 0
        %3396 = vmatpush1.bf16.msra.mxu0 %v3375
        %3397 = vmatprep.subr.bf16.mxu0 0
        %3398 = vmatpush1.bf16.msra.mxu0 %v3376
        %3399 = vmatprep.subr.bf16.mxu0 0
        %3400 = vmatpush1.bf16.msra.mxu0 %v3377
        %3401 = vmatprep.subr.bf16.mxu0 0
        %3402 = vmatpush1.bf16.msra.mxu0 %v3378
        %3403 = vmatprep.subr.bf16.mxu0 0
        %3404 = vmatpush1.bf16.msra.mxu0 0
        %3405 = vmatprep.subr.bf16.mxu0 0
        %3406 = vmatpush1.bf16.msra.mxu0 0
        %3407 = vmatprep.subr.bf16.mxu0 0
        %3408 = vmatpush1.bf16.msra.mxu0 0
        %3409 = vmatprep.subr.bf16.mxu0 0
        %3410 = vmatpush1.bf16.msra.mxu0 0
        %3411 = vmatprep.subr.bf16.mxu0 0
        %3412 = vmatpush1.bf16.msra.mxu0 0
        %3413 = vmatprep.subr.bf16.mxu0 0
        %3414 = vmatpush1.bf16.msra.mxu0 0
        %3415 = vmatprep.subr.bf16.mxu0 0
        %3416 = vmatpush1.bf16.msra.mxu0 0
        %3417 = vmatprep.subr.bf16.mxu0 0
        %3418 = vmatpush1.bf16.msra.mxu0 0
        %3419 = vmatprep.mubr.bf16.mxu0 0
        %3420 = vmatmul.mubr.bf16.gmra.mrb[0].mxu0 %v3306
        %v3421 = vpop.f32.mrb[0].mxu0
        %v3422 = vadd.f32 0.0, %v3421
        %v3423 = vpop.f32.mrb[0].mxu0
        %v3424 = vpop.f32.mrb[0].mxu0
        %v3425 = vadd.f32 0.0, %v3424
        %v3426 = vpop.f32.mrb[0].mxu0
        %3427 = vmatprep.mubr.bf16.mxu0 0
        %3428 = vmatmul.mubr.bf16.gmra.mrb[0].mxu0 %v3307
        %v3429 = vpop.f32.mrb[0].mxu0
        %v3430 = vadd.f32 0.0, %v3429
        %v3431 = vpop.f32.mrb[0].mxu0
        %v3432 = vpop.f32.mrb[0].mxu0
        %v3433 = vadd.f32 0.0, %v3432
        %v3434 = vpop.f32.mrb[0].mxu0
        %3435 = vmatprep.mubr.bf16.mxu0 0
        %3436 = vmatmul.mubr.bf16.gmra.mrb[0].mxu0 %v3308
        %v3437 = vpop.f32.mrb[0].mxu0
        %v3438 = vadd.f32 0.0, %v3437
        %v3439 = vpop.f32.mrb[0].mxu0
        %v3440 = vpop.f32.mrb[0].mxu0
        %v3441 = vadd.f32 0.0, %v3440
        %v3442 = vpop.f32.mrb[0].mxu0
        %3443 = vmatprep.mubr.bf16.mxu0 0
        %3444 = vmatmul.mubr.bf16.gmra.mrb[0].mxu0 %v3309
        %v3445 = vpop.f32.mrb[0].mxu0
        %v3446 = vadd.f32 0.0, %v3445
        %v3447 = vpop.f32.mrb[0].mxu0
        %v3448 = vpop.f32.mrb[0].mxu0
        %v3449 = vadd.f32 0.0, %v3448
        %v3450 = vpop.f32.mrb[0].mxu0
        %3451 = vmatprep.mubr.bf16.mxu0 0
        %3452 = vmatmul.mubr.bf16.gmra.mrb[0].mxu0 %v3310
        %v3453 = vpop.f32.mrb[0].mxu0
        %v3454 = vadd.f32 0.0, %v3453
        %v3455 = vpop.f32.mrb[0].mxu0
        %v3456 = vpop.f32.mrb[0].mxu0
        %v3457 = vadd.f32 0.0, %v3456
        %v3458 = vpop.f32.mrb[0].mxu0
        %3459 = vmatprep.mubr.bf16.mxu0 0
        %3460 = vmatmul.mubr.bf16.gmra.mrb[0].mxu0 %v3311
        %v3461 = vpop.f32.mrb[0].mxu0
        %v3462 = vadd.f32 0.0, %v3461
        %v3463 = vpop.f32.mrb[0].mxu0
        %v3464 = vpop.f32.mrb[0].mxu0
        %v3465 = vadd.f32 0.0, %v3464
        %v3466 = vpop.f32.mrb[0].mxu0
        %3467 = vmatprep.mubr.bf16.mxu0 0
        %3468 = vmatmul.mubr.bf16.gmra.mrb[0].mxu0 %v3312
        %v3469 = vpop.f32.mrb[0].mxu0
        %v3470 = vadd.f32 0.0, %v3469
        %v3471 = vpop.f32.mrb[0].mxu0
        %v3472 = vpop.f32.mrb[0].mxu0
        %v3473 = vadd.f32 0.0, %v3472
        %v3474 = vpop.f32.mrb[0].mxu0
        %3475 = vmatprep.mubr.bf16.mxu0 0
        %3476 = vmatmul.mubr.bf16.gmra.mrb[0].mxu0 %v3313
        %v3477 = vpop.f32.mrb[0].mxu0
        %v3478 = vadd.f32 0.0, %v3477
        %v3479 = vpop.f32.mrb[0].mxu0
        %v3480 = vpop.f32.mrb[0].mxu0
        %v3481 = vadd.f32 0.0, %v3480
        %v3482 = vpop.f32.mrb[0].mxu0
        %3483 = vmatprep.mubr.bf16.mxu0 0
        %3484 = vmatmul.mubr.bf16.gmra.mrb[0].mxu0 %v3314
        %v3485 = vpop.f32.mrb[0].mxu0
        %v3486 = vadd.f32 0.0, %v3485
        %v3487 = vpop.f32.mrb[0].mxu0
        %v3488 = vpop.f32.mrb[0].mxu0
        %v3489 = vadd.f32 0.0, %v3488
        %v3490 = vpop.f32.mrb[0].mxu0
        %3491 = vmatprep.mubr.bf16.mxu0 0
        %3492 = vmatmul.mubr.bf16.gmra.mrb[0].mxu0 %v3315
        %v3493 = vpop.f32.mrb[0].mxu0
        %v3494 = vadd.f32 0.0, %v3493
        %v3495 = vpop.f32.mrb[0].mxu0
        %v3496 = vpop.f32.mrb[0].mxu0
        %v3497 = vadd.f32 0.0, %v3496
        %v3498 = vpop.f32.mrb[0].mxu0
        %3499 = vmatprep.mubr.bf16.mxu0 0
        %3500 = vmatmul.mubr.bf16.gmra.mrb[0].mxu0 %v3316
        %v3501 = vpop.f32.mrb[0].mxu0
        %v3502 = vadd.f32 0.0, %v3501
        %v3503 = vpop.f32.mrb[0].mxu0
        %v3504 = vpop.f32.mrb[0].mxu0
        %v3505 = vadd.f32 0.0, %v3504
        %v3506 = vpop.f32.mrb[0].mxu0
        %3507 = vmatprep.mubr.bf16.mxu0 0
        %3508 = vmatmul.mubr.bf16.gmra.mrb[0].mxu0 %v3317
        %v3509 = vpop.f32.mrb[0].mxu0
        %v3510 = vadd.f32 0.0, %v3509
        %v3511 = vpop.f32.mrb[0].mxu0
        %v3512 = vpop.f32.mrb[0].mxu0
        %v3513 = vadd.f32 0.0, %v3512
        %v3514 = vpop.f32.mrb[0].mxu0
        %3515 = vmatprep.mubr.bf16.mxu0 0
        %3516 = vmatmul.mubr.bf16.gmra.mrb[0].mxu0 %v3318
        %v3517 = vpop.f32.mrb[0].mxu0
        %v3518 = vadd.f32 0.0, %v3517
        %v3519 = vpop.f32.mrb[0].mxu0
        %v3520 = vpop.f32.mrb[0].mxu0
        %v3521 = vadd.f32 0.0, %v3520
        %v3522 = vpop.f32.mrb[0].mxu0
        %3523 = vmatprep.mubr.bf16.mxu0 0
        %3524 = vmatmul.mubr.bf16.gmra.mrb[0].mxu0 %v3319
        %v3525 = vpop.f32.mrb[0].mxu0
        %v3526 = vadd.f32 0.0, %v3525
        %v3527 = vpop.f32.mrb[0].mxu0
        %v3528 = vpop.f32.mrb[0].mxu0
        %v3529 = vadd.f32 0.0, %v3528
        %v3530 = vpop.f32.mrb[0].mxu0
        %3531 = vmatprep.mubr.bf16.mxu0 0
        %3532 = vmatmul.mubr.bf16.gmra.mrb[0].mxu0 %v3320
        %v3533 = vpop.f32.mrb[0].mxu0
        %v3534 = vadd.f32 0.0, %v3533
        %v3535 = vpop.f32.mrb[0].mxu0
        %v3536 = vpop.f32.mrb[0].mxu0
        %v3537 = vadd.f32 0.0, %v3536
        %v3538 = vpop.f32.mrb[0].mxu0
        %3539 = vmatprep.mubr.bf16.mxu0 0
        %3540 = vmatmul.mubr.bf16.gmra.mrb[0].mxu0 %v3321
        %v3541 = vpop.f32.mrb[0].mxu0
        %v3542 = vadd.f32 0.0, %v3541
        %v3543 = vpop.f32.mrb[0].mxu0
        %v3544 = vpop.f32.mrb[0].mxu0
        %v3545 = vadd.f32 0.0, %v3544
        %v3546 = vpop.f32.mrb[0].mxu0
        %3547 = vdwg.mxu0
        %v3548 = vadd.f32 %v3242, %v3422
        %v3549 = vadd.f32 %v3243, %v3425
        %v3550 = vadd.f32 %v3244, %v3430
        %v3551 = vadd.f32 %v3245, %v3433
        %v3552 = vadd.f32 %v3246, %v3438
        %v3553 = vadd.f32 %v3247, %v3441
        %v3554 = vadd.f32 %v3248, %v3446
        %v3555 = vadd.f32 %v3249, %v3449
        %v3556 = vadd.f32 %v3250, %v3454
        %v3557 = vadd.f32 %v3251, %v3457
        %v3558 = vadd.f32 %v3252, %v3462
        %v3559 = vadd.f32 %v3253, %v3465
        %v3560 = vadd.f32 %v3254, %v3470
        %v3561 = vadd.f32 %v3255, %v3473
        %v3562 = vadd.f32 %v3256, %v3478
        %v3563 = vadd.f32 %v3257, %v3481
        %v3564 = vadd.f32 %v3258, %v3486
        %v3565 = vadd.f32 %v3259, %v3489
        %v3566 = vadd.f32 %v3260, %v3494
        %v3567 = vadd.f32 %v3261, %v3497
        %v3568 = vadd.f32 %v3262, %v3502
        %v3569 = vadd.f32 %v3263, %v3505
        %v3570 = vadd.f32 %v3264, %v3510
        %v3571 = vadd.f32 %v3265, %v3513
        %v3572 = vadd.f32 %v3266, %v3518
        %v3573 = vadd.f32 %v3267, %v3521
        %v3574 = vadd.f32 %v3268, %v3526
        %v3575 = vadd.f32 %v3269, %v3529
        %v3576 = vadd.f32 %v3270, %v3534
        %v3577 = vadd.f32 %v3271, %v3537
        %v3578 = vadd.f32 %v3272, %v3542
        %v3579 = vadd.f32 %v3273, %v3545
        %v3580 = vld [vmem:[%s2388 + $0x1] sm:$0xff]
        %v3581 = vld [vmem:[%s2388 + $0x9] sm:$0xff]
        %v3582 = vld [vmem:[%s2388 + $0x19] sm:$0xff]
        %v3583 = vld [vmem:[%s2388 + $0x21] sm:$0xff]
        %v3584 = vld [vmem:[%s2388 + $0x31] sm:$0xff]
        %v3585 = vld [vmem:[%s2388 + $0x39] sm:$0xff]
        %v3586 = vld [vmem:[%s2388 + $0x49] sm:$0xff]
        %v3587 = vld [vmem:[%s2388 + $0x51] sm:$0xff]
        %v3588 = vld [vmem:[%s2388 + $0x61] sm:$0xff]
        %v3589 = vld [vmem:[%s2388 + $0x69] sm:$0xff]
        %v3590 = vld [vmem:[%s2388 + $0x79] sm:$0xff]
        %v3591 = vld [vmem:[%s2388 + $0x81] sm:$0xff]
        %v3592 = vld [vmem:[%s2388 + $0x91] sm:$0xff]
        %v3593 = vld [vmem:[%s2388 + $0x99] sm:$0xff]
        %v3594 = vld [vmem:[%s2388 + $0xa9] sm:$0xff]
        %v3595 = vld [vmem:[%s2388 + $0xb1] sm:$0xff]
        %v3596 = vld [vmem:[%s2388 + $0xc1] sm:$0xff]
        %v3597 = vld [vmem:[%s2388 + $0xc9] sm:$0xff]
        %v3598 = vld [vmem:[%s2388 + $0xd9] sm:$0xff]
        %v3599 = vld [vmem:[%s2388 + $0xe1] sm:$0xff]
        %v3600 = vld [vmem:[%s2388 + $0xf1] sm:$0xff]
        %v3601 = vld [vmem:[%s2388 + $0xf9] sm:$0xff]
        %v3602 = vld [vmem:[%s2388 + $0x109] sm:$0xff]
        %v3603 = vld [vmem:[%s2388 + $0x111] sm:$0xff]
        %v3604 = vld [vmem:[%s2388 + $0x121] sm:$0xff]
        %v3605 = vld [vmem:[%s2388 + $0x129] sm:$0xff]
        %v3606 = vld [vmem:[%s2388 + $0x139] sm:$0xff]
        %v3607 = vld [vmem:[%s2388 + $0x141] sm:$0xff]
        %v3608 = vld [vmem:[%s2388 + $0x151] sm:$0xff]
        %v3609 = vld [vmem:[%s2388 + $0x159] sm:$0xff]
        %v3610 = vld [vmem:[%s2388 + $0x169] sm:$0xff]
        %v3611 = vld [vmem:[%s2388 + $0x171] sm:$0xff]
        %v3612 = vpack.c.bf16 %v3581, %v3580
        %v3613 = vpack.c.bf16 %v3583, %v3582
        %v3614 = vpack.c.bf16 %v3585, %v3584
        %v3615 = vpack.c.bf16 %v3587, %v3586
        %v3616 = vpack.c.bf16 %v3589, %v3588
        %v3617 = vpack.c.bf16 %v3591, %v3590
        %v3618 = vpack.c.bf16 %v3593, %v3592
        %v3619 = vpack.c.bf16 %v3595, %v3594
        %v3620 = vpack.c.bf16 %v3597, %v3596
        %v3621 = vpack.c.bf16 %v3599, %v3598
        %v3622 = vpack.c.bf16 %v3601, %v3600
        %v3623 = vpack.c.bf16 %v3603, %v3602
        %v3624 = vpack.c.bf16 %v3605, %v3604
        %v3625 = vpack.c.bf16 %v3607, %v3606
        %v3626 = vpack.c.bf16 %v3609, %v3608
        %v3627 = vpack.c.bf16 %v3611, %v3610
        %s3628 = scalar_lea.vmem %s8, 256
        %v3629 = vld [vmem:[%s3628] sm:$0xf]
        %v3630 = vld [vmem:[%s3628 + $0x4] sm:$0xf]
        %v3631 = vld [vmem:[%s3628 + $0x8] sm:$0xf]
        %v3632 = vld [vmem:[%s3628 + $0xc] sm:$0xf]
        %v3633 = vld [vmem:[%s3628 + $0x10] sm:$0xf]
        %v3634 = vld [vmem:[%s3628 + $0x14] sm:$0xf]
        %v3635 = vld [vmem:[%s3628 + $0x18] sm:$0xf]
        %v3636 = vld [vmem:[%s3628 + $0x1c] sm:$0xf]
        %v3637 = vld [vmem:[%s3628 + $0x20] sm:$0xf]
        %v3638 = vld [vmem:[%s3628 + $0x24] sm:$0xf]
        %v3639 = vld [vmem:[%s3628 + $0x28] sm:$0xf]
        %v3640 = vld [vmem:[%s3628 + $0x2c] sm:$0xf]
        %v3641 = vld [vmem:[%s3628 + $0x30] sm:$0xf]
        %v3642 = vld [vmem:[%s3628 + $0x34] sm:$0xf]
        %v3643 = vld [vmem:[%s3628 + $0x38] sm:$0xf]
        %v3644 = vld [vmem:[%s3628 + $0x3c] sm:$0xf]
        %v3661 = vunpack.c.l.b16 %v3629
        %v3662 = vunpack.c.l.b16 %v3630
        %v3663 = vunpack.c.l.b16 %v3631
        %v3664 = vunpack.c.l.b16 %v3632
        %v3665 = vunpack.c.l.b16 %v3633
        %v3666 = vunpack.c.l.b16 %v3634
        %v3667 = vunpack.c.l.b16 %v3635
        %v3668 = vunpack.c.l.b16 %v3636
        %v3669 = vunpack.c.l.b16 %v3637
        %v3670 = vunpack.c.l.b16 %v3638
        %v3671 = vunpack.c.l.b16 %v3639
        %v3672 = vunpack.c.l.b16 %v3640
        %v3673 = vunpack.c.l.b16 %v3641
        %v3674 = vunpack.c.l.b16 %v3642
        %v3675 = vunpack.c.l.b16 %v3643
        %v3676 = vunpack.c.l.b16 %v3644
        %v3677 = vpack.c.b16 %v3662, %v3661
        %v3678 = vpack.c.b16 %v3664, %v3663
        %v3679 = vpack.c.b16 %v3666, %v3665
        %v3680 = vpack.c.b16 %v3668, %v3667
        %v3681 = vpack.c.b16 %v3670, %v3669
        %v3682 = vpack.c.b16 %v3672, %v3671
        %v3683 = vpack.c.b16 %v3674, %v3673
        %v3684 = vpack.c.b16 %v3676, %v3675
        %3693 = vmatprep.subr.bf16.mxu0 0
        %3694 = vmatpush1.bf16.msra.mxu0 %v3677
        %3695 = vmatprep.subr.bf16.mxu0 0
        %3696 = vmatpush1.bf16.msra.mxu0 %v3678
        %3697 = vmatprep.subr.bf16.mxu0 0
        %3698 = vmatpush1.bf16.msra.mxu0 %v3679
        %3699 = vmatprep.subr.bf16.mxu0 0
        %3700 = vmatpush1.bf16.msra.mxu0 %v3680
        %3701 = vmatprep.subr.bf16.mxu0 0
        %3702 = vmatpush1.bf16.msra.mxu0 %v3681
        %3703 = vmatprep.subr.bf16.mxu0 0
        %3704 = vmatpush1.bf16.msra.mxu0 %v3682
        %3705 = vmatprep.subr.bf16.mxu0 0
        %3706 = vmatpush1.bf16.msra.mxu0 %v3683
        %3707 = vmatprep.subr.bf16.mxu0 0
        %3708 = vmatpush1.bf16.msra.mxu0 %v3684
        %3709 = vmatprep.subr.bf16.mxu0 0
        %3710 = vmatpush1.bf16.msra.mxu0 0
        %3711 = vmatprep.subr.bf16.mxu0 0
        %3712 = vmatpush1.bf16.msra.mxu0 0
        %3713 = vmatprep.subr.bf16.mxu0 0
        %3714 = vmatpush1.bf16.msra.mxu0 0
        %3715 = vmatprep.subr.bf16.mxu0 0
        %3716 = vmatpush1.bf16.msra.mxu0 0
        %3717 = vmatprep.subr.bf16.mxu0 0
        %3718 = vmatpush1.bf16.msra.mxu0 0
        %3719 = vmatprep.subr.bf16.mxu0 0
        %3720 = vmatpush1.bf16.msra.mxu0 0
        %3721 = vmatprep.subr.bf16.mxu0 0
        %3722 = vmatpush1.bf16.msra.mxu0 0
        %3723 = vmatprep.subr.bf16.mxu0 0
        %3724 = vmatpush1.bf16.msra.mxu0 0
        %3725 = vmatprep.mubr.bf16.mxu0 0
        %3726 = vmatmul.mubr.bf16.gmra.mrb[0].mxu0 %v3612
        %v3727 = vpop.f32.mrb[0].mxu0
        %v3728 = vadd.f32 0.0, %v3727
        %v3729 = vpop.f32.mrb[0].mxu0
        %v3730 = vpop.f32.mrb[0].mxu0
        %v3731 = vadd.f32 0.0, %v3730
        %v3732 = vpop.f32.mrb[0].mxu0
        %3733 = vmatprep.mubr.bf16.mxu0 0
        %3734 = vmatmul.mubr.bf16.gmra.mrb[0].mxu0 %v3613
        %v3735 = vpop.f32.mrb[0].mxu0
        %v3736 = vadd.f32 0.0, %v3735
        %v3737 = vpop.f32.mrb[0].mxu0
        %v3738 = vpop.f32.mrb[0].mxu0
        %v3739 = vadd.f32 0.0, %v3738
        %v3740 = vpop.f32.mrb[0].mxu0
        %3741 = vmatprep.mubr.bf16.mxu0 0
        %3742 = vmatmul.mubr.bf16.gmra.mrb[0].mxu0 %v3614
        %v3743 = vpop.f32.mrb[0].mxu0
        %v3744 = vadd.f32 0.0, %v3743
        %v3745 = vpop.f32.mrb[0].mxu0
        %v3746 = vpop.f32.mrb[0].mxu0
        %v3747 = vadd.f32 0.0, %v3746
        %v3748 = vpop.f32.mrb[0].mxu0
        %3749 = vmatprep.mubr.bf16.mxu0 0
        %3750 = vmatmul.mubr.bf16.gmra.mrb[0].mxu0 %v3615
        %v3751 = vpop.f32.mrb[0].mxu0
        %v3752 = vadd.f32 0.0, %v3751
        %v3753 = vpop.f32.mrb[0].mxu0
        %v3754 = vpop.f32.mrb[0].mxu0
        %v3755 = vadd.f32 0.0, %v3754
        %v3756 = vpop.f32.mrb[0].mxu0
        %3757 = vmatprep.mubr.bf16.mxu0 0
        %3758 = vmatmul.mubr.bf16.gmra.mrb[0].mxu0 %v3616
        %v3759 = vpop.f32.mrb[0].mxu0
        %v3760 = vadd.f32 0.0, %v3759
        %v3761 = vpop.f32.mrb[0].mxu0
        %v3762 = vpop.f32.mrb[0].mxu0
        %v3763 = vadd.f32 0.0, %v3762
        %v3764 = vpop.f32.mrb[0].mxu0
        %3765 = vmatprep.mubr.bf16.mxu0 0
        %3766 = vmatmul.mubr.bf16.gmra.mrb[0].mxu0 %v3617
        %v3767 = vpop.f32.mrb[0].mxu0
        %v3768 = vadd.f32 0.0, %v3767
        %v3769 = vpop.f32.mrb[0].mxu0
        %v3770 = vpop.f32.mrb[0].mxu0
        %v3771 = vadd.f32 0.0, %v3770
        %v3772 = vpop.f32.mrb[0].mxu0
        %3773 = vmatprep.mubr.bf16.mxu0 0
        %3774 = vmatmul.mubr.bf16.gmra.mrb[0].mxu0 %v3618
        %v3775 = vpop.f32.mrb[0].mxu0
        %v3776 = vadd.f32 0.0, %v3775
        %v3777 = vpop.f32.mrb[0].mxu0
        %v3778 = vpop.f32.mrb[0].mxu0
        %v3779 = vadd.f32 0.0, %v3778
        %v3780 = vpop.f32.mrb[0].mxu0
        %3781 = vmatprep.mubr.bf16.mxu0 0
        %3782 = vmatmul.mubr.bf16.gmra.mrb[0].mxu0 %v3619
        %v3783 = vpop.f32.mrb[0].mxu0
        %v3784 = vadd.f32 0.0, %v3783
        %v3785 = vpop.f32.mrb[0].mxu0
        %v3786 = vpop.f32.mrb[0].mxu0
        %v3787 = vadd.f32 0.0, %v3786
        %v3788 = vpop.f32.mrb[0].mxu0
        %3789 = vmatprep.mubr.bf16.mxu0 0
        %3790 = vmatmul.mubr.bf16.gmra.mrb[0].mxu0 %v3620
        %v3791 = vpop.f32.mrb[0].mxu0
        %v3792 = vadd.f32 0.0, %v3791
        %v3793 = vpop.f32.mrb[0].mxu0
        %v3794 = vpop.f32.mrb[0].mxu0
        %v3795 = vadd.f32 0.0, %v3794
        %v3796 = vpop.f32.mrb[0].mxu0
        %3797 = vmatprep.mubr.bf16.mxu0 0
        %3798 = vmatmul.mubr.bf16.gmra.mrb[0].mxu0 %v3621
        %v3799 = vpop.f32.mrb[0].mxu0
        %v3800 = vadd.f32 0.0, %v3799
        %v3801 = vpop.f32.mrb[0].mxu0
        %v3802 = vpop.f32.mrb[0].mxu0
        %v3803 = vadd.f32 0.0, %v3802
        %v3804 = vpop.f32.mrb[0].mxu0
        %3805 = vmatprep.mubr.bf16.mxu0 0
        %3806 = vmatmul.mubr.bf16.gmra.mrb[0].mxu0 %v3622
        %v3807 = vpop.f32.mrb[0].mxu0
        %v3808 = vadd.f32 0.0, %v3807
        %v3809 = vpop.f32.mrb[0].mxu0
        %v3810 = vpop.f32.mrb[0].mxu0
        %v3811 = vadd.f32 0.0, %v3810
        %v3812 = vpop.f32.mrb[0].mxu0
        %3813 = vmatprep.mubr.bf16.mxu0 0
        %3814 = vmatmul.mubr.bf16.gmra.mrb[0].mxu0 %v3623
        %v3815 = vpop.f32.mrb[0].mxu0
        %v3816 = vadd.f32 0.0, %v3815
        %v3817 = vpop.f32.mrb[0].mxu0
        %v3818 = vpop.f32.mrb[0].mxu0
        %v3819 = vadd.f32 0.0, %v3818
        %v3820 = vpop.f32.mrb[0].mxu0
        %3821 = vmatprep.mubr.bf16.mxu0 0
        %3822 = vmatmul.mubr.bf16.gmra.mrb[0].mxu0 %v3624
        %v3823 = vpop.f32.mrb[0].mxu0
        %v3824 = vadd.f32 0.0, %v3823
        %v3825 = vpop.f32.mrb[0].mxu0
        %v3826 = vpop.f32.mrb[0].mxu0
        %v3827 = vadd.f32 0.0, %v3826
        %v3828 = vpop.f32.mrb[0].mxu0
        %3829 = vmatprep.mubr.bf16.mxu0 0
        %3830 = vmatmul.mubr.bf16.gmra.mrb[0].mxu0 %v3625
        %v3831 = vpop.f32.mrb[0].mxu0
        %v3832 = vadd.f32 0.0, %v3831
        %v3833 = vpop.f32.mrb[0].mxu0
        %v3834 = vpop.f32.mrb[0].mxu0
        %v3835 = vadd.f32 0.0, %v3834
        %v3836 = vpop.f32.mrb[0].mxu0
        %3837 = vmatprep.mubr.bf16.mxu0 0
        %3838 = vmatmul.mubr.bf16.gmra.mrb[0].mxu0 %v3626
        %v3839 = vpop.f32.mrb[0].mxu0
        %v3840 = vadd.f32 0.0, %v3839
        %v3841 = vpop.f32.mrb[0].mxu0
        %v3842 = vpop.f32.mrb[0].mxu0
        %v3843 = vadd.f32 0.0, %v3842
        %v3844 = vpop.f32.mrb[0].mxu0
        %3845 = vmatprep.mubr.bf16.mxu0 0
        %3846 = vmatmul.mubr.bf16.gmra.mrb[0].mxu0 %v3627
        %v3847 = vpop.f32.mrb[0].mxu0
        %v3848 = vadd.f32 0.0, %v3847
        %v3849 = vpop.f32.mrb[0].mxu0
        %v3850 = vpop.f32.mrb[0].mxu0
        %v3851 = vadd.f32 0.0, %v3850
        %v3852 = vpop.f32.mrb[0].mxu0
        %3853 = vdwg.mxu0
        %v3854 = vadd.f32 %v3548, %v3728
        %v3855 = vadd.f32 %v3549, %v3731
        %v3856 = vadd.f32 %v3550, %v3736
        %v3857 = vadd.f32 %v3551, %v3739
        %v3858 = vadd.f32 %v3552, %v3744
        %v3859 = vadd.f32 %v3553, %v3747
        %v3860 = vadd.f32 %v3554, %v3752
        %v3861 = vadd.f32 %v3555, %v3755
        %v3862 = vadd.f32 %v3556, %v3760
        %v3863 = vadd.f32 %v3557, %v3763
        %v3864 = vadd.f32 %v3558, %v3768
        %v3865 = vadd.f32 %v3559, %v3771
        %v3866 = vadd.f32 %v3560, %v3776
        %v3867 = vadd.f32 %v3561, %v3779
        %v3868 = vadd.f32 %v3562, %v3784
        %v3869 = vadd.f32 %v3563, %v3787
        %v3870 = vadd.f32 %v3564, %v3792
        %v3871 = vadd.f32 %v3565, %v3795
        %v3872 = vadd.f32 %v3566, %v3800
        %v3873 = vadd.f32 %v3567, %v3803
        %v3874 = vadd.f32 %v3568, %v3808
        %v3875 = vadd.f32 %v3569, %v3811
        %v3876 = vadd.f32 %v3570, %v3816
        %v3877 = vadd.f32 %v3571, %v3819
        %v3878 = vadd.f32 %v3572, %v3824
        %v3879 = vadd.f32 %v3573, %v3827
        %v3880 = vadd.f32 %v3574, %v3832
        %v3881 = vadd.f32 %v3575, %v3835
        %v3882 = vadd.f32 %v3576, %v3840
        %v3883 = vadd.f32 %v3577, %v3843
        %v3884 = vadd.f32 %v3578, %v3848
        %v3885 = vadd.f32 %v3579, %v3851
        %v3886 = vld [vmem:[%s2388 + $0x2] sm:$0xff]
        %v3887 = vld [vmem:[%s2388 + $0xa] sm:$0xff]
        %v3888 = vld [vmem:[%s2388 + $0x1a] sm:$0xff]
        %v3889 = vld [vmem:[%s2388 + $0x22] sm:$0xff]
        %v3890 = vld [vmem:[%s2388 + $0x32] sm:$0xff]
        %v3891 = vld [vmem:[%s2388 + $0x3a] sm:$0xff]
        %v3892 = vld [vmem:[%s2388 + $0x4a] sm:$0xff]
        %v3893 = vld [vmem:[%s2388 + $0x52] sm:$0xff]
        %v3894 = vld [vmem:[%s2388 + $0x62] sm:$0xff]
        %v3895 = vld [vmem:[%s2388 + $0x6a] sm:$0xff]
        %v3896 = vld [vmem:[%s2388 + $0x7a] sm:$0xff]
        %v3897 = vld [vmem:[%s2388 + $0x82] sm:$0xff]
        %v3898 = vld [vmem:[%s2388 + $0x92] sm:$0xff]
        %v3899 = vld [vmem:[%s2388 + $0x9a] sm:$0xff]
        %v3900 = vld [vmem:[%s2388 + $0xaa] sm:$0xff]
        %v3901 = vld [vmem:[%s2388 + $0xb2] sm:$0xff]
        %v3902 = vld [vmem:[%s2388 + $0xc2] sm:$0xff]
        %v3903 = vld [vmem:[%s2388 + $0xca] sm:$0xff]
        %v3904 = vld [vmem:[%s2388 + $0xda] sm:$0xff]
        %v3905 = vld [vmem:[%s2388 + $0xe2] sm:$0xff]
        %v3906 = vld [vmem:[%s2388 + $0xf2] sm:$0xff]
        %v3907 = vld [vmem:[%s2388 + $0xfa] sm:$0xff]
        %v3908 = vld [vmem:[%s2388 + $0x10a] sm:$0xff]
        %v3909 = vld [vmem:[%s2388 + $0x112] sm:$0xff]
        %v3910 = vld [vmem:[%s2388 + $0x122] sm:$0xff]
        %v3911 = vld [vmem:[%s2388 + $0x12a] sm:$0xff]
        %v3912 = vld [vmem:[%s2388 + $0x13a] sm:$0xff]
        %v3913 = vld [vmem:[%s2388 + $0x142] sm:$0xff]
        %v3914 = vld [vmem:[%s2388 + $0x152] sm:$0xff]
        %v3915 = vld [vmem:[%s2388 + $0x15a] sm:$0xff]
        %v3916 = vld [vmem:[%s2388 + $0x16a] sm:$0xff]
        %v3917 = vld [vmem:[%s2388 + $0x172] sm:$0xff]
        %v3918 = vpack.c.bf16 %v3887, %v3886
        %v3919 = vpack.c.bf16 %v3889, %v3888
        %v3920 = vpack.c.bf16 %v3891, %v3890
        %v3921 = vpack.c.bf16 %v3893, %v3892
        %v3922 = vpack.c.bf16 %v3895, %v3894
        %v3923 = vpack.c.bf16 %v3897, %v3896
        %v3924 = vpack.c.bf16 %v3899, %v3898
        %v3925 = vpack.c.bf16 %v3901, %v3900
        %v3926 = vpack.c.bf16 %v3903, %v3902
        %v3927 = vpack.c.bf16 %v3905, %v3904
        %v3928 = vpack.c.bf16 %v3907, %v3906
        %v3929 = vpack.c.bf16 %v3909, %v3908
        %v3930 = vpack.c.bf16 %v3911, %v3910
        %v3931 = vpack.c.bf16 %v3913, %v3912
        %v3932 = vpack.c.bf16 %v3915, %v3914
        %v3933 = vpack.c.bf16 %v3917, %v3916
        %s3934 = scalar_lea.vmem %s8, 320
        %v3935 = vld [vmem:[%s3934] sm:$0xf]
        %v3936 = vld [vmem:[%s3934 + $0x4] sm:$0xf]
        %v3937 = vld [vmem:[%s3934 + $0x8] sm:$0xf]
        %v3938 = vld [vmem:[%s3934 + $0xc] sm:$0xf]
        %v3939 = vld [vmem:[%s3934 + $0x10] sm:$0xf]
        %v3940 = vld [vmem:[%s3934 + $0x14] sm:$0xf]
        %v3941 = vld [vmem:[%s3934 + $0x18] sm:$0xf]
        %v3942 = vld [vmem:[%s3934 + $0x1c] sm:$0xf]
        %v3943 = vld [vmem:[%s3934 + $0x20] sm:$0xf]
        %v3944 = vld [vmem:[%s3934 + $0x24] sm:$0xf]
        %v3945 = vld [vmem:[%s3934 + $0x28] sm:$0xf]
        %v3946 = vld [vmem:[%s3934 + $0x2c] sm:$0xf]
        %v3947 = vld [vmem:[%s3934 + $0x30] sm:$0xf]
        %v3948 = vld [vmem:[%s3934 + $0x34] sm:$0xf]
        %v3949 = vld [vmem:[%s3934 + $0x38] sm:$0xf]
        %v3950 = vld [vmem:[%s3934 + $0x3c] sm:$0xf]
        %v3967 = vunpack.c.l.b16 %v3935
        %v3968 = vunpack.c.l.b16 %v3936
        %v3969 = vunpack.c.l.b16 %v3937
        %v3970 = vunpack.c.l.b16 %v3938
        %v3971 = vunpack.c.l.b16 %v3939
        %v3972 = vunpack.c.l.b16 %v3940
        %v3973 = vunpack.c.l.b16 %v3941
        %v3974 = vunpack.c.l.b16 %v3942
        %v3975 = vunpack.c.l.b16 %v3943
        %v3976 = vunpack.c.l.b16 %v3944
        %v3977 = vunpack.c.l.b16 %v3945
        %v3978 = vunpack.c.l.b16 %v3946
        %v3979 = vunpack.c.l.b16 %v3947
        %v3980 = vunpack.c.l.b16 %v3948
        %v3981 = vunpack.c.l.b16 %v3949
        %v3982 = vunpack.c.l.b16 %v3950
        %v3983 = vpack.c.b16 %v3968, %v3967
        %v3984 = vpack.c.b16 %v3970, %v3969
        %v3985 = vpack.c.b16 %v3972, %v3971
        %v3986 = vpack.c.b16 %v3974, %v3973
        %v3987 = vpack.c.b16 %v3976, %v3975
        %v3988 = vpack.c.b16 %v3978, %v3977
        %v3989 = vpack.c.b16 %v3980, %v3979
        %v3990 = vpack.c.b16 %v3982, %v3981
        %3999 = vmatprep.subr.bf16.mxu0 0
        %4000 = vmatpush1.bf16.msra.mxu0 %v3983
        %4001 = vmatprep.subr.bf16.mxu0 0
        %4002 = vmatpush1.bf16.msra.mxu0 %v3984
        %4003 = vmatprep.subr.bf16.mxu0 0
        %4004 = vmatpush1.bf16.msra.mxu0 %v3985
        %4005 = vmatprep.subr.bf16.mxu0 0
        %4006 = vmatpush1.bf16.msra.mxu0 %v3986
        %4007 = vmatprep.subr.bf16.mxu0 0
        %4008 = vmatpush1.bf16.msra.mxu0 %v3987
        %4009 = vmatprep.subr.bf16.mxu0 0
        %4010 = vmatpush1.bf16.msra.mxu0 %v3988
        %4011 = vmatprep.subr.bf16.mxu0 0
        %4012 = vmatpush1.bf16.msra.mxu0 %v3989
        %4013 = vmatprep.subr.bf16.mxu0 0
        %4014 = vmatpush1.bf16.msra.mxu0 %v3990
        %4015 = vmatprep.subr.bf16.mxu0 0
        %4016 = vmatpush1.bf16.msra.mxu0 0
        %4017 = vmatprep.subr.bf16.mxu0 0
        %4018 = vmatpush1.bf16.msra.mxu0 0
        %4019 = vmatprep.subr.bf16.mxu0 0
        %4020 = vmatpush1.bf16.msra.mxu0 0
        %4021 = vmatprep.subr.bf16.mxu0 0
        %4022 = vmatpush1.bf16.msra.mxu0 0
        %4023 = vmatprep.subr.bf16.mxu0 0
        %4024 = vmatpush1.bf16.msra.mxu0 0
        %4025 = vmatprep.subr.bf16.mxu0 0
        %4026 = vmatpush1.bf16.msra.mxu0 0
        %4027 = vmatprep.subr.bf16.mxu0 0
        %4028 = vmatpush1.bf16.msra.mxu0 0
        %4029 = vmatprep.subr.bf16.mxu0 0
        %4030 = vmatpush1.bf16.msra.mxu0 0
        %4031 = vmatprep.mubr.bf16.mxu0 0
        %4032 = vmatmul.mubr.bf16.gmra.mrb[0].mxu0 %v3918
        %v4033 = vpop.f32.mrb[0].mxu0
        %v4034 = vadd.f32 0.0, %v4033
        %v4035 = vpop.f32.mrb[0].mxu0
        %v4036 = vpop.f32.mrb[0].mxu0
        %v4037 = vadd.f32 0.0, %v4036
        %v4038 = vpop.f32.mrb[0].mxu0
        %4039 = vmatprep.mubr.bf16.mxu0 0
        %4040 = vmatmul.mubr.bf16.gmra.mrb[0].mxu0 %v3919
        %v4041 = vpop.f32.mrb[0].mxu0
        %v4042 = vadd.f32 0.0, %v4041
        %v4043 = vpop.f32.mrb[0].mxu0
        %v4044 = vpop.f32.mrb[0].mxu0
        %v4045 = vadd.f32 0.0, %v4044
        %v4046 = vpop.f32.mrb[0].mxu0
        %4047 = vmatprep.mubr.bf16.mxu0 0
        %4048 = vmatmul.mubr.bf16.gmra.mrb[0].mxu0 %v3920
        %v4049 = vpop.f32.mrb[0].mxu0
        %v4050 = vadd.f32 0.0, %v4049
        %v4051 = vpop.f32.mrb[0].mxu0
        %v4052 = vpop.f32.mrb[0].mxu0
        %v4053 = vadd.f32 0.0, %v4052
        %v4054 = vpop.f32.mrb[0].mxu0
        %4055 = vmatprep.mubr.bf16.mxu0 0
        %4056 = vmatmul.mubr.bf16.gmra.mrb[0].mxu0 %v3921
        %v4057 = vpop.f32.mrb[0].mxu0
        %v4058 = vadd.f32 0.0, %v4057
        %v4059 = vpop.f32.mrb[0].mxu0
        %v4060 = vpop.f32.mrb[0].mxu0
        %v4061 = vadd.f32 0.0, %v4060
        %v4062 = vpop.f32.mrb[0].mxu0
        %4063 = vmatprep.mubr.bf16.mxu0 0
        %4064 = vmatmul.mubr.bf16.gmra.mrb[0].mxu0 %v3922
        %v4065 = vpop.f32.mrb[0].mxu0
        %v4066 = vadd.f32 0.0, %v4065
        %v4067 = vpop.f32.mrb[0].mxu0
        %v4068 = vpop.f32.mrb[0].mxu0
        %v4069 = vadd.f32 0.0, %v4068
        %v4070 = vpop.f32.mrb[0].mxu0
        %4071 = vmatprep.mubr.bf16.mxu0 0
        %4072 = vmatmul.mubr.bf16.gmra.mrb[0].mxu0 %v3923
        %v4073 = vpop.f32.mrb[0].mxu0
        %v4074 = vadd.f32 0.0, %v4073
        %v4075 = vpop.f32.mrb[0].mxu0
        %v4076 = vpop.f32.mrb[0].mxu0
        %v4077 = vadd.f32 0.0, %v4076
        %v4078 = vpop.f32.mrb[0].mxu0
        %4079 = vmatprep.mubr.bf16.mxu0 0
        %4080 = vmatmul.mubr.bf16.gmra.mrb[0].mxu0 %v3924
        %v4081 = vpop.f32.mrb[0].mxu0
        %v4082 = vadd.f32 0.0, %v4081
        %v4083 = vpop.f32.mrb[0].mxu0
        %v4084 = vpop.f32.mrb[0].mxu0
        %v4085 = vadd.f32 0.0, %v4084
        %v4086 = vpop.f32.mrb[0].mxu0
        %4087 = vmatprep.mubr.bf16.mxu0 0
        %4088 = vmatmul.mubr.bf16.gmra.mrb[0].mxu0 %v3925
        %v4089 = vpop.f32.mrb[0].mxu0
        %v4090 = vadd.f32 0.0, %v4089
        %v4091 = vpop.f32.mrb[0].mxu0
        %v4092 = vpop.f32.mrb[0].mxu0
        %v4093 = vadd.f32 0.0, %v4092
        %v4094 = vpop.f32.mrb[0].mxu0
        %4095 = vmatprep.mubr.bf16.mxu0 0
        %4096 = vmatmul.mubr.bf16.gmra.mrb[0].mxu0 %v3926
        %v4097 = vpop.f32.mrb[0].mxu0
        %v4098 = vadd.f32 0.0, %v4097
        %v4099 = vpop.f32.mrb[0].mxu0
        %v4100 = vpop.f32.mrb[0].mxu0
        %v4101 = vadd.f32 0.0, %v4100
        %v4102 = vpop.f32.mrb[0].mxu0
        %4103 = vmatprep.mubr.bf16.mxu0 0
        %4104 = vmatmul.mubr.bf16.gmra.mrb[0].mxu0 %v3927
        %v4105 = vpop.f32.mrb[0].mxu0
        %v4106 = vadd.f32 0.0, %v4105
        %v4107 = vpop.f32.mrb[0].mxu0
        %v4108 = vpop.f32.mrb[0].mxu0
        %v4109 = vadd.f32 0.0, %v4108
        %v4110 = vpop.f32.mrb[0].mxu0
        %4111 = vmatprep.mubr.bf16.mxu0 0
        %4112 = vmatmul.mubr.bf16.gmra.mrb[0].mxu0 %v3928
        %v4113 = vpop.f32.mrb[0].mxu0
        %v4114 = vadd.f32 0.0, %v4113
        %v4115 = vpop.f32.mrb[0].mxu0
        %v4116 = vpop.f32.mrb[0].mxu0
        %v4117 = vadd.f32 0.0, %v4116
        %v4118 = vpop.f32.mrb[0].mxu0
        %4119 = vmatprep.mubr.bf16.mxu0 0
        %4120 = vmatmul.mubr.bf16.gmra.mrb[0].mxu0 %v3929
        %v4121 = vpop.f32.mrb[0].mxu0
        %v4122 = vadd.f32 0.0, %v4121
        %v4123 = vpop.f32.mrb[0].mxu0
        %v4124 = vpop.f32.mrb[0].mxu0
        %v4125 = vadd.f32 0.0, %v4124
        %v4126 = vpop.f32.mrb[0].mxu0
        %4127 = vmatprep.mubr.bf16.mxu0 0
        %4128 = vmatmul.mubr.bf16.gmra.mrb[0].mxu0 %v3930
        %v4129 = vpop.f32.mrb[0].mxu0
        %v4130 = vadd.f32 0.0, %v4129
        %v4131 = vpop.f32.mrb[0].mxu0
        %v4132 = vpop.f32.mrb[0].mxu0
        %v4133 = vadd.f32 0.0, %v4132
        %v4134 = vpop.f32.mrb[0].mxu0
        %4135 = vmatprep.mubr.bf16.mxu0 0
        %4136 = vmatmul.mubr.bf16.gmra.mrb[0].mxu0 %v3931
        %v4137 = vpop.f32.mrb[0].mxu0
        %v4138 = vadd.f32 0.0, %v4137
        %v4139 = vpop.f32.mrb[0].mxu0
        %v4140 = vpop.f32.mrb[0].mxu0
        %v4141 = vadd.f32 0.0, %v4140
        %v4142 = vpop.f32.mrb[0].mxu0
        %4143 = vmatprep.mubr.bf16.mxu0 0
        %4144 = vmatmul.mubr.bf16.gmra.mrb[0].mxu0 %v3932
        %v4145 = vpop.f32.mrb[0].mxu0
        %v4146 = vadd.f32 0.0, %v4145
        %v4147 = vpop.f32.mrb[0].mxu0
        %v4148 = vpop.f32.mrb[0].mxu0
        %v4149 = vadd.f32 0.0, %v4148
        %v4150 = vpop.f32.mrb[0].mxu0
        %4151 = vmatprep.mubr.bf16.mxu0 0
        %4152 = vmatmul.mubr.bf16.gmra.mrb[0].mxu0 %v3933
        %v4153 = vpop.f32.mrb[0].mxu0
        %v4154 = vadd.f32 0.0, %v4153
        %v4155 = vpop.f32.mrb[0].mxu0
        %v4156 = vpop.f32.mrb[0].mxu0
        %v4157 = vadd.f32 0.0, %v4156
        %v4158 = vpop.f32.mrb[0].mxu0
        %4159 = vdwg.mxu0
        %v4160 = vadd.f32 %v3854, %v4034
        %v4161 = vadd.f32 %v3855, %v4037
        %v4162 = vadd.f32 %v3856, %v4042
        %v4163 = vadd.f32 %v3857, %v4045
        %v4164 = vadd.f32 %v3858, %v4050
        %v4165 = vadd.f32 %v3859, %v4053
        %v4166 = vadd.f32 %v3860, %v4058
        %v4167 = vadd.f32 %v3861, %v4061
        %v4168 = vadd.f32 %v3862, %v4066
        %v4169 = vadd.f32 %v3863, %v4069
        %v4170 = vadd.f32 %v3864, %v4074
        %v4171 = vadd.f32 %v3865, %v4077
        %v4172 = vadd.f32 %v3866, %v4082
        %v4173 = vadd.f32 %v3867, %v4085
        %v4174 = vadd.f32 %v3868, %v4090
        %v4175 = vadd.f32 %v3869, %v4093
        %v4176 = vadd.f32 %v3870, %v4098
        %v4177 = vadd.f32 %v3871, %v4101
        %v4178 = vadd.f32 %v3872, %v4106
        %v4179 = vadd.f32 %v3873, %v4109
        %v4180 = vadd.f32 %v3874, %v4114
        %v4181 = vadd.f32 %v3875, %v4117
        %v4182 = vadd.f32 %v3876, %v4122
        %v4183 = vadd.f32 %v3877, %v4125
        %v4184 = vadd.f32 %v3878, %v4130
        %v4185 = vadd.f32 %v3879, %v4133
        %v4186 = vadd.f32 %v3880, %v4138
        %v4187 = vadd.f32 %v3881, %v4141
        %v4188 = vadd.f32 %v3882, %v4146
        %v4189 = vadd.f32 %v3883, %v4149
        %v4190 = vadd.f32 %v3884, %v4154
        %v4191 = vadd.f32 %v3885, %v4157
        %s4192 = scalar_lea.vmem [#allocation2], 48
        %v4193 = vld [vmem:[%s4192] sm:$0xff]
        %v4194 = vld [vmem:[%s4192 + $0x8] sm:$0xff]
        %v4195 = vld [vmem:[%s4192 + $0x18] sm:$0xff]
        %v4196 = vld [vmem:[%s4192 + $0x20] sm:$0xff]
        %v4197 = vld [vmem:[%s4192 + $0x30] sm:$0xff]
        %v4198 = vld [vmem:[%s4192 + $0x38] sm:$0xff]
        %v4199 = vld [vmem:[%s4192 + $0x48] sm:$0xff]
        %v4200 = vld [vmem:[%s4192 + $0x50] sm:$0xff]
        %v4201 = vld [vmem:[%s4192 + $0x60] sm:$0xff]
        %v4202 = vld [vmem:[%s4192 + $0x68] sm:$0xff]
        %v4203 = vld [vmem:[%s4192 + $0x78] sm:$0xff]
        %v4204 = vld [vmem:[%s4192 + $0x80] sm:$0xff]
        %v4205 = vld [vmem:[%s4192 + $0x90] sm:$0xff]
        %v4206 = vld [vmem:[%s4192 + $0x98] sm:$0xff]
        %v4207 = vld [vmem:[%s4192 + $0xa8] sm:$0xff]
        %v4208 = vld [vmem:[%s4192 + $0xb0] sm:$0xff]
        %v4209 = vld [vmem:[%s4192 + $0xc0] sm:$0xff]
        %v4210 = vld [vmem:[%s4192 + $0xc8] sm:$0xff]
        %v4211 = vld [vmem:[%s4192 + $0xd8] sm:$0xff]
        %v4212 = vld [vmem:[%s4192 + $0xe0] sm:$0xff]
        %v4213 = vld [vmem:[%s4192 + $0xf0] sm:$0xff]
        %v4214 = vld [vmem:[%s4192 + $0xf8] sm:$0xff]
        %v4215 = vld [vmem:[%s4192 + $0x108] sm:$0xff]
        %v4216 = vld [vmem:[%s4192 + $0x110] sm:$0xff]
        %v4217 = vld [vmem:[%s4192 + $0x120] sm:$0xff]
        %v4218 = vld [vmem:[%s4192 + $0x128] sm:$0xff]
        %v4219 = vld [vmem:[%s4192 + $0x138] sm:$0xff]
        %v4220 = vld [vmem:[%s4192 + $0x140] sm:$0xff]
        %v4221 = vld [vmem:[%s4192 + $0x150] sm:$0xff]
        %v4222 = vld [vmem:[%s4192 + $0x158] sm:$0xff]
        %v4223 = vld [vmem:[%s4192 + $0x168] sm:$0xff]
        %v4224 = vld [vmem:[%s4192 + $0x170] sm:$0xff]
        %v4225 = vpack.c.bf16 %v4194, %v4193
        %v4226 = vpack.c.bf16 %v4196, %v4195
        %v4227 = vpack.c.bf16 %v4198, %v4197
        %v4228 = vpack.c.bf16 %v4200, %v4199
        %v4229 = vpack.c.bf16 %v4202, %v4201
        %v4230 = vpack.c.bf16 %v4204, %v4203
        %v4231 = vpack.c.bf16 %v4206, %v4205
        %v4232 = vpack.c.bf16 %v4208, %v4207
        %v4233 = vpack.c.bf16 %v4210, %v4209
        %v4234 = vpack.c.bf16 %v4212, %v4211
        %v4235 = vpack.c.bf16 %v4214, %v4213
        %v4236 = vpack.c.bf16 %v4216, %v4215
        %v4237 = vpack.c.bf16 %v4218, %v4217
        %v4238 = vpack.c.bf16 %v4220, %v4219
        %v4239 = vpack.c.bf16 %v4222, %v4221
        %v4240 = vpack.c.bf16 %v4224, %v4223
        %s4241 = scalar_lea.vmem %s8, 384
        %v4242 = vld [vmem:[%s4241] sm:$0xf]
        %v4243 = vld [vmem:[%s4241 + $0x4] sm:$0xf]
        %v4244 = vld [vmem:[%s4241 + $0x8] sm:$0xf]
        %v4245 = vld [vmem:[%s4241 + $0xc] sm:$0xf]
        %v4246 = vld [vmem:[%s4241 + $0x10] sm:$0xf]
        %v4247 = vld [vmem:[%s4241 + $0x14] sm:$0xf]
        %v4248 = vld [vmem:[%s4241 + $0x18] sm:$0xf]
        %v4249 = vld [vmem:[%s4241 + $0x1c] sm:$0xf]
        %v4250 = vld [vmem:[%s4241 + $0x20] sm:$0xf]
        %v4251 = vld [vmem:[%s4241 + $0x24] sm:$0xf]
        %v4252 = vld [vmem:[%s4241 + $0x28] sm:$0xf]
        %v4253 = vld [vmem:[%s4241 + $0x2c] sm:$0xf]
        %v4254 = vld [vmem:[%s4241 + $0x30] sm:$0xf]
        %v4255 = vld [vmem:[%s4241 + $0x34] sm:$0xf]
        %v4256 = vld [vmem:[%s4241 + $0x38] sm:$0xf]
        %v4257 = vld [vmem:[%s4241 + $0x3c] sm:$0xf]
        %v4274 = vunpack.c.l.b16 %v4242
        %v4275 = vunpack.c.l.b16 %v4243
        %v4276 = vunpack.c.l.b16 %v4244
        %v4277 = vunpack.c.l.b16 %v4245
        %v4278 = vunpack.c.l.b16 %v4246
        %v4279 = vunpack.c.l.b16 %v4247
        %v4280 = vunpack.c.l.b16 %v4248
        %v4281 = vunpack.c.l.b16 %v4249
        %v4282 = vunpack.c.l.b16 %v4250
        %v4283 = vunpack.c.l.b16 %v4251
        %v4284 = vunpack.c.l.b16 %v4252
        %v4285 = vunpack.c.l.b16 %v4253
        %v4286 = vunpack.c.l.b16 %v4254
        %v4287 = vunpack.c.l.b16 %v4255
        %v4288 = vunpack.c.l.b16 %v4256
        %v4289 = vunpack.c.l.b16 %v4257
        %v4290 = vpack.c.b16 %v4275, %v4274
        %v4291 = vpack.c.b16 %v4277, %v4276
        %v4292 = vpack.c.b16 %v4279, %v4278
        %v4293 = vpack.c.b16 %v4281, %v4280
        %v4294 = vpack.c.b16 %v4283, %v4282
        %v4295 = vpack.c.b16 %v4285, %v4284
        %v4296 = vpack.c.b16 %v4287, %v4286
        %v4297 = vpack.c.b16 %v4289, %v4288
        %4306 = vmatprep.subr.bf16.mxu0 0
        %4307 = vmatpush1.bf16.msra.mxu0 %v4290
        %4308 = vmatprep.subr.bf16.mxu0 0
        %4309 = vmatpush1.bf16.msra.mxu0 %v4291
        %4310 = vmatprep.subr.bf16.mxu0 0
        %4311 = vmatpush1.bf16.msra.mxu0 %v4292
        %4312 = vmatprep.subr.bf16.mxu0 0
        %4313 = vmatpush1.bf16.msra.mxu0 %v4293
        %4314 = vmatprep.subr.bf16.mxu0 0
        %4315 = vmatpush1.bf16.msra.mxu0 %v4294
        %4316 = vmatprep.subr.bf16.mxu0 0
        %4317 = vmatpush1.bf16.msra.mxu0 %v4295
        %4318 = vmatprep.subr.bf16.mxu0 0
        %4319 = vmatpush1.bf16.msra.mxu0 %v4296
        %4320 = vmatprep.subr.bf16.mxu0 0
        %4321 = vmatpush1.bf16.msra.mxu0 %v4297
        %4322 = vmatprep.subr.bf16.mxu0 0
        %4323 = vmatpush1.bf16.msra.mxu0 0
        %4324 = vmatprep.subr.bf16.mxu0 0
        %4325 = vmatpush1.bf16.msra.mxu0 0
        %4326 = vmatprep.subr.bf16.mxu0 0
        %4327 = vmatpush1.bf16.msra.mxu0 0
        %4328 = vmatprep.subr.bf16.mxu0 0
        %4329 = vmatpush1.bf16.msra.mxu0 0
        %4330 = vmatprep.subr.bf16.mxu0 0
        %4331 = vmatpush1.bf16.msra.mxu0 0
        %4332 = vmatprep.subr.bf16.mxu0 0
        %4333 = vmatpush1.bf16.msra.mxu0 0
        %4334 = vmatprep.subr.bf16.mxu0 0
        %4335 = vmatpush1.bf16.msra.mxu0 0
        %4336 = vmatprep.subr.bf16.mxu0 0
        %4337 = vmatpush1.bf16.msra.mxu0 0
        %4338 = vmatprep.mubr.bf16.mxu0 0
        %4339 = vmatmul.mubr.bf16.gmra.mrb[0].mxu0 %v4225
        %v4340 = vpop.f32.mrb[0].mxu0
        %v4341 = vadd.f32 0.0, %v4340
        %v4342 = vpop.f32.mrb[0].mxu0
        %v4343 = vpop.f32.mrb[0].mxu0
        %v4344 = vadd.f32 0.0, %v4343
        %v4345 = vpop.f32.mrb[0].mxu0
        %4346 = vmatprep.mubr.bf16.mxu0 0
        %4347 = vmatmul.mubr.bf16.gmra.mrb[0].mxu0 %v4226
        %v4348 = vpop.f32.mrb[0].mxu0
        %v4349 = vadd.f32 0.0, %v4348
        %v4350 = vpop.f32.mrb[0].mxu0
        %v4351 = vpop.f32.mrb[0].mxu0
        %v4352 = vadd.f32 0.0, %v4351
        %v4353 = vpop.f32.mrb[0].mxu0
        %4354 = vmatprep.mubr.bf16.mxu0 0
        %4355 = vmatmul.mubr.bf16.gmra.mrb[0].mxu0 %v4227
        %v4356 = vpop.f32.mrb[0].mxu0
        %v4357 = vadd.f32 0.0, %v4356
        %v4358 = vpop.f32.mrb[0].mxu0
        %v4359 = vpop.f32.mrb[0].mxu0
        %v4360 = vadd.f32 0.0, %v4359
        %v4361 = vpop.f32.mrb[0].mxu0
        %4362 = vmatprep.mubr.bf16.mxu0 0
        %4363 = vmatmul.mubr.bf16.gmra.mrb[0].mxu0 %v4228
        %v4364 = vpop.f32.mrb[0].mxu0
        %v4365 = vadd.f32 0.0, %v4364
        %v4366 = vpop.f32.mrb[0].mxu0
        %v4367 = vpop.f32.mrb[0].mxu0
        %v4368 = vadd.f32 0.0, %v4367
        %v4369 = vpop.f32.mrb[0].mxu0
        %4370 = vmatprep.mubr.bf16.mxu0 0
        %4371 = vmatmul.mubr.bf16.gmra.mrb[0].mxu0 %v4229
        %v4372 = vpop.f32.mrb[0].mxu0
        %v4373 = vadd.f32 0.0, %v4372
        %v4374 = vpop.f32.mrb[0].mxu0
        %v4375 = vpop.f32.mrb[0].mxu0
        %v4376 = vadd.f32 0.0, %v4375
        %v4377 = vpop.f32.mrb[0].mxu0
        %4378 = vmatprep.mubr.bf16.mxu0 0
        %4379 = vmatmul.mubr.bf16.gmra.mrb[0].mxu0 %v4230
        %v4380 = vpop.f32.mrb[0].mxu0
        %v4381 = vadd.f32 0.0, %v4380
        %v4382 = vpop.f32.mrb[0].mxu0
        %v4383 = vpop.f32.mrb[0].mxu0
        %v4384 = vadd.f32 0.0, %v4383
        %v4385 = vpop.f32.mrb[0].mxu0
        %4386 = vmatprep.mubr.bf16.mxu0 0
        %4387 = vmatmul.mubr.bf16.gmra.mrb[0].mxu0 %v4231
        %v4388 = vpop.f32.mrb[0].mxu0
        %v4389 = vadd.f32 0.0, %v4388
        %v4390 = vpop.f32.mrb[0].mxu0
        %v4391 = vpop.f32.mrb[0].mxu0
        %v4392 = vadd.f32 0.0, %v4391
        %v4393 = vpop.f32.mrb[0].mxu0
        %4394 = vmatprep.mubr.bf16.mxu0 0
        %4395 = vmatmul.mubr.bf16.gmra.mrb[0].mxu0 %v4232
        %v4396 = vpop.f32.mrb[0].mxu0
        %v4397 = vadd.f32 0.0, %v4396
        %v4398 = vpop.f32.mrb[0].mxu0
        %v4399 = vpop.f32.mrb[0].mxu0
        %v4400 = vadd.f32 0.0, %v4399
        %v4401 = vpop.f32.mrb[0].mxu0
        %4402 = vmatprep.mubr.bf16.mxu0 0
        %4403 = vmatmul.mubr.bf16.gmra.mrb[0].mxu0 %v4233
        %v4404 = vpop.f32.mrb[0].mxu0
        %v4405 = vadd.f32 0.0, %v4404
        %v4406 = vpop.f32.mrb[0].mxu0
        %v4407 = vpop.f32.mrb[0].mxu0
        %v4408 = vadd.f32 0.0, %v4407
        %v4409 = vpop.f32.mrb[0].mxu0
        %4410 = vmatprep.mubr.bf16.mxu0 0
        %4411 = vmatmul.mubr.bf16.gmra.mrb[0].mxu0 %v4234
        %v4412 = vpop.f32.mrb[0].mxu0
        %v4413 = vadd.f32 0.0, %v4412
        %v4414 = vpop.f32.mrb[0].mxu0
        %v4415 = vpop.f32.mrb[0].mxu0
        %v4416 = vadd.f32 0.0, %v4415
        %v4417 = vpop.f32.mrb[0].mxu0
        %4418 = vmatprep.mubr.bf16.mxu0 0
        %4419 = vmatmul.mubr.bf16.gmra.mrb[0].mxu0 %v4235
        %v4420 = vpop.f32.mrb[0].mxu0
        %v4421 = vadd.f32 0.0, %v4420
        %v4422 = vpop.f32.mrb[0].mxu0
        %v4423 = vpop.f32.mrb[0].mxu0
        %v4424 = vadd.f32 0.0, %v4423
        %v4425 = vpop.f32.mrb[0].mxu0
        %4426 = vmatprep.mubr.bf16.mxu0 0
        %4427 = vmatmul.mubr.bf16.gmra.mrb[0].mxu0 %v4236
        %v4428 = vpop.f32.mrb[0].mxu0
        %v4429 = vadd.f32 0.0, %v4428
        %v4430 = vpop.f32.mrb[0].mxu0
        %v4431 = vpop.f32.mrb[0].mxu0
        %v4432 = vadd.f32 0.0, %v4431
        %v4433 = vpop.f32.mrb[0].mxu0
        %4434 = vmatprep.mubr.bf16.mxu0 0
        %4435 = vmatmul.mubr.bf16.gmra.mrb[0].mxu0 %v4237
        %v4436 = vpop.f32.mrb[0].mxu0
        %v4437 = vadd.f32 0.0, %v4436
        %v4438 = vpop.f32.mrb[0].mxu0
        %v4439 = vpop.f32.mrb[0].mxu0
        %v4440 = vadd.f32 0.0, %v4439
        %v4441 = vpop.f32.mrb[0].mxu0
        %4442 = vmatprep.mubr.bf16.mxu0 0
        %4443 = vmatmul.mubr.bf16.gmra.mrb[0].mxu0 %v4238
        %v4444 = vpop.f32.mrb[0].mxu0
        %v4445 = vadd.f32 0.0, %v4444
        %v4446 = vpop.f32.mrb[0].mxu0
        %v4447 = vpop.f32.mrb[0].mxu0
        %v4448 = vadd.f32 0.0, %v4447
        %v4449 = vpop.f32.mrb[0].mxu0
        %4450 = vmatprep.mubr.bf16.mxu0 0
        %4451 = vmatmul.mubr.bf16.gmra.mrb[0].mxu0 %v4239
        %v4452 = vpop.f32.mrb[0].mxu0
        %v4453 = vadd.f32 0.0, %v4452
        %v4454 = vpop.f32.mrb[0].mxu0
        %v4455 = vpop.f32.mrb[0].mxu0
        %v4456 = vadd.f32 0.0, %v4455
        %v4457 = vpop.f32.mrb[0].mxu0
        %4458 = vmatprep.mubr.bf16.mxu0 0
        %4459 = vmatmul.mubr.bf16.gmra.mrb[0].mxu0 %v4240
        %v4460 = vpop.f32.mrb[0].mxu0
        %v4461 = vadd.f32 0.0, %v4460
        %v4462 = vpop.f32.mrb[0].mxu0
        %v4463 = vpop.f32.mrb[0].mxu0
        %v4464 = vadd.f32 0.0, %v4463
        %v4465 = vpop.f32.mrb[0].mxu0
        %4466 = vdwg.mxu0
        %v4467 = vadd.f32 %v4160, %v4341
        %v4468 = vadd.f32 %v4161, %v4344
        %v4469 = vadd.f32 %v4162, %v4349
        %v4470 = vadd.f32 %v4163, %v4352
        %v4471 = vadd.f32 %v4164, %v4357
        %v4472 = vadd.f32 %v4165, %v4360
        %v4473 = vadd.f32 %v4166, %v4365
        %v4474 = vadd.f32 %v4167, %v4368
        %v4475 = vadd.f32 %v4168, %v4373
        %v4476 = vadd.f32 %v4169, %v4376
        %v4477 = vadd.f32 %v4170, %v4381
        %v4478 = vadd.f32 %v4171, %v4384
        %v4479 = vadd.f32 %v4172, %v4389
        %v4480 = vadd.f32 %v4173, %v4392
        %v4481 = vadd.f32 %v4174, %v4397
        %v4482 = vadd.f32 %v4175, %v4400
        %v4483 = vadd.f32 %v4176, %v4405
        %v4484 = vadd.f32 %v4177, %v4408
        %v4485 = vadd.f32 %v4178, %v4413
        %v4486 = vadd.f32 %v4179, %v4416
        %v4487 = vadd.f32 %v4180, %v4421
        %v4488 = vadd.f32 %v4181, %v4424
        %v4489 = vadd.f32 %v4182, %v4429
        %v4490 = vadd.f32 %v4183, %v4432
        %v4491 = vadd.f32 %v4184, %v4437
        %v4492 = vadd.f32 %v4185, %v4440
        %v4493 = vadd.f32 %v4186, %v4445
        %v4494 = vadd.f32 %v4187, %v4448
        %v4495 = vadd.f32 %v4188, %v4453
        %v4496 = vadd.f32 %v4189, %v4456
        %v4497 = vadd.f32 %v4190, %v4461
        %v4498 = vadd.f32 %v4191, %v4464
        %v4499 = vld [vmem:[%s4192 + $0x1] sm:$0xff]
        %v4500 = vld [vmem:[%s4192 + $0x9] sm:$0xff]
        %v4501 = vld [vmem:[%s4192 + $0x19] sm:$0xff]
        %v4502 = vld [vmem:[%s4192 + $0x21] sm:$0xff]
        %v4503 = vld [vmem:[%s4192 + $0x31] sm:$0xff]
        %v4504 = vld [vmem:[%s4192 + $0x39] sm:$0xff]
        %v4505 = vld [vmem:[%s4192 + $0x49] sm:$0xff]
        %v4506 = vld [vmem:[%s4192 + $0x51] sm:$0xff]
        %v4507 = vld [vmem:[%s4192 + $0x61] sm:$0xff]
        %v4508 = vld [vmem:[%s4192 + $0x69] sm:$0xff]
        %v4509 = vld [vmem:[%s4192 + $0x79] sm:$0xff]
        %v4510 = vld [vmem:[%s4192 + $0x81] sm:$0xff]
        %v4511 = vld [vmem:[%s4192 + $0x91] sm:$0xff]
        %v4512 = vld [vmem:[%s4192 + $0x99] sm:$0xff]
        %v4513 = vld [vmem:[%s4192 + $0xa9] sm:$0xff]
        %v4514 = vld [vmem:[%s4192 + $0xb1] sm:$0xff]
        %v4515 = vld [vmem:[%s4192 + $0xc1] sm:$0xff]
        %v4516 = vld [vmem:[%s4192 + $0xc9] sm:$0xff]
        %v4517 = vld [vmem:[%s4192 + $0xd9] sm:$0xff]
        %v4518 = vld [vmem:[%s4192 + $0xe1] sm:$0xff]
        %v4519 = vld [vmem:[%s4192 + $0xf1] sm:$0xff]
        %v4520 = vld [vmem:[%s4192 + $0xf9] sm:$0xff]
        %v4521 = vld [vmem:[%s4192 + $0x109] sm:$0xff]
        %v4522 = vld [vmem:[%s4192 + $0x111] sm:$0xff]
        %v4523 = vld [vmem:[%s4192 + $0x121] sm:$0xff]
        %v4524 = vld [vmem:[%s4192 + $0x129] sm:$0xff]
        %v4525 = vld [vmem:[%s4192 + $0x139] sm:$0xff]
        %v4526 = vld [vmem:[%s4192 + $0x141] sm:$0xff]
        %v4527 = vld [vmem:[%s4192 + $0x151] sm:$0xff]
        %v4528 = vld [vmem:[%s4192 + $0x159] sm:$0xff]
        %v4529 = vld [vmem:[%s4192 + $0x169] sm:$0xff]
        %v4530 = vld [vmem:[%s4192 + $0x171] sm:$0xff]
        %v4531 = vpack.c.bf16 %v4500, %v4499
        %v4532 = vpack.c.bf16 %v4502, %v4501
        %v4533 = vpack.c.bf16 %v4504, %v4503
        %v4534 = vpack.c.bf16 %v4506, %v4505
        %v4535 = vpack.c.bf16 %v4508, %v4507
        %v4536 = vpack.c.bf16 %v4510, %v4509
        %v4537 = vpack.c.bf16 %v4512, %v4511
        %v4538 = vpack.c.bf16 %v4514, %v4513
        %v4539 = vpack.c.bf16 %v4516, %v4515
        %v4540 = vpack.c.bf16 %v4518, %v4517
        %v4541 = vpack.c.bf16 %v4520, %v4519
        %v4542 = vpack.c.bf16 %v4522, %v4521
        %v4543 = vpack.c.bf16 %v4524, %v4523
        %v4544 = vpack.c.bf16 %v4526, %v4525
        %v4545 = vpack.c.bf16 %v4528, %v4527
        %v4546 = vpack.c.bf16 %v4530, %v4529
        %s4547 = scalar_lea.vmem %s8, 448
        %v4548 = vld [vmem:[%s4547] sm:$0xf]
        %v4549 = vld [vmem:[%s4547 + $0x4] sm:$0xf]
        %v4550 = vld [vmem:[%s4547 + $0x8] sm:$0xf]
        %v4551 = vld [vmem:[%s4547 + $0xc] sm:$0xf]
        %v4552 = vld [vmem:[%s4547 + $0x10] sm:$0xf]
        %v4553 = vld [vmem:[%s4547 + $0x14] sm:$0xf]
        %v4554 = vld [vmem:[%s4547 + $0x18] sm:$0xf]
        %v4555 = vld [vmem:[%s4547 + $0x1c] sm:$0xf]
        %v4556 = vld [vmem:[%s4547 + $0x20] sm:$0xf]
        %v4557 = vld [vmem:[%s4547 + $0x24] sm:$0xf]
        %v4558 = vld [vmem:[%s4547 + $0x28] sm:$0xf]
        %v4559 = vld [vmem:[%s4547 + $0x2c] sm:$0xf]
        %v4560 = vld [vmem:[%s4547 + $0x30] sm:$0xf]
        %v4561 = vld [vmem:[%s4547 + $0x34] sm:$0xf]
        %v4562 = vld [vmem:[%s4547 + $0x38] sm:$0xf]
        %v4563 = vld [vmem:[%s4547 + $0x3c] sm:$0xf]
        %v4580 = vunpack.c.l.b16 %v4548
        %v4581 = vunpack.c.l.b16 %v4549
        %v4582 = vunpack.c.l.b16 %v4550
        %v4583 = vunpack.c.l.b16 %v4551
        %v4584 = vunpack.c.l.b16 %v4552
        %v4585 = vunpack.c.l.b16 %v4553
        %v4586 = vunpack.c.l.b16 %v4554
        %v4587 = vunpack.c.l.b16 %v4555
        %v4588 = vunpack.c.l.b16 %v4556
        %v4589 = vunpack.c.l.b16 %v4557
        %v4590 = vunpack.c.l.b16 %v4558
        %v4591 = vunpack.c.l.b16 %v4559
        %v4592 = vunpack.c.l.b16 %v4560
        %v4593 = vunpack.c.l.b16 %v4561
        %v4594 = vunpack.c.l.b16 %v4562
        %v4595 = vunpack.c.l.b16 %v4563
        %v4596 = vpack.c.b16 %v4581, %v4580
        %v4597 = vpack.c.b16 %v4583, %v4582
        %v4598 = vpack.c.b16 %v4585, %v4584
        %v4599 = vpack.c.b16 %v4587, %v4586
        %v4600 = vpack.c.b16 %v4589, %v4588
        %v4601 = vpack.c.b16 %v4591, %v4590
        %v4602 = vpack.c.b16 %v4593, %v4592
        %v4603 = vpack.c.b16 %v4595, %v4594
        %4612 = vmatprep.subr.bf16.mxu0 0
        %4613 = vmatpush1.bf16.msra.mxu0 %v4596
        %4614 = vmatprep.subr.bf16.mxu0 0
        %4615 = vmatpush1.bf16.msra.mxu0 %v4597
        %4616 = vmatprep.subr.bf16.mxu0 0
        %4617 = vmatpush1.bf16.msra.mxu0 %v4598
        %4618 = vmatprep.subr.bf16.mxu0 0
        %4619 = vmatpush1.bf16.msra.mxu0 %v4599
        %4620 = vmatprep.subr.bf16.mxu0 0
        %4621 = vmatpush1.bf16.msra.mxu0 %v4600
        %4622 = vmatprep.subr.bf16.mxu0 0
        %4623 = vmatpush1.bf16.msra.mxu0 %v4601
        %4624 = vmatprep.subr.bf16.mxu0 0
        %4625 = vmatpush1.bf16.msra.mxu0 %v4602
        %4626 = vmatprep.subr.bf16.mxu0 0
        %4627 = vmatpush1.bf16.msra.mxu0 %v4603
        %4628 = vmatprep.subr.bf16.mxu0 0
        %4629 = vmatpush1.bf16.msra.mxu0 0
        %4630 = vmatprep.subr.bf16.mxu0 0
        %4631 = vmatpush1.bf16.msra.mxu0 0
        %4632 = vmatprep.subr.bf16.mxu0 0
        %4633 = vmatpush1.bf16.msra.mxu0 0
        %4634 = vmatprep.subr.bf16.mxu0 0
        %4635 = vmatpush1.bf16.msra.mxu0 0
        %4636 = vmatprep.subr.bf16.mxu0 0
        %4637 = vmatpush1.bf16.msra.mxu0 0
        %4638 = vmatprep.subr.bf16.mxu0 0
        %4639 = vmatpush1.bf16.msra.mxu0 0
        %4640 = vmatprep.subr.bf16.mxu0 0
        %4641 = vmatpush1.bf16.msra.mxu0 0
        %4642 = vmatprep.subr.bf16.mxu0 0
        %4643 = vmatpush1.bf16.msra.mxu0 0
        %4644 = vmatprep.mubr.bf16.mxu0 0
        %4645 = vmatmul.mubr.bf16.gmra.mrb[0].mxu0 %v4531
        %v4646 = vpop.f32.mrb[0].mxu0
        %v4647 = vadd.f32 0.0, %v4646
        %v4648 = vpop.f32.mrb[0].mxu0
        %v4649 = vpop.f32.mrb[0].mxu0
        %v4650 = vadd.f32 0.0, %v4649
        %v4651 = vpop.f32.mrb[0].mxu0
        %4652 = vmatprep.mubr.bf16.mxu0 0
        %4653 = vmatmul.mubr.bf16.gmra.mrb[0].mxu0 %v4532
        %v4654 = vpop.f32.mrb[0].mxu0
        %v4655 = vadd.f32 0.0, %v4654
        %v4656 = vpop.f32.mrb[0].mxu0
        %v4657 = vpop.f32.mrb[0].mxu0
        %v4658 = vadd.f32 0.0, %v4657
        %v4659 = vpop.f32.mrb[0].mxu0
        %4660 = vmatprep.mubr.bf16.mxu0 0
        %4661 = vmatmul.mubr.bf16.gmra.mrb[0].mxu0 %v4533
        %v4662 = vpop.f32.mrb[0].mxu0
        %v4663 = vadd.f32 0.0, %v4662
        %v4664 = vpop.f32.mrb[0].mxu0
        %v4665 = vpop.f32.mrb[0].mxu0
        %v4666 = vadd.f32 0.0, %v4665
        %v4667 = vpop.f32.mrb[0].mxu0
        %4668 = vmatprep.mubr.bf16.mxu0 0
        %4669 = vmatmul.mubr.bf16.gmra.mrb[0].mxu0 %v4534
        %v4670 = vpop.f32.mrb[0].mxu0
        %v4671 = vadd.f32 0.0, %v4670
        %v4672 = vpop.f32.mrb[0].mxu0
        %v4673 = vpop.f32.mrb[0].mxu0
        %v4674 = vadd.f32 0.0, %v4673
        %v4675 = vpop.f32.mrb[0].mxu0
        %4676 = vmatprep.mubr.bf16.mxu0 0
        %4677 = vmatmul.mubr.bf16.gmra.mrb[0].mxu0 %v4535
        %v4678 = vpop.f32.mrb[0].mxu0
        %v4679 = vadd.f32 0.0, %v4678
        %v4680 = vpop.f32.mrb[0].mxu0
        %v4681 = vpop.f32.mrb[0].mxu0
        %v4682 = vadd.f32 0.0, %v4681
        %v4683 = vpop.f32.mrb[0].mxu0
        %4684 = vmatprep.mubr.bf16.mxu0 0
        %4685 = vmatmul.mubr.bf16.gmra.mrb[0].mxu0 %v4536
        %v4686 = vpop.f32.mrb[0].mxu0
        %v4687 = vadd.f32 0.0, %v4686
        %v4688 = vpop.f32.mrb[0].mxu0
        %v4689 = vpop.f32.mrb[0].mxu0
        %v4690 = vadd.f32 0.0, %v4689
        %v4691 = vpop.f32.mrb[0].mxu0
        %4692 = vmatprep.mubr.bf16.mxu0 0
        %4693 = vmatmul.mubr.bf16.gmra.mrb[0].mxu0 %v4537
        %v4694 = vpop.f32.mrb[0].mxu0
        %v4695 = vadd.f32 0.0, %v4694
        %v4696 = vpop.f32.mrb[0].mxu0
        %v4697 = vpop.f32.mrb[0].mxu0
        %v4698 = vadd.f32 0.0, %v4697
        %v4699 = vpop.f32.mrb[0].mxu0
        %4700 = vmatprep.mubr.bf16.mxu0 0
        %4701 = vmatmul.mubr.bf16.gmra.mrb[0].mxu0 %v4538
        %v4702 = vpop.f32.mrb[0].mxu0
        %v4703 = vadd.f32 0.0, %v4702
        %v4704 = vpop.f32.mrb[0].mxu0
        %v4705 = vpop.f32.mrb[0].mxu0
        %v4706 = vadd.f32 0.0, %v4705
        %v4707 = vpop.f32.mrb[0].mxu0
        %4708 = vmatprep.mubr.bf16.mxu0 0
        %4709 = vmatmul.mubr.bf16.gmra.mrb[0].mxu0 %v4539
        %v4710 = vpop.f32.mrb[0].mxu0
        %v4711 = vadd.f32 0.0, %v4710
        %v4712 = vpop.f32.mrb[0].mxu0
        %v4713 = vpop.f32.mrb[0].mxu0
        %v4714 = vadd.f32 0.0, %v4713
        %v4715 = vpop.f32.mrb[0].mxu0
        %4716 = vmatprep.mubr.bf16.mxu0 0
        %4717 = vmatmul.mubr.bf16.gmra.mrb[0].mxu0 %v4540
        %v4718 = vpop.f32.mrb[0].mxu0
        %v4719 = vadd.f32 0.0, %v4718
        %v4720 = vpop.f32.mrb[0].mxu0
        %v4721 = vpop.f32.mrb[0].mxu0
        %v4722 = vadd.f32 0.0, %v4721
        %v4723 = vpop.f32.mrb[0].mxu0
        %4724 = vmatprep.mubr.bf16.mxu0 0
        %4725 = vmatmul.mubr.bf16.gmra.mrb[0].mxu0 %v4541
        %v4726 = vpop.f32.mrb[0].mxu0
        %v4727 = vadd.f32 0.0, %v4726
        %v4728 = vpop.f32.mrb[0].mxu0
        %v4729 = vpop.f32.mrb[0].mxu0
        %v4730 = vadd.f32 0.0, %v4729
        %v4731 = vpop.f32.mrb[0].mxu0
        %4732 = vmatprep.mubr.bf16.mxu0 0
        %4733 = vmatmul.mubr.bf16.gmra.mrb[0].mxu0 %v4542
        %v4734 = vpop.f32.mrb[0].mxu0
        %v4735 = vadd.f32 0.0, %v4734
        %v4736 = vpop.f32.mrb[0].mxu0
        %v4737 = vpop.f32.mrb[0].mxu0
        %v4738 = vadd.f32 0.0, %v4737
        %v4739 = vpop.f32.mrb[0].mxu0
        %4740 = vmatprep.mubr.bf16.mxu0 0
        %4741 = vmatmul.mubr.bf16.gmra.mrb[0].mxu0 %v4543
        %v4742 = vpop.f32.mrb[0].mxu0
        %v4743 = vadd.f32 0.0, %v4742
        %v4744 = vpop.f32.mrb[0].mxu0
        %v4745 = vpop.f32.mrb[0].mxu0
        %v4746 = vadd.f32 0.0, %v4745
        %v4747 = vpop.f32.mrb[0].mxu0
        %4748 = vmatprep.mubr.bf16.mxu0 0
        %4749 = vmatmul.mubr.bf16.gmra.mrb[0].mxu0 %v4544
        %v4750 = vpop.f32.mrb[0].mxu0
        %v4751 = vadd.f32 0.0, %v4750
        %v4752 = vpop.f32.mrb[0].mxu0
        %v4753 = vpop.f32.mrb[0].mxu0
        %v4754 = vadd.f32 0.0, %v4753
        %v4755 = vpop.f32.mrb[0].mxu0
        %4756 = vmatprep.mubr.bf16.mxu0 0
        %4757 = vmatmul.mubr.bf16.gmra.mrb[0].mxu0 %v4545
        %v4758 = vpop.f32.mrb[0].mxu0
        %v4759 = vadd.f32 0.0, %v4758
        %v4760 = vpop.f32.mrb[0].mxu0
        %v4761 = vpop.f32.mrb[0].mxu0
        %v4762 = vadd.f32 0.0, %v4761
        %v4763 = vpop.f32.mrb[0].mxu0
        %4764 = vmatprep.mubr.bf16.mxu0 0
        %4765 = vmatmul.mubr.bf16.gmra.mrb[0].mxu0 %v4546
        %v4766 = vpop.f32.mrb[0].mxu0
        %v4767 = vadd.f32 0.0, %v4766
        %v4768 = vpop.f32.mrb[0].mxu0
        %v4769 = vpop.f32.mrb[0].mxu0
        %v4770 = vadd.f32 0.0, %v4769
        %v4771 = vpop.f32.mrb[0].mxu0
        %4772 = vdwg.mxu0
        %v4773 = vadd.f32 %v4467, %v4647
        %v4774 = vadd.f32 %v4468, %v4650
        %v4775 = vadd.f32 %v4469, %v4655
        %v4776 = vadd.f32 %v4470, %v4658
        %v4777 = vadd.f32 %v4471, %v4663
        %v4778 = vadd.f32 %v4472, %v4666
        %v4779 = vadd.f32 %v4473, %v4671
        %v4780 = vadd.f32 %v4474, %v4674
        %v4781 = vadd.f32 %v4475, %v4679
        %v4782 = vadd.f32 %v4476, %v4682
        %v4783 = vadd.f32 %v4477, %v4687
        %v4784 = vadd.f32 %v4478, %v4690
        %v4785 = vadd.f32 %v4479, %v4695
        %v4786 = vadd.f32 %v4480, %v4698
        %v4787 = vadd.f32 %v4481, %v4703
        %v4788 = vadd.f32 %v4482, %v4706
        %v4789 = vadd.f32 %v4483, %v4711
        %v4790 = vadd.f32 %v4484, %v4714
        %v4791 = vadd.f32 %v4485, %v4719
        %v4792 = vadd.f32 %v4486, %v4722
        %v4793 = vadd.f32 %v4487, %v4727
        %v4794 = vadd.f32 %v4488, %v4730
        %v4795 = vadd.f32 %v4489, %v4735
        %v4796 = vadd.f32 %v4490, %v4738
        %v4797 = vadd.f32 %v4491, %v4743
        %v4798 = vadd.f32 %v4492, %v4746
        %v4799 = vadd.f32 %v4493, %v4751
        %v4800 = vadd.f32 %v4494, %v4754
        %v4801 = vadd.f32 %v4495, %v4759
        %v4802 = vadd.f32 %v4496, %v4762
        %v4803 = vadd.f32 %v4497, %v4767
        %v4804 = vadd.f32 %v4498, %v4770
        %v4805 = vld [vmem:[%s4192 + $0x2] sm:$0xff]
        %v4806 = vld [vmem:[%s4192 + $0xa] sm:$0xff]
        %v4807 = vld [vmem:[%s4192 + $0x1a] sm:$0xff]
        %v4808 = vld [vmem:[%s4192 + $0x22] sm:$0xff]
        %v4809 = vld [vmem:[%s4192 + $0x32] sm:$0xff]
        %v4810 = vld [vmem:[%s4192 + $0x3a] sm:$0xff]
        %v4811 = vld [vmem:[%s4192 + $0x4a] sm:$0xff]
        %v4812 = vld [vmem:[%s4192 + $0x52] sm:$0xff]
        %v4813 = vld [vmem:[%s4192 + $0x62] sm:$0xff]
        %v4814 = vld [vmem:[%s4192 + $0x6a] sm:$0xff]
        %v4815 = vld [vmem:[%s4192 + $0x7a] sm:$0xff]
        %v4816 = vld [vmem:[%s4192 + $0x82] sm:$0xff]
        %v4817 = vld [vmem:[%s4192 + $0x92] sm:$0xff]
        %v4818 = vld [vmem:[%s4192 + $0x9a] sm:$0xff]
        %v4819 = vld [vmem:[%s4192 + $0xaa] sm:$0xff]
        %v4820 = vld [vmem:[%s4192 + $0xb2] sm:$0xff]
        %v4821 = vld [vmem:[%s4192 + $0xc2] sm:$0xff]
        %v4822 = vld [vmem:[%s4192 + $0xca] sm:$0xff]
        %v4823 = vld [vmem:[%s4192 + $0xda] sm:$0xff]
        %v4824 = vld [vmem:[%s4192 + $0xe2] sm:$0xff]
        %v4825 = vld [vmem:[%s4192 + $0xf2] sm:$0xff]
        %v4826 = vld [vmem:[%s4192 + $0xfa] sm:$0xff]
        %v4827 = vld [vmem:[%s4192 + $0x10a] sm:$0xff]
        %v4828 = vld [vmem:[%s4192 + $0x112] sm:$0xff]
        %v4829 = vld [vmem:[%s4192 + $0x122] sm:$0xff]
        %v4830 = vld [vmem:[%s4192 + $0x12a] sm:$0xff]
        %v4831 = vld [vmem:[%s4192 + $0x13a] sm:$0xff]
        %v4832 = vld [vmem:[%s4192 + $0x142] sm:$0xff]
        %v4833 = vld [vmem:[%s4192 + $0x152] sm:$0xff]
        %v4834 = vld [vmem:[%s4192 + $0x15a] sm:$0xff]
        %v4835 = vld [vmem:[%s4192 + $0x16a] sm:$0xff]
        %v4836 = vld [vmem:[%s4192 + $0x172] sm:$0xff]
        %v4837 = vpack.c.bf16 %v4806, %v4805
        %v4838 = vpack.c.bf16 %v4808, %v4807
        %v4839 = vpack.c.bf16 %v4810, %v4809
        %v4840 = vpack.c.bf16 %v4812, %v4811
        %v4841 = vpack.c.bf16 %v4814, %v4813
        %v4842 = vpack.c.bf16 %v4816, %v4815
        %v4843 = vpack.c.bf16 %v4818, %v4817
        %v4844 = vpack.c.bf16 %v4820, %v4819
        %v4845 = vpack.c.bf16 %v4822, %v4821
        %v4846 = vpack.c.bf16 %v4824, %v4823
        %v4847 = vpack.c.bf16 %v4826, %v4825
        %v4848 = vpack.c.bf16 %v4828, %v4827
        %v4849 = vpack.c.bf16 %v4830, %v4829
        %v4850 = vpack.c.bf16 %v4832, %v4831
        %v4851 = vpack.c.bf16 %v4834, %v4833
        %v4852 = vpack.c.bf16 %v4836, %v4835
        %s4853 = scalar_lea.vmem %s8, 512
        %v4854 = vld [vmem:[%s4853] sm:$0xf]
        %v4855 = vld [vmem:[%s4853 + $0x4] sm:$0xf]
        %v4856 = vld [vmem:[%s4853 + $0x8] sm:$0xf]
        %v4857 = vld [vmem:[%s4853 + $0xc] sm:$0xf]
        %v4858 = vld [vmem:[%s4853 + $0x10] sm:$0xf]
        %v4859 = vld [vmem:[%s4853 + $0x14] sm:$0xf]
        %v4860 = vld [vmem:[%s4853 + $0x18] sm:$0xf]
        %v4861 = vld [vmem:[%s4853 + $0x1c] sm:$0xf]
        %v4862 = vld [vmem:[%s4853 + $0x20] sm:$0xf]
        %v4863 = vld [vmem:[%s4853 + $0x24] sm:$0xf]
        %v4864 = vld [vmem:[%s4853 + $0x28] sm:$0xf]
        %v4865 = vld [vmem:[%s4853 + $0x2c] sm:$0xf]
        %v4866 = vld [vmem:[%s4853 + $0x30] sm:$0xf]
        %v4867 = vld [vmem:[%s4853 + $0x34] sm:$0xf]
        %v4868 = vld [vmem:[%s4853 + $0x38] sm:$0xf]
        %v4869 = vld [vmem:[%s4853 + $0x3c] sm:$0xf]
        %v4886 = vunpack.c.l.b16 %v4854
        %v4887 = vunpack.c.l.b16 %v4855
        %v4888 = vunpack.c.l.b16 %v4856
        %v4889 = vunpack.c.l.b16 %v4857
        %v4890 = vunpack.c.l.b16 %v4858
        %v4891 = vunpack.c.l.b16 %v4859
        %v4892 = vunpack.c.l.b16 %v4860
        %v4893 = vunpack.c.l.b16 %v4861
        %v4894 = vunpack.c.l.b16 %v4862
        %v4895 = vunpack.c.l.b16 %v4863
        %v4896 = vunpack.c.l.b16 %v4864
        %v4897 = vunpack.c.l.b16 %v4865
        %v4898 = vunpack.c.l.b16 %v4866
        %v4899 = vunpack.c.l.b16 %v4867
        %v4900 = vunpack.c.l.b16 %v4868
        %v4901 = vunpack.c.l.b16 %v4869
        %v4902 = vpack.c.b16 %v4887, %v4886
        %v4903 = vpack.c.b16 %v4889, %v4888
        %v4904 = vpack.c.b16 %v4891, %v4890
        %v4905 = vpack.c.b16 %v4893, %v4892
        %v4906 = vpack.c.b16 %v4895, %v4894
        %v4907 = vpack.c.b16 %v4897, %v4896
        %v4908 = vpack.c.b16 %v4899, %v4898
        %v4909 = vpack.c.b16 %v4901, %v4900
        %4918 = vmatprep.subr.bf16.mxu0 0
        %4919 = vmatpush1.bf16.msra.mxu0 %v4902
        %4920 = vmatprep.subr.bf16.mxu0 0
        %4921 = vmatpush1.bf16.msra.mxu0 %v4903
        %4922 = vmatprep.subr.bf16.mxu0 0
        %4923 = vmatpush1.bf16.msra.mxu0 %v4904
        %4924 = vmatprep.subr.bf16.mxu0 0
        %4925 = vmatpush1.bf16.msra.mxu0 %v4905
        %4926 = vmatprep.subr.bf16.mxu0 0
        %4927 = vmatpush1.bf16.msra.mxu0 %v4906
        %4928 = vmatprep.subr.bf16.mxu0 0
        %4929 = vmatpush1.bf16.msra.mxu0 %v4907
        %4930 = vmatprep.subr.bf16.mxu0 0
        %4931 = vmatpush1.bf16.msra.mxu0 %v4908
        %4932 = vmatprep.subr.bf16.mxu0 0
        %4933 = vmatpush1.bf16.msra.mxu0 %v4909
        %4934 = vmatprep.subr.bf16.mxu0 0
        %4935 = vmatpush1.bf16.msra.mxu0 0
        %4936 = vmatprep.subr.bf16.mxu0 0
        %4937 = vmatpush1.bf16.msra.mxu0 0
        %4938 = vmatprep.subr.bf16.mxu0 0
        %4939 = vmatpush1.bf16.msra.mxu0 0
        %4940 = vmatprep.subr.bf16.mxu0 0
        %4941 = vmatpush1.bf16.msra.mxu0 0
        %4942 = vmatprep.subr.bf16.mxu0 0
        %4943 = vmatpush1.bf16.msra.mxu0 0
        %4944 = vmatprep.subr.bf16.mxu0 0
        %4945 = vmatpush1.bf16.msra.mxu0 0
        %4946 = vmatprep.subr.bf16.mxu0 0
        %4947 = vmatpush1.bf16.msra.mxu0 0
        %4948 = vmatprep.subr.bf16.mxu0 0
        %4949 = vmatpush1.bf16.msra.mxu0 0
        %4950 = vmatprep.mubr.bf16.mxu0 0
        %4951 = vmatmul.mubr.bf16.gmra.mrb[0].mxu0 %v4837
        %v4952 = vpop.f32.mrb[0].mxu0
        %v4953 = vadd.f32 0.0, %v4952
        %v4954 = vpop.f32.mrb[0].mxu0
        %v4955 = vpop.f32.mrb[0].mxu0
        %v4956 = vadd.f32 0.0, %v4955
        %v4957 = vpop.f32.mrb[0].mxu0
        %4958 = vmatprep.mubr.bf16.mxu0 0
        %4959 = vmatmul.mubr.bf16.gmra.mrb[0].mxu0 %v4838
        %v4960 = vpop.f32.mrb[0].mxu0
        %v4961 = vadd.f32 0.0, %v4960
        %v4962 = vpop.f32.mrb[0].mxu0
        %v4963 = vpop.f32.mrb[0].mxu0
        %v4964 = vadd.f32 0.0, %v4963
        %v4965 = vpop.f32.mrb[0].mxu0
        %4966 = vmatprep.mubr.bf16.mxu0 0
        %4967 = vmatmul.mubr.bf16.gmra.mrb[0].mxu0 %v4839
        %v4968 = vpop.f32.mrb[0].mxu0
        %v4969 = vadd.f32 0.0, %v4968
        %v4970 = vpop.f32.mrb[0].mxu0
        %v4971 = vpop.f32.mrb[0].mxu0
        %v4972 = vadd.f32 0.0, %v4971
        %v4973 = vpop.f32.mrb[0].mxu0
        %4974 = vmatprep.mubr.bf16.mxu0 0
        %4975 = vmatmul.mubr.bf16.gmra.mrb[0].mxu0 %v4840
        %v4976 = vpop.f32.mrb[0].mxu0
        %v4977 = vadd.f32 0.0, %v4976
        %v4978 = vpop.f32.mrb[0].mxu0
        %v4979 = vpop.f32.mrb[0].mxu0
        %v4980 = vadd.f32 0.0, %v4979
        %v4981 = vpop.f32.mrb[0].mxu0
        %4982 = vmatprep.mubr.bf16.mxu0 0
        %4983 = vmatmul.mubr.bf16.gmra.mrb[0].mxu0 %v4841
        %v4984 = vpop.f32.mrb[0].mxu0
        %v4985 = vadd.f32 0.0, %v4984
        %v4986 = vpop.f32.mrb[0].mxu0
        %v4987 = vpop.f32.mrb[0].mxu0
        %v4988 = vadd.f32 0.0, %v4987
        %v4989 = vpop.f32.mrb[0].mxu0
        %4990 = vmatprep.mubr.bf16.mxu0 0
        %4991 = vmatmul.mubr.bf16.gmra.mrb[0].mxu0 %v4842
        %v4992 = vpop.f32.mrb[0].mxu0
        %v4993 = vadd.f32 0.0, %v4992
        %v4994 = vpop.f32.mrb[0].mxu0
        %v4995 = vpop.f32.mrb[0].mxu0
        %v4996 = vadd.f32 0.0, %v4995
        %v4997 = vpop.f32.mrb[0].mxu0
        %4998 = vmatprep.mubr.bf16.mxu0 0
        %4999 = vmatmul.mubr.bf16.gmra.mrb[0].mxu0 %v4843
        %v5000 = vpop.f32.mrb[0].mxu0
        %v5001 = vadd.f32 0.0, %v5000
        %v5002 = vpop.f32.mrb[0].mxu0
        %v5003 = vpop.f32.mrb[0].mxu0
        %v5004 = vadd.f32 0.0, %v5003
        %v5005 = vpop.f32.mrb[0].mxu0
        %5006 = vmatprep.mubr.bf16.mxu0 0
        %5007 = vmatmul.mubr.bf16.gmra.mrb[0].mxu0 %v4844
        %v5008 = vpop.f32.mrb[0].mxu0
        %v5009 = vadd.f32 0.0, %v5008
        %v5010 = vpop.f32.mrb[0].mxu0
        %v5011 = vpop.f32.mrb[0].mxu0
        %v5012 = vadd.f32 0.0, %v5011
        %v5013 = vpop.f32.mrb[0].mxu0
        %5014 = vmatprep.mubr.bf16.mxu0 0
        %5015 = vmatmul.mubr.bf16.gmra.mrb[0].mxu0 %v4845
        %v5016 = vpop.f32.mrb[0].mxu0
        %v5017 = vadd.f32 0.0, %v5016
        %v5018 = vpop.f32.mrb[0].mxu0
        %v5019 = vpop.f32.mrb[0].mxu0
        %v5020 = vadd.f32 0.0, %v5019
        %v5021 = vpop.f32.mrb[0].mxu0
        %5022 = vmatprep.mubr.bf16.mxu0 0
        %5023 = vmatmul.mubr.bf16.gmra.mrb[0].mxu0 %v4846
        %v5024 = vpop.f32.mrb[0].mxu0
        %v5025 = vadd.f32 0.0, %v5024
        %v5026 = vpop.f32.mrb[0].mxu0
        %v5027 = vpop.f32.mrb[0].mxu0
        %v5028 = vadd.f32 0.0, %v5027
        %v5029 = vpop.f32.mrb[0].mxu0
        %5030 = vmatprep.mubr.bf16.mxu0 0
        %5031 = vmatmul.mubr.bf16.gmra.mrb[0].mxu0 %v4847
        %v5032 = vpop.f32.mrb[0].mxu0
        %v5033 = vadd.f32 0.0, %v5032
        %v5034 = vpop.f32.mrb[0].mxu0
        %v5035 = vpop.f32.mrb[0].mxu0
        %v5036 = vadd.f32 0.0, %v5035
        %v5037 = vpop.f32.mrb[0].mxu0
        %5038 = vmatprep.mubr.bf16.mxu0 0
        %5039 = vmatmul.mubr.bf16.gmra.mrb[0].mxu0 %v4848
        %v5040 = vpop.f32.mrb[0].mxu0
        %v5041 = vadd.f32 0.0, %v5040
        %v5042 = vpop.f32.mrb[0].mxu0
        %v5043 = vpop.f32.mrb[0].mxu0
        %v5044 = vadd.f32 0.0, %v5043
        %v5045 = vpop.f32.mrb[0].mxu0
        %5046 = vmatprep.mubr.bf16.mxu0 0
        %5047 = vmatmul.mubr.bf16.gmra.mrb[0].mxu0 %v4849
        %v5048 = vpop.f32.mrb[0].mxu0
        %v5049 = vadd.f32 0.0, %v5048
        %v5050 = vpop.f32.mrb[0].mxu0
        %v5051 = vpop.f32.mrb[0].mxu0
        %v5052 = vadd.f32 0.0, %v5051
        %v5053 = vpop.f32.mrb[0].mxu0
        %5054 = vmatprep.mubr.bf16.mxu0 0
        %5055 = vmatmul.mubr.bf16.gmra.mrb[0].mxu0 %v4850
        %v5056 = vpop.f32.mrb[0].mxu0
        %v5057 = vadd.f32 0.0, %v5056
        %v5058 = vpop.f32.mrb[0].mxu0
        %v5059 = vpop.f32.mrb[0].mxu0
        %v5060 = vadd.f32 0.0, %v5059
        %v5061 = vpop.f32.mrb[0].mxu0
        %5062 = vmatprep.mubr.bf16.mxu0 0
        %5063 = vmatmul.mubr.bf16.gmra.mrb[0].mxu0 %v4851
        %v5064 = vpop.f32.mrb[0].mxu0
        %v5065 = vadd.f32 0.0, %v5064
        %v5066 = vpop.f32.mrb[0].mxu0
        %v5067 = vpop.f32.mrb[0].mxu0
        %v5068 = vadd.f32 0.0, %v5067
        %v5069 = vpop.f32.mrb[0].mxu0
        %5070 = vmatprep.mubr.bf16.mxu0 0
        %5071 = vmatmul.mubr.bf16.gmra.mrb[0].mxu0 %v4852
        %v5072 = vpop.f32.mrb[0].mxu0
        %v5073 = vadd.f32 0.0, %v5072
        %v5074 = vpop.f32.mrb[0].mxu0
        %v5075 = vpop.f32.mrb[0].mxu0
        %v5076 = vadd.f32 0.0, %v5075
        %v5077 = vpop.f32.mrb[0].mxu0
        %5078 = vdwg.mxu0
        %v5079 = vadd.f32 %v4773, %v4953
        %v5080 = vadd.f32 %v4774, %v4956
        %v5081 = vadd.f32 %v4775, %v4961
        %v5082 = vadd.f32 %v4776, %v4964
        %v5083 = vadd.f32 %v4777, %v4969
        %v5084 = vadd.f32 %v4778, %v4972
        %v5085 = vadd.f32 %v4779, %v4977
        %v5086 = vadd.f32 %v4780, %v4980
        %v5087 = vadd.f32 %v4781, %v4985
        %v5088 = vadd.f32 %v4782, %v4988
        %v5089 = vadd.f32 %v4783, %v4993
        %v5090 = vadd.f32 %v4784, %v4996
        %v5091 = vadd.f32 %v4785, %v5001
        %v5092 = vadd.f32 %v4786, %v5004
        %v5093 = vadd.f32 %v4787, %v5009
        %v5094 = vadd.f32 %v4788, %v5012
        %v5095 = vadd.f32 %v4789, %v5017
        %v5096 = vadd.f32 %v4790, %v5020
        %v5097 = vadd.f32 %v4791, %v5025
        %v5098 = vadd.f32 %v4792, %v5028
        %v5099 = vadd.f32 %v4793, %v5033
        %v5100 = vadd.f32 %v4794, %v5036
        %v5101 = vadd.f32 %v4795, %v5041
        %v5102 = vadd.f32 %v4796, %v5044
        %v5103 = vadd.f32 %v4797, %v5049
        %v5104 = vadd.f32 %v4798, %v5052
        %v5105 = vadd.f32 %v4799, %v5057
        %v5106 = vadd.f32 %v4800, %v5060
        %v5107 = vadd.f32 %v4801, %v5065
        %v5108 = vadd.f32 %v4802, %v5068
        %v5109 = vadd.f32 %v4803, %v5073
        %v5110 = vadd.f32 %v4804, %v5076
        %v5111 = vadd.f32 %v5079, %v5080
        %v5112 = vadd.f32 %v5111, %v5081
        %v5113 = vadd.f32 %v5112, %v5082
        %v5114 = vadd.f32 %v5113, %v5083
        %v5115 = vadd.f32 %v5114, %v5084
        %v5116 = vadd.f32 %v5115, %v5085
        %v5117 = vadd.f32 %v5116, %v5086
        %v5118 = vadd.f32 %v5117, %v5087
        %v5119 = vadd.f32 %v5118, %v5088
        %v5120 = vadd.f32 %v5119, %v5089
        %v5121 = vadd.f32 %v5120, %v5090
        %v5122 = vadd.f32 %v5121, %v5091
        %v5123 = vadd.f32 %v5122, %v5092
        %v5124 = vadd.f32 %v5123, %v5093
        %v5125 = vadd.f32 %v5124, %v5094
        %v5126 = vadd.f32 %v5125, %v5095
        %v5127 = vadd.f32 %v5126, %v5096
        %v5128 = vadd.f32 %v5127, %v5097
        %v5129 = vadd.f32 %v5128, %v5098
        %v5130 = vadd.f32 %v5129, %v5099
        %v5131 = vadd.f32 %v5130, %v5100
        %v5132 = vadd.f32 %v5131, %v5101
        %v5133 = vadd.f32 %v5132, %v5102
        %v5134 = vadd.f32 %v5133, %v5103
        %v5135 = vadd.f32 %v5134, %v5104
        %v5136 = vadd.f32 %v5135, %v5105
        %v5137 = vadd.f32 %v5136, %v5106
        %v5138 = vadd.f32 %v5137, %v5107
        %v5139 = vadd.f32 %v5138, %v5108
        %v5140 = vadd.f32 %v5139, %v5109
        %v5141 = vadd.f32 %v5140, %v5110
        %v5142 = vrot.slane %v5141, 4
        %v5143 = vadd.f32 %v5141, %v5142
        %v5144 = vrot.slane %v5143, 2
        %v5145 = vadd.f32 %v5143, %v5144
        %v5146 = vrot.slane %v5145, 1
        %v5147 = vadd.f32 %v5145, %v5146
        %v5148 = vmul.f32 %v5147, 0.00390625
        %v5149 = vmul.f32 %v5079, %v5079
        %v5150 = vmul.f32 %v5080, %v5080
        %v5151 = vmul.f32 %v5081, %v5081
        %v5152 = vmul.f32 %v5082, %v5082
        %v5153 = vmul.f32 %v5083, %v5083
        %v5154 = vmul.f32 %v5084, %v5084
        %v5155 = vmul.f32 %v5085, %v5085
        %v5156 = vmul.f32 %v5086, %v5086
        %v5157 = vmul.f32 %v5087, %v5087
        %v5158 = vmul.f32 %v5088, %v5088
        %v5159 = vmul.f32 %v5089, %v5089
        %v5160 = vmul.f32 %v5090, %v5090
        %v5161 = vmul.f32 %v5091, %v5091
        %v5162 = vmul.f32 %v5092, %v5092
        %v5163 = vmul.f32 %v5093, %v5093
        %v5164 = vmul.f32 %v5094, %v5094
        %v5165 = vmul.f32 %v5095, %v5095
        %v5166 = vmul.f32 %v5096, %v5096
        %v5167 = vmul.f32 %v5097, %v5097
        %v5168 = vmul.f32 %v5098, %v5098
        %v5169 = vmul.f32 %v5099, %v5099
        %v5170 = vmul.f32 %v5100, %v5100
        %v5171 = vmul.f32 %v5101, %v5101
        %v5172 = vmul.f32 %v5102, %v5102
        %v5173 = vmul.f32 %v5103, %v5103
        %v5174 = vmul.f32 %v5104, %v5104
        %v5175 = vmul.f32 %v5105, %v5105
        %v5176 = vmul.f32 %v5106, %v5106
        %v5177 = vmul.f32 %v5107, %v5107
        %v5178 = vmul.f32 %v5108, %v5108
        %v5179 = vmul.f32 %v5109, %v5109
        %v5180 = vmul.f32 %v5110, %v5110
        %v5181 = vadd.f32 %v5149, %v5150
        %v5182 = vadd.f32 %v5181, %v5151
        %v5183 = vadd.f32 %v5182, %v5152
        %v5184 = vadd.f32 %v5183, %v5153
        %v5185 = vadd.f32 %v5184, %v5154
        %v5186 = vadd.f32 %v5185, %v5155
        %v5187 = vadd.f32 %v5186, %v5156
        %v5188 = vadd.f32 %v5187, %v5157
        %v5189 = vadd.f32 %v5188, %v5158
        %v5190 = vadd.f32 %v5189, %v5159
        %v5191 = vadd.f32 %v5190, %v5160
        %v5192 = vadd.f32 %v5191, %v5161
        %v5193 = vadd.f32 %v5192, %v5162
        %v5194 = vadd.f32 %v5193, %v5163
        %v5195 = vadd.f32 %v5194, %v5164
        %v5196 = vadd.f32 %v5195, %v5165
        %v5197 = vadd.f32 %v5196, %v5166
        %v5198 = vadd.f32 %v5197, %v5167
        %v5199 = vadd.f32 %v5198, %v5168
        %v5200 = vadd.f32 %v5199, %v5169
        %v5201 = vadd.f32 %v5200, %v5170
        %v5202 = vadd.f32 %v5201, %v5171
        %v5203 = vadd.f32 %v5202, %v5172
        %v5204 = vadd.f32 %v5203, %v5173
        %v5205 = vadd.f32 %v5204, %v5174
        %v5206 = vadd.f32 %v5205, %v5175
        %v5207 = vadd.f32 %v5206, %v5176
        %v5208 = vadd.f32 %v5207, %v5177
        %v5209 = vadd.f32 %v5208, %v5178
        %v5210 = vadd.f32 %v5209, %v5179
        %v5211 = vadd.f32 %v5210, %v5180
        %v5212 = vrot.slane %v5211, 4
        %v5213 = vadd.f32 %v5211, %v5212
        %v5214 = vrot.slane %v5213, 2
        %v5215 = vadd.f32 %v5213, %v5214
        %v5216 = vrot.slane %v5215, 1
        %v5217 = vadd.f32 %v5215, %v5216
        %v5218 = vmul.f32 %v5217, 0.00390625
        %v5219 = vsel %vm1299, %v5148, %v5218
        %5220 = vmatprep.subr.mxu0 0.0
        %5221 = vmatpush1.msra.mxu0 %v1175
        %5222 = vmatprep.subr.mxu0 0.0
        %5223 = vmatpush1.msra.mxu0 %v1176
        %5224 = vmatprep.subr.mxu0 0.0
        %5225 = vmatpush1.msra.mxu0 %v1177
        %5226 = vmatprep.subr.mxu0 0.0
        %5227 = vmatpush1.msra.mxu0 %v1178
        %5228 = vmatprep.subr.mxu0 0.0
        %5229 = vmatpush1.msra.mxu0 %v1179
        %5230 = vmatprep.subr.mxu0 0.0
        %5231 = vmatpush1.msra.mxu0 %v1180
        %5232 = vmatprep.subr.mxu0 0.0
        %5233 = vmatpush1.msra.mxu0 %v1181
        %5234 = vmatprep.subr.mxu0 0.0
        %5235 = vmatpush1.msra.mxu0 %v1182
        %5236 = vmatprep.subr.mxu0 0.0
        %5237 = vmatpush1.msra.mxu0 %v1183
        %5238 = vmatprep.subr.mxu0 0.0
        %5239 = vmatpush1.msra.mxu0 %v1184
        %5240 = vmatprep.subr.mxu0 0.0
        %5241 = vmatpush1.msra.mxu0 %v1185
        %5242 = vmatprep.subr.mxu0 0.0
        %5243 = vmatpush1.msra.mxu0 %v1186
        %5244 = vmatprep.subr.mxu0 0.0
        %5245 = vmatpush1.msra.mxu0 %v1187
        %5246 = vmatprep.subr.mxu0 0.0
        %5247 = vmatpush1.msra.mxu0 %v1188
        %5248 = vmatprep.subr.mxu0 0.0
        %5249 = vmatpush1.msra.mxu0 %v1189
        %5250 = vmatprep.subr.mxu0 0.0
        %5251 = vmatpush1.msra.mxu0 %v1190
        %5252 = vmatprep.subr.mxu0 0.0
        %5253 = vmatpush1.msra.mxu0 0.0
        %5254 = vmatprep.subr.mxu0 0.0
        %5255 = vmatpush1.msra.mxu0 0.0
        %5256 = vmatprep.subr.mxu0 0.0
        %5257 = vmatpush1.msra.mxu0 0.0
        %5258 = vmatprep.subr.mxu0 0.0
        %5259 = vmatpush1.msra.mxu0 0.0
        %5260 = vmatprep.subr.mxu0 0.0
        %5261 = vmatpush1.msra.mxu0 0.0
        %5262 = vmatprep.subr.mxu0 0.0
        %5263 = vmatpush1.msra.mxu0 0.0
        %5264 = vmatprep.subr.mxu0 0.0
        %5265 = vmatpush1.msra.mxu0 0.0
        %5266 = vmatprep.subr.mxu0 0.0
        %5267 = vmatpush1.msra.mxu0 0.0
        %5268 = vmatprep.subr.mxu0 0.0
        %5269 = vmatpush1.msra.mxu0 0.0
        %5270 = vmatprep.subr.mxu0 0.0
        %5271 = vmatpush1.msra.mxu0 0.0
        %5272 = vmatprep.subr.mxu0 0.0
        %5273 = vmatpush1.msra.mxu0 0.0
        %5274 = vmatprep.subr.mxu0 0.0
        %5275 = vmatpush1.msra.mxu0 0.0
        %5276 = vmatprep.subr.mxu0 0.0
        %5277 = vmatpush1.msra.mxu0 0.0
        %5278 = vmatprep.subr.mxu0 0.0
        %5279 = vmatpush1.msra.mxu0 0.0
        %5280 = vmatprep.subr.mxu0 0.0
        %5281 = vmatpush1.msra.mxu0 0.0
        %5282 = vmatprep.subr.mxu0 0.0
        %5283 = vmatpush1.msra.mxu0 0.0
        %5284 = vmatprep.mubr.f32.mxu0 0.0
        %5285 = vmatmul.mubr.f32.gmra.mrb[0].mxu0 %v5219
        %v5286 = vpop.f32.mrb[0].mxu0
        %v5287 = vadd.f32 0.0, %v5286
        %v5288 = vpop.f32.mrb[0].mxu0
        %5289 = vdwg.mxu0
        %v5290 = vmul.f32 %v5287, %v5287
        %v5292 = vrot.slane %v5290, 7
        %v5294 = vsub.f32 %v5287, %v5292
        %v5295 = vmax.f32 %v5294, 0.0
        %v5296 = vadd.f32 %v5295, 1e-05
        %v5297 = vrsqrt.pop %v5296
        %v5298 = vld [vmem:[%s5 + $0x4] sm:$0x1]
        %v5299 = vld [vmem:[%s5 + $0x5] sm:$0x1]
        %v5300 = vlaneseq
        %v5301 = vshrl.u32 %v5300, 7
        %v5302 = vsub.s32 0, %v5301
        %v5303 = vrot.slane %v5287, %v5302
        %v5304 = vsub.f32 %v5079, %v5303
        %v5305 = vsub.f32 %v5080, %v5303
        %v5306 = vsub.f32 %v5081, %v5303
        %v5307 = vsub.f32 %v5082, %v5303
        %v5308 = vsub.f32 %v5083, %v5303
        %v5309 = vsub.f32 %v5084, %v5303
        %v5310 = vsub.f32 %v5085, %v5303
        %v5311 = vsub.f32 %v5086, %v5303
        %v5312 = vsub.f32 %v5087, %v5303
        %v5313 = vsub.f32 %v5088, %v5303
        %v5314 = vsub.f32 %v5089, %v5303
        %v5315 = vsub.f32 %v5090, %v5303
        %v5316 = vsub.f32 %v5091, %v5303
        %v5317 = vsub.f32 %v5092, %v5303
        %v5318 = vsub.f32 %v5093, %v5303
        %v5319 = vsub.f32 %v5094, %v5303
        %v5320 = vsub.f32 %v5095, %v5303
        %v5321 = vsub.f32 %v5096, %v5303
        %v5322 = vsub.f32 %v5097, %v5303
        %v5323 = vsub.f32 %v5098, %v5303
        %v5324 = vsub.f32 %v5099, %v5303
        %v5325 = vsub.f32 %v5100, %v5303
        %v5326 = vsub.f32 %v5101, %v5303
        %v5327 = vsub.f32 %v5102, %v5303
        %v5328 = vsub.f32 %v5103, %v5303
        %v5329 = vsub.f32 %v5104, %v5303
        %v5330 = vsub.f32 %v5105, %v5303
        %v5331 = vsub.f32 %v5106, %v5303
        %v5332 = vsub.f32 %v5107, %v5303
        %v5333 = vsub.f32 %v5108, %v5303
        %v5334 = vsub.f32 %v5109, %v5303
        %v5335 = vsub.f32 %v5110, %v5303
        %v5336 = vlaneseq
        %v5337 = vshrl.u32 %v5336, 7
        %v5338 = vsub.s32 1, %v5337
        %v5339 = vrot.slane %v5297, %v5338
        %v5340 = vmul.f32 %v5304, %v5339
        %v5341 = vmul.f32 %v5305, %v5339
        %v5342 = vmul.f32 %v5306, %v5339
        %v5343 = vmul.f32 %v5307, %v5339
        %v5344 = vmul.f32 %v5308, %v5339
        %v5345 = vmul.f32 %v5309, %v5339
        %v5346 = vmul.f32 %v5310, %v5339
        %v5347 = vmul.f32 %v5311, %v5339
        %v5348 = vmul.f32 %v5312, %v5339
        %v5349 = vmul.f32 %v5313, %v5339
        %v5350 = vmul.f32 %v5314, %v5339
        %v5351 = vmul.f32 %v5315, %v5339
        %v5352 = vmul.f32 %v5316, %v5339
        %v5353 = vmul.f32 %v5317, %v5339
        %v5354 = vmul.f32 %v5318, %v5339
        %v5355 = vmul.f32 %v5319, %v5339
        %v5356 = vmul.f32 %v5320, %v5339
        %v5357 = vmul.f32 %v5321, %v5339
        %v5358 = vmul.f32 %v5322, %v5339
        %v5359 = vmul.f32 %v5323, %v5339
        %v5360 = vmul.f32 %v5324, %v5339
        %v5361 = vmul.f32 %v5325, %v5339
        %v5362 = vmul.f32 %v5326, %v5339
        %v5363 = vmul.f32 %v5327, %v5339
        %v5364 = vmul.f32 %v5328, %v5339
        %v5365 = vmul.f32 %v5329, %v5339
        %v5366 = vmul.f32 %v5330, %v5339
        %v5367 = vmul.f32 %v5331, %v5339
        %v5368 = vmul.f32 %v5332, %v5339
        %v5369 = vmul.f32 %v5333, %v5339
        %v5370 = vmul.f32 %v5334, %v5339
        %v5371 = vmul.f32 %v5335, %v5339
        %v5372 = vlaneseq
        %v5373 = vshrl.u32 %v5372, 7
        %v5374 = vsub.s32 0, %v5373
        %v5375 = vrot.slane %v5298, %v5374
        %v5376 = vmul.f32 %v5340, %v5375
        %v5377 = vmul.f32 %v5341, %v5375
        %v5378 = vmul.f32 %v5342, %v5375
        %v5379 = vmul.f32 %v5343, %v5375
        %v5380 = vmul.f32 %v5344, %v5375
        %v5381 = vmul.f32 %v5345, %v5375
        %v5382 = vmul.f32 %v5346, %v5375
        %v5383 = vmul.f32 %v5347, %v5375
        %v5384 = vmul.f32 %v5348, %v5375
        %v5385 = vmul.f32 %v5349, %v5375
        %v5386 = vmul.f32 %v5350, %v5375
        %v5387 = vmul.f32 %v5351, %v5375
        %v5388 = vmul.f32 %v5352, %v5375
        %v5389 = vmul.f32 %v5353, %v5375
        %v5390 = vmul.f32 %v5354, %v5375
        %v5391 = vmul.f32 %v5355, %v5375
        %v5392 = vmul.f32 %v5356, %v5375
        %v5393 = vmul.f32 %v5357, %v5375
        %v5394 = vmul.f32 %v5358, %v5375
        %v5395 = vmul.f32 %v5359, %v5375
        %v5396 = vmul.f32 %v5360, %v5375
        %v5397 = vmul.f32 %v5361, %v5375
        %v5398 = vmul.f32 %v5362, %v5375
        %v5399 = vmul.f32 %v5363, %v5375
        %v5400 = vmul.f32 %v5364, %v5375
        %v5401 = vmul.f32 %v5365, %v5375
        %v5402 = vmul.f32 %v5366, %v5375
        %v5403 = vmul.f32 %v5367, %v5375
        %v5404 = vmul.f32 %v5368, %v5375
        %v5405 = vmul.f32 %v5369, %v5375
        %v5406 = vmul.f32 %v5370, %v5375
        %v5407 = vmul.f32 %v5371, %v5375
        %v5408 = vlaneseq
        %v5409 = vshrl.u32 %v5408, 7
        %v5410 = vsub.s32 0, %v5409
        %v5411 = vrot.slane %v5299, %v5410
        %v5412 = vadd.f32 %v5376, %v5411
        %v5413 = vadd.f32 %v5377, %v5411
        %v5414 = vadd.f32 %v5378, %v5411
        %v5415 = vadd.f32 %v5379, %v5411
        %v5416 = vadd.f32 %v5380, %v5411
        %v5417 = vadd.f32 %v5381, %v5411
        %v5418 = vadd.f32 %v5382, %v5411
        %v5419 = vadd.f32 %v5383, %v5411
        %v5420 = vadd.f32 %v5384, %v5411
        %v5421 = vadd.f32 %v5385, %v5411
        %v5422 = vadd.f32 %v5386, %v5411
        %v5423 = vadd.f32 %v5387, %v5411
        %v5424 = vadd.f32 %v5388, %v5411
        %v5425 = vadd.f32 %v5389, %v5411
        %v5426 = vadd.f32 %v5390, %v5411
        %v5427 = vadd.f32 %v5391, %v5411
        %v5428 = vadd.f32 %v5392, %v5411
        %v5429 = vadd.f32 %v5393, %v5411
        %v5430 = vadd.f32 %v5394, %v5411
        %v5431 = vadd.f32 %v5395, %v5411
        %v5432 = vadd.f32 %v5396, %v5411
        %v5433 = vadd.f32 %v5397, %v5411
        %v5434 = vadd.f32 %v5398, %v5411
        %v5435 = vadd.f32 %v5399, %v5411
        %v5436 = vadd.f32 %v5400, %v5411
        %v5437 = vadd.f32 %v5401, %v5411
        %v5438 = vadd.f32 %v5402, %v5411
        %v5439 = vadd.f32 %v5403, %v5411
        %v5440 = vadd.f32 %v5404, %v5411
        %v5441 = vadd.f32 %v5405, %v5411
        %v5442 = vadd.f32 %v5406, %v5411
        %v5443 = vadd.f32 %v5407, %v5411
        %v5444 = vmax.f32 %v5412, 0.0
        %v5445 = vmax.f32 %v5413, 0.0
        %v5446 = vmax.f32 %v5414, 0.0
        %v5447 = vmax.f32 %v5415, 0.0
        %v5448 = vmax.f32 %v5416, 0.0
        %v5449 = vmax.f32 %v5417, 0.0
        %v5450 = vmax.f32 %v5418, 0.0
        %v5451 = vmax.f32 %v5419, 0.0
        %v5452 = vmax.f32 %v5420, 0.0
        %v5453 = vmax.f32 %v5421, 0.0
        %v5454 = vmax.f32 %v5422, 0.0
        %v5455 = vmax.f32 %v5423, 0.0
        %v5456 = vmax.f32 %v5424, 0.0
        %v5457 = vmax.f32 %v5425, 0.0
        %v5458 = vmax.f32 %v5426, 0.0
        %v5459 = vmax.f32 %v5427, 0.0
        %v5460 = vmax.f32 %v5428, 0.0
        %v5461 = vmax.f32 %v5429, 0.0
        %v5462 = vmax.f32 %v5430, 0.0
        %v5463 = vmax.f32 %v5431, 0.0
        %v5464 = vmax.f32 %v5432, 0.0
        %v5465 = vmax.f32 %v5433, 0.0
        %v5466 = vmax.f32 %v5434, 0.0
        %v5467 = vmax.f32 %v5435, 0.0
        %v5468 = vmax.f32 %v5436, 0.0
        %v5469 = vmax.f32 %v5437, 0.0
        %v5470 = vmax.f32 %v5438, 0.0
        %v5471 = vmax.f32 %v5439, 0.0
        %v5472 = vmax.f32 %v5440, 0.0
        %v5473 = vmax.f32 %v5441, 0.0
        %v5474 = vmax.f32 %v5442, 0.0
        %v5475 = vmax.f32 %v5443, 0.0
        %v5476 = vpack.c.bf16 %v5445, %v5444
        %v5477 = vpack.c.bf16 %v5447, %v5446
        %v5478 = vpack.c.bf16 %v5449, %v5448
        %v5479 = vpack.c.bf16 %v5451, %v5450
        %v5480 = vpack.c.bf16 %v5453, %v5452
        %v5481 = vpack.c.bf16 %v5455, %v5454
        %v5482 = vpack.c.bf16 %v5457, %v5456
        %v5483 = vpack.c.bf16 %v5459, %v5458
        %v5484 = vpack.c.bf16 %v5461, %v5460
        %v5485 = vpack.c.bf16 %v5463, %v5462
        %v5486 = vpack.c.bf16 %v5465, %v5464
        %v5487 = vpack.c.bf16 %v5467, %v5466
        %v5488 = vpack.c.bf16 %v5469, %v5468
        %v5489 = vpack.c.bf16 %v5471, %v5470
        %v5490 = vpack.c.bf16 %v5473, %v5472
        %v5491 = vpack.c.bf16 %v5475, %v5474
        %v5492 = vld [vmem:[#allocation8] sm:$0xf]
        %v5493 = vld [vmem:[#allocation8 + $0x4] sm:$0xf]
        %v5494 = vld [vmem:[#allocation8 + $0x8] sm:$0xf]
        %v5495 = vld [vmem:[#allocation8 + $0xc] sm:$0xf]
        %v5496 = vld [vmem:[#allocation8 + $0x10] sm:$0xf]
        %v5497 = vld [vmem:[#allocation8 + $0x14] sm:$0xf]
        %v5498 = vld [vmem:[#allocation8 + $0x18] sm:$0xf]
        %v5499 = vld [vmem:[#allocation8 + $0x1c] sm:$0xf]
        %v5500 = vld [vmem:[#allocation8 + $0x20] sm:$0xf]
        %v5501 = vld [vmem:[#allocation8 + $0x24] sm:$0xf]
        %v5502 = vld [vmem:[#allocation8 + $0x28] sm:$0xf]
        %v5503 = vld [vmem:[#allocation8 + $0x2c] sm:$0xf]
        %v5504 = vld [vmem:[#allocation8 + $0x30] sm:$0xf]
        %v5505 = vld [vmem:[#allocation8 + $0x34] sm:$0xf]
        %v5506 = vld [vmem:[#allocation8 + $0x38] sm:$0xf]
        %v5507 = vld [vmem:[#allocation8 + $0x3c] sm:$0xf]
        %v5524 = vunpack.c.l.b16 %v5492
        %v5525 = vunpack.c.l.b16 %v5493
        %v5526 = vunpack.c.l.b16 %v5494
        %v5527 = vunpack.c.l.b16 %v5495
        %v5528 = vunpack.c.l.b16 %v5496
        %v5529 = vunpack.c.l.b16 %v5497
        %v5530 = vunpack.c.l.b16 %v5498
        %v5531 = vunpack.c.l.b16 %v5499
        %v5532 = vunpack.c.l.b16 %v5500
        %v5533 = vunpack.c.l.b16 %v5501
        %v5534 = vunpack.c.l.b16 %v5502
        %v5535 = vunpack.c.l.b16 %v5503
        %v5536 = vunpack.c.l.b16 %v5504
        %v5537 = vunpack.c.l.b16 %v5505
        %v5538 = vunpack.c.l.b16 %v5506
        %v5539 = vunpack.c.l.b16 %v5507
        %v5540 = vpack.c.b16 %v5525, %v5524
        %v5541 = vpack.c.b16 %v5527, %v5526
        %v5542 = vpack.c.b16 %v5529, %v5528
        %v5543 = vpack.c.b16 %v5531, %v5530
        %v5544 = vpack.c.b16 %v5533, %v5532
        %v5545 = vpack.c.b16 %v5535, %v5534
        %v5546 = vpack.c.b16 %v5537, %v5536
        %v5547 = vpack.c.b16 %v5539, %v5538
        %5556 = vmatprep.subr.bf16.mxu0 0
        %5557 = vmatpush1.bf16.msra.mxu0 %v5540
        %5558 = vmatprep.subr.bf16.mxu0 0
        %5559 = vmatpush1.bf16.msra.mxu0 %v5541
        %5560 = vmatprep.subr.bf16.mxu0 0
        %5561 = vmatpush1.bf16.msra.mxu0 %v5542
        %5562 = vmatprep.subr.bf16.mxu0 0
        %5563 = vmatpush1.bf16.msra.mxu0 %v5543
        %5564 = vmatprep.subr.bf16.mxu0 0
        %5565 = vmatpush1.bf16.msra.mxu0 %v5544
        %5566 = vmatprep.subr.bf16.mxu0 0
        %5567 = vmatpush1.bf16.msra.mxu0 %v5545
        %5568 = vmatprep.subr.bf16.mxu0 0
        %5569 = vmatpush1.bf16.msra.mxu0 %v5546
        %5570 = vmatprep.subr.bf16.mxu0 0
        %5571 = vmatpush1.bf16.msra.mxu0 %v5547
        %5572 = vmatprep.subr.bf16.mxu0 0
        %5573 = vmatpush1.bf16.msra.mxu0 0
        %5574 = vmatprep.subr.bf16.mxu0 0
        %5575 = vmatpush1.bf16.msra.mxu0 0
        %5576 = vmatprep.subr.bf16.mxu0 0
        %5577 = vmatpush1.bf16.msra.mxu0 0
        %5578 = vmatprep.subr.bf16.mxu0 0
        %5579 = vmatpush1.bf16.msra.mxu0 0
        %5580 = vmatprep.subr.bf16.mxu0 0
        %5581 = vmatpush1.bf16.msra.mxu0 0
        %5582 = vmatprep.subr.bf16.mxu0 0
        %5583 = vmatpush1.bf16.msra.mxu0 0
        %5584 = vmatprep.subr.bf16.mxu0 0
        %5585 = vmatpush1.bf16.msra.mxu0 0
        %5586 = vmatprep.subr.bf16.mxu0 0
        %5587 = vmatpush1.bf16.msra.mxu0 0
        %5588 = vmatprep.mubr.bf16.mxu0 0
        %5589 = vmatmul.mubr.bf16.gmra.mrb[0].mxu0 %v5476
        %v5590 = vpop.f32.mrb[0].mxu0
        %v5591 = vadd.f32 %v1672, %v5590
        %v5592 = vpop.f32.mrb[0].mxu0
        %v5593 = vpop.f32.mrb[0].mxu0
        %v5594 = vadd.f32 %v1675, %v5593
        %v5595 = vpop.f32.mrb[0].mxu0
        %5596 = vmatprep.mubr.bf16.mxu0 0
        %5597 = vmatmul.mubr.bf16.gmra.mrb[0].mxu0 %v5477
        %v5598 = vpop.f32.mrb[0].mxu0
        %v5599 = vadd.f32 %v1680, %v5598
        %v5600 = vpop.f32.mrb[0].mxu0
        %v5601 = vpop.f32.mrb[0].mxu0
        %v5602 = vadd.f32 %v1683, %v5601
        %v5603 = vpop.f32.mrb[0].mxu0
        %5604 = vmatprep.mubr.bf16.mxu0 0
        %5605 = vmatmul.mubr.bf16.gmra.mrb[0].mxu0 %v5478
        %v5606 = vpop.f32.mrb[0].mxu0
        %v5607 = vadd.f32 %v1688, %v5606
        %v5608 = vpop.f32.mrb[0].mxu0
        %v5609 = vpop.f32.mrb[0].mxu0
        %v5610 = vadd.f32 %v1691, %v5609
        %v5611 = vpop.f32.mrb[0].mxu0
        %5612 = vmatprep.mubr.bf16.mxu0 0
        %5613 = vmatmul.mubr.bf16.gmra.mrb[0].mxu0 %v5479
        %v5614 = vpop.f32.mrb[0].mxu0
        %v5615 = vadd.f32 %v1696, %v5614
        %v5616 = vpop.f32.mrb[0].mxu0
        %v5617 = vpop.f32.mrb[0].mxu0
        %v5618 = vadd.f32 %v1699, %v5617
        %v5619 = vpop.f32.mrb[0].mxu0
        %5620 = vmatprep.mubr.bf16.mxu0 0
        %5621 = vmatmul.mubr.bf16.gmra.mrb[0].mxu0 %v5480
        %v5622 = vpop.f32.mrb[0].mxu0
        %v5623 = vadd.f32 %v1704, %v5622
        %v5624 = vpop.f32.mrb[0].mxu0
        %v5625 = vpop.f32.mrb[0].mxu0
        %v5626 = vadd.f32 %v1707, %v5625
        %v5627 = vpop.f32.mrb[0].mxu0
        %5628 = vmatprep.mubr.bf16.mxu0 0
        %5629 = vmatmul.mubr.bf16.gmra.mrb[0].mxu0 %v5481
        %v5630 = vpop.f32.mrb[0].mxu0
        %v5631 = vadd.f32 %v1712, %v5630
        %v5632 = vpop.f32.mrb[0].mxu0
        %v5633 = vpop.f32.mrb[0].mxu0
        %v5634 = vadd.f32 %v1715, %v5633
        %v5635 = vpop.f32.mrb[0].mxu0
        %5636 = vmatprep.mubr.bf16.mxu0 0
        %5637 = vmatmul.mubr.bf16.gmra.mrb[0].mxu0 %v5482
        %v5638 = vpop.f32.mrb[0].mxu0
        %v5639 = vadd.f32 %v1720, %v5638
        %v5640 = vpop.f32.mrb[0].mxu0
        %v5641 = vpop.f32.mrb[0].mxu0
        %v5642 = vadd.f32 %v1723, %v5641
        %v5643 = vpop.f32.mrb[0].mxu0
        %5644 = vmatprep.mubr.bf16.mxu0 0
        %5645 = vmatmul.mubr.bf16.gmra.mrb[0].mxu0 %v5483
        %v5646 = vpop.f32.mrb[0].mxu0
        %v5647 = vadd.f32 %v1728, %v5646
        %v5648 = vpop.f32.mrb[0].mxu0
        %v5649 = vpop.f32.mrb[0].mxu0
        %v5650 = vadd.f32 %v1731, %v5649
        %v5651 = vpop.f32.mrb[0].mxu0
        %5652 = vmatprep.mubr.bf16.mxu0 0
        %5653 = vmatmul.mubr.bf16.gmra.mrb[0].mxu0 %v5484
        %v5654 = vpop.f32.mrb[0].mxu0
        %v5655 = vadd.f32 %v1736, %v5654
        %v5656 = vpop.f32.mrb[0].mxu0
        %v5657 = vpop.f32.mrb[0].mxu0
        %v5658 = vadd.f32 %v1739, %v5657
        %v5659 = vpop.f32.mrb[0].mxu0
        %5660 = vmatprep.mubr.bf16.mxu0 0
        %5661 = vmatmul.mubr.bf16.gmra.mrb[0].mxu0 %v5485
        %v5662 = vpop.f32.mrb[0].mxu0
        %v5663 = vadd.f32 %v1744, %v5662
        %v5664 = vpop.f32.mrb[0].mxu0
        %v5665 = vpop.f32.mrb[0].mxu0
        %v5666 = vadd.f32 %v1747, %v5665
        %v5667 = vpop.f32.mrb[0].mxu0
        %5668 = vmatprep.mubr.bf16.mxu0 0
        %5669 = vmatmul.mubr.bf16.gmra.mrb[0].mxu0 %v5486
        %v5670 = vpop.f32.mrb[0].mxu0
        %v5671 = vadd.f32 %v1752, %v5670
        %v5672 = vpop.f32.mrb[0].mxu0
        %v5673 = vpop.f32.mrb[0].mxu0
        %v5674 = vadd.f32 %v1755, %v5673
        %v5675 = vpop.f32.mrb[0].mxu0
        %5676 = vmatprep.mubr.bf16.mxu0 0
        %5677 = vmatmul.mubr.bf16.gmra.mrb[0].mxu0 %v5487
        %v5678 = vpop.f32.mrb[0].mxu0
        %v5679 = vadd.f32 %v1760, %v5678
        %v5680 = vpop.f32.mrb[0].mxu0
        %v5681 = vpop.f32.mrb[0].mxu0
        %v5682 = vadd.f32 %v1763, %v5681
        %v5683 = vpop.f32.mrb[0].mxu0
        %5684 = vmatprep.mubr.bf16.mxu0 0
        %5685 = vmatmul.mubr.bf16.gmra.mrb[0].mxu0 %v5488
        %v5686 = vpop.f32.mrb[0].mxu0
        %v5687 = vadd.f32 %v1768, %v5686
        %v5688 = vpop.f32.mrb[0].mxu0
        %v5689 = vpop.f32.mrb[0].mxu0
        %v5690 = vadd.f32 %v1771, %v5689
        %v5691 = vpop.f32.mrb[0].mxu0
        %5692 = vmatprep.mubr.bf16.mxu0 0
        %5693 = vmatmul.mubr.bf16.gmra.mrb[0].mxu0 %v5489
        %v5694 = vpop.f32.mrb[0].mxu0
        %v5695 = vadd.f32 %v1776, %v5694
        %v5696 = vpop.f32.mrb[0].mxu0
        %v5697 = vpop.f32.mrb[0].mxu0
        %v5698 = vadd.f32 %v1779, %v5697
        %v5699 = vpop.f32.mrb[0].mxu0
        %5700 = vmatprep.mubr.bf16.mxu0 0
        %5701 = vmatmul.mubr.bf16.gmra.mrb[0].mxu0 %v5490
        %v5702 = vpop.f32.mrb[0].mxu0
        %v5703 = vadd.f32 %v1784, %v5702
        %v5704 = vpop.f32.mrb[0].mxu0
        %v5705 = vpop.f32.mrb[0].mxu0
        %v5706 = vadd.f32 %v1787, %v5705
        %v5707 = vpop.f32.mrb[0].mxu0
        %5708 = vmatprep.mubr.bf16.mxu0 0
        %5709 = vmatmul.mubr.bf16.gmra.mrb[0].mxu0 %v5491
        %v5710 = vpop.f32.mrb[0].mxu0
        %v5711 = vadd.f32 %v1792, %v5710
        %v5712 = vpop.f32.mrb[0].mxu0
        %v5713 = vpop.f32.mrb[0].mxu0
        %v5714 = vadd.f32 %v1795, %v5713
        %v5715 = vpop.f32.mrb[0].mxu0
        %5716 = vdwg.mxu0
        %v5717 = vadd.f32 %v5591, %v5594
        %v5718 = vadd.f32 %v5717, %v5599
        %v5719 = vadd.f32 %v5718, %v5602
        %v5720 = vadd.f32 %v5719, %v5607
        %v5721 = vadd.f32 %v5720, %v5610
        %v5722 = vadd.f32 %v5721, %v5615
        %v5723 = vadd.f32 %v5722, %v5618
        %v5724 = vadd.f32 %v5723, %v5623
        %v5725 = vadd.f32 %v5724, %v5626
        %v5726 = vadd.f32 %v5725, %v5631
        %v5727 = vadd.f32 %v5726, %v5634
        %v5728 = vadd.f32 %v5727, %v5639
        %v5729 = vadd.f32 %v5728, %v5642
        %v5730 = vadd.f32 %v5729, %v5647
        %v5731 = vadd.f32 %v5730, %v5650
        %v5732 = vadd.f32 %v5731, %v5655
        %v5733 = vadd.f32 %v5732, %v5658
        %v5734 = vadd.f32 %v5733, %v5663
        %v5735 = vadd.f32 %v5734, %v5666
        %v5736 = vadd.f32 %v5735, %v5671
        %v5737 = vadd.f32 %v5736, %v5674
        %v5738 = vadd.f32 %v5737, %v5679
        %v5739 = vadd.f32 %v5738, %v5682
        %v5740 = vadd.f32 %v5739, %v5687
        %v5741 = vadd.f32 %v5740, %v5690
        %v5742 = vadd.f32 %v5741, %v5695
        %v5743 = vadd.f32 %v5742, %v5698
        %v5744 = vadd.f32 %v5743, %v5703
        %v5745 = vadd.f32 %v5744, %v5706
        %v5746 = vadd.f32 %v5745, %v5711
        %v5747 = vadd.f32 %v5746, %v5714
        %v5748 = vrot.slane %v5747, 4
        %v5749 = vadd.f32 %v5747, %v5748
        %v5750 = vrot.slane %v5749, 2
        %v5751 = vadd.f32 %v5749, %v5750
        %v5752 = vrot.slane %v5751, 1
        %v5753 = vadd.f32 %v5751, %v5752
        %v5754 = vmul.f32 %v5753, 0.00390625
        %v5755 = vmul.f32 %v5591, %v5591
        %v5756 = vmul.f32 %v5594, %v5594
        %v5757 = vmul.f32 %v5599, %v5599
        %v5758 = vmul.f32 %v5602, %v5602
        %v5759 = vmul.f32 %v5607, %v5607
        %v5760 = vmul.f32 %v5610, %v5610
        %v5761 = vmul.f32 %v5615, %v5615
        %v5762 = vmul.f32 %v5618, %v5618
        %v5763 = vmul.f32 %v5623, %v5623
        %v5764 = vmul.f32 %v5626, %v5626
        %v5765 = vmul.f32 %v5631, %v5631
        %v5766 = vmul.f32 %v5634, %v5634
        %v5767 = vmul.f32 %v5639, %v5639
        %v5768 = vmul.f32 %v5642, %v5642
        %v5769 = vmul.f32 %v5647, %v5647
        %v5770 = vmul.f32 %v5650, %v5650
        %v5771 = vmul.f32 %v5655, %v5655
        %v5772 = vmul.f32 %v5658, %v5658
        %v5773 = vmul.f32 %v5663, %v5663
        %v5774 = vmul.f32 %v5666, %v5666
        %v5775 = vmul.f32 %v5671, %v5671
        %v5776 = vmul.f32 %v5674, %v5674
        %v5777 = vmul.f32 %v5679, %v5679
        %v5778 = vmul.f32 %v5682, %v5682
        %v5779 = vmul.f32 %v5687, %v5687
        %v5780 = vmul.f32 %v5690, %v5690
        %v5781 = vmul.f32 %v5695, %v5695
        %v5782 = vmul.f32 %v5698, %v5698
        %v5783 = vmul.f32 %v5703, %v5703
        %v5784 = vmul.f32 %v5706, %v5706
        %v5785 = vmul.f32 %v5711, %v5711
        %v5786 = vmul.f32 %v5714, %v5714
        %v5787 = vadd.f32 %v5755, %v5756
        %v5788 = vadd.f32 %v5787, %v5757
        %v5789 = vadd.f32 %v5788, %v5758
        %v5790 = vadd.f32 %v5789, %v5759
        %v5791 = vadd.f32 %v5790, %v5760
        %v5792 = vadd.f32 %v5791, %v5761
        %v5793 = vadd.f32 %v5792, %v5762
        %v5794 = vadd.f32 %v5793, %v5763
        %v5795 = vadd.f32 %v5794, %v5764
        %v5796 = vadd.f32 %v5795, %v5765
        %v5797 = vadd.f32 %v5796, %v5766
        %v5798 = vadd.f32 %v5797, %v5767
        %v5799 = vadd.f32 %v5798, %v5768
        %v5800 = vadd.f32 %v5799, %v5769
        %v5801 = vadd.f32 %v5800, %v5770
        %v5802 = vadd.f32 %v5801, %v5771
        %v5803 = vadd.f32 %v5802, %v5772
        %v5804 = vadd.f32 %v5803, %v5773
        %v5805 = vadd.f32 %v5804, %v5774
        %v5806 = vadd.f32 %v5805, %v5775
        %v5807 = vadd.f32 %v5806, %v5776
        %v5808 = vadd.f32 %v5807, %v5777
        %v5809 = vadd.f32 %v5808, %v5778
        %v5810 = vadd.f32 %v5809, %v5779
        %v5811 = vadd.f32 %v5810, %v5780
        %v5812 = vadd.f32 %v5811, %v5781
        %v5813 = vadd.f32 %v5812, %v5782
        %v5814 = vadd.f32 %v5813, %v5783
        %v5815 = vadd.f32 %v5814, %v5784
        %v5816 = vadd.f32 %v5815, %v5785
        %v5817 = vadd.f32 %v5816, %v5786
        %v5818 = vrot.slane %v5817, 4
        %v5819 = vadd.f32 %v5817, %v5818
        %v5820 = vrot.slane %v5819, 2
        %v5821 = vadd.f32 %v5819, %v5820
        %v5822 = vrot.slane %v5821, 1
        %v5823 = vadd.f32 %v5821, %v5822
        %v5824 = vmul.f32 %v5823, 0.00390625
        %v5825 = vsel %vm1299, %v5754, %v5824
        %5826 = vmatprep.subr.mxu0 0.0
        %5827 = vmatpush1.msra.mxu0 %v1175
        %5828 = vmatprep.subr.mxu0 0.0
        %5829 = vmatpush1.msra.mxu0 %v1176
        %5830 = vmatprep.subr.mxu0 0.0
        %5831 = vmatpush1.msra.mxu0 %v1177
        %5832 = vmatprep.subr.mxu0 0.0
        %5833 = vmatpush1.msra.mxu0 %v1178
        %5834 = vmatprep.subr.mxu0 0.0
        %5835 = vmatpush1.msra.mxu0 %v1179
        %5836 = vmatprep.subr.mxu0 0.0
        %5837 = vmatpush1.msra.mxu0 %v1180
        %5838 = vmatprep.subr.mxu0 0.0
        %5839 = vmatpush1.msra.mxu0 %v1181
        %5840 = vmatprep.subr.mxu0 0.0
        %5841 = vmatpush1.msra.mxu0 %v1182
        %5842 = vmatprep.subr.mxu0 0.0
        %5843 = vmatpush1.msra.mxu0 %v1183
        %5844 = vmatprep.subr.mxu0 0.0
        %5845 = vmatpush1.msra.mxu0 %v1184
        %5846 = vmatprep.subr.mxu0 0.0
        %5847 = vmatpush1.msra.mxu0 %v1185
        %5848 = vmatprep.subr.mxu0 0.0
        %5849 = vmatpush1.msra.mxu0 %v1186
        %5850 = vmatprep.subr.mxu0 0.0
        %5851 = vmatpush1.msra.mxu0 %v1187
        %5852 = vmatprep.subr.mxu0 0.0
        %5853 = vmatpush1.msra.mxu0 %v1188
        %5854 = vmatprep.subr.mxu0 0.0
        %5855 = vmatpush1.msra.mxu0 %v1189
        %5856 = vmatprep.subr.mxu0 0.0
        %5857 = vmatpush1.msra.mxu0 %v1190
        %5858 = vmatprep.subr.mxu0 0.0
        %5859 = vmatpush1.msra.mxu0 0.0
        %5860 = vmatprep.subr.mxu0 0.0
        %5861 = vmatpush1.msra.mxu0 0.0
        %5862 = vmatprep.subr.mxu0 0.0
        %5863 = vmatpush1.msra.mxu0 0.0
        %5864 = vmatprep.subr.mxu0 0.0
        %5865 = vmatpush1.msra.mxu0 0.0
        %5866 = vmatprep.subr.mxu0 0.0
        %5867 = vmatpush1.msra.mxu0 0.0
        %5868 = vmatprep.subr.mxu0 0.0
        %5869 = vmatpush1.msra.mxu0 0.0
        %5870 = vmatprep.subr.mxu0 0.0
        %5871 = vmatpush1.msra.mxu0 0.0
        %5872 = vmatprep.subr.mxu0 0.0
        %5873 = vmatpush1.msra.mxu0 0.0
        %5874 = vmatprep.subr.mxu0 0.0
        %5875 = vmatpush1.msra.mxu0 0.0
        %5876 = vmatprep.subr.mxu0 0.0
        %5877 = vmatpush1.msra.mxu0 0.0
        %5878 = vmatprep.subr.mxu0 0.0
        %5879 = vmatpush1.msra.mxu0 0.0
        %5880 = vmatprep.subr.mxu0 0.0
        %5881 = vmatpush1.msra.mxu0 0.0
        %5882 = vmatprep.subr.mxu0 0.0
        %5883 = vmatpush1.msra.mxu0 0.0
        %5884 = vmatprep.subr.mxu0 0.0
        %5885 = vmatpush1.msra.mxu0 0.0
        %5886 = vmatprep.subr.mxu0 0.0
        %5887 = vmatpush1.msra.mxu0 0.0
        %5888 = vmatprep.subr.mxu0 0.0
        %5889 = vmatpush1.msra.mxu0 0.0
        %5890 = vmatprep.mubr.f32.mxu0 0.0
        %5891 = vmatmul.mubr.f32.gmra.mrb[0].mxu0 %v5825
        %v5892 = vpop.f32.mrb[0].mxu0
        %v5893 = vadd.f32 0.0, %v5892
        %v5894 = vpop.f32.mrb[0].mxu0
        %5895 = vdwg.mxu0
        %v5896 = vmul.f32 %v5893, %v5893
        %v5898 = vrot.slane %v5896, 7
        %v5900 = vsub.f32 %v5893, %v5898
        %v5901 = vmax.f32 %v5900, 0.0
        %v5902 = vadd.f32 %v5901, 1e-05
        %v5903 = vrsqrt.pop %v5902
        %v5904 = vld [vmem:[#allocation9] sm:$0x1]
        %v5905 = vld [vmem:[#allocation9 + $0x1] sm:$0x1]
        %v5906 = vlaneseq
        %v5907 = vshrl.u32 %v5906, 7
        %v5908 = vsub.s32 0, %v5907
        %v5909 = vrot.slane %v5893, %v5908
        %v5910 = vsub.f32 %v5591, %v5909
        %v5911 = vsub.f32 %v5594, %v5909
        %v5912 = vsub.f32 %v5599, %v5909
        %v5913 = vsub.f32 %v5602, %v5909
        %v5914 = vsub.f32 %v5607, %v5909
        %v5915 = vsub.f32 %v5610, %v5909
        %v5916 = vsub.f32 %v5615, %v5909
        %v5917 = vsub.f32 %v5618, %v5909
        %v5918 = vsub.f32 %v5623, %v5909
        %v5919 = vsub.f32 %v5626, %v5909
        %v5920 = vsub.f32 %v5631, %v5909
        %v5921 = vsub.f32 %v5634, %v5909
        %v5922 = vsub.f32 %v5639, %v5909
        %v5923 = vsub.f32 %v5642, %v5909
        %v5924 = vsub.f32 %v5647, %v5909
        %v5925 = vsub.f32 %v5650, %v5909
        %v5926 = vsub.f32 %v5655, %v5909
        %v5927 = vsub.f32 %v5658, %v5909
        %v5928 = vsub.f32 %v5663, %v5909
        %v5929 = vsub.f32 %v5666, %v5909
        %v5930 = vsub.f32 %v5671, %v5909
        %v5931 = vsub.f32 %v5674, %v5909
        %v5932 = vsub.f32 %v5679, %v5909
        %v5933 = vsub.f32 %v5682, %v5909
        %v5934 = vsub.f32 %v5687, %v5909
        %v5935 = vsub.f32 %v5690, %v5909
        %v5936 = vsub.f32 %v5695, %v5909
        %v5937 = vsub.f32 %v5698, %v5909
        %v5938 = vsub.f32 %v5703, %v5909
        %v5939 = vsub.f32 %v5706, %v5909
        %v5940 = vsub.f32 %v5711, %v5909
        %v5941 = vsub.f32 %v5714, %v5909
        %v5942 = vlaneseq
        %v5943 = vshrl.u32 %v5942, 7
        %v5944 = vsub.s32 1, %v5943
        %v5945 = vrot.slane %v5903, %v5944
        %v5946 = vmul.f32 %v5910, %v5945
        %v5947 = vmul.f32 %v5911, %v5945
        %v5948 = vmul.f32 %v5912, %v5945
        %v5949 = vmul.f32 %v5913, %v5945
        %v5950 = vmul.f32 %v5914, %v5945
        %v5951 = vmul.f32 %v5915, %v5945
        %v5952 = vmul.f32 %v5916, %v5945
        %v5953 = vmul.f32 %v5917, %v5945
        %v5954 = vmul.f32 %v5918, %v5945
        %v5955 = vmul.f32 %v5919, %v5945
        %v5956 = vmul.f32 %v5920, %v5945
        %v5957 = vmul.f32 %v5921, %v5945
        %v5958 = vmul.f32 %v5922, %v5945
        %v5959 = vmul.f32 %v5923, %v5945
        %v5960 = vmul.f32 %v5924, %v5945
        %v5961 = vmul.f32 %v5925, %v5945
        %v5962 = vmul.f32 %v5926, %v5945
        %v5963 = vmul.f32 %v5927, %v5945
        %v5964 = vmul.f32 %v5928, %v5945
        %v5965 = vmul.f32 %v5929, %v5945
        %v5966 = vmul.f32 %v5930, %v5945
        %v5967 = vmul.f32 %v5931, %v5945
        %v5968 = vmul.f32 %v5932, %v5945
        %v5969 = vmul.f32 %v5933, %v5945
        %v5970 = vmul.f32 %v5934, %v5945
        %v5971 = vmul.f32 %v5935, %v5945
        %v5972 = vmul.f32 %v5936, %v5945
        %v5973 = vmul.f32 %v5937, %v5945
        %v5974 = vmul.f32 %v5938, %v5945
        %v5975 = vmul.f32 %v5939, %v5945
        %v5976 = vmul.f32 %v5940, %v5945
        %v5977 = vmul.f32 %v5941, %v5945
        %v5978 = vlaneseq
        %v5979 = vshrl.u32 %v5978, 7
        %v5980 = vsub.s32 0, %v5979
        %v5981 = vrot.slane %v5904, %v5980
        %v5982 = vmul.f32 %v5946, %v5981
        %v5983 = vmul.f32 %v5947, %v5981
        %v5984 = vmul.f32 %v5948, %v5981
        %v5985 = vmul.f32 %v5949, %v5981
        %v5986 = vmul.f32 %v5950, %v5981
        %v5987 = vmul.f32 %v5951, %v5981
        %v5988 = vmul.f32 %v5952, %v5981
        %v5989 = vmul.f32 %v5953, %v5981
        %v5990 = vmul.f32 %v5954, %v5981
        %v5991 = vmul.f32 %v5955, %v5981
        %v5992 = vmul.f32 %v5956, %v5981
        %v5993 = vmul.f32 %v5957, %v5981
        %v5994 = vmul.f32 %v5958, %v5981
        %v5995 = vmul.f32 %v5959, %v5981
        %v5996 = vmul.f32 %v5960, %v5981
        %v5997 = vmul.f32 %v5961, %v5981
        %v5998 = vmul.f32 %v5962, %v5981
        %v5999 = vmul.f32 %v5963, %v5981
        %v6000 = vmul.f32 %v5964, %v5981
        %v6001 = vmul.f32 %v5965, %v5981
        %v6002 = vmul.f32 %v5966, %v5981
        %v6003 = vmul.f32 %v5967, %v5981
        %v6004 = vmul.f32 %v5968, %v5981
        %v6005 = vmul.f32 %v5969, %v5981
        %v6006 = vmul.f32 %v5970, %v5981
        %v6007 = vmul.f32 %v5971, %v5981
        %v6008 = vmul.f32 %v5972, %v5981
        %v6009 = vmul.f32 %v5973, %v5981
        %v6010 = vmul.f32 %v5974, %v5981
        %v6011 = vmul.f32 %v5975, %v5981
        %v6012 = vmul.f32 %v5976, %v5981
        %v6013 = vmul.f32 %v5977, %v5981
        %v6014 = vlaneseq
        %v6015 = vshrl.u32 %v6014, 7
        %v6016 = vsub.s32 0, %v6015
        %v6017 = vrot.slane %v5905, %v6016
        %v6018 = vadd.f32 %v5982, %v6017
        %v6019 = vadd.f32 %v5983, %v6017
        %v6020 = vadd.f32 %v5984, %v6017
        %v6021 = vadd.f32 %v5985, %v6017
        %v6022 = vadd.f32 %v5986, %v6017
        %v6023 = vadd.f32 %v5987, %v6017
        %v6024 = vadd.f32 %v5988, %v6017
        %v6025 = vadd.f32 %v5989, %v6017
        %v6026 = vadd.f32 %v5990, %v6017
        %v6027 = vadd.f32 %v5991, %v6017
        %v6028 = vadd.f32 %v5992, %v6017
        %v6029 = vadd.f32 %v5993, %v6017
        %v6030 = vadd.f32 %v5994, %v6017
        %v6031 = vadd.f32 %v5995, %v6017
        %v6032 = vadd.f32 %v5996, %v6017
        %v6033 = vadd.f32 %v5997, %v6017
        %v6034 = vadd.f32 %v5998, %v6017
        %v6035 = vadd.f32 %v5999, %v6017
        %v6036 = vadd.f32 %v6000, %v6017
        %v6037 = vadd.f32 %v6001, %v6017
        %v6038 = vadd.f32 %v6002, %v6017
        %v6039 = vadd.f32 %v6003, %v6017
        %v6040 = vadd.f32 %v6004, %v6017
        %v6041 = vadd.f32 %v6005, %v6017
        %v6042 = vadd.f32 %v6006, %v6017
        %v6043 = vadd.f32 %v6007, %v6017
        %v6044 = vadd.f32 %v6008, %v6017
        %v6045 = vadd.f32 %v6009, %v6017
        %v6046 = vadd.f32 %v6010, %v6017
        %v6047 = vadd.f32 %v6011, %v6017
        %v6048 = vadd.f32 %v6012, %v6017
        %v6049 = vadd.f32 %v6013, %v6017
        %v6050 = vmax.f32 %v6018, 0.0
        %v6051 = vmax.f32 %v6019, 0.0
        %v6052 = vmax.f32 %v6020, 0.0
        %v6053 = vmax.f32 %v6021, 0.0
        %v6054 = vmax.f32 %v6022, 0.0
        %v6055 = vmax.f32 %v6023, 0.0
        %v6056 = vmax.f32 %v6024, 0.0
        %v6057 = vmax.f32 %v6025, 0.0
        %v6058 = vmax.f32 %v6026, 0.0
        %v6059 = vmax.f32 %v6027, 0.0
        %v6060 = vmax.f32 %v6028, 0.0
        %v6061 = vmax.f32 %v6029, 0.0
        %v6062 = vmax.f32 %v6030, 0.0
        %v6063 = vmax.f32 %v6031, 0.0
        %v6064 = vmax.f32 %v6032, 0.0
        %v6065 = vmax.f32 %v6033, 0.0
        %v6066 = vmax.f32 %v6034, 0.0
        %v6067 = vmax.f32 %v6035, 0.0
        %v6068 = vmax.f32 %v6036, 0.0
        %v6069 = vmax.f32 %v6037, 0.0
        %v6070 = vmax.f32 %v6038, 0.0
        %v6071 = vmax.f32 %v6039, 0.0
        %v6072 = vmax.f32 %v6040, 0.0
        %v6073 = vmax.f32 %v6041, 0.0
        %v6074 = vmax.f32 %v6042, 0.0
        %v6075 = vmax.f32 %v6043, 0.0
        %v6076 = vmax.f32 %v6044, 0.0
        %v6077 = vmax.f32 %v6045, 0.0
        %v6078 = vmax.f32 %v6046, 0.0
        %v6079 = vmax.f32 %v6047, 0.0
        %v6080 = vmax.f32 %v6048, 0.0
        %v6081 = vmax.f32 %v6049, 0.0
        %v6082 = vpack.c.bf16 %v6051, %v6050
        %v6083 = vpack.c.bf16 %v6053, %v6052
        %v6084 = vpack.c.bf16 %v6055, %v6054
        %v6085 = vpack.c.bf16 %v6057, %v6056
        %v6086 = vpack.c.bf16 %v6059, %v6058
        %v6087 = vpack.c.bf16 %v6061, %v6060
        %v6088 = vpack.c.bf16 %v6063, %v6062
        %v6089 = vpack.c.bf16 %v6065, %v6064
        %v6090 = vpack.c.bf16 %v6067, %v6066
        %v6091 = vpack.c.bf16 %v6069, %v6068
        %v6092 = vpack.c.bf16 %v6071, %v6070
        %v6093 = vpack.c.bf16 %v6073, %v6072
        %v6094 = vpack.c.bf16 %v6075, %v6074
        %v6095 = vpack.c.bf16 %v6077, %v6076
        %v6096 = vpack.c.bf16 %v6079, %v6078
        %v6097 = vpack.c.bf16 %v6081, %v6080
        %v6098 = vld [vmem:[#allocation12] sm:$0xff]
        %v6099 = vld [vmem:[#allocation12 + $0x8] sm:$0xff]
        %v6100 = vld [vmem:[#allocation12 + $0x10] sm:$0xff]
        %v6101 = vld [vmem:[#allocation12 + $0x18] sm:$0xff]
        %v6102 = vld [vmem:[#allocation12 + $0x20] sm:$0xff]
        %v6103 = vld [vmem:[#allocation12 + $0x28] sm:$0xff]
        %v6104 = vld [vmem:[#allocation12 + $0x30] sm:$0xff]
        %v6105 = vld [vmem:[#allocation12 + $0x38] sm:$0xff]
        %v6114 = vunpack.c.l.b16 %v6098
        %v6115 = vunpack.c.h.b16 %v6098
        %v6116 = vunpack.c.l.b16 %v6099
        %v6117 = vunpack.c.h.b16 %v6099
        %v6118 = vunpack.c.l.b16 %v6100
        %v6119 = vunpack.c.h.b16 %v6100
        %v6120 = vunpack.c.l.b16 %v6101
        %v6121 = vunpack.c.h.b16 %v6101
        %v6122 = vunpack.c.l.b16 %v6102
        %v6123 = vunpack.c.h.b16 %v6102
        %v6124 = vunpack.c.l.b16 %v6103
        %v6125 = vunpack.c.h.b16 %v6103
        %v6126 = vunpack.c.l.b16 %v6104
        %v6127 = vunpack.c.h.b16 %v6104
        %v6128 = vunpack.c.l.b16 %v6105
        %v6129 = vunpack.c.h.b16 %v6105
        %v6130 = vpack.c.b16 %v6116, %v6114
        %v6131 = vpack.c.b16 %v6117, %v6115
        %v6132 = vpack.c.b16 %v6120, %v6118
        %v6133 = vpack.c.b16 %v6121, %v6119
        %v6134 = vpack.c.b16 %v6124, %v6122
        %v6135 = vpack.c.b16 %v6125, %v6123
        %v6136 = vpack.c.b16 %v6128, %v6126
        %v6137 = vpack.c.b16 %v6129, %v6127
        %6146 = vmatprep.subr.bf16.mxu0 0
        %6147 = vmatpush1.bf16.msra.mxu0 %v6082
        %6148 = vmatprep.subr.bf16.mxu0 0
        %6149 = vmatpush1.bf16.msra.mxu0 %v6083
        %6150 = vmatprep.subr.bf16.mxu0 0
        %6151 = vmatpush1.bf16.msra.mxu0 %v6084
        %6152 = vmatprep.subr.bf16.mxu0 0
        %6153 = vmatpush1.bf16.msra.mxu0 %v6085
        %6154 = vmatprep.subr.bf16.mxu0 0
        %6155 = vmatpush1.bf16.msra.mxu0 %v6086
        %6156 = vmatprep.subr.bf16.mxu0 0
        %6157 = vmatpush1.bf16.msra.mxu0 %v6087
        %6158 = vmatprep.subr.bf16.mxu0 0
        %6159 = vmatpush1.bf16.msra.mxu0 %v6088
        %6160 = vmatprep.subr.bf16.mxu0 0
        %6161 = vmatpush1.bf16.msra.mxu0 %v6089
        %6162 = vmatprep.subr.bf16.mxu0 0
        %6163 = vmatpush1.bf16.msra.mxu0 %v6090
        %6164 = vmatprep.subr.bf16.mxu0 0
        %6165 = vmatpush1.bf16.msra.mxu0 %v6091
        %6166 = vmatprep.subr.bf16.mxu0 0
        %6167 = vmatpush1.bf16.msra.mxu0 %v6092
        %6168 = vmatprep.subr.bf16.mxu0 0
        %6169 = vmatpush1.bf16.msra.mxu0 %v6093
        %6170 = vmatprep.subr.bf16.mxu0 0
        %6171 = vmatpush1.bf16.msra.mxu0 %v6094
        %6172 = vmatprep.subr.bf16.mxu0 0
        %6173 = vmatpush1.bf16.msra.mxu0 %v6095
        %6174 = vmatprep.subr.bf16.mxu0 0
        %6175 = vmatpush1.bf16.msra.mxu0 %v6096
        %6176 = vmatprep.subr.bf16.mxu0 0
        %6177 = vmatpush1.bf16.msra.mxu0 %v6097
        %6178 = vmatprep.mubr.bf16.mxu0 %v6131
        %6179 = vmatmul.mubr.bf16.gmra.mrb[0].mxu0 %v6130
        %v6180 = vpop.f32.mrb[0].mxu0
        %v6181 = vadd.f32 0.0, %v6180
        %v6182 = vpop.f32.mrb[0].mxu0
        %v6183 = vpop.f32.mrb[0].mxu0
        %v6184 = vadd.f32 0.0, %v6183
        %v6185 = vpop.f32.mrb[0].mxu0
        %6186 = vmatprep.mubr.bf16.mxu0 %v6133
        %6187 = vmatmul.mubr.bf16.gmra.mrb[0].mxu0 %v6132
        %v6188 = vpop.f32.mrb[0].mxu0
        %v6189 = vadd.f32 0.0, %v6188
        %v6190 = vpop.f32.mrb[0].mxu0
        %v6191 = vpop.f32.mrb[0].mxu0
        %v6192 = vadd.f32 0.0, %v6191
        %v6193 = vpop.f32.mrb[0].mxu0
        %6194 = vmatprep.mubr.bf16.mxu0 %v6135
        %6195 = vmatmul.mubr.bf16.gmra.mrb[0].mxu0 %v6134
        %v6196 = vpop.f32.mrb[0].mxu0
        %v6197 = vadd.f32 0.0, %v6196
        %v6198 = vpop.f32.mrb[0].mxu0
        %v6199 = vpop.f32.mrb[0].mxu0
        %v6200 = vadd.f32 0.0, %v6199
        %v6201 = vpop.f32.mrb[0].mxu0
        %6202 = vmatprep.mubr.bf16.mxu0 %v6137
        %6203 = vmatmul.mubr.bf16.gmra.mrb[0].mxu0 %v6136
        %v6204 = vpop.f32.mrb[0].mxu0
        %v6205 = vadd.f32 0.0, %v6204
        %v6206 = vpop.f32.mrb[0].mxu0
        %v6207 = vpop.f32.mrb[0].mxu0
        %v6208 = vadd.f32 0.0, %v6207
        %v6209 = vpop.f32.mrb[0].mxu0
        %6210 = vdwg.mxu0
        %v6211 = vpack.c.bf16 %v6184, %v6181
        %v6212 = vpack.c.bf16 %v6192, %v6189
        %v6213 = vpack.c.bf16 %v6200, %v6197
        %v6214 = vpack.c.bf16 %v6208, %v6205
        %v6215 = vld [vmem:[%s12] sm:$0xff]
        %v6216 = vld [vmem:[%s12 + $0x8] sm:$0xff]
        %v6217 = vld [vmem:[%s12 + $0x10] sm:$0xff]
        %v6218 = vld [vmem:[%s12 + $0x18] sm:$0xff]
        %v6219 = vld [vmem:[%s12 + $0x20] sm:$0xff]
        %v6220 = vld [vmem:[%s12 + $0x28] sm:$0xff]
        %v6221 = vld [vmem:[%s12 + $0x30] sm:$0xff]
        %v6222 = vld [vmem:[%s12 + $0x38] sm:$0xff]
        %v6223 = vld [vmem:[%s12 + $0x40] sm:$0xff]
        %v6224 = vld [vmem:[%s12 + $0x48] sm:$0xff]
        %v6225 = vld [vmem:[%s12 + $0x50] sm:$0xff]
        %v6226 = vld [vmem:[%s12 + $0x58] sm:$0xff]
        %v6227 = vld [vmem:[%s12 + $0x60] sm:$0xff]
        %v6228 = vld [vmem:[%s12 + $0x68] sm:$0xff]
        %v6229 = vld [vmem:[%s12 + $0x70] sm:$0xff]
        %v6230 = vld [vmem:[%s12 + $0x78] sm:$0xff]
        %v6247 = vunpack.c.l.b16 %v6215
        %v6248 = vunpack.c.h.b16 %v6215
        %v6249 = vunpack.c.l.b16 %v6216
        %v6250 = vunpack.c.h.b16 %v6216
        %v6251 = vunpack.c.l.b16 %v6217
        %v6252 = vunpack.c.h.b16 %v6217
        %v6253 = vunpack.c.l.b16 %v6218
        %v6254 = vunpack.c.h.b16 %v6218
        %v6255 = vunpack.c.l.b16 %v6219
        %v6256 = vunpack.c.h.b16 %v6219
        %v6257 = vunpack.c.l.b16 %v6220
        %v6258 = vunpack.c.h.b16 %v6220
        %v6259 = vunpack.c.l.b16 %v6221
        %v6260 = vunpack.c.h.b16 %v6221
        %v6261 = vunpack.c.l.b16 %v6222
        %v6262 = vunpack.c.h.b16 %v6222
        %v6263 = vunpack.c.l.b16 %v6223
        %v6264 = vunpack.c.h.b16 %v6223
        %v6265 = vunpack.c.l.b16 %v6224
        %v6266 = vunpack.c.h.b16 %v6224
        %v6267 = vunpack.c.l.b16 %v6225
        %v6268 = vunpack.c.h.b16 %v6225
        %v6269 = vunpack.c.l.b16 %v6226
        %v6270 = vunpack.c.h.b16 %v6226
        %v6271 = vunpack.c.l.b16 %v6227
        %v6272 = vunpack.c.h.b16 %v6227
        %v6273 = vunpack.c.l.b16 %v6228
        %v6274 = vunpack.c.h.b16 %v6228
        %v6275 = vunpack.c.l.b16 %v6229
        %v6276 = vunpack.c.h.b16 %v6229
        %v6277 = vunpack.c.l.b16 %v6230
        %v6278 = vunpack.c.h.b16 %v6230
        %v6279 = vpack.c.b16 %v6249, %v6247
        %v6280 = vpack.c.b16 %v6250, %v6248
        %v6281 = vpack.c.b16 %v6253, %v6251
        %v6282 = vpack.c.b16 %v6254, %v6252
        %v6283 = vpack.c.b16 %v6257, %v6255
        %v6284 = vpack.c.b16 %v6258, %v6256
        %v6285 = vpack.c.b16 %v6261, %v6259
        %v6286 = vpack.c.b16 %v6262, %v6260
        %v6287 = vpack.c.b16 %v6265, %v6263
        %v6288 = vpack.c.b16 %v6266, %v6264
        %v6289 = vpack.c.b16 %v6269, %v6267
        %v6290 = vpack.c.b16 %v6270, %v6268
        %v6291 = vpack.c.b16 %v6273, %v6271
        %v6292 = vpack.c.b16 %v6274, %v6272
        %v6293 = vpack.c.b16 %v6277, %v6275
        %v6294 = vpack.c.b16 %v6278, %v6276
        %6311 = vmatprep.subr.bf16.mxu0 %v6280
        %6312 = vmatpush1.bf16.msra.mxu0 %v6279
        %6313 = vmatprep.subr.bf16.mxu0 %v6282
        %6314 = vmatpush1.bf16.msra.mxu0 %v6281
        %6315 = vmatprep.subr.bf16.mxu0 %v6284
        %6316 = vmatpush1.bf16.msra.mxu0 %v6283
        %6317 = vmatprep.subr.bf16.mxu0 %v6286
        %6318 = vmatpush1.bf16.msra.mxu0 %v6285
        %6319 = vmatprep.subr.bf16.mxu0 %v6288
        %6320 = vmatpush1.bf16.msra.mxu0 %v6287
        %6321 = vmatprep.subr.bf16.mxu0 %v6290
        %6322 = vmatpush1.bf16.msra.mxu0 %v6289
        %6323 = vmatprep.subr.bf16.mxu0 %v6292
        %6324 = vmatpush1.bf16.msra.mxu0 %v6291
        %6325 = vmatprep.subr.bf16.mxu0 %v6294
        %6326 = vmatpush1.bf16.msra.mxu0 %v6293
        %6327 = vmatprep.subr.bf16.mxu0 0
        %6328 = vmatpush1.bf16.msra.mxu0 0
        %6329 = vmatprep.subr.bf16.mxu0 0
        %6330 = vmatpush1.bf16.msra.mxu0 0
        %6331 = vmatprep.subr.bf16.mxu0 0
        %6332 = vmatpush1.bf16.msra.mxu0 0
        %6333 = vmatprep.subr.bf16.mxu0 0
        %6334 = vmatpush1.bf16.msra.mxu0 0
        %6335 = vmatprep.subr.bf16.mxu0 0
        %6336 = vmatpush1.bf16.msra.mxu0 0
        %6337 = vmatprep.subr.bf16.mxu0 0
        %6338 = vmatpush1.bf16.msra.mxu0 0
        %6339 = vmatprep.subr.bf16.mxu0 0
        %6340 = vmatpush1.bf16.msra.mxu0 0
        %6341 = vmatprep.subr.bf16.mxu0 0
        %6342 = vmatpush1.bf16.msra.mxu0 0
        %6343 = vmatprep.mubr.bf16.mxu0 0
        %6344 = vmatmul.mubr.bf16.gmra.mrb[0].mxu0 %v6211
        %v6345 = vpop.f32.mrb[0].mxu0
        %v6346 = vadd.f32 0.0, %v6345
        %v6347 = vpop.f32.mrb[0].mxu0
        %v6348 = vadd.f32 0.0, %v6347
        %v6349 = vpop.f32.mrb[0].mxu0
        %v6350 = vadd.f32 0.0, %v6349
        %v6351 = vpop.f32.mrb[0].mxu0
        %v6352 = vadd.f32 0.0, %v6351
        %6353 = vmatprep.mubr.bf16.mxu0 0
        %6354 = vmatmul.mubr.bf16.gmra.mrb[0].mxu0 %v6212
        %v6355 = vpop.f32.mrb[0].mxu0
        %v6356 = vadd.f32 0.0, %v6355
        %v6357 = vpop.f32.mrb[0].mxu0
        %v6358 = vadd.f32 0.0, %v6357
        %v6359 = vpop.f32.mrb[0].mxu0
        %v6360 = vadd.f32 0.0, %v6359
        %v6361 = vpop.f32.mrb[0].mxu0
        %v6362 = vadd.f32 0.0, %v6361
        %6363 = vmatprep.mubr.bf16.mxu0 0
        %6364 = vmatmul.mubr.bf16.gmra.mrb[0].mxu0 %v6213
        %v6365 = vpop.f32.mrb[0].mxu0
        %v6366 = vadd.f32 0.0, %v6365
        %v6367 = vpop.f32.mrb[0].mxu0
        %v6368 = vadd.f32 0.0, %v6367
        %v6369 = vpop.f32.mrb[0].mxu0
        %v6370 = vadd.f32 0.0, %v6369
        %v6371 = vpop.f32.mrb[0].mxu0
        %v6372 = vadd.f32 0.0, %v6371
        %6373 = vmatprep.mubr.bf16.mxu0 0
        %6374 = vmatmul.mubr.bf16.gmra.mrb[0].mxu0 %v6214
        %v6375 = vpop.f32.mrb[0].mxu0
        %v6376 = vadd.f32 0.0, %v6375
        %v6377 = vpop.f32.mrb[0].mxu0
        %v6378 = vadd.f32 0.0, %v6377
        %v6379 = vpop.f32.mrb[0].mxu0
        %v6380 = vadd.f32 0.0, %v6379
        %v6381 = vpop.f32.mrb[0].mxu0
        %v6382 = vadd.f32 0.0, %v6381
        %6383 = vdwg.mxu0
        %v6384 = vld [vmem:[#allocation11] sm:$0xf]
        %v6385 = vld [vmem:[#allocation11 + $0x4] sm:$0xf]
        %v6386 = vld [vmem:[#allocation11 + $0x8] sm:$0xf]
        %v6387 = vld [vmem:[#allocation11 + $0xc] sm:$0xf]
        %v6388 = vld [vmem:[#allocation11 + $0x10] sm:$0xf]
        %v6389 = vld [vmem:[#allocation11 + $0x14] sm:$0xf]
        %v6390 = vld [vmem:[#allocation11 + $0x18] sm:$0xf]
        %v6391 = vld [vmem:[#allocation11 + $0x1c] sm:$0xf]
        %v6392 = vld [vmem:[#allocation11 + $0x20] sm:$0xf]
        %v6393 = vld [vmem:[#allocation11 + $0x24] sm:$0xf]
        %v6394 = vld [vmem:[#allocation11 + $0x28] sm:$0xf]
        %v6395 = vld [vmem:[#allocation11 + $0x2c] sm:$0xf]
        %v6396 = vld [vmem:[#allocation11 + $0x30] sm:$0xf]
        %v6397 = vld [vmem:[#allocation11 + $0x34] sm:$0xf]
        %v6398 = vld [vmem:[#allocation11 + $0x38] sm:$0xf]
        %v6399 = vld [vmem:[#allocation11 + $0x3c] sm:$0xf]
        %v6416 = vunpack.c.l.b16 %v6384
        %v6417 = vunpack.c.l.b16 %v6385
        %v6418 = vunpack.c.l.b16 %v6386
        %v6419 = vunpack.c.l.b16 %v6387
        %v6420 = vunpack.c.l.b16 %v6388
        %v6421 = vunpack.c.l.b16 %v6389
        %v6422 = vunpack.c.l.b16 %v6390
        %v6423 = vunpack.c.l.b16 %v6391
        %v6424 = vunpack.c.l.b16 %v6392
        %v6425 = vunpack.c.l.b16 %v6393
        %v6426 = vunpack.c.l.b16 %v6394
        %v6427 = vunpack.c.l.b16 %v6395
        %v6428 = vunpack.c.l.b16 %v6396
        %v6429 = vunpack.c.l.b16 %v6397
        %v6430 = vunpack.c.l.b16 %v6398
        %v6431 = vunpack.c.l.b16 %v6399
        %v6432 = vpack.c.b16 %v6417, %v6416
        %v6433 = vpack.c.b16 %v6419, %v6418
        %v6434 = vpack.c.b16 %v6421, %v6420
        %v6435 = vpack.c.b16 %v6423, %v6422
        %v6436 = vpack.c.b16 %v6425, %v6424
        %v6437 = vpack.c.b16 %v6427, %v6426
        %v6438 = vpack.c.b16 %v6429, %v6428
        %v6439 = vpack.c.b16 %v6431, %v6430
        %6448 = vmatprep.subr.bf16.mxu0 0
        %6449 = vmatpush1.bf16.msra.mxu0 %v6432
        %6450 = vmatprep.subr.bf16.mxu0 0
        %6451 = vmatpush1.bf16.msra.mxu0 %v6433
        %6452 = vmatprep.subr.bf16.mxu0 0
        %6453 = vmatpush1.bf16.msra.mxu0 %v6434
        %6454 = vmatprep.subr.bf16.mxu0 0
        %6455 = vmatpush1.bf16.msra.mxu0 %v6435
        %6456 = vmatprep.subr.bf16.mxu0 0
        %6457 = vmatpush1.bf16.msra.mxu0 %v6436
        %6458 = vmatprep.subr.bf16.mxu0 0
        %6459 = vmatpush1.bf16.msra.mxu0 %v6437
        %6460 = vmatprep.subr.bf16.mxu0 0
        %6461 = vmatpush1.bf16.msra.mxu0 %v6438
        %6462 = vmatprep.subr.bf16.mxu0 0
        %6463 = vmatpush1.bf16.msra.mxu0 %v6439
        %6464 = vmatprep.subr.bf16.mxu0 0
        %6465 = vmatpush1.bf16.msra.mxu0 0
        %6466 = vmatprep.subr.bf16.mxu0 0
        %6467 = vmatpush1.bf16.msra.mxu0 0
        %6468 = vmatprep.subr.bf16.mxu0 0
        %6469 = vmatpush1.bf16.msra.mxu0 0
        %6470 = vmatprep.subr.bf16.mxu0 0
        %6471 = vmatpush1.bf16.msra.mxu0 0
        %6472 = vmatprep.subr.bf16.mxu0 0
        %6473 = vmatpush1.bf16.msra.mxu0 0
        %6474 = vmatprep.subr.bf16.mxu0 0
        %6475 = vmatpush1.bf16.msra.mxu0 0
        %6476 = vmatprep.subr.bf16.mxu0 0
        %6477 = vmatpush1.bf16.msra.mxu0 0
        %6478 = vmatprep.subr.bf16.mxu0 0
        %6479 = vmatpush1.bf16.msra.mxu0 0
        %6480 = vmatprep.mubr.bf16.mxu0 0
        %6481 = vmatmul.mubr.bf16.gmra.mrb[0].mxu0 %v6082
        %v6482 = vpop.f32.mrb[0].mxu0
        %v6483 = vadd.f32 0.0, %v6482
        %v6484 = vpop.f32.mrb[0].mxu0
        %v6485 = vpop.f32.mrb[0].mxu0
        %v6486 = vadd.f32 0.0, %v6485
        %v6487 = vpop.f32.mrb[0].mxu0
        %6488 = vmatprep.mubr.bf16.mxu0 0
        %6489 = vmatmul.mubr.bf16.gmra.mrb[0].mxu0 %v6083
        %v6490 = vpop.f32.mrb[0].mxu0
        %v6491 = vadd.f32 0.0, %v6490
        %v6492 = vpop.f32.mrb[0].mxu0
        %v6493 = vpop.f32.mrb[0].mxu0
        %v6494 = vadd.f32 0.0, %v6493
        %v6495 = vpop.f32.mrb[0].mxu0
        %6496 = vmatprep.mubr.bf16.mxu0 0
        %6497 = vmatmul.mubr.bf16.gmra.mrb[0].mxu0 %v6084
        %v6498 = vpop.f32.mrb[0].mxu0
        %v6499 = vadd.f32 0.0, %v6498
        %v6500 = vpop.f32.mrb[0].mxu0
        %v6501 = vpop.f32.mrb[0].mxu0
        %v6502 = vadd.f32 0.0, %v6501
        %v6503 = vpop.f32.mrb[0].mxu0
        %6504 = vmatprep.mubr.bf16.mxu0 0
        %6505 = vmatmul.mubr.bf16.gmra.mrb[0].mxu0 %v6085
        %v6506 = vpop.f32.mrb[0].mxu0
        %v6507 = vadd.f32 0.0, %v6506
        %v6508 = vpop.f32.mrb[0].mxu0
        %v6509 = vpop.f32.mrb[0].mxu0
        %v6510 = vadd.f32 0.0, %v6509
        %v6511 = vpop.f32.mrb[0].mxu0
        %6512 = vmatprep.mubr.bf16.mxu0 0
        %6513 = vmatmul.mubr.bf16.gmra.mrb[0].mxu0 %v6086
        %v6514 = vpop.f32.mrb[0].mxu0
        %v6515 = vadd.f32 0.0, %v6514
        %v6516 = vpop.f32.mrb[0].mxu0
        %v6517 = vpop.f32.mrb[0].mxu0
        %v6518 = vadd.f32 0.0, %v6517
        %v6519 = vpop.f32.mrb[0].mxu0
        %6520 = vmatprep.mubr.bf16.mxu0 0
        %6521 = vmatmul.mubr.bf16.gmra.mrb[0].mxu0 %v6087
        %v6522 = vpop.f32.mrb[0].mxu0
        %v6523 = vadd.f32 0.0, %v6522
        %v6524 = vpop.f32.mrb[0].mxu0
        %v6525 = vpop.f32.mrb[0].mxu0
        %v6526 = vadd.f32 0.0, %v6525
        %v6527 = vpop.f32.mrb[0].mxu0
        %6528 = vmatprep.mubr.bf16.mxu0 0
        %6529 = vmatmul.mubr.bf16.gmra.mrb[0].mxu0 %v6088
        %v6530 = vpop.f32.mrb[0].mxu0
        %v6531 = vadd.f32 0.0, %v6530
        %v6532 = vpop.f32.mrb[0].mxu0
        %v6533 = vpop.f32.mrb[0].mxu0
        %v6534 = vadd.f32 0.0, %v6533
        %v6535 = vpop.f32.mrb[0].mxu0
        %6536 = vmatprep.mubr.bf16.mxu0 0
        %6537 = vmatmul.mubr.bf16.gmra.mrb[0].mxu0 %v6089
        %v6538 = vpop.f32.mrb[0].mxu0
        %v6539 = vadd.f32 0.0, %v6538
        %v6540 = vpop.f32.mrb[0].mxu0
        %v6541 = vpop.f32.mrb[0].mxu0
        %v6542 = vadd.f32 0.0, %v6541
        %v6543 = vpop.f32.mrb[0].mxu0
        %6544 = vmatprep.mubr.bf16.mxu0 0
        %6545 = vmatmul.mubr.bf16.gmra.mrb[0].mxu0 %v6090
        %v6546 = vpop.f32.mrb[0].mxu0
        %v6547 = vadd.f32 0.0, %v6546
        %v6548 = vpop.f32.mrb[0].mxu0
        %v6549 = vpop.f32.mrb[0].mxu0
        %v6550 = vadd.f32 0.0, %v6549
        %v6551 = vpop.f32.mrb[0].mxu0
        %6552 = vmatprep.mubr.bf16.mxu0 0
        %6553 = vmatmul.mubr.bf16.gmra.mrb[0].mxu0 %v6091
        %v6554 = vpop.f32.mrb[0].mxu0
        %v6555 = vadd.f32 0.0, %v6554
        %v6556 = vpop.f32.mrb[0].mxu0
        %v6557 = vpop.f32.mrb[0].mxu0
        %v6558 = vadd.f32 0.0, %v6557
        %v6559 = vpop.f32.mrb[0].mxu0
        %6560 = vmatprep.mubr.bf16.mxu0 0
        %6561 = vmatmul.mubr.bf16.gmra.mrb[0].mxu0 %v6092
        %v6562 = vpop.f32.mrb[0].mxu0
        %v6563 = vadd.f32 0.0, %v6562
        %v6564 = vpop.f32.mrb[0].mxu0
        %v6565 = vpop.f32.mrb[0].mxu0
        %v6566 = vadd.f32 0.0, %v6565
        %v6567 = vpop.f32.mrb[0].mxu0
        %6568 = vmatprep.mubr.bf16.mxu0 0
        %6569 = vmatmul.mubr.bf16.gmra.mrb[0].mxu0 %v6093
        %v6570 = vpop.f32.mrb[0].mxu0
        %v6571 = vadd.f32 0.0, %v6570
        %v6572 = vpop.f32.mrb[0].mxu0
        %v6573 = vpop.f32.mrb[0].mxu0
        %v6574 = vadd.f32 0.0, %v6573
        %v6575 = vpop.f32.mrb[0].mxu0
        %6576 = vmatprep.mubr.bf16.mxu0 0
        %6577 = vmatmul.mubr.bf16.gmra.mrb[0].mxu0 %v6094
        %v6578 = vpop.f32.mrb[0].mxu0
        %v6579 = vadd.f32 0.0, %v6578
        %v6580 = vpop.f32.mrb[0].mxu0
        %v6581 = vpop.f32.mrb[0].mxu0
        %v6582 = vadd.f32 0.0, %v6581
        %v6583 = vpop.f32.mrb[0].mxu0
        %6584 = vmatprep.mubr.bf16.mxu0 0
        %6585 = vmatmul.mubr.bf16.gmra.mrb[0].mxu0 %v6095
        %v6586 = vpop.f32.mrb[0].mxu0
        %v6587 = vadd.f32 0.0, %v6586
        %v6588 = vpop.f32.mrb[0].mxu0
        %v6589 = vpop.f32.mrb[0].mxu0
        %v6590 = vadd.f32 0.0, %v6589
        %v6591 = vpop.f32.mrb[0].mxu0
        %6592 = vmatprep.mubr.bf16.mxu0 0
        %6593 = vmatmul.mubr.bf16.gmra.mrb[0].mxu0 %v6096
        %v6594 = vpop.f32.mrb[0].mxu0
        %v6595 = vadd.f32 0.0, %v6594
        %v6596 = vpop.f32.mrb[0].mxu0
        %v6597 = vpop.f32.mrb[0].mxu0
        %v6598 = vadd.f32 0.0, %v6597
        %v6599 = vpop.f32.mrb[0].mxu0
        %6600 = vmatprep.mubr.bf16.mxu0 0
        %6601 = vmatmul.mubr.bf16.gmra.mrb[0].mxu0 %v6097
        %v6602 = vpop.f32.mrb[0].mxu0
        %v6603 = vadd.f32 0.0, %v6602
        %v6604 = vpop.f32.mrb[0].mxu0
        %v6605 = vpop.f32.mrb[0].mxu0
        %v6606 = vadd.f32 0.0, %v6605
        %v6607 = vpop.f32.mrb[0].mxu0
        %6608 = vdwg.mxu0
        %v6609 = vadd.f32 %v6483, %v6486
        %v6610 = vadd.f32 %v6609, %v6491
        %v6611 = vadd.f32 %v6610, %v6494
        %v6612 = vadd.f32 %v6611, %v6499
        %v6613 = vadd.f32 %v6612, %v6502
        %v6614 = vadd.f32 %v6613, %v6507
        %v6615 = vadd.f32 %v6614, %v6510
        %v6616 = vadd.f32 %v6615, %v6515
        %v6617 = vadd.f32 %v6616, %v6518
        %v6618 = vadd.f32 %v6617, %v6523
        %v6619 = vadd.f32 %v6618, %v6526
        %v6620 = vadd.f32 %v6619, %v6531
        %v6621 = vadd.f32 %v6620, %v6534
        %v6622 = vadd.f32 %v6621, %v6539
        %v6623 = vadd.f32 %v6622, %v6542
        %v6624 = vadd.f32 %v6623, %v6547
        %v6625 = vadd.f32 %v6624, %v6550
        %v6626 = vadd.f32 %v6625, %v6555
        %v6627 = vadd.f32 %v6626, %v6558
        %v6628 = vadd.f32 %v6627, %v6563
        %v6629 = vadd.f32 %v6628, %v6566
        %v6630 = vadd.f32 %v6629, %v6571
        %v6631 = vadd.f32 %v6630, %v6574
        %v6632 = vadd.f32 %v6631, %v6579
        %v6633 = vadd.f32 %v6632, %v6582
        %v6634 = vadd.f32 %v6633, %v6587
        %v6635 = vadd.f32 %v6634, %v6590
        %v6636 = vadd.f32 %v6635, %v6595
        %v6637 = vadd.f32 %v6636, %v6598
        %v6638 = vadd.f32 %v6637, %v6603
        %v6639 = vadd.f32 %v6638, %v6606
        %v6640 = vrot.slane %v6639, 4
        %v6641 = vadd.f32 %v6639, %v6640
        %v6642 = vrot.slane %v6641, 2
        %v6643 = vadd.f32 %v6641, %v6642
        %v6644 = vrot.slane %v6643, 1
        %v6645 = vadd.f32 %v6643, %v6644
        %v6646 = vmul.f32 %v6645, 0.00390625
        %v6647 = vmul.f32 %v6483, %v6483
        %v6648 = vmul.f32 %v6486, %v6486
        %v6649 = vmul.f32 %v6491, %v6491
        %v6650 = vmul.f32 %v6494, %v6494
        %v6651 = vmul.f32 %v6499, %v6499
        %v6652 = vmul.f32 %v6502, %v6502
        %v6653 = vmul.f32 %v6507, %v6507
        %v6654 = vmul.f32 %v6510, %v6510
        %v6655 = vmul.f32 %v6515, %v6515
        %v6656 = vmul.f32 %v6518, %v6518
        %v6657 = vmul.f32 %v6523, %v6523
        %v6658 = vmul.f32 %v6526, %v6526
        %v6659 = vmul.f32 %v6531, %v6531
        %v6660 = vmul.f32 %v6534, %v6534
        %v6661 = vmul.f32 %v6539, %v6539
        %v6662 = vmul.f32 %v6542, %v6542
        %v6663 = vmul.f32 %v6547, %v6547
        %v6664 = vmul.f32 %v6550, %v6550
        %v6665 = vmul.f32 %v6555, %v6555
        %v6666 = vmul.f32 %v6558, %v6558
        %v6667 = vmul.f32 %v6563, %v6563
        %v6668 = vmul.f32 %v6566, %v6566
        %v6669 = vmul.f32 %v6571, %v6571
        %v6670 = vmul.f32 %v6574, %v6574
        %v6671 = vmul.f32 %v6579, %v6579
        %v6672 = vmul.f32 %v6582, %v6582
        %v6673 = vmul.f32 %v6587, %v6587
        %v6674 = vmul.f32 %v6590, %v6590
        %v6675 = vmul.f32 %v6595, %v6595
        %v6676 = vmul.f32 %v6598, %v6598
        %v6677 = vmul.f32 %v6603, %v6603
        %v6678 = vmul.f32 %v6606, %v6606
        %v6679 = vadd.f32 %v6647, %v6648
        %v6680 = vadd.f32 %v6679, %v6649
        %v6681 = vadd.f32 %v6680, %v6650
        %v6682 = vadd.f32 %v6681, %v6651
        %v6683 = vadd.f32 %v6682, %v6652
        %v6684 = vadd.f32 %v6683, %v6653
        %v6685 = vadd.f32 %v6684, %v6654
        %v6686 = vadd.f32 %v6685, %v6655
        %v6687 = vadd.f32 %v6686, %v6656
        %v6688 = vadd.f32 %v6687, %v6657
        %v6689 = vadd.f32 %v6688, %v6658
        %v6690 = vadd.f32 %v6689, %v6659
        %v6691 = vadd.f32 %v6690, %v6660
        %v6692 = vadd.f32 %v6691, %v6661
        %v6693 = vadd.f32 %v6692, %v6662
        %v6694 = vadd.f32 %v6693, %v6663
        %v6695 = vadd.f32 %v6694, %v6664
        %v6696 = vadd.f32 %v6695, %v6665
        %v6697 = vadd.f32 %v6696, %v6666
        %v6698 = vadd.f32 %v6697, %v6667
        %v6699 = vadd.f32 %v6698, %v6668
        %v6700 = vadd.f32 %v6699, %v6669
        %v6701 = vadd.f32 %v6700, %v6670
        %v6702 = vadd.f32 %v6701, %v6671
        %v6703 = vadd.f32 %v6702, %v6672
        %v6704 = vadd.f32 %v6703, %v6673
        %v6705 = vadd.f32 %v6704, %v6674
        %v6706 = vadd.f32 %v6705, %v6675
        %v6707 = vadd.f32 %v6706, %v6676
        %v6708 = vadd.f32 %v6707, %v6677
        %v6709 = vadd.f32 %v6708, %v6678
        %v6710 = vrot.slane %v6709, 4
        %v6711 = vadd.f32 %v6709, %v6710
        %v6712 = vrot.slane %v6711, 2
        %v6713 = vadd.f32 %v6711, %v6712
        %v6714 = vrot.slane %v6713, 1
        %v6715 = vadd.f32 %v6713, %v6714
        %v6716 = vmul.f32 %v6715, 0.00390625
        %v6717 = vsel %vm1299, %v6646, %v6716
        %6718 = vmatprep.subr.mxu0 0.0
        %6719 = vmatpush1.msra.mxu0 %v1175
        %6720 = vmatprep.subr.mxu0 0.0
        %6721 = vmatpush1.msra.mxu0 %v1176
        %6722 = vmatprep.subr.mxu0 0.0
        %6723 = vmatpush1.msra.mxu0 %v1177
        %6724 = vmatprep.subr.mxu0 0.0
        %6725 = vmatpush1.msra.mxu0 %v1178
        %6726 = vmatprep.subr.mxu0 0.0
        %6727 = vmatpush1.msra.mxu0 %v1179
        %6728 = vmatprep.subr.mxu0 0.0
        %6729 = vmatpush1.msra.mxu0 %v1180
        %6730 = vmatprep.subr.mxu0 0.0
        %6731 = vmatpush1.msra.mxu0 %v1181
        %6732 = vmatprep.subr.mxu0 0.0
        %6733 = vmatpush1.msra.mxu0 %v1182
        %6734 = vmatprep.subr.mxu0 0.0
        %6735 = vmatpush1.msra.mxu0 %v1183
        %6736 = vmatprep.subr.mxu0 0.0
        %6737 = vmatpush1.msra.mxu0 %v1184
        %6738 = vmatprep.subr.mxu0 0.0
        %6739 = vmatpush1.msra.mxu0 %v1185
        %6740 = vmatprep.subr.mxu0 0.0
        %6741 = vmatpush1.msra.mxu0 %v1186
        %6742 = vmatprep.subr.mxu0 0.0
        %6743 = vmatpush1.msra.mxu0 %v1187
        %6744 = vmatprep.subr.mxu0 0.0
        %6745 = vmatpush1.msra.mxu0 %v1188
        %6746 = vmatprep.subr.mxu0 0.0
        %6747 = vmatpush1.msra.mxu0 %v1189
        %6748 = vmatprep.subr.mxu0 0.0
        %6749 = vmatpush1.msra.mxu0 %v1190
        %6750 = vmatprep.subr.mxu0 0.0
        %6751 = vmatpush1.msra.mxu0 0.0
        %6752 = vmatprep.subr.mxu0 0.0
        %6753 = vmatpush1.msra.mxu0 0.0
        %6754 = vmatprep.subr.mxu0 0.0
        %6755 = vmatpush1.msra.mxu0 0.0
        %6756 = vmatprep.subr.mxu0 0.0
        %6757 = vmatpush1.msra.mxu0 0.0
        %6758 = vmatprep.subr.mxu0 0.0
        %6759 = vmatpush1.msra.mxu0 0.0
        %6760 = vmatprep.subr.mxu0 0.0
        %6761 = vmatpush1.msra.mxu0 0.0
        %6762 = vmatprep.subr.mxu0 0.0
        %6763 = vmatpush1.msra.mxu0 0.0
        %6764 = vmatprep.subr.mxu0 0.0
        %6765 = vmatpush1.msra.mxu0 0.0
        %6766 = vmatprep.subr.mxu0 0.0
        %6767 = vmatpush1.msra.mxu0 0.0
        %6768 = vmatprep.subr.mxu0 0.0
        %6769 = vmatpush1.msra.mxu0 0.0
        %6770 = vmatprep.subr.mxu0 0.0
        %6771 = vmatpush1.msra.mxu0 0.0
        %6772 = vmatprep.subr.mxu0 0.0
        %6773 = vmatpush1.msra.mxu0 0.0
        %6774 = vmatprep.subr.mxu0 0.0
        %6775 = vmatpush1.msra.mxu0 0.0
        %6776 = vmatprep.subr.mxu0 0.0
        %6777 = vmatpush1.msra.mxu0 0.0
        %6778 = vmatprep.subr.mxu0 0.0
        %6779 = vmatpush1.msra.mxu0 0.0
        %6780 = vmatprep.subr.mxu0 0.0
        %6781 = vmatpush1.msra.mxu0 0.0
        %6782 = vmatprep.mubr.f32.mxu0 0.0
        %6783 = vmatmul.mubr.f32.gmra.mrb[0].mxu0 %v6717
        %v6784 = vpop.f32.mrb[0].mxu0
        %v6785 = vadd.f32 0.0, %v6784
        %v6786 = vpop.f32.mrb[0].mxu0
        %6787 = vdwg.mxu0
        %v6788 = vmul.f32 %v6785, %v6785
        %v6790 = vrot.slane %v6788, 7
        %v6792 = vsub.f32 %v6785, %v6790
        %v6793 = vmax.f32 %v6792, 0.0
        %v6794 = vadd.f32 %v6793, 1e-05
        %v6795 = vrsqrt.pop %v6794
        %v6796 = vld [vmem:[#allocation9 + $0x2] sm:$0x1]
        %v6797 = vld [vmem:[#allocation9 + $0x3] sm:$0x1]
        %v6798 = vlaneseq
        %v6799 = vshrl.u32 %v6798, 7
        %v6800 = vsub.s32 0, %v6799
        %v6801 = vrot.slane %v6785, %v6800
        %v6802 = vsub.f32 %v6483, %v6801
        %v6803 = vsub.f32 %v6486, %v6801
        %v6804 = vsub.f32 %v6491, %v6801
        %v6805 = vsub.f32 %v6494, %v6801
        %v6806 = vsub.f32 %v6499, %v6801
        %v6807 = vsub.f32 %v6502, %v6801
        %v6808 = vsub.f32 %v6507, %v6801
        %v6809 = vsub.f32 %v6510, %v6801
        %v6810 = vsub.f32 %v6515, %v6801
        %v6811 = vsub.f32 %v6518, %v6801
        %v6812 = vsub.f32 %v6523, %v6801
        %v6813 = vsub.f32 %v6526, %v6801
        %v6814 = vsub.f32 %v6531, %v6801
        %v6815 = vsub.f32 %v6534, %v6801
        %v6816 = vsub.f32 %v6539, %v6801
        %v6817 = vsub.f32 %v6542, %v6801
        %v6818 = vsub.f32 %v6547, %v6801
        %v6819 = vsub.f32 %v6550, %v6801
        %v6820 = vsub.f32 %v6555, %v6801
        %v6821 = vsub.f32 %v6558, %v6801
        %v6822 = vsub.f32 %v6563, %v6801
        %v6823 = vsub.f32 %v6566, %v6801
        %v6824 = vsub.f32 %v6571, %v6801
        %v6825 = vsub.f32 %v6574, %v6801
        %v6826 = vsub.f32 %v6579, %v6801
        %v6827 = vsub.f32 %v6582, %v6801
        %v6828 = vsub.f32 %v6587, %v6801
        %v6829 = vsub.f32 %v6590, %v6801
        %v6830 = vsub.f32 %v6595, %v6801
        %v6831 = vsub.f32 %v6598, %v6801
        %v6832 = vsub.f32 %v6603, %v6801
        %v6833 = vsub.f32 %v6606, %v6801
        %v6834 = vlaneseq
        %v6835 = vshrl.u32 %v6834, 7
        %v6836 = vsub.s32 1, %v6835
        %v6837 = vrot.slane %v6795, %v6836
        %v6838 = vmul.f32 %v6802, %v6837
        %v6839 = vmul.f32 %v6803, %v6837
        %v6840 = vmul.f32 %v6804, %v6837
        %v6841 = vmul.f32 %v6805, %v6837
        %v6842 = vmul.f32 %v6806, %v6837
        %v6843 = vmul.f32 %v6807, %v6837
        %v6844 = vmul.f32 %v6808, %v6837
        %v6845 = vmul.f32 %v6809, %v6837
        %v6846 = vmul.f32 %v6810, %v6837
        %v6847 = vmul.f32 %v6811, %v6837
        %v6848 = vmul.f32 %v6812, %v6837
        %v6849 = vmul.f32 %v6813, %v6837
        %v6850 = vmul.f32 %v6814, %v6837
        %v6851 = vmul.f32 %v6815, %v6837
        %v6852 = vmul.f32 %v6816, %v6837
        %v6853 = vmul.f32 %v6817, %v6837
        %v6854 = vmul.f32 %v6818, %v6837
        %v6855 = vmul.f32 %v6819, %v6837
        %v6856 = vmul.f32 %v6820, %v6837
        %v6857 = vmul.f32 %v6821, %v6837
        %v6858 = vmul.f32 %v6822, %v6837
        %v6859 = vmul.f32 %v6823, %v6837
        %v6860 = vmul.f32 %v6824, %v6837
        %v6861 = vmul.f32 %v6825, %v6837
        %v6862 = vmul.f32 %v6826, %v6837
        %v6863 = vmul.f32 %v6827, %v6837
        %v6864 = vmul.f32 %v6828, %v6837
        %v6865 = vmul.f32 %v6829, %v6837
        %v6866 = vmul.f32 %v6830, %v6837
        %v6867 = vmul.f32 %v6831, %v6837
        %v6868 = vmul.f32 %v6832, %v6837
        %v6869 = vmul.f32 %v6833, %v6837
        %v6870 = vlaneseq
        %v6871 = vshrl.u32 %v6870, 7
        %v6872 = vsub.s32 0, %v6871
        %v6873 = vrot.slane %v6796, %v6872
        %v6874 = vmul.f32 %v6838, %v6873
        %v6875 = vmul.f32 %v6839, %v6873
        %v6876 = vmul.f32 %v6840, %v6873
        %v6877 = vmul.f32 %v6841, %v6873
        %v6878 = vmul.f32 %v6842, %v6873
        %v6879 = vmul.f32 %v6843, %v6873
        %v6880 = vmul.f32 %v6844, %v6873
        %v6881 = vmul.f32 %v6845, %v6873
        %v6882 = vmul.f32 %v6846, %v6873
        %v6883 = vmul.f32 %v6847, %v6873
        %v6884 = vmul.f32 %v6848, %v6873
        %v6885 = vmul.f32 %v6849, %v6873
        %v6886 = vmul.f32 %v6850, %v6873
        %v6887 = vmul.f32 %v6851, %v6873
        %v6888 = vmul.f32 %v6852, %v6873
        %v6889 = vmul.f32 %v6853, %v6873
        %v6890 = vmul.f32 %v6854, %v6873
        %v6891 = vmul.f32 %v6855, %v6873
        %v6892 = vmul.f32 %v6856, %v6873
        %v6893 = vmul.f32 %v6857, %v6873
        %v6894 = vmul.f32 %v6858, %v6873
        %v6895 = vmul.f32 %v6859, %v6873
        %v6896 = vmul.f32 %v6860, %v6873
        %v6897 = vmul.f32 %v6861, %v6873
        %v6898 = vmul.f32 %v6862, %v6873
        %v6899 = vmul.f32 %v6863, %v6873
        %v6900 = vmul.f32 %v6864, %v6873
        %v6901 = vmul.f32 %v6865, %v6873
        %v6902 = vmul.f32 %v6866, %v6873
        %v6903 = vmul.f32 %v6867, %v6873
        %v6904 = vmul.f32 %v6868, %v6873
        %v6905 = vmul.f32 %v6869, %v6873
        %v6906 = vlaneseq
        %v6907 = vshrl.u32 %v6906, 7
        %v6908 = vsub.s32 0, %v6907
        %v6909 = vrot.slane %v6797, %v6908
        %v6910 = vadd.f32 %v6874, %v6909
        %v6911 = vadd.f32 %v6875, %v6909
        %v6912 = vadd.f32 %v6876, %v6909
        %v6913 = vadd.f32 %v6877, %v6909
        %v6914 = vadd.f32 %v6878, %v6909
        %v6915 = vadd.f32 %v6879, %v6909
        %v6916 = vadd.f32 %v6880, %v6909
        %v6917 = vadd.f32 %v6881, %v6909
        %v6918 = vadd.f32 %v6882, %v6909
        %v6919 = vadd.f32 %v6883, %v6909
        %v6920 = vadd.f32 %v6884, %v6909
        %v6921 = vadd.f32 %v6885, %v6909
        %v6922 = vadd.f32 %v6886, %v6909
        %v6923 = vadd.f32 %v6887, %v6909
        %v6924 = vadd.f32 %v6888, %v6909
        %v6925 = vadd.f32 %v6889, %v6909
        %v6926 = vadd.f32 %v6890, %v6909
        %v6927 = vadd.f32 %v6891, %v6909
        %v6928 = vadd.f32 %v6892, %v6909
        %v6929 = vadd.f32 %v6893, %v6909
        %v6930 = vadd.f32 %v6894, %v6909
        %v6931 = vadd.f32 %v6895, %v6909
        %v6932 = vadd.f32 %v6896, %v6909
        %v6933 = vadd.f32 %v6897, %v6909
        %v6934 = vadd.f32 %v6898, %v6909
        %v6935 = vadd.f32 %v6899, %v6909
        %v6936 = vadd.f32 %v6900, %v6909
        %v6937 = vadd.f32 %v6901, %v6909
        %v6938 = vadd.f32 %v6902, %v6909
        %v6939 = vadd.f32 %v6903, %v6909
        %v6940 = vadd.f32 %v6904, %v6909
        %v6941 = vadd.f32 %v6905, %v6909
        %v6942 = vmax.f32 %v6910, 0.0
        %v6943 = vmax.f32 %v6911, 0.0
        %v6944 = vmax.f32 %v6912, 0.0
        %v6945 = vmax.f32 %v6913, 0.0
        %v6946 = vmax.f32 %v6914, 0.0
        %v6947 = vmax.f32 %v6915, 0.0
        %v6948 = vmax.f32 %v6916, 0.0
        %v6949 = vmax.f32 %v6917, 0.0
        %v6950 = vmax.f32 %v6918, 0.0
        %v6951 = vmax.f32 %v6919, 0.0
        %v6952 = vmax.f32 %v6920, 0.0
        %v6953 = vmax.f32 %v6921, 0.0
        %v6954 = vmax.f32 %v6922, 0.0
        %v6955 = vmax.f32 %v6923, 0.0
        %v6956 = vmax.f32 %v6924, 0.0
        %v6957 = vmax.f32 %v6925, 0.0
        %v6958 = vmax.f32 %v6926, 0.0
        %v6959 = vmax.f32 %v6927, 0.0
        %v6960 = vmax.f32 %v6928, 0.0
        %v6961 = vmax.f32 %v6929, 0.0
        %v6962 = vmax.f32 %v6930, 0.0
        %v6963 = vmax.f32 %v6931, 0.0
        %v6964 = vmax.f32 %v6932, 0.0
        %v6965 = vmax.f32 %v6933, 0.0
        %v6966 = vmax.f32 %v6934, 0.0
        %v6967 = vmax.f32 %v6935, 0.0
        %v6968 = vmax.f32 %v6936, 0.0
        %v6969 = vmax.f32 %v6937, 0.0
        %v6970 = vmax.f32 %v6938, 0.0
        %v6971 = vmax.f32 %v6939, 0.0
        %v6972 = vmax.f32 %v6940, 0.0
        %v6973 = vmax.f32 %v6941, 0.0
        %6974 = vst [vmem:[%s2388 + $0x1] sm:$0xff] %v6942
        %6975 = vst [vmem:[%s2388 + $0x9] sm:$0xff] %v6943
        %6976 = vst [vmem:[%s2388 + $0x19] sm:$0xff] %v6944
        %6977 = vst [vmem:[%s2388 + $0x21] sm:$0xff] %v6945
        %6978 = vst [vmem:[%s2388 + $0x31] sm:$0xff] %v6946
        %6979 = vst [vmem:[%s2388 + $0x39] sm:$0xff] %v6947
        %6980 = vst [vmem:[%s2388 + $0x49] sm:$0xff] %v6948
        %6981 = vst [vmem:[%s2388 + $0x51] sm:$0xff] %v6949
        %6982 = vst [vmem:[%s2388 + $0x61] sm:$0xff] %v6950
        %6983 = vst [vmem:[%s2388 + $0x69] sm:$0xff] %v6951
        %6984 = vst [vmem:[%s2388 + $0x79] sm:$0xff] %v6952
        %6985 = vst [vmem:[%s2388 + $0x81] sm:$0xff] %v6953
        %6986 = vst [vmem:[%s2388 + $0x91] sm:$0xff] %v6954
        %6987 = vst [vmem:[%s2388 + $0x99] sm:$0xff] %v6955
        %6988 = vst [vmem:[%s2388 + $0xa9] sm:$0xff] %v6956
        %6989 = vst [vmem:[%s2388 + $0xb1] sm:$0xff] %v6957
        %6990 = vst [vmem:[%s2388 + $0xc1] sm:$0xff] %v6958
        %6991 = vst [vmem:[%s2388 + $0xc9] sm:$0xff] %v6959
        %6992 = vst [vmem:[%s2388 + $0xd9] sm:$0xff] %v6960
        %6993 = vst [vmem:[%s2388 + $0xe1] sm:$0xff] %v6961
        %6994 = vst [vmem:[%s2388 + $0xf1] sm:$0xff] %v6962
        %6995 = vst [vmem:[%s2388 + $0xf9] sm:$0xff] %v6963
        %6996 = vst [vmem:[%s2388 + $0x109] sm:$0xff] %v6964
        %6997 = vst [vmem:[%s2388 + $0x111] sm:$0xff] %v6965
        %6998 = vst [vmem:[%s2388 + $0x121] sm:$0xff] %v6966
        %6999 = vst [vmem:[%s2388 + $0x129] sm:$0xff] %v6967
        %7000 = vst [vmem:[%s2388 + $0x139] sm:$0xff] %v6968
        %7001 = vst [vmem:[%s2388 + $0x141] sm:$0xff] %v6969
        %7002 = vst [vmem:[%s2388 + $0x151] sm:$0xff] %v6970
        %7003 = vst [vmem:[%s2388 + $0x159] sm:$0xff] %v6971
        %7004 = vst [vmem:[%s2388 + $0x169] sm:$0xff] %v6972
        %7005 = vst [vmem:[%s2388 + $0x171] sm:$0xff] %v6973
        %v7006 = vld [vmem:[#allocation2] ss:$2 sm:$0xff]
        %s7007 = scalar_lea.vmem [#allocation2], 48
        %v7008 = vld [vmem:[%s7007] ss:$2 sm:$0xff]
        %s7009 = scalar_lea.vmem [#allocation2], 96
        %v7010 = vld [vmem:[%s7009] ss:$2 sm:$0xff]
        %s7011 = scalar_lea.vmem [#allocation2], 144
        %v7012 = vld [vmem:[%s7011] ss:$2 sm:$0xff]
        %s7013 = scalar_lea.vmem [#allocation2], 192
        %v7014 = vld [vmem:[%s7013] ss:$2 sm:$0xff]
        %s7015 = scalar_lea.vmem [#allocation2], 240
        %v7016 = vld [vmem:[%s7015] ss:$2 sm:$0xff]
        %s7017 = scalar_lea.vmem [#allocation2], 288
        %v7018 = vld [vmem:[%s7017] ss:$2 sm:$0xff]
        %s7019 = scalar_lea.vmem [#allocation2], 336
        %v7020 = vld [vmem:[%s7019] ss:$2 sm:$0xff]
        %v7021 = vpack.c.bf16 %v7008, %v7006
        %v7022 = vpack.c.bf16 %v7012, %v7010
        %v7023 = vpack.c.bf16 %v7016, %v7014
        %v7024 = vpack.c.bf16 %v7020, %v7018
        %v7025 = vld [vmem:[%s13] sm:$0xf]
        %v7026 = vld [vmem:[%s13 + $0x4] sm:$0xf]
        %v7027 = vld [vmem:[%s13 + $0x8] sm:$0xf]
        %v7028 = vld [vmem:[%s13 + $0xc] sm:$0xf]
        %v7029 = vld [vmem:[%s13 + $0x10] sm:$0xf]
        %v7030 = vld [vmem:[%s13 + $0x14] sm:$0xf]
        %v7031 = vld [vmem:[%s13 + $0x18] sm:$0xf]
        %v7032 = vld [vmem:[%s13 + $0x1c] sm:$0xf]
        %v7033 = vld [vmem:[%s13 + $0x20] sm:$0xf]
        %v7034 = vld [vmem:[%s13 + $0x24] sm:$0xf]
        %v7035 = vld [vmem:[%s13 + $0x28] sm:$0xf]
        %v7036 = vld [vmem:[%s13 + $0x2c] sm:$0xf]
        %v7037 = vld [vmem:[%s13 + $0x30] sm:$0xf]
        %v7038 = vld [vmem:[%s13 + $0x34] sm:$0xf]
        %v7039 = vld [vmem:[%s13 + $0x38] sm:$0xf]
        %v7040 = vld [vmem:[%s13 + $0x3c] sm:$0xf]
        %s7041 = scalar_lea.vmem [#allocation2], 1
        %v7042 = vld [vmem:[%s7041] ss:$2 sm:$0xff]
        %s7043 = scalar_lea.vmem [#allocation2], 49
        %v7044 = vld [vmem:[%s7043] ss:$2 sm:$0xff]
        %s7045 = scalar_lea.vmem [#allocation2], 97
        %v7046 = vld [vmem:[%s7045] ss:$2 sm:$0xff]
        %s7047 = scalar_lea.vmem [#allocation2], 145
        %v7048 = vld [vmem:[%s7047] ss:$2 sm:$0xff]
        %s7049 = scalar_lea.vmem [#allocation2], 193
        %v7050 = vld [vmem:[%s7049] ss:$2 sm:$0xff]
        %s7051 = scalar_lea.vmem [#allocation2], 241
        %v7052 = vld [vmem:[%s7051] ss:$2 sm:$0xff]
        %s7053 = scalar_lea.vmem [#allocation2], 289
        %v7054 = vld [vmem:[%s7053] ss:$2 sm:$0xff]
        %s7055 = scalar_lea.vmem [#allocation2], 337
        %v7056 = vld [vmem:[%s7055] ss:$2 sm:$0xff]
        %v7057 = vpack.c.bf16 %v7044, %v7042
        %v7058 = vpack.c.bf16 %v7048, %v7046
        %v7059 = vpack.c.bf16 %v7052, %v7050
        %v7060 = vpack.c.bf16 %v7056, %v7054
        %s7061 = scalar_lea.vmem %s13, 64
        %v7062 = vld [vmem:[%s7061] sm:$0xf]
        %v7063 = vld [vmem:[%s7061 + $0x4] sm:$0xf]
        %v7064 = vld [vmem:[%s7061 + $0x8] sm:$0xf]
        %v7065 = vld [vmem:[%s7061 + $0xc] sm:$0xf]
        %v7066 = vld [vmem:[%s7061 + $0x10] sm:$0xf]
        %v7067 = vld [vmem:[%s7061 + $0x14] sm:$0xf]
        %v7068 = vld [vmem:[%s7061 + $0x18] sm:$0xf]
        %v7069 = vld [vmem:[%s7061 + $0x1c] sm:$0xf]
        %v7070 = vld [vmem:[%s7061 + $0x20] sm:$0xf]
        %v7071 = vld [vmem:[%s7061 + $0x24] sm:$0xf]
        %v7072 = vld [vmem:[%s7061 + $0x28] sm:$0xf]
        %v7073 = vld [vmem:[%s7061 + $0x2c] sm:$0xf]
        %v7074 = vld [vmem:[%s7061 + $0x30] sm:$0xf]
        %v7075 = vld [vmem:[%s7061 + $0x34] sm:$0xf]
        %v7076 = vld [vmem:[%s7061 + $0x38] sm:$0xf]
        %v7077 = vld [vmem:[%s7061 + $0x3c] sm:$0xf]
        %v7094 = vunpack.c.l.b16 %v7062
        %v7095 = vunpack.c.l.b16 %v7063
        %v7096 = vunpack.c.l.b16 %v7064
        %v7097 = vunpack.c.l.b16 %v7065
        %v7098 = vunpack.c.l.b16 %v7066
        %v7099 = vunpack.c.l.b16 %v7067
        %v7100 = vunpack.c.l.b16 %v7068
        %v7101 = vunpack.c.l.b16 %v7069
        %v7102 = vunpack.c.l.b16 %v7070
        %v7103 = vunpack.c.l.b16 %v7071
        %v7104 = vunpack.c.l.b16 %v7072
        %v7105 = vunpack.c.l.b16 %v7073
        %v7106 = vunpack.c.l.b16 %v7074
        %v7107 = vunpack.c.l.b16 %v7075
        %v7108 = vunpack.c.l.b16 %v7076
        %v7109 = vunpack.c.l.b16 %v7077
        %v7110 = vpack.c.b16 %v7095, %v7094
        %v7111 = vpack.c.b16 %v7097, %v7096
        %v7112 = vpack.c.b16 %v7099, %v7098
        %v7113 = vpack.c.b16 %v7101, %v7100
        %v7114 = vpack.c.b16 %v7103, %v7102
        %v7115 = vpack.c.b16 %v7105, %v7104
        %v7116 = vpack.c.b16 %v7107, %v7106
        %v7117 = vpack.c.b16 %v7109, %v7108
        %7126 = vmatprep.subr.bf16.mxu0 0
        %7127 = vmatpush1.bf16.msra.mxu0 %v7110
        %7128 = vmatprep.subr.bf16.mxu0 0
        %7129 = vmatpush1.bf16.msra.mxu0 %v7111
        %7130 = vmatprep.subr.bf16.mxu0 0
        %7131 = vmatpush1.bf16.msra.mxu0 %v7112
        %7132 = vmatprep.subr.bf16.mxu0 0
        %7133 = vmatpush1.bf16.msra.mxu0 %v7113
        %7134 = vmatprep.subr.bf16.mxu0 0
        %7135 = vmatpush1.bf16.msra.mxu0 %v7114
        %7136 = vmatprep.subr.bf16.mxu0 0
        %7137 = vmatpush1.bf16.msra.mxu0 %v7115
        %7138 = vmatprep.subr.bf16.mxu0 0
        %7139 = vmatpush1.bf16.msra.mxu0 %v7116
        %7140 = vmatprep.subr.bf16.mxu0 0
        %7141 = vmatpush1.bf16.msra.mxu0 %v7117
        %7142 = vmatprep.subr.bf16.mxu0 0
        %7143 = vmatpush1.bf16.msra.mxu0 0
        %7144 = vmatprep.subr.bf16.mxu0 0
        %7145 = vmatpush1.bf16.msra.mxu0 0
        %7146 = vmatprep.subr.bf16.mxu0 0
        %7147 = vmatpush1.bf16.msra.mxu0 0
        %7148 = vmatprep.subr.bf16.mxu0 0
        %7149 = vmatpush1.bf16.msra.mxu0 0
        %7150 = vmatprep.subr.bf16.mxu0 0
        %7151 = vmatpush1.bf16.msra.mxu0 0
        %7152 = vmatprep.subr.bf16.mxu0 0
        %7153 = vmatpush1.bf16.msra.mxu0 0
        %7154 = vmatprep.subr.bf16.mxu0 0
        %7155 = vmatpush1.bf16.msra.mxu0 0
        %7156 = vmatprep.subr.bf16.mxu0 0
        %7157 = vmatpush1.bf16.msra.mxu0 0
        %7158 = vmatprep.mubr.bf16.mxu0 0
        %7159 = vmatmul.mubr.bf16.gmra.mrb[0].mxu0 %v7057
        %v7160 = vpop.f32.mrb[0].mxu0
        %v7161 = vadd.f32 0.0, %v7160
        %v7162 = vpop.f32.mrb[0].mxu0
        %v7163 = vpop.f32.mrb[0].mxu0
        %v7164 = vadd.f32 0.0, %v7163
        %v7165 = vpop.f32.mrb[0].mxu0
        %7166 = vmatprep.mubr.bf16.mxu0 0
        %7167 = vmatmul.mubr.bf16.gmra.mrb[0].mxu0 %v7058
        %v7168 = vpop.f32.mrb[0].mxu0
        %v7169 = vadd.f32 0.0, %v7168
        %v7170 = vpop.f32.mrb[0].mxu0
        %v7171 = vpop.f32.mrb[0].mxu0
        %v7172 = vadd.f32 0.0, %v7171
        %v7173 = vpop.f32.mrb[0].mxu0
        %7174 = vmatprep.mubr.bf16.mxu0 0
        %7175 = vmatmul.mubr.bf16.gmra.mrb[0].mxu0 %v7059
        %v7176 = vpop.f32.mrb[0].mxu0
        %v7177 = vadd.f32 0.0, %v7176
        %v7178 = vpop.f32.mrb[0].mxu0
        %v7179 = vpop.f32.mrb[0].mxu0
        %v7180 = vadd.f32 0.0, %v7179
        %v7181 = vpop.f32.mrb[0].mxu0
        %7182 = vmatprep.mubr.bf16.mxu0 0
        %7183 = vmatmul.mubr.bf16.gmra.mrb[0].mxu0 %v7060
        %v7184 = vpop.f32.mrb[0].mxu0
        %v7185 = vadd.f32 0.0, %v7184
        %v7186 = vpop.f32.mrb[0].mxu0
        %v7187 = vpop.f32.mrb[0].mxu0
        %v7188 = vadd.f32 0.0, %v7187
        %v7189 = vpop.f32.mrb[0].mxu0
        %7190 = vdwg.mxu0
        %v7207 = vunpack.c.l.b16 %v7025
        %v7208 = vunpack.c.l.b16 %v7026
        %v7209 = vunpack.c.l.b16 %v7027
        %v7210 = vunpack.c.l.b16 %v7028
        %v7211 = vunpack.c.l.b16 %v7029
        %v7212 = vunpack.c.l.b16 %v7030
        %v7213 = vunpack.c.l.b16 %v7031
        %v7214 = vunpack.c.l.b16 %v7032
        %v7215 = vunpack.c.l.b16 %v7033
        %v7216 = vunpack.c.l.b16 %v7034
        %v7217 = vunpack.c.l.b16 %v7035
        %v7218 = vunpack.c.l.b16 %v7036
        %v7219 = vunpack.c.l.b16 %v7037
        %v7220 = vunpack.c.l.b16 %v7038
        %v7221 = vunpack.c.l.b16 %v7039
        %v7222 = vunpack.c.l.b16 %v7040
        %v7223 = vpack.c.b16 %v7208, %v7207
        %v7224 = vpack.c.b16 %v7210, %v7209
        %v7225 = vpack.c.b16 %v7212, %v7211
        %v7226 = vpack.c.b16 %v7214, %v7213
        %v7227 = vpack.c.b16 %v7216, %v7215
        %v7228 = vpack.c.b16 %v7218, %v7217
        %v7229 = vpack.c.b16 %v7220, %v7219
        %v7230 = vpack.c.b16 %v7222, %v7221
        %7239 = vmatprep.subr.bf16.mxu0 0
        %7240 = vmatpush1.bf16.msra.mxu0 %v7223
        %7241 = vmatprep.subr.bf16.mxu0 0
        %7242 = vmatpush1.bf16.msra.mxu0 %v7224
        %7243 = vmatprep.subr.bf16.mxu0 0
        %7244 = vmatpush1.bf16.msra.mxu0 %v7225
        %7245 = vmatprep.subr.bf16.mxu0 0
        %7246 = vmatpush1.bf16.msra.mxu0 %v7226
        %7247 = vmatprep.subr.bf16.mxu0 0
        %7248 = vmatpush1.bf16.msra.mxu0 %v7227
        %7249 = vmatprep.subr.bf16.mxu0 0
        %7250 = vmatpush1.bf16.msra.mxu0 %v7228
        %7251 = vmatprep.subr.bf16.mxu0 0
        %7252 = vmatpush1.bf16.msra.mxu0 %v7229
        %7253 = vmatprep.subr.bf16.mxu0 0
        %7254 = vmatpush1.bf16.msra.mxu0 %v7230
        %7255 = vmatprep.subr.bf16.mxu0 0
        %7256 = vmatpush1.bf16.msra.mxu0 0
        %7257 = vmatprep.subr.bf16.mxu0 0
        %7258 = vmatpush1.bf16.msra.mxu0 0
        %7259 = vmatprep.subr.bf16.mxu0 0
        %7260 = vmatpush1.bf16.msra.mxu0 0
        %7261 = vmatprep.subr.bf16.mxu0 0
        %7262 = vmatpush1.bf16.msra.mxu0 0
        %7263 = vmatprep.subr.bf16.mxu0 0
        %7264 = vmatpush1.bf16.msra.mxu0 0
        %7265 = vmatprep.subr.bf16.mxu0 0
        %7266 = vmatpush1.bf16.msra.mxu0 0
        %7267 = vmatprep.subr.bf16.mxu0 0
        %7268 = vmatpush1.bf16.msra.mxu0 0
        %7269 = vmatprep.subr.bf16.mxu0 0
        %7270 = vmatpush1.bf16.msra.mxu0 0
        %7271 = vmatprep.mubr.bf16.mxu0 0
        %7272 = vmatmul.mubr.bf16.gmra.mrb[0].mxu0 %v7021
        %v7273 = vpop.f32.mrb[0].mxu0
        %v7274 = vadd.f32 %v7161, %v7273
        %v7275 = vpop.f32.mrb[0].mxu0
        %v7276 = vpop.f32.mrb[0].mxu0
        %v7277 = vadd.f32 %v7164, %v7276
        %v7278 = vpop.f32.mrb[0].mxu0
        %7279 = vmatprep.mubr.bf16.mxu0 0
        %7280 = vmatmul.mubr.bf16.gmra.mrb[0].mxu0 %v7022
        %v7281 = vpop.f32.mrb[0].mxu0
        %v7282 = vadd.f32 %v7169, %v7281
        %v7283 = vpop.f32.mrb[0].mxu0
        %v7284 = vpop.f32.mrb[0].mxu0
        %v7285 = vadd.f32 %v7172, %v7284
        %v7286 = vpop.f32.mrb[0].mxu0
        %7287 = vmatprep.mubr.bf16.mxu0 0
        %7288 = vmatmul.mubr.bf16.gmra.mrb[0].mxu0 %v7023
        %v7289 = vpop.f32.mrb[0].mxu0
        %v7290 = vadd.f32 %v7177, %v7289
        %v7291 = vpop.f32.mrb[0].mxu0
        %v7292 = vpop.f32.mrb[0].mxu0
        %v7293 = vadd.f32 %v7180, %v7292
        %v7294 = vpop.f32.mrb[0].mxu0
        %7295 = vmatprep.mubr.bf16.mxu0 0
        %7296 = vmatmul.mubr.bf16.gmra.mrb[0].mxu0 %v7024
        %v7297 = vpop.f32.mrb[0].mxu0
        %v7298 = vadd.f32 %v7185, %v7297
        %v7299 = vpop.f32.mrb[0].mxu0
        %v7300 = vpop.f32.mrb[0].mxu0
        %v7301 = vadd.f32 %v7188, %v7300
        %v7302 = vpop.f32.mrb[0].mxu0
        %7303 = vdwg.mxu0
        %s7304 = scalar_lea.vmem [#allocation2], 2
        %v7305 = vld [vmem:[%s7304] ss:$2 sm:$0xff]
        %s7306 = scalar_lea.vmem [#allocation2], 50
        %v7307 = vld [vmem:[%s7306] ss:$2 sm:$0xff]
        %s7308 = scalar_lea.vmem [#allocation2], 98
        %v7309 = vld [vmem:[%s7308] ss:$2 sm:$0xff]
        %s7310 = scalar_lea.vmem [#allocation2], 146
        %v7311 = vld [vmem:[%s7310] ss:$2 sm:$0xff]
        %s7312 = scalar_lea.vmem [#allocation2], 194
        %v7313 = vld [vmem:[%s7312] ss:$2 sm:$0xff]
        %s7314 = scalar_lea.vmem [#allocation2], 242
        %v7315 = vld [vmem:[%s7314] ss:$2 sm:$0xff]
        %s7316 = scalar_lea.vmem [#allocation2], 290
        %v7317 = vld [vmem:[%s7316] ss:$2 sm:$0xff]
        %s7318 = scalar_lea.vmem [#allocation2], 338
        %v7319 = vld [vmem:[%s7318] ss:$2 sm:$0xff]
        %v7320 = vpack.c.bf16 %v7307, %v7305
        %v7321 = vpack.c.bf16 %v7311, %v7309
        %v7322 = vpack.c.bf16 %v7315, %v7313
        %v7323 = vpack.c.bf16 %v7319, %v7317
        %s7324 = scalar_lea.vmem %s13, 128
        %v7325 = vld [vmem:[%s7324] sm:$0xf]
        %v7326 = vld [vmem:[%s7324 + $0x4] sm:$0xf]
        %v7327 = vld [vmem:[%s7324 + $0x8] sm:$0xf]
        %v7328 = vld [vmem:[%s7324 + $0xc] sm:$0xf]
        %v7329 = vld [vmem:[%s7324 + $0x10] sm:$0xf]
        %v7330 = vld [vmem:[%s7324 + $0x14] sm:$0xf]
        %v7331 = vld [vmem:[%s7324 + $0x18] sm:$0xf]
        %v7332 = vld [vmem:[%s7324 + $0x1c] sm:$0xf]
        %v7333 = vld [vmem:[%s7324 + $0x20] sm:$0xf]
        %v7334 = vld [vmem:[%s7324 + $0x24] sm:$0xf]
        %v7335 = vld [vmem:[%s7324 + $0x28] sm:$0xf]
        %v7336 = vld [vmem:[%s7324 + $0x2c] sm:$0xf]
        %v7337 = vld [vmem:[%s7324 + $0x30] sm:$0xf]
        %v7338 = vld [vmem:[%s7324 + $0x34] sm:$0xf]
        %v7339 = vld [vmem:[%s7324 + $0x38] sm:$0xf]
        %v7340 = vld [vmem:[%s7324 + $0x3c] sm:$0xf]
        %v7357 = vunpack.c.l.b16 %v7325
        %v7358 = vunpack.c.l.b16 %v7326
        %v7359 = vunpack.c.l.b16 %v7327
        %v7360 = vunpack.c.l.b16 %v7328
        %v7361 = vunpack.c.l.b16 %v7329
        %v7362 = vunpack.c.l.b16 %v7330
        %v7363 = vunpack.c.l.b16 %v7331
        %v7364 = vunpack.c.l.b16 %v7332
        %v7365 = vunpack.c.l.b16 %v7333
        %v7366 = vunpack.c.l.b16 %v7334
        %v7367 = vunpack.c.l.b16 %v7335
        %v7368 = vunpack.c.l.b16 %v7336
        %v7369 = vunpack.c.l.b16 %v7337
        %v7370 = vunpack.c.l.b16 %v7338
        %v7371 = vunpack.c.l.b16 %v7339
        %v7372 = vunpack.c.l.b16 %v7340
        %v7373 = vpack.c.b16 %v7358, %v7357
        %v7374 = vpack.c.b16 %v7360, %v7359
        %v7375 = vpack.c.b16 %v7362, %v7361
        %v7376 = vpack.c.b16 %v7364, %v7363
        %v7377 = vpack.c.b16 %v7366, %v7365
        %v7378 = vpack.c.b16 %v7368, %v7367
        %v7379 = vpack.c.b16 %v7370, %v7369
        %v7380 = vpack.c.b16 %v7372, %v7371
        %7389 = vmatprep.subr.bf16.mxu0 0
        %7390 = vmatpush1.bf16.msra.mxu0 %v7373
        %7391 = vmatprep.subr.bf16.mxu0 0
        %7392 = vmatpush1.bf16.msra.mxu0 %v7374
        %7393 = vmatprep.subr.bf16.mxu0 0
        %7394 = vmatpush1.bf16.msra.mxu0 %v7375
        %7395 = vmatprep.subr.bf16.mxu0 0
        %7396 = vmatpush1.bf16.msra.mxu0 %v7376
        %7397 = vmatprep.subr.bf16.mxu0 0
        %7398 = vmatpush1.bf16.msra.mxu0 %v7377
        %7399 = vmatprep.subr.bf16.mxu0 0
        %7400 = vmatpush1.bf16.msra.mxu0 %v7378
        %7401 = vmatprep.subr.bf16.mxu0 0
        %7402 = vmatpush1.bf16.msra.mxu0 %v7379
        %7403 = vmatprep.subr.bf16.mxu0 0
        %7404 = vmatpush1.bf16.msra.mxu0 %v7380
        %7405 = vmatprep.subr.bf16.mxu0 0
        %7406 = vmatpush1.bf16.msra.mxu0 0
        %7407 = vmatprep.subr.bf16.mxu0 0
        %7408 = vmatpush1.bf16.msra.mxu0 0
        %7409 = vmatprep.subr.bf16.mxu0 0
        %7410 = vmatpush1.bf16.msra.mxu0 0
        %7411 = vmatprep.subr.bf16.mxu0 0
        %7412 = vmatpush1.bf16.msra.mxu0 0
        %7413 = vmatprep.subr.bf16.mxu0 0
        %7414 = vmatpush1.bf16.msra.mxu0 0
        %7415 = vmatprep.subr.bf16.mxu0 0
        %7416 = vmatpush1.bf16.msra.mxu0 0
        %7417 = vmatprep.subr.bf16.mxu0 0
        %7418 = vmatpush1.bf16.msra.mxu0 0
        %7419 = vmatprep.subr.bf16.mxu0 0
        %7420 = vmatpush1.bf16.msra.mxu0 0
        %7421 = vmatprep.mubr.bf16.mxu0 0
        %7422 = vmatmul.mubr.bf16.gmra.mrb[0].mxu0 %v7320
        %v7423 = vpop.f32.mrb[0].mxu0
        %v7424 = vadd.f32 0.0, %v7423
        %v7425 = vpop.f32.mrb[0].mxu0
        %v7426 = vpop.f32.mrb[0].mxu0
        %v7427 = vadd.f32 0.0, %v7426
        %v7428 = vpop.f32.mrb[0].mxu0
        %7429 = vmatprep.mubr.bf16.mxu0 0
        %7430 = vmatmul.mubr.bf16.gmra.mrb[0].mxu0 %v7321
        %v7431 = vpop.f32.mrb[0].mxu0
        %v7432 = vadd.f32 0.0, %v7431
        %v7433 = vpop.f32.mrb[0].mxu0
        %v7434 = vpop.f32.mrb[0].mxu0
        %v7435 = vadd.f32 0.0, %v7434
        %v7436 = vpop.f32.mrb[0].mxu0
        %7437 = vmatprep.mubr.bf16.mxu0 0
        %7438 = vmatmul.mubr.bf16.gmra.mrb[0].mxu0 %v7322
        %v7439 = vpop.f32.mrb[0].mxu0
        %v7440 = vadd.f32 0.0, %v7439
        %v7441 = vpop.f32.mrb[0].mxu0
        %v7442 = vpop.f32.mrb[0].mxu0
        %v7443 = vadd.f32 0.0, %v7442
        %v7444 = vpop.f32.mrb[0].mxu0
        %7445 = vmatprep.mubr.bf16.mxu0 0
        %7446 = vmatmul.mubr.bf16.gmra.mrb[0].mxu0 %v7323
        %v7447 = vpop.f32.mrb[0].mxu0
        %v7448 = vadd.f32 0.0, %v7447
        %v7449 = vpop.f32.mrb[0].mxu0
        %v7450 = vpop.f32.mrb[0].mxu0
        %v7451 = vadd.f32 0.0, %v7450
        %v7452 = vpop.f32.mrb[0].mxu0
        %7453 = vdwg.mxu0
        %v7454 = vadd.f32 %v7274, %v7424
        %v7455 = vadd.f32 %v7277, %v7427
        %v7456 = vadd.f32 %v7282, %v7432
        %v7457 = vadd.f32 %v7285, %v7435
        %v7458 = vadd.f32 %v7290, %v7440
        %v7459 = vadd.f32 %v7293, %v7443
        %v7460 = vadd.f32 %v7298, %v7448
        %v7461 = vadd.f32 %v7301, %v7451
        %v7462 = vld [vmem:[%s2388] ss:$2 sm:$0xff]
        %s7463 = scalar_lea.vmem %s2388, 48 [#allocation2]
        %v7464 = vld [vmem:[%s7463] ss:$2 sm:$0xff]
        %s7465 = scalar_lea.vmem %s2388, 96 [#allocation2]
        %v7466 = vld [vmem:[%s7465] ss:$2 sm:$0xff]
        %s7467 = scalar_lea.vmem %s2388, 144 [#allocation2]
        %v7468 = vld [vmem:[%s7467] ss:$2 sm:$0xff]
        %s7469 = scalar_lea.vmem %s2388, 192 [#allocation2]
        %v7470 = vld [vmem:[%s7469] ss:$2 sm:$0xff]
        %s7471 = scalar_lea.vmem %s2388, 240 [#allocation2]
        %v7472 = vld [vmem:[%s7471] ss:$2 sm:$0xff]
        %s7473 = scalar_lea.vmem %s2388, 288 [#allocation2]
        %v7474 = vld [vmem:[%s7473] ss:$2 sm:$0xff]
        %s7475 = scalar_lea.vmem %s2388, 336 [#allocation2]
        %v7476 = vld [vmem:[%s7475] ss:$2 sm:$0xff]
        %v7477 = vpack.c.bf16 %v7464, %v7462
        %v7478 = vpack.c.bf16 %v7468, %v7466
        %v7479 = vpack.c.bf16 %v7472, %v7470
        %v7480 = vpack.c.bf16 %v7476, %v7474
        %s7481 = scalar_lea.vmem %s13, 192
        %v7482 = vld [vmem:[%s7481] sm:$0xf]
        %v7483 = vld [vmem:[%s7481 + $0x4] sm:$0xf]
        %v7484 = vld [vmem:[%s7481 + $0x8] sm:$0xf]
        %v7485 = vld [vmem:[%s7481 + $0xc] sm:$0xf]
        %v7486 = vld [vmem:[%s7481 + $0x10] sm:$0xf]
        %v7487 = vld [vmem:[%s7481 + $0x14] sm:$0xf]
        %v7488 = vld [vmem:[%s7481 + $0x18] sm:$0xf]
        %v7489 = vld [vmem:[%s7481 + $0x1c] sm:$0xf]
        %v7490 = vld [vmem:[%s7481 + $0x20] sm:$0xf]
        %v7491 = vld [vmem:[%s7481 + $0x24] sm:$0xf]
        %v7492 = vld [vmem:[%s7481 + $0x28] sm:$0xf]
        %v7493 = vld [vmem:[%s7481 + $0x2c] sm:$0xf]
        %v7494 = vld [vmem:[%s7481 + $0x30] sm:$0xf]
        %v7495 = vld [vmem:[%s7481 + $0x34] sm:$0xf]
        %v7496 = vld [vmem:[%s7481 + $0x38] sm:$0xf]
        %v7497 = vld [vmem:[%s7481 + $0x3c] sm:$0xf]
        %v7514 = vunpack.c.l.b16 %v7482
        %v7515 = vunpack.c.l.b16 %v7483
        %v7516 = vunpack.c.l.b16 %v7484
        %v7517 = vunpack.c.l.b16 %v7485
        %v7518 = vunpack.c.l.b16 %v7486
        %v7519 = vunpack.c.l.b16 %v7487
        %v7520 = vunpack.c.l.b16 %v7488
        %v7521 = vunpack.c.l.b16 %v7489
        %v7522 = vunpack.c.l.b16 %v7490
        %v7523 = vunpack.c.l.b16 %v7491
        %v7524 = vunpack.c.l.b16 %v7492
        %v7525 = vunpack.c.l.b16 %v7493
        %v7526 = vunpack.c.l.b16 %v7494
        %v7527 = vunpack.c.l.b16 %v7495
        %v7528 = vunpack.c.l.b16 %v7496
        %v7529 = vunpack.c.l.b16 %v7497
        %v7530 = vpack.c.b16 %v7515, %v7514
        %v7531 = vpack.c.b16 %v7517, %v7516
        %v7532 = vpack.c.b16 %v7519, %v7518
        %v7533 = vpack.c.b16 %v7521, %v7520
        %v7534 = vpack.c.b16 %v7523, %v7522
        %v7535 = vpack.c.b16 %v7525, %v7524
        %v7536 = vpack.c.b16 %v7527, %v7526
        %v7537 = vpack.c.b16 %v7529, %v7528
        %7546 = vmatprep.subr.bf16.mxu0 0
        %7547 = vmatpush1.bf16.msra.mxu0 %v7530
        %7548 = vmatprep.subr.bf16.mxu0 0
        %7549 = vmatpush1.bf16.msra.mxu0 %v7531
        %7550 = vmatprep.subr.bf16.mxu0 0
        %7551 = vmatpush1.bf16.msra.mxu0 %v7532
        %7552 = vmatprep.subr.bf16.mxu0 0
        %7553 = vmatpush1.bf16.msra.mxu0 %v7533
        %7554 = vmatprep.subr.bf16.mxu0 0
        %7555 = vmatpush1.bf16.msra.mxu0 %v7534
        %7556 = vmatprep.subr.bf16.mxu0 0
        %7557 = vmatpush1.bf16.msra.mxu0 %v7535
        %7558 = vmatprep.subr.bf16.mxu0 0
        %7559 = vmatpush1.bf16.msra.mxu0 %v7536
        %7560 = vmatprep.subr.bf16.mxu0 0
        %7561 = vmatpush1.bf16.msra.mxu0 %v7537
        %7562 = vmatprep.subr.bf16.mxu0 0
        %7563 = vmatpush1.bf16.msra.mxu0 0
        %7564 = vmatprep.subr.bf16.mxu0 0
        %7565 = vmatpush1.bf16.msra.mxu0 0
        %7566 = vmatprep.subr.bf16.mxu0 0
        %7567 = vmatpush1.bf16.msra.mxu0 0
        %7568 = vmatprep.subr.bf16.mxu0 0
        %7569 = vmatpush1.bf16.msra.mxu0 0
        %7570 = vmatprep.subr.bf16.mxu0 0
        %7571 = vmatpush1.bf16.msra.mxu0 0
        %7572 = vmatprep.subr.bf16.mxu0 0
        %7573 = vmatpush1.bf16.msra.mxu0 0
        %7574 = vmatprep.subr.bf16.mxu0 0
        %7575 = vmatpush1.bf16.msra.mxu0 0
        %7576 = vmatprep.subr.bf16.mxu0 0
        %7577 = vmatpush1.bf16.msra.mxu0 0
        %7578 = vmatprep.mubr.bf16.mxu0 0
        %7579 = vmatmul.mubr.bf16.gmra.mrb[0].mxu0 %v7477
        %v7580 = vpop.f32.mrb[0].mxu0
        %v7581 = vadd.f32 0.0, %v7580
        %v7582 = vpop.f32.mrb[0].mxu0
        %v7583 = vpop.f32.mrb[0].mxu0
        %v7584 = vadd.f32 0.0, %v7583
        %v7585 = vpop.f32.mrb[0].mxu0
        %7586 = vmatprep.mubr.bf16.mxu0 0
        %7587 = vmatmul.mubr.bf16.gmra.mrb[0].mxu0 %v7478
        %v7588 = vpop.f32.mrb[0].mxu0
        %v7589 = vadd.f32 0.0, %v7588
        %v7590 = vpop.f32.mrb[0].mxu0
        %v7591 = vpop.f32.mrb[0].mxu0
        %v7592 = vadd.f32 0.0, %v7591
        %v7593 = vpop.f32.mrb[0].mxu0
        %7594 = vmatprep.mubr.bf16.mxu0 0
        %7595 = vmatmul.mubr.bf16.gmra.mrb[0].mxu0 %v7479
        %v7596 = vpop.f32.mrb[0].mxu0
        %v7597 = vadd.f32 0.0, %v7596
        %v7598 = vpop.f32.mrb[0].mxu0
        %v7599 = vpop.f32.mrb[0].mxu0
        %v7600 = vadd.f32 0.0, %v7599
        %v7601 = vpop.f32.mrb[0].mxu0
        %7602 = vmatprep.mubr.bf16.mxu0 0
        %7603 = vmatmul.mubr.bf16.gmra.mrb[0].mxu0 %v7480
        %v7604 = vpop.f32.mrb[0].mxu0
        %v7605 = vadd.f32 0.0, %v7604
        %v7606 = vpop.f32.mrb[0].mxu0
        %v7607 = vpop.f32.mrb[0].mxu0
        %v7608 = vadd.f32 0.0, %v7607
        %v7609 = vpop.f32.mrb[0].mxu0
        %7610 = vdwg.mxu0
        %v7611 = vadd.f32 %v7454, %v7581
        %v7612 = vadd.f32 %v7455, %v7584
        %v7613 = vadd.f32 %v7456, %v7589
        %v7614 = vadd.f32 %v7457, %v7592
        %v7615 = vadd.f32 %v7458, %v7597
        %v7616 = vadd.f32 %v7459, %v7600
        %v7617 = vadd.f32 %v7460, %v7605
        %v7618 = vadd.f32 %v7461, %v7608
        %s7619 = scalar_lea.vmem %s2388, 1 [#allocation2]
        %v7620 = vld [vmem:[%s7619] ss:$2 sm:$0xff]
        %s7621 = scalar_lea.vmem %s2388, 49 [#allocation2]
        %v7622 = vld [vmem:[%s7621] ss:$2 sm:$0xff]
        %s7623 = scalar_lea.vmem %s2388, 97 [#allocation2]
        %v7624 = vld [vmem:[%s7623] ss:$2 sm:$0xff]
        %s7625 = scalar_lea.vmem %s2388, 145 [#allocation2]
        %v7626 = vld [vmem:[%s7625] ss:$2 sm:$0xff]
        %s7627 = scalar_lea.vmem %s2388, 193 [#allocation2]
        %v7628 = vld [vmem:[%s7627] ss:$2 sm:$0xff]
        %s7629 = scalar_lea.vmem %s2388, 241 [#allocation2]
        %v7630 = vld [vmem:[%s7629] ss:$2 sm:$0xff]
        %s7631 = scalar_lea.vmem %s2388, 289 [#allocation2]
        %v7632 = vld [vmem:[%s7631] ss:$2 sm:$0xff]
        %s7633 = scalar_lea.vmem %s2388, 337 [#allocation2]
        %v7634 = vld [vmem:[%s7633] ss:$2 sm:$0xff]
        %v7635 = vpack.c.bf16 %v7622, %v7620
        %v7636 = vpack.c.bf16 %v7626, %v7624
        %v7637 = vpack.c.bf16 %v7630, %v7628
        %v7638 = vpack.c.bf16 %v7634, %v7632
        %s7639 = scalar_lea.vmem %s13, 256
        %v7640 = vld [vmem:[%s7639] sm:$0xf]
        %v7641 = vld [vmem:[%s7639 + $0x4] sm:$0xf]
        %v7642 = vld [vmem:[%s7639 + $0x8] sm:$0xf]
        %v7643 = vld [vmem:[%s7639 + $0xc] sm:$0xf]
        %v7644 = vld [vmem:[%s7639 + $0x10] sm:$0xf]
        %v7645 = vld [vmem:[%s7639 + $0x14] sm:$0xf]
        %v7646 = vld [vmem:[%s7639 + $0x18] sm:$0xf]
        %v7647 = vld [vmem:[%s7639 + $0x1c] sm:$0xf]
        %v7648 = vld [vmem:[%s7639 + $0x20] sm:$0xf]
        %v7649 = vld [vmem:[%s7639 + $0x24] sm:$0xf]
        %v7650 = vld [vmem:[%s7639 + $0x28] sm:$0xf]
        %v7651 = vld [vmem:[%s7639 + $0x2c] sm:$0xf]
        %v7652 = vld [vmem:[%s7639 + $0x30] sm:$0xf]
        %v7653 = vld [vmem:[%s7639 + $0x34] sm:$0xf]
        %v7654 = vld [vmem:[%s7639 + $0x38] sm:$0xf]
        %v7655 = vld [vmem:[%s7639 + $0x3c] sm:$0xf]
        %v7672 = vunpack.c.l.b16 %v7640
        %v7673 = vunpack.c.l.b16 %v7641
        %v7674 = vunpack.c.l.b16 %v7642
        %v7675 = vunpack.c.l.b16 %v7643
        %v7676 = vunpack.c.l.b16 %v7644
        %v7677 = vunpack.c.l.b16 %v7645
        %v7678 = vunpack.c.l.b16 %v7646
        %v7679 = vunpack.c.l.b16 %v7647
        %v7680 = vunpack.c.l.b16 %v7648
        %v7681 = vunpack.c.l.b16 %v7649
        %v7682 = vunpack.c.l.b16 %v7650
        %v7683 = vunpack.c.l.b16 %v7651
        %v7684 = vunpack.c.l.b16 %v7652
        %v7685 = vunpack.c.l.b16 %v7653
        %v7686 = vunpack.c.l.b16 %v7654
        %v7687 = vunpack.c.l.b16 %v7655
        %v7688 = vpack.c.b16 %v7673, %v7672
        %v7689 = vpack.c.b16 %v7675, %v7674
        %v7690 = vpack.c.b16 %v7677, %v7676
        %v7691 = vpack.c.b16 %v7679, %v7678
        %v7692 = vpack.c.b16 %v7681, %v7680
        %v7693 = vpack.c.b16 %v7683, %v7682
        %v7694 = vpack.c.b16 %v7685, %v7684
        %v7695 = vpack.c.b16 %v7687, %v7686
        %7704 = vmatprep.subr.bf16.mxu0 0
        %7705 = vmatpush1.bf16.msra.mxu0 %v7688
        %7706 = vmatprep.subr.bf16.mxu0 0
        %7707 = vmatpush1.bf16.msra.mxu0 %v7689
        %7708 = vmatprep.subr.bf16.mxu0 0
        %7709 = vmatpush1.bf16.msra.mxu0 %v7690
        %7710 = vmatprep.subr.bf16.mxu0 0
        %7711 = vmatpush1.bf16.msra.mxu0 %v7691
        %7712 = vmatprep.subr.bf16.mxu0 0
        %7713 = vmatpush1.bf16.msra.mxu0 %v7692
        %7714 = vmatprep.subr.bf16.mxu0 0
        %7715 = vmatpush1.bf16.msra.mxu0 %v7693
        %7716 = vmatprep.subr.bf16.mxu0 0
        %7717 = vmatpush1.bf16.msra.mxu0 %v7694
        %7718 = vmatprep.subr.bf16.mxu0 0
        %7719 = vmatpush1.bf16.msra.mxu0 %v7695
        %7720 = vmatprep.subr.bf16.mxu0 0
        %7721 = vmatpush1.bf16.msra.mxu0 0
        %7722 = vmatprep.subr.bf16.mxu0 0
        %7723 = vmatpush1.bf16.msra.mxu0 0
        %7724 = vmatprep.subr.bf16.mxu0 0
        %7725 = vmatpush1.bf16.msra.mxu0 0
        %7726 = vmatprep.subr.bf16.mxu0 0
        %7727 = vmatpush1.bf16.msra.mxu0 0
        %7728 = vmatprep.subr.bf16.mxu0 0
        %7729 = vmatpush1.bf16.msra.mxu0 0
        %7730 = vmatprep.subr.bf16.mxu0 0
        %7731 = vmatpush1.bf16.msra.mxu0 0
        %7732 = vmatprep.subr.bf16.mxu0 0
        %7733 = vmatpush1.bf16.msra.mxu0 0
        %7734 = vmatprep.subr.bf16.mxu0 0
        %7735 = vmatpush1.bf16.msra.mxu0 0
        %7736 = vmatprep.mubr.bf16.mxu0 0
        %7737 = vmatmul.mubr.bf16.gmra.mrb[0].mxu0 %v7635
        %v7738 = vpop.f32.mrb[0].mxu0
        %v7739 = vadd.f32 0.0, %v7738
        %v7740 = vpop.f32.mrb[0].mxu0
        %v7741 = vpop.f32.mrb[0].mxu0
        %v7742 = vadd.f32 0.0, %v7741
        %v7743 = vpop.f32.mrb[0].mxu0
        %7744 = vmatprep.mubr.bf16.mxu0 0
        %7745 = vmatmul.mubr.bf16.gmra.mrb[0].mxu0 %v7636
        %v7746 = vpop.f32.mrb[0].mxu0
        %v7747 = vadd.f32 0.0, %v7746
        %v7748 = vpop.f32.mrb[0].mxu0
        %v7749 = vpop.f32.mrb[0].mxu0
        %v7750 = vadd.f32 0.0, %v7749
        %v7751 = vpop.f32.mrb[0].mxu0
        %7752 = vmatprep.mubr.bf16.mxu0 0
        %7753 = vmatmul.mubr.bf16.gmra.mrb[0].mxu0 %v7637
        %v7754 = vpop.f32.mrb[0].mxu0
        %v7755 = vadd.f32 0.0, %v7754
        %v7756 = vpop.f32.mrb[0].mxu0
        %v7757 = vpop.f32.mrb[0].mxu0
        %v7758 = vadd.f32 0.0, %v7757
        %v7759 = vpop.f32.mrb[0].mxu0
        %7760 = vmatprep.mubr.bf16.mxu0 0
        %7761 = vmatmul.mubr.bf16.gmra.mrb[0].mxu0 %v7638
        %v7762 = vpop.f32.mrb[0].mxu0
        %v7763 = vadd.f32 0.0, %v7762
        %v7764 = vpop.f32.mrb[0].mxu0
        %v7765 = vpop.f32.mrb[0].mxu0
        %v7766 = vadd.f32 0.0, %v7765
        %v7767 = vpop.f32.mrb[0].mxu0
        %7768 = vdwg.mxu0
        %v7769 = vadd.f32 %v7611, %v7739
        %v7770 = vadd.f32 %v7612, %v7742
        %v7771 = vadd.f32 %v7613, %v7747
        %v7772 = vadd.f32 %v7614, %v7750
        %v7773 = vadd.f32 %v7615, %v7755
        %v7774 = vadd.f32 %v7616, %v7758
        %v7775 = vadd.f32 %v7617, %v7763
        %v7776 = vadd.f32 %v7618, %v7766
        %s7777 = scalar_lea.vmem %s2388, 2 [#allocation2]
        %v7778 = vld [vmem:[%s7777] ss:$2 sm:$0xff]
        %s7779 = scalar_lea.vmem %s2388, 50 [#allocation2]
        %v7780 = vld [vmem:[%s7779] ss:$2 sm:$0xff]
        %s7781 = scalar_lea.vmem %s2388, 98 [#allocation2]
        %v7782 = vld [vmem:[%s7781] ss:$2 sm:$0xff]
        %s7783 = scalar_lea.vmem %s2388, 146 [#allocation2]
        %v7784 = vld [vmem:[%s7783] ss:$2 sm:$0xff]
        %s7785 = scalar_lea.vmem %s2388, 194 [#allocation2]
        %v7786 = vld [vmem:[%s7785] ss:$2 sm:$0xff]
        %s7787 = scalar_lea.vmem %s2388, 242 [#allocation2]
        %v7788 = vld [vmem:[%s7787] ss:$2 sm:$0xff]
        %s7789 = scalar_lea.vmem %s2388, 290 [#allocation2]
        %v7790 = vld [vmem:[%s7789] ss:$2 sm:$0xff]
        %s7791 = scalar_lea.vmem %s2388, 338 [#allocation2]
        %v7792 = vld [vmem:[%s7791] ss:$2 sm:$0xff]
        %v7793 = vpack.c.bf16 %v7780, %v7778
        %v7794 = vpack.c.bf16 %v7784, %v7782
        %v7795 = vpack.c.bf16 %v7788, %v7786
        %v7796 = vpack.c.bf16 %v7792, %v7790
        %s7797 = scalar_lea.vmem %s13, 320
        %v7798 = vld [vmem:[%s7797] sm:$0xf]
        %v7799 = vld [vmem:[%s7797 + $0x4] sm:$0xf]
        %v7800 = vld [vmem:[%s7797 + $0x8] sm:$0xf]
        %v7801 = vld [vmem:[%s7797 + $0xc] sm:$0xf]
        %v7802 = vld [vmem:[%s7797 + $0x10] sm:$0xf]
        %v7803 = vld [vmem:[%s7797 + $0x14] sm:$0xf]
        %v7804 = vld [vmem:[%s7797 + $0x18] sm:$0xf]
        %v7805 = vld [vmem:[%s7797 + $0x1c] sm:$0xf]
        %v7806 = vld [vmem:[%s7797 + $0x20] sm:$0xf]
        %v7807 = vld [vmem:[%s7797 + $0x24] sm:$0xf]
        %v7808 = vld [vmem:[%s7797 + $0x28] sm:$0xf]
        %v7809 = vld [vmem:[%s7797 + $0x2c] sm:$0xf]
        %v7810 = vld [vmem:[%s7797 + $0x30] sm:$0xf]
        %v7811 = vld [vmem:[%s7797 + $0x34] sm:$0xf]
        %v7812 = vld [vmem:[%s7797 + $0x38] sm:$0xf]
        %v7813 = vld [vmem:[%s7797 + $0x3c] sm:$0xf]
        %v7830 = vunpack.c.l.b16 %v7798
        %v7831 = vunpack.c.l.b16 %v7799
        %v7832 = vunpack.c.l.b16 %v7800
        %v7833 = vunpack.c.l.b16 %v7801
        %v7834 = vunpack.c.l.b16 %v7802
        %v7835 = vunpack.c.l.b16 %v7803
        %v7836 = vunpack.c.l.b16 %v7804
        %v7837 = vunpack.c.l.b16 %v7805
        %v7838 = vunpack.c.l.b16 %v7806
        %v7839 = vunpack.c.l.b16 %v7807
        %v7840 = vunpack.c.l.b16 %v7808
        %v7841 = vunpack.c.l.b16 %v7809
        %v7842 = vunpack.c.l.b16 %v7810
        %v7843 = vunpack.c.l.b16 %v7811
        %v7844 = vunpack.c.l.b16 %v7812
        %v7845 = vunpack.c.l.b16 %v7813
        %v7846 = vpack.c.b16 %v7831, %v7830
        %v7847 = vpack.c.b16 %v7833, %v7832
        %v7848 = vpack.c.b16 %v7835, %v7834
        %v7849 = vpack.c.b16 %v7837, %v7836
        %v7850 = vpack.c.b16 %v7839, %v7838
        %v7851 = vpack.c.b16 %v7841, %v7840
        %v7852 = vpack.c.b16 %v7843, %v7842
        %v7853 = vpack.c.b16 %v7845, %v7844
        %7862 = vmatprep.subr.bf16.mxu0 0
        %7863 = vmatpush1.bf16.msra.mxu0 %v7846
        %7864 = vmatprep.subr.bf16.mxu0 0
        %7865 = vmatpush1.bf16.msra.mxu0 %v7847
        %7866 = vmatprep.subr.bf16.mxu0 0
        %7867 = vmatpush1.bf16.msra.mxu0 %v7848
        %7868 = vmatprep.subr.bf16.mxu0 0
        %7869 = vmatpush1.bf16.msra.mxu0 %v7849
        %7870 = vmatprep.subr.bf16.mxu0 0
        %7871 = vmatpush1.bf16.msra.mxu0 %v7850
        %7872 = vmatprep.subr.bf16.mxu0 0
        %7873 = vmatpush1.bf16.msra.mxu0 %v7851
        %7874 = vmatprep.subr.bf16.mxu0 0
        %7875 = vmatpush1.bf16.msra.mxu0 %v7852
        %7876 = vmatprep.subr.bf16.mxu0 0
        %7877 = vmatpush1.bf16.msra.mxu0 %v7853
        %7878 = vmatprep.subr.bf16.mxu0 0
        %7879 = vmatpush1.bf16.msra.mxu0 0
        %7880 = vmatprep.subr.bf16.mxu0 0
        %7881 = vmatpush1.bf16.msra.mxu0 0
        %7882 = vmatprep.subr.bf16.mxu0 0
        %7883 = vmatpush1.bf16.msra.mxu0 0
        %7884 = vmatprep.subr.bf16.mxu0 0
        %7885 = vmatpush1.bf16.msra.mxu0 0
        %7886 = vmatprep.subr.bf16.mxu0 0
        %7887 = vmatpush1.bf16.msra.mxu0 0
        %7888 = vmatprep.subr.bf16.mxu0 0
        %7889 = vmatpush1.bf16.msra.mxu0 0
        %7890 = vmatprep.subr.bf16.mxu0 0
        %7891 = vmatpush1.bf16.msra.mxu0 0
        %7892 = vmatprep.subr.bf16.mxu0 0
        %7893 = vmatpush1.bf16.msra.mxu0 0
        %7894 = vmatprep.mubr.bf16.mxu0 0
        %7895 = vmatmul.mubr.bf16.gmra.mrb[0].mxu0 %v7793
        %v7896 = vpop.f32.mrb[0].mxu0
        %v7897 = vadd.f32 0.0, %v7896
        %v7898 = vpop.f32.mrb[0].mxu0
        %v7899 = vpop.f32.mrb[0].mxu0
        %v7900 = vadd.f32 0.0, %v7899
        %v7901 = vpop.f32.mrb[0].mxu0
        %7902 = vmatprep.mubr.bf16.mxu0 0
        %7903 = vmatmul.mubr.bf16.gmra.mrb[0].mxu0 %v7794
        %v7904 = vpop.f32.mrb[0].mxu0
        %v7905 = vadd.f32 0.0, %v7904
        %v7906 = vpop.f32.mrb[0].mxu0
        %v7907 = vpop.f32.mrb[0].mxu0
        %v7908 = vadd.f32 0.0, %v7907
        %v7909 = vpop.f32.mrb[0].mxu0
        %7910 = vmatprep.mubr.bf16.mxu0 0
        %7911 = vmatmul.mubr.bf16.gmra.mrb[0].mxu0 %v7795
        %v7912 = vpop.f32.mrb[0].mxu0
        %v7913 = vadd.f32 0.0, %v7912
        %v7914 = vpop.f32.mrb[0].mxu0
        %v7915 = vpop.f32.mrb[0].mxu0
        %v7916 = vadd.f32 0.0, %v7915
        %v7917 = vpop.f32.mrb[0].mxu0
        %7918 = vmatprep.mubr.bf16.mxu0 0
        %7919 = vmatmul.mubr.bf16.gmra.mrb[0].mxu0 %v7796
        %v7920 = vpop.f32.mrb[0].mxu0
        %v7921 = vadd.f32 0.0, %v7920
        %v7922 = vpop.f32.mrb[0].mxu0
        %v7923 = vpop.f32.mrb[0].mxu0
        %v7924 = vadd.f32 0.0, %v7923
        %v7925 = vpop.f32.mrb[0].mxu0
        %7926 = vdwg.mxu0
        %v7927 = vadd.f32 %v7769, %v7897
        %v7928 = vadd.f32 %v7770, %v7900
        %v7929 = vadd.f32 %v7771, %v7905
        %v7930 = vadd.f32 %v7772, %v7908
        %v7931 = vadd.f32 %v7773, %v7913
        %v7932 = vadd.f32 %v7774, %v7916
        %v7933 = vadd.f32 %v7775, %v7921
        %v7934 = vadd.f32 %v7776, %v7924
        %v7935 = vld [vmem:[%s4192] ss:$2 sm:$0xff]
        %s7936 = scalar_lea.vmem %s4192, 48 [#allocation2]
        %v7937 = vld [vmem:[%s7936] ss:$2 sm:$0xff]
        %s7938 = scalar_lea.vmem %s4192, 96 [#allocation2]
        %v7939 = vld [vmem:[%s7938] ss:$2 sm:$0xff]
        %s7940 = scalar_lea.vmem %s4192, 144 [#allocation2]
        %v7941 = vld [vmem:[%s7940] ss:$2 sm:$0xff]
        %s7942 = scalar_lea.vmem %s4192, 192 [#allocation2]
        %v7943 = vld [vmem:[%s7942] ss:$2 sm:$0xff]
        %s7944 = scalar_lea.vmem %s4192, 240 [#allocation2]
        %v7945 = vld [vmem:[%s7944] ss:$2 sm:$0xff]
        %s7946 = scalar_lea.vmem %s4192, 288 [#allocation2]
        %v7947 = vld [vmem:[%s7946] ss:$2 sm:$0xff]
        %s7948 = scalar_lea.vmem %s4192, 336 [#allocation2]
        %v7949 = vld [vmem:[%s7948] ss:$2 sm:$0xff]
        %v7950 = vpack.c.bf16 %v7937, %v7935
        %v7951 = vpack.c.bf16 %v7941, %v7939
        %v7952 = vpack.c.bf16 %v7945, %v7943
        %v7953 = vpack.c.bf16 %v7949, %v7947
        %s7954 = scalar_lea.vmem %s13, 384
        %v7955 = vld [vmem:[%s7954] sm:$0xf]
        %v7956 = vld [vmem:[%s7954 + $0x4] sm:$0xf]
        %v7957 = vld [vmem:[%s7954 + $0x8] sm:$0xf]
        %v7958 = vld [vmem:[%s7954 + $0xc] sm:$0xf]
        %v7959 = vld [vmem:[%s7954 + $0x10] sm:$0xf]
        %v7960 = vld [vmem:[%s7954 + $0x14] sm:$0xf]
        %v7961 = vld [vmem:[%s7954 + $0x18] sm:$0xf]
        %v7962 = vld [vmem:[%s7954 + $0x1c] sm:$0xf]
        %v7963 = vld [vmem:[%s7954 + $0x20] sm:$0xf]
        %v7964 = vld [vmem:[%s7954 + $0x24] sm:$0xf]
        %v7965 = vld [vmem:[%s7954 + $0x28] sm:$0xf]
        %v7966 = vld [vmem:[%s7954 + $0x2c] sm:$0xf]
        %v7967 = vld [vmem:[%s7954 + $0x30] sm:$0xf]
        %v7968 = vld [vmem:[%s7954 + $0x34] sm:$0xf]
        %v7969 = vld [vmem:[%s7954 + $0x38] sm:$0xf]
        %v7970 = vld [vmem:[%s7954 + $0x3c] sm:$0xf]
        %v7987 = vunpack.c.l.b16 %v7955
        %v7988 = vunpack.c.l.b16 %v7956
        %v7989 = vunpack.c.l.b16 %v7957
        %v7990 = vunpack.c.l.b16 %v7958
        %v7991 = vunpack.c.l.b16 %v7959
        %v7992 = vunpack.c.l.b16 %v7960
        %v7993 = vunpack.c.l.b16 %v7961
        %v7994 = vunpack.c.l.b16 %v7962
        %v7995 = vunpack.c.l.b16 %v7963
        %v7996 = vunpack.c.l.b16 %v7964
        %v7997 = vunpack.c.l.b16 %v7965
        %v7998 = vunpack.c.l.b16 %v7966
        %v7999 = vunpack.c.l.b16 %v7967
        %v8000 = vunpack.c.l.b16 %v7968
        %v8001 = vunpack.c.l.b16 %v7969
        %v8002 = vunpack.c.l.b16 %v7970
        %v8003 = vpack.c.b16 %v7988, %v7987
        %v8004 = vpack.c.b16 %v7990, %v7989
        %v8005 = vpack.c.b16 %v7992, %v7991
        %v8006 = vpack.c.b16 %v7994, %v7993
        %v8007 = vpack.c.b16 %v7996, %v7995
        %v8008 = vpack.c.b16 %v7998, %v7997
        %v8009 = vpack.c.b16 %v8000, %v7999
        %v8010 = vpack.c.b16 %v8002, %v8001
        %8019 = vmatprep.subr.bf16.mxu0 0
        %8020 = vmatpush1.bf16.msra.mxu0 %v8003
        %8021 = vmatprep.subr.bf16.mxu0 0
        %8022 = vmatpush1.bf16.msra.mxu0 %v8004
        %8023 = vmatprep.subr.bf16.mxu0 0
        %8024 = vmatpush1.bf16.msra.mxu0 %v8005
        %8025 = vmatprep.subr.bf16.mxu0 0
        %8026 = vmatpush1.bf16.msra.mxu0 %v8006
        %8027 = vmatprep.subr.bf16.mxu0 0
        %8028 = vmatpush1.bf16.msra.mxu0 %v8007
        %8029 = vmatprep.subr.bf16.mxu0 0
        %8030 = vmatpush1.bf16.msra.mxu0 %v8008
        %8031 = vmatprep.subr.bf16.mxu0 0
        %8032 = vmatpush1.bf16.msra.mxu0 %v8009
        %8033 = vmatprep.subr.bf16.mxu0 0
        %8034 = vmatpush1.bf16.msra.mxu0 %v8010
        %8035 = vmatprep.subr.bf16.mxu0 0
        %8036 = vmatpush1.bf16.msra.mxu0 0
        %8037 = vmatprep.subr.bf16.mxu0 0
        %8038 = vmatpush1.bf16.msra.mxu0 0
        %8039 = vmatprep.subr.bf16.mxu0 0
        %8040 = vmatpush1.bf16.msra.mxu0 0
        %8041 = vmatprep.subr.bf16.mxu0 0
        %8042 = vmatpush1.bf16.msra.mxu0 0
        %8043 = vmatprep.subr.bf16.mxu0 0
        %8044 = vmatpush1.bf16.msra.mxu0 0
        %8045 = vmatprep.subr.bf16.mxu0 0
        %8046 = vmatpush1.bf16.msra.mxu0 0
        %8047 = vmatprep.subr.bf16.mxu0 0
        %8048 = vmatpush1.bf16.msra.mxu0 0
        %8049 = vmatprep.subr.bf16.mxu0 0
        %8050 = vmatpush1.bf16.msra.mxu0 0
        %8051 = vmatprep.mubr.bf16.mxu0 0
        %8052 = vmatmul.mubr.bf16.gmra.mrb[0].mxu0 %v7950
        %v8053 = vpop.f32.mrb[0].mxu0
        %v8054 = vadd.f32 0.0, %v8053
        %v8055 = vpop.f32.mrb[0].mxu0
        %v8056 = vpop.f32.mrb[0].mxu0
        %v8057 = vadd.f32 0.0, %v8056
        %v8058 = vpop.f32.mrb[0].mxu0
        %8059 = vmatprep.mubr.bf16.mxu0 0
        %8060 = vmatmul.mubr.bf16.gmra.mrb[0].mxu0 %v7951
        %v8061 = vpop.f32.mrb[0].mxu0
        %v8062 = vadd.f32 0.0, %v8061
        %v8063 = vpop.f32.mrb[0].mxu0
        %v8064 = vpop.f32.mrb[0].mxu0
        %v8065 = vadd.f32 0.0, %v8064
        %v8066 = vpop.f32.mrb[0].mxu0
        %8067 = vmatprep.mubr.bf16.mxu0 0
        %8068 = vmatmul.mubr.bf16.gmra.mrb[0].mxu0 %v7952
        %v8069 = vpop.f32.mrb[0].mxu0
        %v8070 = vadd.f32 0.0, %v8069
        %v8071 = vpop.f32.mrb[0].mxu0
        %v8072 = vpop.f32.mrb[0].mxu0
        %v8073 = vadd.f32 0.0, %v8072
        %v8074 = vpop.f32.mrb[0].mxu0
        %8075 = vmatprep.mubr.bf16.mxu0 0
        %8076 = vmatmul.mubr.bf16.gmra.mrb[0].mxu0 %v7953
        %v8077 = vpop.f32.mrb[0].mxu0
        %v8078 = vadd.f32 0.0, %v8077
        %v8079 = vpop.f32.mrb[0].mxu0
        %v8080 = vpop.f32.mrb[0].mxu0
        %v8081 = vadd.f32 0.0, %v8080
        %v8082 = vpop.f32.mrb[0].mxu0
        %8083 = vdwg.mxu0
        %v8084 = vadd.f32 %v7927, %v8054
        %v8085 = vadd.f32 %v7928, %v8057
        %v8086 = vadd.f32 %v7929, %v8062
        %v8087 = vadd.f32 %v7930, %v8065
        %v8088 = vadd.f32 %v7931, %v8070
        %v8089 = vadd.f32 %v7932, %v8073
        %v8090 = vadd.f32 %v7933, %v8078
        %v8091 = vadd.f32 %v7934, %v8081
        %s8092 = scalar_lea.vmem %s4192, 1 [#allocation2]
        %v8093 = vld [vmem:[%s8092] ss:$2 sm:$0xff]
        %s8094 = scalar_lea.vmem %s4192, 49 [#allocation2]
        %v8095 = vld [vmem:[%s8094] ss:$2 sm:$0xff]
        %s8096 = scalar_lea.vmem %s4192, 97 [#allocation2]
        %v8097 = vld [vmem:[%s8096] ss:$2 sm:$0xff]
        %s8098 = scalar_lea.vmem %s4192, 145 [#allocation2]
        %v8099 = vld [vmem:[%s8098] ss:$2 sm:$0xff]
        %s8100 = scalar_lea.vmem %s4192, 193 [#allocation2]
        %v8101 = vld [vmem:[%s8100] ss:$2 sm:$0xff]
        %s8102 = scalar_lea.vmem %s4192, 241 [#allocation2]
        %v8103 = vld [vmem:[%s8102] ss:$2 sm:$0xff]
        %s8104 = scalar_lea.vmem %s4192, 289 [#allocation2]
        %v8105 = vld [vmem:[%s8104] ss:$2 sm:$0xff]
        %s8106 = scalar_lea.vmem %s4192, 337 [#allocation2]
        %v8107 = vld [vmem:[%s8106] ss:$2 sm:$0xff]
        %v8108 = vpack.c.bf16 %v8095, %v8093
        %v8109 = vpack.c.bf16 %v8099, %v8097
        %v8110 = vpack.c.bf16 %v8103, %v8101
        %v8111 = vpack.c.bf16 %v8107, %v8105
        %s8112 = scalar_lea.vmem %s13, 448
        %v8113 = vld [vmem:[%s8112] sm:$0xf]
        %v8114 = vld [vmem:[%s8112 + $0x4] sm:$0xf]
        %v8115 = vld [vmem:[%s8112 + $0x8] sm:$0xf]
        %v8116 = vld [vmem:[%s8112 + $0xc] sm:$0xf]
        %v8117 = vld [vmem:[%s8112 + $0x10] sm:$0xf]
        %v8118 = vld [vmem:[%s8112 + $0x14] sm:$0xf]
        %v8119 = vld [vmem:[%s8112 + $0x18] sm:$0xf]
        %v8120 = vld [vmem:[%s8112 + $0x1c] sm:$0xf]
        %v8121 = vld [vmem:[%s8112 + $0x20] sm:$0xf]
        %v8122 = vld [vmem:[%s8112 + $0x24] sm:$0xf]
        %v8123 = vld [vmem:[%s8112 + $0x28] sm:$0xf]
        %v8124 = vld [vmem:[%s8112 + $0x2c] sm:$0xf]
        %v8125 = vld [vmem:[%s8112 + $0x30] sm:$0xf]
        %v8126 = vld [vmem:[%s8112 + $0x34] sm:$0xf]
        %v8127 = vld [vmem:[%s8112 + $0x38] sm:$0xf]
        %v8128 = vld [vmem:[%s8112 + $0x3c] sm:$0xf]
        %v8145 = vunpack.c.l.b16 %v8113
        %v8146 = vunpack.c.l.b16 %v8114
        %v8147 = vunpack.c.l.b16 %v8115
        %v8148 = vunpack.c.l.b16 %v8116
        %v8149 = vunpack.c.l.b16 %v8117
        %v8150 = vunpack.c.l.b16 %v8118
        %v8151 = vunpack.c.l.b16 %v8119
        %v8152 = vunpack.c.l.b16 %v8120
        %v8153 = vunpack.c.l.b16 %v8121
        %v8154 = vunpack.c.l.b16 %v8122
        %v8155 = vunpack.c.l.b16 %v8123
        %v8156 = vunpack.c.l.b16 %v8124
        %v8157 = vunpack.c.l.b16 %v8125
        %v8158 = vunpack.c.l.b16 %v8126
        %v8159 = vunpack.c.l.b16 %v8127
        %v8160 = vunpack.c.l.b16 %v8128
        %v8161 = vpack.c.b16 %v8146, %v8145
        %v8162 = vpack.c.b16 %v8148, %v8147
        %v8163 = vpack.c.b16 %v8150, %v8149
        %v8164 = vpack.c.b16 %v8152, %v8151
        %v8165 = vpack.c.b16 %v8154, %v8153
        %v8166 = vpack.c.b16 %v8156, %v8155
        %v8167 = vpack.c.b16 %v8158, %v8157
        %v8168 = vpack.c.b16 %v8160, %v8159
        %8177 = vmatprep.subr.bf16.mxu0 0
        %8178 = vmatpush1.bf16.msra.mxu0 %v8161
        %8179 = vmatprep.subr.bf16.mxu0 0
        %8180 = vmatpush1.bf16.msra.mxu0 %v8162
        %8181 = vmatprep.subr.bf16.mxu0 0
        %8182 = vmatpush1.bf16.msra.mxu0 %v8163
        %8183 = vmatprep.subr.bf16.mxu0 0
        %8184 = vmatpush1.bf16.msra.mxu0 %v8164
        %8185 = vmatprep.subr.bf16.mxu0 0
        %8186 = vmatpush1.bf16.msra.mxu0 %v8165
        %8187 = vmatprep.subr.bf16.mxu0 0
        %8188 = vmatpush1.bf16.msra.mxu0 %v8166
        %8189 = vmatprep.subr.bf16.mxu0 0
        %8190 = vmatpush1.bf16.msra.mxu0 %v8167
        %8191 = vmatprep.subr.bf16.mxu0 0
        %8192 = vmatpush1.bf16.msra.mxu0 %v8168
        %8193 = vmatprep.subr.bf16.mxu0 0
        %8194 = vmatpush1.bf16.msra.mxu0 0
        %8195 = vmatprep.subr.bf16.mxu0 0
        %8196 = vmatpush1.bf16.msra.mxu0 0
        %8197 = vmatprep.subr.bf16.mxu0 0
        %8198 = vmatpush1.bf16.msra.mxu0 0
        %8199 = vmatprep.subr.bf16.mxu0 0
        %8200 = vmatpush1.bf16.msra.mxu0 0
        %8201 = vmatprep.subr.bf16.mxu0 0
        %8202 = vmatpush1.bf16.msra.mxu0 0
        %8203 = vmatprep.subr.bf16.mxu0 0
        %8204 = vmatpush1.bf16.msra.mxu0 0
        %8205 = vmatprep.subr.bf16.mxu0 0
        %8206 = vmatpush1.bf16.msra.mxu0 0
        %8207 = vmatprep.subr.bf16.mxu0 0
        %8208 = vmatpush1.bf16.msra.mxu0 0
        %8209 = vmatprep.mubr.bf16.mxu0 0
        %8210 = vmatmul.mubr.bf16.gmra.mrb[0].mxu0 %v8108
        %v8211 = vpop.f32.mrb[0].mxu0
        %v8212 = vadd.f32 0.0, %v8211
        %v8213 = vpop.f32.mrb[0].mxu0
        %v8214 = vpop.f32.mrb[0].mxu0
        %v8215 = vadd.f32 0.0, %v8214
        %v8216 = vpop.f32.mrb[0].mxu0
        %8217 = vmatprep.mubr.bf16.mxu0 0
        %8218 = vmatmul.mubr.bf16.gmra.mrb[0].mxu0 %v8109
        %v8219 = vpop.f32.mrb[0].mxu0
        %v8220 = vadd.f32 0.0, %v8219
        %v8221 = vpop.f32.mrb[0].mxu0
        %v8222 = vpop.f32.mrb[0].mxu0
        %v8223 = vadd.f32 0.0, %v8222
        %v8224 = vpop.f32.mrb[0].mxu0
        %8225 = vmatprep.mubr.bf16.mxu0 0
        %8226 = vmatmul.mubr.bf16.gmra.mrb[0].mxu0 %v8110
        %v8227 = vpop.f32.mrb[0].mxu0
        %v8228 = vadd.f32 0.0, %v8227
        %v8229 = vpop.f32.mrb[0].mxu0
        %v8230 = vpop.f32.mrb[0].mxu0
        %v8231 = vadd.f32 0.0, %v8230
        %v8232 = vpop.f32.mrb[0].mxu0
        %8233 = vmatprep.mubr.bf16.mxu0 0
        %8234 = vmatmul.mubr.bf16.gmra.mrb[0].mxu0 %v8111
        %v8235 = vpop.f32.mrb[0].mxu0
        %v8236 = vadd.f32 0.0, %v8235
        %v8237 = vpop.f32.mrb[0].mxu0
        %v8238 = vpop.f32.mrb[0].mxu0
        %v8239 = vadd.f32 0.0, %v8238
        %v8240 = vpop.f32.mrb[0].mxu0
        %8241 = vdwg.mxu0
        %v8242 = vadd.f32 %v8084, %v8212
        %v8243 = vadd.f32 %v8085, %v8215
        %v8244 = vadd.f32 %v8086, %v8220
        %v8245 = vadd.f32 %v8087, %v8223
        %v8246 = vadd.f32 %v8088, %v8228
        %v8247 = vadd.f32 %v8089, %v8231
        %v8248 = vadd.f32 %v8090, %v8236
        %v8249 = vadd.f32 %v8091, %v8239
        %s8250 = scalar_lea.vmem %s4192, 2 [#allocation2]
        %v8251 = vld [vmem:[%s8250] ss:$2 sm:$0xff]
        %s8252 = scalar_lea.vmem %s4192, 50 [#allocation2]
        %v8253 = vld [vmem:[%s8252] ss:$2 sm:$0xff]
        %s8254 = scalar_lea.vmem %s4192, 98 [#allocation2]
        %v8255 = vld [vmem:[%s8254] ss:$2 sm:$0xff]
        %s8256 = scalar_lea.vmem %s4192, 146 [#allocation2]
        %v8257 = vld [vmem:[%s8256] ss:$2 sm:$0xff]
        %s8258 = scalar_lea.vmem %s4192, 194 [#allocation2]
        %v8259 = vld [vmem:[%s8258] ss:$2 sm:$0xff]
        %s8260 = scalar_lea.vmem %s4192, 242 [#allocation2]
        %v8261 = vld [vmem:[%s8260] ss:$2 sm:$0xff]
        %s8262 = scalar_lea.vmem %s4192, 290 [#allocation2]
        %v8263 = vld [vmem:[%s8262] ss:$2 sm:$0xff]
        %s8264 = scalar_lea.vmem %s4192, 338 [#allocation2]
        %v8265 = vld [vmem:[%s8264] ss:$2 sm:$0xff]
        %v8266 = vpack.c.bf16 %v8253, %v8251
        %v8267 = vpack.c.bf16 %v8257, %v8255
        %v8268 = vpack.c.bf16 %v8261, %v8259
        %v8269 = vpack.c.bf16 %v8265, %v8263
        %s8270 = scalar_lea.vmem %s13, 512
        %v8271 = vld [vmem:[%s8270] sm:$0xf]
        %v8272 = vld [vmem:[%s8270 + $0x4] sm:$0xf]
        %v8273 = vld [vmem:[%s8270 + $0x8] sm:$0xf]
        %v8274 = vld [vmem:[%s8270 + $0xc] sm:$0xf]
        %v8275 = vld [vmem:[%s8270 + $0x10] sm:$0xf]
        %v8276 = vld [vmem:[%s8270 + $0x14] sm:$0xf]
        %v8277 = vld [vmem:[%s8270 + $0x18] sm:$0xf]
        %v8278 = vld [vmem:[%s8270 + $0x1c] sm:$0xf]
        %v8279 = vld [vmem:[%s8270 + $0x20] sm:$0xf]
        %v8280 = vld [vmem:[%s8270 + $0x24] sm:$0xf]
        %v8281 = vld [vmem:[%s8270 + $0x28] sm:$0xf]
        %v8282 = vld [vmem:[%s8270 + $0x2c] sm:$0xf]
        %v8283 = vld [vmem:[%s8270 + $0x30] sm:$0xf]
        %v8284 = vld [vmem:[%s8270 + $0x34] sm:$0xf]
        %v8285 = vld [vmem:[%s8270 + $0x38] sm:$0xf]
        %v8286 = vld [vmem:[%s8270 + $0x3c] sm:$0xf]
        %v8303 = vunpack.c.l.b16 %v8271
        %v8304 = vunpack.c.l.b16 %v8272
        %v8305 = vunpack.c.l.b16 %v8273
        %v8306 = vunpack.c.l.b16 %v8274
        %v8307 = vunpack.c.l.b16 %v8275
        %v8308 = vunpack.c.l.b16 %v8276
        %v8309 = vunpack.c.l.b16 %v8277
        %v8310 = vunpack.c.l.b16 %v8278
        %v8311 = vunpack.c.l.b16 %v8279
        %v8312 = vunpack.c.l.b16 %v8280
        %v8313 = vunpack.c.l.b16 %v8281
        %v8314 = vunpack.c.l.b16 %v8282
        %v8315 = vunpack.c.l.b16 %v8283
        %v8316 = vunpack.c.l.b16 %v8284
        %v8317 = vunpack.c.l.b16 %v8285
        %v8318 = vunpack.c.l.b16 %v8286
        %v8319 = vpack.c.b16 %v8304, %v8303
        %v8320 = vpack.c.b16 %v8306, %v8305
        %v8321 = vpack.c.b16 %v8308, %v8307
        %v8322 = vpack.c.b16 %v8310, %v8309
        %v8323 = vpack.c.b16 %v8312, %v8311
        %v8324 = vpack.c.b16 %v8314, %v8313
        %v8325 = vpack.c.b16 %v8316, %v8315
        %v8326 = vpack.c.b16 %v8318, %v8317
        %8335 = vmatprep.subr.bf16.mxu0 0
        %8336 = vmatpush1.bf16.msra.mxu0 %v8319
        %8337 = vmatprep.subr.bf16.mxu0 0
        %8338 = vmatpush1.bf16.msra.mxu0 %v8320
        %8339 = vmatprep.subr.bf16.mxu0 0
        %8340 = vmatpush1.bf16.msra.mxu0 %v8321
        %8341 = vmatprep.subr.bf16.mxu0 0
        %8342 = vmatpush1.bf16.msra.mxu0 %v8322
        %8343 = vmatprep.subr.bf16.mxu0 0
        %8344 = vmatpush1.bf16.msra.mxu0 %v8323
        %8345 = vmatprep.subr.bf16.mxu0 0
        %8346 = vmatpush1.bf16.msra.mxu0 %v8324
        %8347 = vmatprep.subr.bf16.mxu0 0
        %8348 = vmatpush1.bf16.msra.mxu0 %v8325
        %8349 = vmatprep.subr.bf16.mxu0 0
        %8350 = vmatpush1.bf16.msra.mxu0 %v8326
        %8351 = vmatprep.subr.bf16.mxu0 0
        %8352 = vmatpush1.bf16.msra.mxu0 0
        %8353 = vmatprep.subr.bf16.mxu0 0
        %8354 = vmatpush1.bf16.msra.mxu0 0
        %8355 = vmatprep.subr.bf16.mxu0 0
        %8356 = vmatpush1.bf16.msra.mxu0 0
        %8357 = vmatprep.subr.bf16.mxu0 0
        %8358 = vmatpush1.bf16.msra.mxu0 0
        %8359 = vmatprep.subr.bf16.mxu0 0
        %8360 = vmatpush1.bf16.msra.mxu0 0
        %8361 = vmatprep.subr.bf16.mxu0 0
        %8362 = vmatpush1.bf16.msra.mxu0 0
        %8363 = vmatprep.subr.bf16.mxu0 0
        %8364 = vmatpush1.bf16.msra.mxu0 0
        %8365 = vmatprep.subr.bf16.mxu0 0
        %8366 = vmatpush1.bf16.msra.mxu0 0
        %8367 = vmatprep.mubr.bf16.mxu0 0
        %8368 = vmatmul.mubr.bf16.gmra.mrb[0].mxu0 %v8266
        %v8369 = vpop.f32.mrb[0].mxu0
        %v8370 = vadd.f32 0.0, %v8369
        %v8371 = vpop.f32.mrb[0].mxu0
        %v8372 = vpop.f32.mrb[0].mxu0
        %v8373 = vadd.f32 0.0, %v8372
        %v8374 = vpop.f32.mrb[0].mxu0
        %8375 = vmatprep.mubr.bf16.mxu0 0
        %8376 = vmatmul.mubr.bf16.gmra.mrb[0].mxu0 %v8267
        %v8377 = vpop.f32.mrb[0].mxu0
        %v8378 = vadd.f32 0.0, %v8377
        %v8379 = vpop.f32.mrb[0].mxu0
        %v8380 = vpop.f32.mrb[0].mxu0
        %v8381 = vadd.f32 0.0, %v8380
        %v8382 = vpop.f32.mrb[0].mxu0
        %8383 = vmatprep.mubr.bf16.mxu0 0
        %8384 = vmatmul.mubr.bf16.gmra.mrb[0].mxu0 %v8268
        %v8385 = vpop.f32.mrb[0].mxu0
        %v8386 = vadd.f32 0.0, %v8385
        %v8387 = vpop.f32.mrb[0].mxu0
        %v8388 = vpop.f32.mrb[0].mxu0
        %v8389 = vadd.f32 0.0, %v8388
        %v8390 = vpop.f32.mrb[0].mxu0
        %8391 = vmatprep.mubr.bf16.mxu0 0
        %8392 = vmatmul.mubr.bf16.gmra.mrb[0].mxu0 %v8269
        %v8393 = vpop.f32.mrb[0].mxu0
        %v8394 = vadd.f32 0.0, %v8393
        %v8395 = vpop.f32.mrb[0].mxu0
        %v8396 = vpop.f32.mrb[0].mxu0
        %v8397 = vadd.f32 0.0, %v8396
        %v8398 = vpop.f32.mrb[0].mxu0
        %8399 = vdwg.mxu0
        %v8400 = vadd.f32 %v8242, %v8370
        %v8401 = vadd.f32 %v8243, %v8373
        %v8402 = vadd.f32 %v8244, %v8378
        %v8403 = vadd.f32 %v8245, %v8381
        %v8404 = vadd.f32 %v8246, %v8386
        %v8405 = vadd.f32 %v8247, %v8389
        %v8406 = vadd.f32 %v8248, %v8394
        %v8407 = vadd.f32 %v8249, %v8397
        %v8408 = vadd.f32 %v8400, %v8401
        %v8409 = vadd.f32 %v8408, %v8402
        %v8410 = vadd.f32 %v8409, %v8403
        %v8411 = vadd.f32 %v8410, %v8404
        %v8412 = vadd.f32 %v8411, %v8405
        %v8413 = vadd.f32 %v8412, %v8406
        %v8414 = vadd.f32 %v8413, %v8407
        %v8415 = vrot.slane %v8414, 4
        %v8416 = vadd.f32 %v8414, %v8415
        %v8417 = vrot.slane %v8416, 2
        %v8418 = vadd.f32 %v8416, %v8417
        %v8419 = vrot.slane %v8418, 1
        %v8420 = vadd.f32 %v8418, %v8419
        %v8421 = vmul.f32 %v8420, 0.015625
        %v8422 = vmul.f32 %v8400, %v8400
        %v8423 = vmul.f32 %v8401, %v8401
        %v8424 = vmul.f32 %v8402, %v8402
        %v8425 = vmul.f32 %v8403, %v8403
        %v8426 = vmul.f32 %v8404, %v8404
        %v8427 = vmul.f32 %v8405, %v8405
        %v8428 = vmul.f32 %v8406, %v8406
        %v8429 = vmul.f32 %v8407, %v8407
        %v8430 = vadd.f32 %v8422, %v8423
        %v8431 = vadd.f32 %v8430, %v8424
        %v8432 = vadd.f32 %v8431, %v8425
        %v8433 = vadd.f32 %v8432, %v8426
        %v8434 = vadd.f32 %v8433, %v8427
        %v8435 = vadd.f32 %v8434, %v8428
        %v8436 = vadd.f32 %v8435, %v8429
        %v8437 = vrot.slane %v8436, 4
        %v8438 = vadd.f32 %v8436, %v8437
        %v8439 = vrot.slane %v8438, 2
        %v8440 = vadd.f32 %v8438, %v8439
        %v8441 = vrot.slane %v8440, 1
        %v8442 = vadd.f32 %v8440, %v8441
        %v8443 = vmul.f32 %v8442, 0.015625
        %v8444 = vsel %vm1299, %v8421, %v8443
        %8445 = vmatprep.subr.mxu0 0.0
        %8446 = vmatpush1.msra.mxu0 %v1175
        %8447 = vmatprep.subr.mxu0 0.0
        %8448 = vmatpush1.msra.mxu0 %v1176
        %8449 = vmatprep.subr.mxu0 0.0
        %8450 = vmatpush1.msra.mxu0 %v1177
        %8451 = vmatprep.subr.mxu0 0.0
        %8452 = vmatpush1.msra.mxu0 %v1178
        %8453 = vmatprep.subr.mxu0 0.0
        %8454 = vmatpush1.msra.mxu0 %v1179
        %8455 = vmatprep.subr.mxu0 0.0
        %8456 = vmatpush1.msra.mxu0 %v1180
        %8457 = vmatprep.subr.mxu0 0.0
        %8458 = vmatpush1.msra.mxu0 %v1181
        %8459 = vmatprep.subr.mxu0 0.0
        %8460 = vmatpush1.msra.mxu0 %v1182
        %8461 = vmatprep.subr.mxu0 0.0
        %8462 = vmatpush1.msra.mxu0 %v1183
        %8463 = vmatprep.subr.mxu0 0.0
        %8464 = vmatpush1.msra.mxu0 %v1184
        %8465 = vmatprep.subr.mxu0 0.0
        %8466 = vmatpush1.msra.mxu0 %v1185
        %8467 = vmatprep.subr.mxu0 0.0
        %8468 = vmatpush1.msra.mxu0 %v1186
        %8469 = vmatprep.subr.mxu0 0.0
        %8470 = vmatpush1.msra.mxu0 %v1187
        %8471 = vmatprep.subr.mxu0 0.0
        %8472 = vmatpush1.msra.mxu0 %v1188
        %8473 = vmatprep.subr.mxu0 0.0
        %8474 = vmatpush1.msra.mxu0 %v1189
        %8475 = vmatprep.subr.mxu0 0.0
        %8476 = vmatpush1.msra.mxu0 %v1190
        %8477 = vmatprep.subr.mxu0 0.0
        %8478 = vmatpush1.msra.mxu0 0.0
        %8479 = vmatprep.subr.mxu0 0.0
        %8480 = vmatpush1.msra.mxu0 0.0
        %8481 = vmatprep.subr.mxu0 0.0
        %8482 = vmatpush1.msra.mxu0 0.0
        %8483 = vmatprep.subr.mxu0 0.0
        %8484 = vmatpush1.msra.mxu0 0.0
        %8485 = vmatprep.subr.mxu0 0.0
        %8486 = vmatpush1.msra.mxu0 0.0
        %8487 = vmatprep.subr.mxu0 0.0
        %8488 = vmatpush1.msra.mxu0 0.0
        %8489 = vmatprep.subr.mxu0 0.0
        %8490 = vmatpush1.msra.mxu0 0.0
        %8491 = vmatprep.subr.mxu0 0.0
        %8492 = vmatpush1.msra.mxu0 0.0
        %8493 = vmatprep.subr.mxu0 0.0
        %8494 = vmatpush1.msra.mxu0 0.0
        %8495 = vmatprep.subr.mxu0 0.0
        %8496 = vmatpush1.msra.mxu0 0.0
        %8497 = vmatprep.subr.mxu0 0.0
        %8498 = vmatpush1.msra.mxu0 0.0
        %8499 = vmatprep.subr.mxu0 0.0
        %8500 = vmatpush1.msra.mxu0 0.0
        %8501 = vmatprep.subr.mxu0 0.0
        %8502 = vmatpush1.msra.mxu0 0.0
        %8503 = vmatprep.subr.mxu0 0.0
        %8504 = vmatpush1.msra.mxu0 0.0
        %8505 = vmatprep.subr.mxu0 0.0
        %8506 = vmatpush1.msra.mxu0 0.0
        %8507 = vmatprep.subr.mxu0 0.0
        %8508 = vmatpush1.msra.mxu0 0.0
        %8509 = vmatprep.mubr.f32.mxu0 0.0
        %8510 = vmatmul.mubr.f32.gmra.mrb[0].mxu0 %v8444
        %v8511 = vpop.f32.mrb[0].mxu0
        %v8512 = vadd.f32 0.0, %v8511
        %v8513 = vpop.f32.mrb[0].mxu0
        %8514 = vdwg.mxu0
        %v8515 = vmul.f32 %v8512, %v8512
        %v8517 = vrot.slane %v8515, 7
        %v8519 = vsub.f32 %v8512, %v8517
        %v8520 = vmax.f32 %v8519, 0.0
        %v8521 = vadd.f32 %v8520, 1e-05
        %v8522 = vrsqrt.pop %v8521
        %v8523 = vld [vmem:[#allocation9 + $0x4] sm:$0x1]
        %v8524 = vld [vmem:[#allocation9 + $0x5] sm:$0x1]
        %v8525 = vlaneseq
        %v8526 = vshrl.u32 %v8525, 7
        %v8527 = vsub.s32 0, %v8526
        %v8528 = vrot.slane %v8512, %v8527
        %v8529 = vsub.f32 %v8400, %v8528
        %v8530 = vsub.f32 %v8401, %v8528
        %v8531 = vsub.f32 %v8402, %v8528
        %v8532 = vsub.f32 %v8403, %v8528
        %v8533 = vsub.f32 %v8404, %v8528
        %v8534 = vsub.f32 %v8405, %v8528
        %v8535 = vsub.f32 %v8406, %v8528
        %v8536 = vsub.f32 %v8407, %v8528
        %v8537 = vlaneseq
        %v8538 = vshrl.u32 %v8537, 7
        %v8539 = vsub.s32 1, %v8538
        %v8540 = vrot.slane %v8522, %v8539
        %v8541 = vmul.f32 %v8529, %v8540
        %v8542 = vmul.f32 %v8530, %v8540
        %v8543 = vmul.f32 %v8531, %v8540
        %v8544 = vmul.f32 %v8532, %v8540
        %v8545 = vmul.f32 %v8533, %v8540
        %v8546 = vmul.f32 %v8534, %v8540
        %v8547 = vmul.f32 %v8535, %v8540
        %v8548 = vmul.f32 %v8536, %v8540
        %v8549 = vlaneseq
        %v8550 = vshrl.u32 %v8549, 7
        %v8551 = vsub.s32 0, %v8550
        %v8552 = vrot.slane %v8523, %v8551
        %v8553 = vmul.f32 %v8541, %v8552
        %v8554 = vmul.f32 %v8542, %v8552
        %v8555 = vmul.f32 %v8543, %v8552
        %v8556 = vmul.f32 %v8544, %v8552
        %v8557 = vmul.f32 %v8545, %v8552
        %v8558 = vmul.f32 %v8546, %v8552
        %v8559 = vmul.f32 %v8547, %v8552
        %v8560 = vmul.f32 %v8548, %v8552
        %v8561 = vlaneseq
        %v8562 = vshrl.u32 %v8561, 7
        %v8563 = vsub.s32 0, %v8562
        %v8564 = vrot.slane %v8524, %v8563
        %v8565 = vadd.f32 %v8553, %v8564
        %v8566 = vadd.f32 %v8554, %v8564
        %v8567 = vadd.f32 %v8555, %v8564
        %v8568 = vadd.f32 %v8556, %v8564
        %v8569 = vadd.f32 %v8557, %v8564
        %v8570 = vadd.f32 %v8558, %v8564
        %v8571 = vadd.f32 %v8559, %v8564
        %v8572 = vadd.f32 %v8560, %v8564
        %v8573 = vmax.f32 %v8565, 0.0
        %v8574 = vmax.f32 %v8566, 0.0
        %v8575 = vmax.f32 %v8567, 0.0
        %v8576 = vmax.f32 %v8568, 0.0
        %v8577 = vmax.f32 %v8569, 0.0
        %v8578 = vmax.f32 %v8570, 0.0
        %v8579 = vmax.f32 %v8571, 0.0
        %v8580 = vmax.f32 %v8572, 0.0
        %v8581 = vpack.c.bf16 %v8574, %v8573
        %v8582 = vpack.c.bf16 %v8576, %v8575
        %v8583 = vpack.c.bf16 %v8578, %v8577
        %v8584 = vpack.c.bf16 %v8580, %v8579
        %v8585 = vld [vmem:[%s14] sm:$0xff]
        %v8586 = vld [vmem:[%s14 + $0x8] sm:$0xff]
        %v8587 = vld [vmem:[%s14 + $0x10] sm:$0xff]
        %v8588 = vld [vmem:[%s14 + $0x18] sm:$0xff]
        %v8589 = vld [vmem:[%s14 + $0x20] sm:$0xff]
        %v8590 = vld [vmem:[%s14 + $0x28] sm:$0xff]
        %v8591 = vld [vmem:[%s14 + $0x30] sm:$0xff]
        %v8592 = vld [vmem:[%s14 + $0x38] sm:$0xff]
        %v8593 = vld [vmem:[%s14 + $0x40] sm:$0xff]
        %v8594 = vld [vmem:[%s14 + $0x48] sm:$0xff]
        %v8595 = vld [vmem:[%s14 + $0x50] sm:$0xff]
        %v8596 = vld [vmem:[%s14 + $0x58] sm:$0xff]
        %v8597 = vld [vmem:[%s14 + $0x60] sm:$0xff]
        %v8598 = vld [vmem:[%s14 + $0x68] sm:$0xff]
        %v8599 = vld [vmem:[%s14 + $0x70] sm:$0xff]
        %v8600 = vld [vmem:[%s14 + $0x78] sm:$0xff]
        %v8617 = vunpack.c.l.b16 %v8585
        %v8618 = vunpack.c.h.b16 %v8585
        %v8619 = vunpack.c.l.b16 %v8586
        %v8620 = vunpack.c.h.b16 %v8586
        %v8621 = vunpack.c.l.b16 %v8587
        %v8622 = vunpack.c.h.b16 %v8587
        %v8623 = vunpack.c.l.b16 %v8588
        %v8624 = vunpack.c.h.b16 %v8588
        %v8625 = vunpack.c.l.b16 %v8589
        %v8626 = vunpack.c.h.b16 %v8589
        %v8627 = vunpack.c.l.b16 %v8590
        %v8628 = vunpack.c.h.b16 %v8590
        %v8629 = vunpack.c.l.b16 %v8591
        %v8630 = vunpack.c.h.b16 %v8591
        %v8631 = vunpack.c.l.b16 %v8592
        %v8632 = vunpack.c.h.b16 %v8592
        %v8633 = vunpack.c.l.b16 %v8593
        %v8634 = vunpack.c.h.b16 %v8593
        %v8635 = vunpack.c.l.b16 %v8594
        %v8636 = vunpack.c.h.b16 %v8594
        %v8637 = vunpack.c.l.b16 %v8595
        %v8638 = vunpack.c.h.b16 %v8595
        %v8639 = vunpack.c.l.b16 %v8596
        %v8640 = vunpack.c.h.b16 %v8596
        %v8641 = vunpack.c.l.b16 %v8597
        %v8642 = vunpack.c.h.b16 %v8597
        %v8643 = vunpack.c.l.b16 %v8598
        %v8644 = vunpack.c.h.b16 %v8598
        %v8645 = vunpack.c.l.b16 %v8599
        %v8646 = vunpack.c.h.b16 %v8599
        %v8647 = vunpack.c.l.b16 %v8600
        %v8648 = vunpack.c.h.b16 %v8600
        %v8649 = vpack.c.b16 %v8619, %v8617
        %v8650 = vpack.c.b16 %v8620, %v8618
        %v8651 = vpack.c.b16 %v8623, %v8621
        %v8652 = vpack.c.b16 %v8624, %v8622
        %v8653 = vpack.c.b16 %v8627, %v8625
        %v8654 = vpack.c.b16 %v8628, %v8626
        %v8655 = vpack.c.b16 %v8631, %v8629
        %v8656 = vpack.c.b16 %v8632, %v8630
        %v8657 = vpack.c.b16 %v8635, %v8633
        %v8658 = vpack.c.b16 %v8636, %v8634
        %v8659 = vpack.c.b16 %v8639, %v8637
        %v8660 = vpack.c.b16 %v8640, %v8638
        %v8661 = vpack.c.b16 %v8643, %v8641
        %v8662 = vpack.c.b16 %v8644, %v8642
        %v8663 = vpack.c.b16 %v8647, %v8645
        %v8664 = vpack.c.b16 %v8648, %v8646
        %8681 = vmatprep.subr.bf16.mxu0 %v8650
        %8682 = vmatpush1.bf16.msra.mxu0 %v8649
        %8683 = vmatprep.subr.bf16.mxu0 %v8652
        %8684 = vmatpush1.bf16.msra.mxu0 %v8651
        %8685 = vmatprep.subr.bf16.mxu0 %v8654
        %8686 = vmatpush1.bf16.msra.mxu0 %v8653
        %8687 = vmatprep.subr.bf16.mxu0 %v8656
        %8688 = vmatpush1.bf16.msra.mxu0 %v8655
        %8689 = vmatprep.subr.bf16.mxu0 %v8658
        %8690 = vmatpush1.bf16.msra.mxu0 %v8657
        %8691 = vmatprep.subr.bf16.mxu0 %v8660
        %8692 = vmatpush1.bf16.msra.mxu0 %v8659
        %8693 = vmatprep.subr.bf16.mxu0 %v8662
        %8694 = vmatpush1.bf16.msra.mxu0 %v8661
        %8695 = vmatprep.subr.bf16.mxu0 %v8664
        %8696 = vmatpush1.bf16.msra.mxu0 %v8663
        %8697 = vmatprep.subr.bf16.mxu0 0
        %8698 = vmatpush1.bf16.msra.mxu0 0
        %8699 = vmatprep.subr.bf16.mxu0 0
        %8700 = vmatpush1.bf16.msra.mxu0 0
        %8701 = vmatprep.subr.bf16.mxu0 0
        %8702 = vmatpush1.bf16.msra.mxu0 0
        %8703 = vmatprep.subr.bf16.mxu0 0
        %8704 = vmatpush1.bf16.msra.mxu0 0
        %8705 = vmatprep.subr.bf16.mxu0 0
        %8706 = vmatpush1.bf16.msra.mxu0 0
        %8707 = vmatprep.subr.bf16.mxu0 0
        %8708 = vmatpush1.bf16.msra.mxu0 0
        %8709 = vmatprep.subr.bf16.mxu0 0
        %8710 = vmatpush1.bf16.msra.mxu0 0
        %8711 = vmatprep.subr.bf16.mxu0 0
        %8712 = vmatpush1.bf16.msra.mxu0 0
        %8713 = vmatprep.mubr.bf16.mxu0 0
        %8714 = vmatmul.mubr.bf16.gmra.mrb[0].mxu0 %v8581
        %v8715 = vpop.f32.mrb[0].mxu0
        %v8716 = vadd.f32 %v6346, %v8715
        %v8717 = vpop.f32.mrb[0].mxu0
        %v8718 = vadd.f32 %v6348, %v8717
        %v8719 = vpop.f32.mrb[0].mxu0
        %v8720 = vadd.f32 %v6350, %v8719
        %v8721 = vpop.f32.mrb[0].mxu0
        %v8722 = vadd.f32 %v6352, %v8721
        %8723 = vmatprep.mubr.bf16.mxu0 0
        %8724 = vmatmul.mubr.bf16.gmra.mrb[0].mxu0 %v8582
        %v8725 = vpop.f32.mrb[0].mxu0
        %v8726 = vadd.f32 %v6356, %v8725
        %v8727 = vpop.f32.mrb[0].mxu0
        %v8728 = vadd.f32 %v6358, %v8727
        %v8729 = vpop.f32.mrb[0].mxu0
        %v8730 = vadd.f32 %v6360, %v8729
        %v8731 = vpop.f32.mrb[0].mxu0
        %v8732 = vadd.f32 %v6362, %v8731
        %8733 = vmatprep.mubr.bf16.mxu0 0
        %8734 = vmatmul.mubr.bf16.gmra.mrb[0].mxu0 %v8583
        %v8735 = vpop.f32.mrb[0].mxu0
        %v8736 = vadd.f32 %v6366, %v8735
        %v8737 = vpop.f32.mrb[0].mxu0
        %v8738 = vadd.f32 %v6368, %v8737
        %v8739 = vpop.f32.mrb[0].mxu0
        %v8740 = vadd.f32 %v6370, %v8739
        %v8741 = vpop.f32.mrb[0].mxu0
        %v8742 = vadd.f32 %v6372, %v8741
        %8743 = vmatprep.mubr.bf16.mxu0 0
        %8744 = vmatmul.mubr.bf16.gmra.mrb[0].mxu0 %v8584
        %v8745 = vpop.f32.mrb[0].mxu0
        %v8746 = vadd.f32 %v6376, %v8745
        %v8747 = vpop.f32.mrb[0].mxu0
        %v8748 = vadd.f32 %v6378, %v8747
        %v8749 = vpop.f32.mrb[0].mxu0
        %v8750 = vadd.f32 %v6380, %v8749
        %v8751 = vpop.f32.mrb[0].mxu0
        %v8752 = vadd.f32 %v6382, %v8751
        %8753 = vdwg.mxu0
        %v8754 = vld [vmem:[%s4] sm:$0xff]
        %v8755 = vld [vmem:[%s4 + $0x8] sm:$0xff]
        %v8756 = vld [vmem:[%s4 + $0x10] sm:$0xff]
        %v8757 = vld [vmem:[%s4 + $0x18] sm:$0xff]
        %v8758 = vld [vmem:[%s4 + $0x20] sm:$0xff]
        %v8759 = vld [vmem:[%s4 + $0x28] sm:$0xff]
        %v8760 = vld [vmem:[%s4 + $0x30] sm:$0xff]
        %v8761 = vld [vmem:[%s4 + $0x38] sm:$0xff]
        %v8762 = vld [vmem:[%s4 + $0x40] sm:$0xff]
        %v8763 = vld [vmem:[%s4 + $0x48] sm:$0xff]
        %v8764 = vld [vmem:[%s4 + $0x50] sm:$0xff]
        %v8765 = vld [vmem:[%s4 + $0x58] sm:$0xff]
        %v8766 = vld [vmem:[%s4 + $0x60] sm:$0xff]
        %v8767 = vld [vmem:[%s4 + $0x68] sm:$0xff]
        %v8768 = vld [vmem:[%s4 + $0x70] sm:$0xff]
        %v8769 = vld [vmem:[%s4 + $0x78] sm:$0xff]
        %v8770 = vld [vmem:[%s4 + $0x80] sm:$0xff]
        %v8771 = vld [vmem:[%s4 + $0x88] sm:$0xff]
        %v8772 = vld [vmem:[%s4 + $0x90] sm:$0xff]
        %v8773 = vld [vmem:[%s4 + $0x98] sm:$0xff]
        %v8774 = vld [vmem:[%s4 + $0xa0] sm:$0xff]
        %v8775 = vld [vmem:[%s4 + $0xa8] sm:$0xff]
        %v8776 = vld [vmem:[%s4 + $0xb0] sm:$0xff]
        %v8777 = vld [vmem:[%s4 + $0xb8] sm:$0xff]
        %v8778 = vld [vmem:[%s4 + $0xc0] sm:$0xff]
        %v8779 = vld [vmem:[%s4 + $0xc8] sm:$0xff]
        %v8780 = vld [vmem:[%s4 + $0xd0] sm:$0xff]
        %v8781 = vld [vmem:[%s4 + $0xd8] sm:$0xff]
        %v8782 = vld [vmem:[%s4 + $0xe0] sm:$0xff]
        %v8783 = vld [vmem:[%s4 + $0xe8] sm:$0xff]
        %v8784 = vld [vmem:[%s4 + $0xf0] sm:$0xff]
        %v8785 = vld [vmem:[%s4 + $0xf8] sm:$0xff]
        %v8786 = vld [vmem:[%s4 + $0x100] sm:$0xff]
        %v8787 = vld [vmem:[%s4 + $0x108] sm:$0xff]
        %v8788 = vld [vmem:[%s4 + $0x110] sm:$0xff]
        %v8789 = vld [vmem:[%s4 + $0x118] sm:$0xff]
        %v8790 = vld [vmem:[%s4 + $0x120] sm:$0xff]
        %v8791 = vld [vmem:[%s4 + $0x128] sm:$0xff]
        %v8792 = vld [vmem:[%s4 + $0x130] sm:$0xff]
        %v8793 = vld [vmem:[%s4 + $0x138] sm:$0xff]
        %v8794 = vld [vmem:[%s4 + $0x140] sm:$0xff]
        %v8795 = vld [vmem:[%s4 + $0x148] sm:$0xff]
        %v8796 = vld [vmem:[%s4 + $0x150] sm:$0xff]
        %v8797 = vld [vmem:[%s4 + $0x158] sm:$0xff]
        %v8798 = vld [vmem:[%s4 + $0x160] sm:$0xff]
        %v8799 = vld [vmem:[%s4 + $0x168] sm:$0xff]
        %v8800 = vld [vmem:[%s4 + $0x170] sm:$0xff]
        %v8801 = vld [vmem:[%s4 + $0x178] sm:$0xff]
        %v8802 = vld [vmem:[%s4 + $0x180] sm:$0xff]
        %v8803 = vld [vmem:[%s4 + $0x188] sm:$0xff]
        %v8804 = vld [vmem:[%s4 + $0x190] sm:$0xff]
        %v8805 = vld [vmem:[%s4 + $0x198] sm:$0xff]
        %v8806 = vld [vmem:[%s4 + $0x1a0] sm:$0xff]
        %v8807 = vld [vmem:[%s4 + $0x1a8] sm:$0xff]
        %v8808 = vld [vmem:[%s4 + $0x1b0] sm:$0xff]
        %v8809 = vld [vmem:[%s4 + $0x1b8] sm:$0xff]
        %v8810 = vld [vmem:[%s4 + $0x1c0] sm:$0xff]
        %v8811 = vld [vmem:[%s4 + $0x1c8] sm:$0xff]
        %v8812 = vld [vmem:[%s4 + $0x1d0] sm:$0xff]
        %v8813 = vld [vmem:[%s4 + $0x1d8] sm:$0xff]
        %v8814 = vld [vmem:[%s4 + $0x1e0] sm:$0xff]
        %v8815 = vld [vmem:[%s4 + $0x1e8] sm:$0xff]
        %v8816 = vld [vmem:[%s4 + $0x1f0] sm:$0xff]
        %v8817 = vld [vmem:[%s4 + $0x1f8] sm:$0xff]
        %v8818 = vadd.f32 %v8716, %v8720
        %v8819 = vadd.f32 %v8818, %v8726
        %v8820 = vadd.f32 %v8819, %v8730
        %v8821 = vadd.f32 %v8820, %v8736
        %v8822 = vadd.f32 %v8821, %v8740
        %v8823 = vadd.f32 %v8822, %v8746
        %v8824 = vadd.f32 %v8823, %v8750
        %v8825 = vrot.slane %v8824, 4
        %v8826 = vadd.f32 %v8824, %v8825
        %v8827 = vrot.slane %v8826, 2
        %v8828 = vadd.f32 %v8826, %v8827
        %v8829 = vrot.slane %v8828, 1
        %v8830 = vadd.f32 %v8828, %v8829
        %v8831 = vadd.f32 %v8718, %v8722
        %v8832 = vadd.f32 %v8831, %v8728
        %v8833 = vadd.f32 %v8832, %v8732
        %v8834 = vadd.f32 %v8833, %v8738
        %v8835 = vadd.f32 %v8834, %v8742
        %v8836 = vadd.f32 %v8835, %v8748
        %v8837 = vadd.f32 %v8836, %v8752
        %v8838 = vrot.slane %v8837, 4
        %v8839 = vadd.f32 %v8837, %v8838
        %v8840 = vrot.slane %v8839, 2
        %v8841 = vadd.f32 %v8839, %v8840
        %v8842 = vrot.slane %v8841, 1
        %v8843 = vadd.f32 %v8841, %v8842
        %v8844 = vmul.f32 %v8830, 0.015625
        %v8845 = vmul.f32 %v8843, 0.015625
        %v8846 = vmul.f32 %v8716, %v8716
        %v8847 = vmul.f32 %v8718, %v8718
        %v8848 = vmul.f32 %v8720, %v8720
        %v8849 = vmul.f32 %v8722, %v8722
        %v8850 = vmul.f32 %v8726, %v8726
        %v8851 = vmul.f32 %v8728, %v8728
        %v8852 = vmul.f32 %v8730, %v8730
        %v8853 = vmul.f32 %v8732, %v8732
        %v8854 = vmul.f32 %v8736, %v8736
        %v8855 = vmul.f32 %v8738, %v8738
        %v8856 = vmul.f32 %v8740, %v8740
        %v8857 = vmul.f32 %v8742, %v8742
        %v8858 = vmul.f32 %v8746, %v8746
        %v8859 = vmul.f32 %v8748, %v8748
        %v8860 = vmul.f32 %v8750, %v8750
        %v8861 = vmul.f32 %v8752, %v8752
        %v8862 = vadd.f32 %v8846, %v8848
        %v8863 = vadd.f32 %v8862, %v8850
        %v8864 = vadd.f32 %v8863, %v8852
        %v8865 = vadd.f32 %v8864, %v8854
        %v8866 = vadd.f32 %v8865, %v8856
        %v8867 = vadd.f32 %v8866, %v8858
        %v8868 = vadd.f32 %v8867, %v8860
        %v8869 = vrot.slane %v8868, 4
        %v8870 = vadd.f32 %v8868, %v8869
        %v8871 = vrot.slane %v8870, 2
        %v8872 = vadd.f32 %v8870, %v8871
        %v8873 = vrot.slane %v8872, 1
        %v8874 = vadd.f32 %v8872, %v8873
        %v8875 = vadd.f32 %v8847, %v8849
        %v8876 = vadd.f32 %v8875, %v8851
        %v8877 = vadd.f32 %v8876, %v8853
        %v8878 = vadd.f32 %v8877, %v8855
        %v8879 = vadd.f32 %v8878, %v8857
        %v8880 = vadd.f32 %v8879, %v8859
        %v8881 = vadd.f32 %v8880, %v8861
        %v8882 = vrot.slane %v8881, 4
        %v8883 = vadd.f32 %v8881, %v8882
        %v8884 = vrot.slane %v8883, 2
        %v8885 = vadd.f32 %v8883, %v8884
        %v8886 = vrot.slane %v8885, 1
        %v8887 = vadd.f32 %v8885, %v8886
        %v8888 = vmul.f32 %v8874, 0.015625
        %v8889 = vmul.f32 %v8887, 0.015625
        %v8890 = vsel %vm1299, %v8844, %v8888
        %v8891 = vsel %vm1299, %v8845, %v8889
        %8892 = vmatprep.subr.mxu0 %v8755
        %8893 = vmatpush1.msra.mxu0 %v8754
        %8894 = vmatprep.subr.mxu0 %v8757
        %8895 = vmatpush1.msra.mxu0 %v8756
        %8896 = vmatprep.subr.mxu0 %v8759
        %8897 = vmatpush1.msra.mxu0 %v8758
        %8898 = vmatprep.subr.mxu0 %v8761
        %8899 = vmatpush1.msra.mxu0 %v8760
        %8900 = vmatprep.subr.mxu0 %v8763
        %8901 = vmatpush1.msra.mxu0 %v8762
        %8902 = vmatprep.subr.mxu0 %v8765
        %8903 = vmatpush1.msra.mxu0 %v8764
        %8904 = vmatprep.subr.mxu0 %v8767
        %8905 = vmatpush1.msra.mxu0 %v8766
        %8906 = vmatprep.subr.mxu0 %v8769
        %8907 = vmatpush1.msra.mxu0 %v8768
        %8908 = vmatprep.subr.mxu0 %v8771
        %8909 = vmatpush1.msra.mxu0 %v8770
        %8910 = vmatprep.subr.mxu0 %v8773
        %8911 = vmatpush1.msra.mxu0 %v8772
        %8912 = vmatprep.subr.mxu0 %v8775
        %8913 = vmatpush1.msra.mxu0 %v8774
        %8914 = vmatprep.subr.mxu0 %v8777
        %8915 = vmatpush1.msra.mxu0 %v8776
        %8916 = vmatprep.subr.mxu0 %v8779
        %8917 = vmatpush1.msra.mxu0 %v8778
        %8918 = vmatprep.subr.mxu0 %v8781
        %8919 = vmatpush1.msra.mxu0 %v8780
        %8920 = vmatprep.subr.mxu0 %v8783
        %8921 = vmatpush1.msra.mxu0 %v8782
        %8922 = vmatprep.subr.mxu0 %v8785
        %8923 = vmatpush1.msra.mxu0 %v8784
        %8924 = vmatprep.subr.mxu0 %v8787
        %8925 = vmatpush1.msra.mxu0 %v8786
        %8926 = vmatprep.subr.mxu0 %v8789
        %8927 = vmatpush1.msra.mxu0 %v8788
        %8928 = vmatprep.subr.mxu0 %v8791
        %8929 = vmatpush1.msra.mxu0 %v8790
        %8930 = vmatprep.subr.mxu0 %v8793
        %8931 = vmatpush1.msra.mxu0 %v8792
        %8932 = vmatprep.subr.mxu0 %v8795
        %8933 = vmatpush1.msra.mxu0 %v8794
        %8934 = vmatprep.subr.mxu0 %v8797
        %8935 = vmatpush1.msra.mxu0 %v8796
        %8936 = vmatprep.subr.mxu0 %v8799
        %8937 = vmatpush1.msra.mxu0 %v8798
        %8938 = vmatprep.subr.mxu0 %v8801
        %8939 = vmatpush1.msra.mxu0 %v8800
        %8940 = vmatprep.subr.mxu0 %v8803
        %8941 = vmatpush1.msra.mxu0 %v8802
        %8942 = vmatprep.subr.mxu0 %v8805
        %8943 = vmatpush1.msra.mxu0 %v8804
        %8944 = vmatprep.subr.mxu0 %v8807
        %8945 = vmatpush1.msra.mxu0 %v8806
        %8946 = vmatprep.subr.mxu0 %v8809
        %8947 = vmatpush1.msra.mxu0 %v8808
        %8948 = vmatprep.subr.mxu0 %v8811
        %8949 = vmatpush1.msra.mxu0 %v8810
        %8950 = vmatprep.subr.mxu0 %v8813
        %8951 = vmatpush1.msra.mxu0 %v8812
        %8952 = vmatprep.subr.mxu0 %v8815
        %8953 = vmatpush1.msra.mxu0 %v8814
        %8954 = vmatprep.subr.mxu0 %v8817
        %8955 = vmatpush1.msra.mxu0 %v8816
        %8956 = vmatprep.mubr.f32.mxu0 %v8891
        %8957 = vmatmul.mubr.f32.gmra.mrb[0].mxu0 %v8890
        %v8958 = vpop.f32.mrb[0].mxu0
        %v8959 = vadd.f32 0.0, %v8958
        %v8960 = vpop.f32.mrb[0].mxu0
        %v8961 = vadd.f32 0.0, %v8960
        %8962 = vdwg.mxu0
        %v8963 = vmul.f32 %v8959, %v8959
        %v8964 = vmul.f32 %v8961, %v8961
        %v8967 = vrot.slane %v8963, 7
        %v8968 = vrot.slane %v8964, 7
        %v8971 = vsub.f32 %v8959, %v8967
        %v8972 = vsub.f32 %v8961, %v8968
        %v8973 = vmax.f32 %v8971, 0.0
        %v8974 = vmax.f32 %v8972, 0.0
        %v8975 = vadd.f32 %v8973, 1e-05
        %v8976 = vadd.f32 %v8974, 1e-05
        %v8977 = vrsqrt.pop %v8975
        %v8978 = vrsqrt.pop %v8976
        %v8979 = vld [vmem:[#allocation14] ss:$2 sm:$0x3]
        %s8980 = scalar_lea.vmem [#allocation14], 1
        %v8981 = vld [vmem:[%s8980] ss:$2 sm:$0x3]
        %v8982 = vlaneseq
        %v8983 = vshrl.u32 %v8982, 7
        %v8984 = vsub.s32 0, %v8983
        %v8985 = vrot.slane %v8959, %v8984
        %v8986 = vlaneseq
        %v8987 = vshrl.u32 %v8986, 7
        %v8988 = vsub.s32 0, %v8987
        %v8989 = vrot.slane %v8961, %v8988
        %v8990 = vsub.f32 %v8716, %v8985
        %v8991 = vsub.f32 %v8718, %v8989
        %v8992 = vsub.f32 %v8720, %v8985
        %v8993 = vsub.f32 %v8722, %v8989
        %v8994 = vsub.f32 %v8726, %v8985
        %v8995 = vsub.f32 %v8728, %v8989
        %v8996 = vsub.f32 %v8730, %v8985
        %v8997 = vsub.f32 %v8732, %v8989
        %v8998 = vsub.f32 %v8736, %v8985
        %v8999 = vsub.f32 %v8738, %v8989
        %v9000 = vsub.f32 %v8740, %v8985
        %v9001 = vsub.f32 %v8742, %v8989
        %v9002 = vsub.f32 %v8746, %v8985
        %v9003 = vsub.f32 %v8748, %v8989
        %v9004 = vsub.f32 %v8750, %v8985
        %v9005 = vsub.f32 %v8752, %v8989
        %v9006 = vlaneseq
        %v9007 = vshrl.u32 %v9006, 7
        %v9008 = vsub.s32 1, %v9007
        %v9009 = vrot.slane %v8977, %v9008
        %v9010 = vlaneseq
        %v9011 = vshrl.u32 %v9010, 7
        %v9012 = vsub.s32 1, %v9011
        %v9013 = vrot.slane %v8978, %v9012
        %v9014 = vmul.f32 %v8990, %v9009
        %v9015 = vmul.f32 %v8991, %v9013
        %v9016 = vmul.f32 %v8992, %v9009
        %v9017 = vmul.f32 %v8993, %v9013
        %v9018 = vmul.f32 %v8994, %v9009
        %v9019 = vmul.f32 %v8995, %v9013
        %v9020 = vmul.f32 %v8996, %v9009
        %v9021 = vmul.f32 %v8997, %v9013
        %v9022 = vmul.f32 %v8998, %v9009
        %v9023 = vmul.f32 %v8999, %v9013
        %v9024 = vmul.f32 %v9000, %v9009
        %v9025 = vmul.f32 %v9001, %v9013
        %v9026 = vmul.f32 %v9002, %v9009
        %v9027 = vmul.f32 %v9003, %v9013
        %v9028 = vmul.f32 %v9004, %v9009
        %v9029 = vmul.f32 %v9005, %v9013
        %v9031 = vlaneseq
        %v9032 = vshrl.u32 %v9031, 7
        %v9033 = vsub.s32 0, %v9032
        %v9034 = vrot.slane %v8979, %v9033
        %v9035 = vlaneseq
        %v9036 = vshrl.u32 %v9035, 7
        %v9037 = vsub.s32 1, %v9036
        %v9038 = vrot.slane %v8979, %v9037
        %v9041 = vmul.f32 %v9014, %v9034
        %v9042 = vmul.f32 %v9015, %v9038
        %v9043 = vmul.f32 %v9016, %v9034
        %v9044 = vmul.f32 %v9017, %v9038
        %v9045 = vmul.f32 %v9018, %v9034
        %v9046 = vmul.f32 %v9019, %v9038
        %v9047 = vmul.f32 %v9020, %v9034
        %v9048 = vmul.f32 %v9021, %v9038
        %v9049 = vmul.f32 %v9022, %v9034
        %v9050 = vmul.f32 %v9023, %v9038
        %v9051 = vmul.f32 %v9024, %v9034
        %v9052 = vmul.f32 %v9025, %v9038
        %v9053 = vmul.f32 %v9026, %v9034
        %v9054 = vmul.f32 %v9027, %v9038
        %v9055 = vmul.f32 %v9028, %v9034
        %v9056 = vmul.f32 %v9029, %v9038
        %v9058 = vlaneseq
        %v9059 = vshrl.u32 %v9058, 7
        %v9060 = vsub.s32 0, %v9059
        %v9061 = vrot.slane %v8981, %v9060
        %v9062 = vlaneseq
        %v9063 = vshrl.u32 %v9062, 7
        %v9064 = vsub.s32 1, %v9063
        %v9065 = vrot.slane %v8981, %v9064
        %v9068 = vadd.f32 %v9041, %v9061
        %v9069 = vadd.f32 %v9042, %v9065
        %v9070 = vadd.f32 %v9043, %v9061
        %v9071 = vadd.f32 %v9044, %v9065
        %v9072 = vadd.f32 %v9045, %v9061
        %v9073 = vadd.f32 %v9046, %v9065
        %v9074 = vadd.f32 %v9047, %v9061
        %v9075 = vadd.f32 %v9048, %v9065
        %v9076 = vadd.f32 %v9049, %v9061
        %v9077 = vadd.f32 %v9050, %v9065
        %v9078 = vadd.f32 %v9051, %v9061
        %v9079 = vadd.f32 %v9052, %v9065
        %v9080 = vadd.f32 %v9053, %v9061
        %v9081 = vadd.f32 %v9054, %v9065
        %v9082 = vadd.f32 %v9055, %v9061
        %v9083 = vadd.f32 %v9056, %v9065
        %v9084 = vmax.f32 %v9068, 0.0
        %v9085 = vmax.f32 %v9069, 0.0
        %v9086 = vmax.f32 %v9070, 0.0
        %v9087 = vmax.f32 %v9071, 0.0
        %v9088 = vmax.f32 %v9072, 0.0
        %v9089 = vmax.f32 %v9073, 0.0
        %v9090 = vmax.f32 %v9074, 0.0
        %v9091 = vmax.f32 %v9075, 0.0
        %v9092 = vmax.f32 %v9076, 0.0
        %v9093 = vmax.f32 %v9077, 0.0
        %v9094 = vmax.f32 %v9078, 0.0
        %v9095 = vmax.f32 %v9079, 0.0
        %v9096 = vmax.f32 %v9080, 0.0
        %v9097 = vmax.f32 %v9081, 0.0
        %v9098 = vmax.f32 %v9082, 0.0
        %v9099 = vmax.f32 %v9083, 0.0
        %v9100 = vadd.f32 %v9084, %v9086
        %v9101 = vadd.f32 %v9100, %v9088
        %v9102 = vadd.f32 %v9101, %v9090
        %v9103 = vadd.f32 %v9102, %v9092
        %v9104 = vadd.f32 %v9103, %v9094
        %v9105 = vadd.f32 %v9104, %v9096
        %v9106 = vadd.f32 %v9105, %v9098
        %v9107 = vrot.slane %v9106, 4
        %v9108 = vadd.f32 %v9106, %v9107
        %v9109 = vrot.slane %v9108, 2
        %v9110 = vadd.f32 %v9108, %v9109
        %v9111 = vrot.slane %v9110, 1
        %v9112 = vadd.f32 %v9110, %v9111
        %v9113 = vadd.f32 %v9085, %v9087
        %v9114 = vadd.f32 %v9113, %v9089
        %v9115 = vadd.f32 %v9114, %v9091
        %v9116 = vadd.f32 %v9115, %v9093
        %v9117 = vadd.f32 %v9116, %v9095
        %v9118 = vadd.f32 %v9117, %v9097
        %v9119 = vadd.f32 %v9118, %v9099
        %v9120 = vrot.slane %v9119, 4
        %v9121 = vadd.f32 %v9119, %v9120
        %v9122 = vrot.slane %v9121, 2
        %v9123 = vadd.f32 %v9121, %v9122
        %v9124 = vrot.slane %v9123, 1
        %v9125 = vadd.f32 %v9123, %v9124
        %v9126 = vrcp.pop 64.0
        %v9127 = vmul.f32 %v9112, %v9126
        %v9128 = vmul.f32 %v9125, %v9126
        %v9129 = vpack.c.bf16 %v9127, %v9127
        %v9130 = vpack.c.bf16 %v9128, %v9128
        %v9131 = vld [vmem:[%s17] sm:$0xf]
        %v9132 = vld [vmem:[%s17 + $0x4] sm:$0xf]
        %v9133 = vld [vmem:[%s17 + $0x8] sm:$0xf]
        %v9134 = vld [vmem:[%s17 + $0xc] sm:$0xf]
        %v9135 = vld [vmem:[%s17 + $0x10] sm:$0xf]
        %v9136 = vld [vmem:[%s17 + $0x14] sm:$0xf]
        %v9137 = vld [vmem:[%s17 + $0x18] sm:$0xf]
        %v9138 = vld [vmem:[%s17 + $0x1c] sm:$0xf]
        %v9139 = vld [vmem:[%s17 + $0x20] sm:$0xf]
        %v9140 = vld [vmem:[%s17 + $0x24] sm:$0xf]
        %v9141 = vld [vmem:[%s17 + $0x28] sm:$0xf]
        %v9142 = vld [vmem:[%s17 + $0x2c] sm:$0xf]
        %v9143 = vld [vmem:[%s17 + $0x30] sm:$0xf]
        %v9144 = vld [vmem:[%s17 + $0x34] sm:$0xf]
        %v9145 = vld [vmem:[%s17 + $0x38] sm:$0xf]
        %v9146 = vld [vmem:[%s17 + $0x3c] sm:$0xf]
        %v9147 = vld [vmem:[%s17 + $0x40] sm:$0xf]
        %v9148 = vld [vmem:[%s17 + $0x44] sm:$0xf]
        %v9149 = vld [vmem:[%s17 + $0x48] sm:$0xf]
        %v9150 = vld [vmem:[%s17 + $0x4c] sm:$0xf]
        %v9151 = vld [vmem:[%s17 + $0x50] sm:$0xf]
        %v9152 = vld [vmem:[%s17 + $0x54] sm:$0xf]
        %v9153 = vld [vmem:[%s17 + $0x58] sm:$0xf]
        %v9154 = vld [vmem:[%s17 + $0x5c] sm:$0xf]
        %v9155 = vld [vmem:[%s17 + $0x60] sm:$0xf]
        %v9156 = vld [vmem:[%s17 + $0x64] sm:$0xf]
        %v9157 = vld [vmem:[%s17 + $0x68] sm:$0xf]
        %v9158 = vld [vmem:[%s17 + $0x6c] sm:$0xf]
        %v9159 = vld [vmem:[%s17 + $0x70] sm:$0xf]
        %v9160 = vld [vmem:[%s17 + $0x74] sm:$0xf]
        %v9161 = vld [vmem:[%s17 + $0x78] sm:$0xf]
        %v9162 = vld [vmem:[%s17 + $0x7c] sm:$0xf]
        %v9163 = vld [vmem:[%s18] sm:$0x1]
        %v9196 = vunpack.c.l.b16 %v9131
        %v9197 = vunpack.c.l.b16 %v9132
        %v9198 = vunpack.c.l.b16 %v9133
        %v9199 = vunpack.c.l.b16 %v9134
        %v9200 = vunpack.c.l.b16 %v9135
        %v9201 = vunpack.c.l.b16 %v9136
        %v9202 = vunpack.c.l.b16 %v9137
        %v9203 = vunpack.c.l.b16 %v9138
        %v9204 = vunpack.c.l.b16 %v9139
        %v9205 = vunpack.c.l.b16 %v9140
        %v9206 = vunpack.c.l.b16 %v9141
        %v9207 = vunpack.c.l.b16 %v9142
        %v9208 = vunpack.c.l.b16 %v9143
        %v9209 = vunpack.c.l.b16 %v9144
        %v9210 = vunpack.c.l.b16 %v9145
        %v9211 = vunpack.c.l.b16 %v9146
        %v9212 = vunpack.c.l.b16 %v9147
        %v9213 = vunpack.c.l.b16 %v9148
        %v9214 = vunpack.c.l.b16 %v9149
        %v9215 = vunpack.c.l.b16 %v9150
        %v9216 = vunpack.c.l.b16 %v9151
        %v9217 = vunpack.c.l.b16 %v9152
        %v9218 = vunpack.c.l.b16 %v9153
        %v9219 = vunpack.c.l.b16 %v9154
        %v9220 = vunpack.c.l.b16 %v9155
        %v9221 = vunpack.c.l.b16 %v9156
        %v9222 = vunpack.c.l.b16 %v9157
        %v9223 = vunpack.c.l.b16 %v9158
        %v9224 = vunpack.c.l.b16 %v9159
        %v9225 = vunpack.c.l.b16 %v9160
        %v9226 = vunpack.c.l.b16 %v9161
        %v9227 = vunpack.c.l.b16 %v9162
        %v9228 = vpack.c.b16 %v9197, %v9196
        %v9229 = vpack.c.b16 %v9199, %v9198
        %v9230 = vpack.c.b16 %v9201, %v9200
        %v9231 = vpack.c.b16 %v9203, %v9202
        %v9232 = vpack.c.b16 %v9205, %v9204
        %v9233 = vpack.c.b16 %v9207, %v9206
        %v9234 = vpack.c.b16 %v9209, %v9208
        %v9235 = vpack.c.b16 %v9211, %v9210
        %v9236 = vpack.c.b16 %v9213, %v9212
        %v9237 = vpack.c.b16 %v9215, %v9214
        %v9238 = vpack.c.b16 %v9217, %v9216
        %v9239 = vpack.c.b16 %v9219, %v9218
        %v9240 = vpack.c.b16 %v9221, %v9220
        %v9241 = vpack.c.b16 %v9223, %v9222
        %v9242 = vpack.c.b16 %v9225, %v9224
        %v9243 = vpack.c.b16 %v9227, %v9226
        %9260 = vmatprep.subr.bf16.mxu0 0
        %9261 = vmatpush1.bf16.msra.mxu0 %v9228
        %9262 = vmatprep.subr.bf16.mxu0 0
        %9263 = vmatpush1.bf16.msra.mxu0 %v9229
        %9264 = vmatprep.subr.bf16.mxu0 0
        %9265 = vmatpush1.bf16.msra.mxu0 %v9230
        %9266 = vmatprep.subr.bf16.mxu0 0
        %9267 = vmatpush1.bf16.msra.mxu0 %v9231
        %9268 = vmatprep.subr.bf16.mxu0 0
        %9269 = vmatpush1.bf16.msra.mxu0 %v9232
        %9270 = vmatprep.subr.bf16.mxu0 0
        %9271 = vmatpush1.bf16.msra.mxu0 %v9233
        %9272 = vmatprep.subr.bf16.mxu0 0
        %9273 = vmatpush1.bf16.msra.mxu0 %v9234
        %9274 = vmatprep.subr.bf16.mxu0 0
        %9275 = vmatpush1.bf16.msra.mxu0 %v9235
        %9276 = vmatprep.subr.bf16.mxu0 0
        %9277 = vmatpush1.bf16.msra.mxu0 %v9236
        %9278 = vmatprep.subr.bf16.mxu0 0
        %9279 = vmatpush1.bf16.msra.mxu0 %v9237
        %9280 = vmatprep.subr.bf16.mxu0 0
        %9281 = vmatpush1.bf16.msra.mxu0 %v9238
        %9282 = vmatprep.subr.bf16.mxu0 0
        %9283 = vmatpush1.bf16.msra.mxu0 %v9239
        %9284 = vmatprep.subr.bf16.mxu0 0
        %9285 = vmatpush1.bf16.msra.mxu0 %v9240
        %9286 = vmatprep.subr.bf16.mxu0 0
        %9287 = vmatpush1.bf16.msra.mxu0 %v9241
        %9288 = vmatprep.subr.bf16.mxu0 0
        %9289 = vmatpush1.bf16.msra.mxu0 %v9242
        %9290 = vmatprep.subr.bf16.mxu0 0
        %9291 = vmatpush1.bf16.msra.mxu0 %v9243
        %9292 = vmatprep.mubr.bf16.mxu0 %v9130
        %9293 = vmatmul.mubr.bf16.gmra.mrb[0].mxu0 %v9129
        %v9294 = vpop.f32.mrb[0].mxu0
        %v9295 = vadd.f32 %v9163, %v9294
        %v9296 = vpop.f32.mrb[0].mxu0
        %v9297 = vpop.f32.mrb[0].mxu0
        %v9298 = vpop.f32.mrb[0].mxu0
        %9299 = vdwg.mxu0
        %v9300 = vmul.f32 %v9295, 0.5
        %v9301 = vmul.f32 %v9295, 0.044715
        %v9302 = vmul.f32 %v9301, %v9295
        %v9303 = vmul.f32 %v9302, %v9295
        %v9304 = vadd.f32 %v9295, %v9303
        %v9305 = vmul.f32 %v9304, 0.7978846
        %v9306 = vtanh.pop %v9305
        %v9307 = vadd.f32 %v9306, 1.0
        %v9308 = vmul.f32 %v9300, %v9307
        %v9309 = vpack.c.bf16 %v9308, %v9308
        %v9310 = vld [vmem:[#allocation15] sm:$0xf]
        %v9311 = vld [vmem:[#allocation15 + $0x4] sm:$0xf]
        %v9312 = vld [vmem:[#allocation15 + $0x8] sm:$0xf]
        %v9313 = vld [vmem:[#allocation15 + $0xc] sm:$0xf]
        %v9314 = vld [vmem:[#allocation15 + $0x10] sm:$0xf]
        %v9315 = vld [vmem:[#allocation15 + $0x14] sm:$0xf]
        %v9316 = vld [vmem:[#allocation15 + $0x18] sm:$0xf]
        %v9317 = vld [vmem:[#allocation15 + $0x1c] sm:$0xf]
        %v9318 = vld [vmem:[#allocation15 + $0x20] sm:$0xf]
        %v9319 = vld [vmem:[#allocation15 + $0x24] sm:$0xf]
        %v9320 = vld [vmem:[#allocation15 + $0x28] sm:$0xf]
        %v9321 = vld [vmem:[#allocation15 + $0x2c] sm:$0xf]
        %v9322 = vld [vmem:[#allocation15 + $0x30] sm:$0xf]
        %v9323 = vld [vmem:[#allocation15 + $0x34] sm:$0xf]
        %v9324 = vld [vmem:[#allocation15 + $0x38] sm:$0xf]
        %v9325 = vld [vmem:[#allocation15 + $0x3c] sm:$0xf]
        %v9326 = vld [vmem:[#allocation17] sm:$0x1]
        %v9343 = vunpack.c.l.b16 %v9310
        %v9344 = vunpack.c.l.b16 %v9311
        %v9345 = vunpack.c.l.b16 %v9312
        %v9346 = vunpack.c.l.b16 %v9313
        %v9347 = vunpack.c.l.b16 %v9314
        %v9348 = vunpack.c.l.b16 %v9315
        %v9349 = vunpack.c.l.b16 %v9316
        %v9350 = vunpack.c.l.b16 %v9317
        %v9351 = vunpack.c.l.b16 %v9318
        %v9352 = vunpack.c.l.b16 %v9319
        %v9353 = vunpack.c.l.b16 %v9320
        %v9354 = vunpack.c.l.b16 %v9321
        %v9355 = vunpack.c.l.b16 %v9322
        %v9356 = vunpack.c.l.b16 %v9323
        %v9357 = vunpack.c.l.b16 %v9324
        %v9358 = vunpack.c.l.b16 %v9325
        %v9359 = vpack.c.b16 %v9344, %v9343
        %v9360 = vpack.c.b16 %v9346, %v9345
        %v9361 = vpack.c.b16 %v9348, %v9347
        %v9362 = vpack.c.b16 %v9350, %v9349
        %v9363 = vpack.c.b16 %v9352, %v9351
        %v9364 = vpack.c.b16 %v9354, %v9353
        %v9365 = vpack.c.b16 %v9356, %v9355
        %v9366 = vpack.c.b16 %v9358, %v9357
        %9375 = vmatprep.subr.bf16.mxu0 0
        %9376 = vmatpush1.bf16.msra.mxu0 %v9359
        %9377 = vmatprep.subr.bf16.mxu0 0
        %9378 = vmatpush1.bf16.msra.mxu0 %v9360
        %9379 = vmatprep.subr.bf16.mxu0 0
        %9380 = vmatpush1.bf16.msra.mxu0 %v9361
        %9381 = vmatprep.subr.bf16.mxu0 0
        %9382 = vmatpush1.bf16.msra.mxu0 %v9362
        %9383 = vmatprep.subr.bf16.mxu0 0
        %9384 = vmatpush1.bf16.msra.mxu0 %v9363
        %9385 = vmatprep.subr.bf16.mxu0 0
        %9386 = vmatpush1.bf16.msra.mxu0 %v9364
        %9387 = vmatprep.subr.bf16.mxu0 0
        %9388 = vmatpush1.bf16.msra.mxu0 %v9365
        %9389 = vmatprep.subr.bf16.mxu0 0
        %9390 = vmatpush1.bf16.msra.mxu0 %v9366
        %9391 = vmatprep.subr.bf16.mxu0 0
        %9392 = vmatpush1.bf16.msra.mxu0 0
        %9393 = vmatprep.subr.bf16.mxu0 0
        %9394 = vmatpush1.bf16.msra.mxu0 0
        %9395 = vmatprep.subr.bf16.mxu0 0
        %9396 = vmatpush1.bf16.msra.mxu0 0
        %9397 = vmatprep.subr.bf16.mxu0 0
        %9398 = vmatpush1.bf16.msra.mxu0 0
        %9399 = vmatprep.subr.bf16.mxu0 0
        %9400 = vmatpush1.bf16.msra.mxu0 0
        %9401 = vmatprep.subr.bf16.mxu0 0
        %9402 = vmatpush1.bf16.msra.mxu0 0
        %9403 = vmatprep.subr.bf16.mxu0 0
        %9404 = vmatpush1.bf16.msra.mxu0 0
        %9405 = vmatprep.subr.bf16.mxu0 0
        %9406 = vmatpush1.bf16.msra.mxu0 0
        %9407 = vmatprep.mubr.bf16.mxu0 0
        %9408 = vmatmul.mubr.bf16.gmra.mrb[0].mxu0 %v9309
        %v9409 = vpop.f32.mrb[0].mxu0
        %v9410 = vadd.f32 %v9326, %v9409
        %v9411 = vpop.f32.mrb[0].mxu0
        %v9412 = vpop.f32.mrb[0].mxu0
        %v9413 = vpop.f32.mrb[0].mxu0
        %9414 = vdwg.mxu0
        %v9415 = vld [vmem:[%s792] sm:$0x1]
        %vm9416 = vcmp.ne.s32.totalorder %v9415, 0
        %v9417 = vsel %vm9416, -10000.0, %v9410
        %9418 = vst [vmem:[%s784] sm:$0x1] %v9417
        %s9419 = sand.u32 %s499, 1
        %s9420 = scalar_lea.sflag [#allocation5], %s9419
        %s9421 = sand.u32 %s499, 1
        %s9422 = scalar_lea.vmem [#allocation18], %s9421
        // Predicated region
        $region141: #{disease_classifier_forward.1} parent=103 // pred_check
          %p9423 = pneg %p509
        $region142: #{disease_classifier_forward.1} parent=103 // pred_check_branch
          %9425 = sbr.rel (%p9423) target = $region144
        $region143: #{disease_classifier_forward.1} parent=103 // pred_region
          %s9427 = ssub.s32 16, 16
          %9428 = vsyncadd %s9420, %s9427
          %s9429 = smul.addr %s40, 16
          %s9430 = scalar_lea.hbm %s21, %s9429
          %s9432 = sshll.u32 %s9422, 4
          %s9433 = int_to_ptr.vmem [resolvable:$true] %s9432
          %9435 = dma.vmem_to_hbm [thread:$0]  %s9433, 16, %s9430, %s9420
        $region144: #{disease_classifier_forward.1} parent=103 // pred_fallthru
          _
      $region104: #{disease_classifier_forward.1} parent=5 // pred_fallthru
        _
      %p9436 = scmp.le.s32.totalorder 2, %s35
      // Predicated region
      $region145: #{disease_classifier_forward.1} parent=5 // pred_check
        %p9437 = pneg %p9436
      $region146: #{disease_classifier_forward.1} parent=5 // pred_check_branch
        %9439 = sbr.rel (%p9437) target = $region148
      $region147: #{disease_classifier_forward.1} parent=5 // pred_region
        %s9440 = ssub.s32 %s35, 2
        // Predicated region
        $region149: #{disease_classifier_forward.1} parent=147 // pred_check
          %p9441 = pneg %p515
        $region150: #{disease_classifier_forward.1} parent=147 // pred_check_branch
          %9443 = sbr.rel (%p9441) target = $region152
        $region151: #{disease_classifier_forward.1} parent=147 // pred_region
          %s9444 = sand.u32 %s500, 1
          %s9445 = scalar_lea.sflag [#allocation5], %s9444
          %s9446 = sand.u32 %s500, 1
          %s9447 = scalar_lea.vmem [#allocation18], %s9446
          %9448 = dma.done %s9445, 16
        $region152: #{disease_classifier_forward.1} parent=147 // pred_fallthru
          _
      $region148: #{disease_classifier_forward.1} parent=5 // pred_fallthru
        _
    $region6: #{disease_classifier_forward.1} parent=1 // loop_footer
      %s39 = sadd.s32 1, %s35
    $region7: #{disease_classifier_forward.1} parent=1 // loop_footer_branch
      %34 = sbr.rel target = $region3
    $region8: #{disease_classifier_forward.1} parent=1 // loop_exit
      _
    %9449 = vsyncpa [#allocation4], 1
    %s9450 = scalar_lea.sflag [#allocation4], 1
    %9451 = vsyncpa %s9450, 1
    %9452 = vsyncpa [#allocation7], 1
    %9453 = vsyncpa [#allocation10], 1
    %9454 = vsyncpa [#allocation13], 1
    %9455 = vsyncpa [#allocation16], 1
    %9456 = vsyncpa [#allocation5], 1
    %s9457 = scalar_lea.sflag [#allocation5], 1
    %9458 = vsyncpa %s9457, 1

</llo_original>
